<compile_context>
chip_gen: v7x
topology: tpu7x:2x2x1
jax: 0.10.0
libtpu: 0.0.40
codegen_flags: <defaults>
</compile_context>

<pallas_src>
import math
import functools

import numpy as np
import jax
import jax.numpy as jnp
from jax import lax
from jax.experimental import pallas as pl
from jax.experimental.pallas import tpu as pltpu


def _ffm_kernel(idx_ref, w_ref, st_ref, en_ref, fld_ref, tab_ref, out_ref,
                *, num_fields, field_dim, num_features, num_entries,
                block_b, global_bias):
    M, fd, F, N, TB = num_fields, field_dim, num_features, num_entries, block_b
    D = M * fd

    idx = idx_ref[...]                        # (TB, N) int32
    w = w_ref[...]                            # (TB, N) f32
    st = st_ref[...]                          # (TB, M) int32   bag starts
    en = en_ref[...]                          # (TB, M) int32   bag ends (exclusive)
    fld = fld_ref[...]                        # (TB, M) int32   field of each bag

    f_iota = lax.broadcasted_iota(jnp.int32, (TB, F), 1)

    # ---- per-bag feature-weight matrix C, stacked bag-major: cmat[m*TB + b, f] ----
    # weights are folded into the (scaled) one-hot; the bag membership is a pure
    # 0/1 mask.  Everything stays 2-D and vectorized across the TB batch rows.
    c_rows = [jnp.zeros((TB, F), jnp.float32) for _ in range(M)]
    for n in range(N):                                        # static unroll (N small)
        ohw_n = jnp.where(f_iota == idx[:, n:n + 1], w[:, n:n + 1], 0.0)   # (TB, F)
        for m in range(M):                                    # static unroll (M small)
            memb = ((n >= st[:, m:m + 1]) & (n < en[:, m:m + 1])).astype(jnp.float32)
            c_rows[m] = c_rows[m] + memb * ohw_n
    cmat = jnp.concatenate(c_rows, axis=0)                    # (M*TB, F)

    # ---- single fused MXU contraction: bag embeddings + bag biases together ----
    v = jnp.dot(cmat, tab_ref[...], preferred_element_type=jnp.float32)    # (M*TB, D+1)

    # ---- linear term: sum over bags of the bag bias (original bag order) ----
    linear = jnp.zeros((TB, 1), jnp.float32)
    for m in range(M):
        linear = linear + v[m * TB:(m + 1) * TB, D:D + 1]

    # ---- pairwise FFM term via static field one-hot selects ----
    # fsel[i][a][b] = [fields[b, i] == a]
    fsel = [[(fld[:, i:i + 1] == a).astype(jnp.float32) for a in range(M)]
            for i in range(M)]
    # per-bag embedding slabs (TB, D): vemb[m][b, g*fd + d] = V[b, m, g, d]
    vemb = [v[m * TB:(m + 1) * TB, :D] for m in range(M)]
    # bag-permuted slabs: vb[i][b, :] = V[b, fields[b, i], :, :]
    vb = []
    for i in range(M):
        acc = jnp.zeros((TB, D), jnp.float32)
        for a in range(M):
            acc = acc + fsel[i][a] * vemb[a]
        vb.append(acc)

    pair = jnp.zeros((TB, 1), jnp.float32)
    for i in range(1, M):                                     # static tril pair list
        for j in range(i):
            vi = jnp.zeros((TB, fd), jnp.float32)             # V[b, f_i, f_j, :]
            vj = jnp.zeros((TB, fd), jnp.float32)             # V[b, f_j, f_i, :]
            for g in range(M):
                vi = vi + fsel[j][g] * vb[i][:, g * fd:(g + 1) * fd]
                vj = vj + fsel[i][g] * vb[j][:, g * fd:(g + 1) * fd]
            pair = pair + jnp.sum(vi * vj, axis=-1, keepdims=True)

    result = pair + linear + jnp.float32(global_bias)         # (TB, 1)
    # lane-dense output: batch along the last (lane) dimension
    out_ref[...] = result.reshape(1, 1, TB)


def weighted_ffm_forward(indices, weights, offsets, fields,
                         vec_table, bias_table, global_bias, *, block_b=128):
    B, N = indices.shape
    M = offsets.shape[1]
    F, D = vec_table.shape
    assert D % M == 0
    fd = D // M
    TB = block_b
    B_pad = pl.cdiv(B, TB) * TB
    pad = B_pad - B

    idx = indices.astype(jnp.int32)
    w = weights.astype(jnp.float32)
    off = offsets.astype(jnp.int32)
    fld = fields.astype(jnp.int32)
    if pad:
        idx = jnp.pad(idx, ((0, pad), (0, 0)))
        w = jnp.pad(w, ((0, pad), (0, 0)))
        off = jnp.pad(off, ((0, pad), (0, 0)))
        fld = jnp.pad(fld, ((0, pad), (0, 0)))

    # exclusive-end offsets -> per-bag [start, end) ranges (glue, host side)
    starts = jnp.concatenate([jnp.zeros((B_pad, 1), jnp.int32), off[:, :-1]], axis=1)
    ends = off

    # fold the bias column into the embedding table: (F, D + 1)
    tab_aug = jnp.concatenate([vec_table.astype(jnp.float32),
                               bias_table.astype(jnp.float32)], axis=1)

    num_blocks = B_pad // TB
    kernel = functools.partial(_ffm_kernel, num_fields=M, field_dim=fd,
                               num_features=F, num_entries=N, block_b=TB,
                               global_bias=float(global_bias))

    out = pl.pallas_call(
        kernel,
        out_shape=jax.ShapeDtypeStruct((num_blocks, 1, TB), jnp.float32),
        grid_spec=pltpu.PrefetchScalarGridSpec(
            num_scalar_prefetch=0,
            grid=(num_blocks,),
            in_specs=[
                pl.BlockSpec((TB, N), lambda i: (i, 0)),       # indices
                pl.BlockSpec((TB, N), lambda i: (i, 0)),       # weights
                pl.BlockSpec((TB, M), lambda i: (i, 0)),       # bag starts
                pl.BlockSpec((TB, M), lambda i: (i, 0)),       # bag ends
                pl.BlockSpec((TB, M), lambda i: (i, 0)),       # fields
                pl.BlockSpec((F, D + 1), lambda i: (0, 0)),    # table (+ bias column)
            ],
            out_specs=pl.BlockSpec((1, 1, TB), lambda i: (i, 0, 0)),
        ),
        compiler_params=pltpu.CompilerParams(
            dimension_semantics=("parallel",),        # batch blocks are independent
            vmem_limit_bytes=32 * 1024 * 1024),       # raise v5e's 16 MiB default
    )(idx, w, starts, ends, fld, tab_aug)

    return out.reshape(B_pad)[:B]


def _reference_forward(indices, weights, offsets, fields,
                       vec_table, bias_table, global_bias):
    """Pure-JAX reference matching the PyTorch forward semantics."""
    B, N = indices.shape
    M = offsets.shape[1]
    F, D = vec_table.shape
    fd = D // M
    gathered = vec_table[indices]                      # (B, N, D)
    gathered_b = bias_table[indices]                   # (B, N, 1)
    starts = jnp.concatenate([jnp.zeros((B, 1), jnp.int32), offsets[:, :-1]], axis=1)
    n_ar = jnp.arange(N)
    mask = ((n_ar[None, None, :] >= starts[:, :, None]) &
            (n_ar[None, None, :] < offsets[:, :, None]))
    A = mask.astype(jnp.float32) * weights[:, None, :]
    bags = jnp.einsum('bmn,bnd->bmd', A, gathered)      # (B, M, D)
    bag_b = jnp.einsum('bmn,bno->bmo', A, gathered_b)   # (B, M, 1)
    V = bags.reshape(B, M, M, fd)
    ii, jj = np.tril_indices(M, -1)
    fi = fields[:, ii]
    fj = fields[:, jj]
    batches = jnp.arange(B)[:, None]
    vi = V[batches, fi, fj]
    vj = V[batches, fj, fi]
    pairwise = (vi * vj).sum(axis=(-1, -2))
    linear = bag_b[..., 0].sum(axis=1)
    return pairwise + linear + global_bias


if __name__ == "__main__":
    key = jax.random.PRNGKey(0)
    k1, k2, k3, k4 = jax.random.split(key, 4)

    B, N = 2, 8
    num_features, field_dim, num_fields = 32, 4, 4
    D = field_dim * num_fields

    # Deterministic parameter init (shapes per WeightedFFM.__init__).
    vec_init_scale = 1.0 / math.sqrt(field_dim)
    vec_table = jax.random.uniform(k1, (num_features, D), jnp.float32,
                                   0.0, vec_init_scale)
    # Module default init is zeros; use a small nonzero init so the linear path
    # is actually exercised.
    bias_table = 0.01 * jax.random.normal(k2, (num_features, 1), jnp.float32)
    global_bias = 0.0   # torch.nn.Parameter(torch.tensor(0.0))

    indices = jax.random.randint(k3, (B, N), 0, num_features, jnp.int32)
    weights = jax.random.uniform(k4, (B, N), jnp.float32)
    offsets = jnp.array([[2, 4, 6, 8], [1, 3, 5, 8]], jnp.int32)   # exclusive bag ends
    fields = jnp.array([[0, 1, 2, 3], [2, 0, 3, 1]], jnp.int32)    # field per bag

    out = weighted_ffm_forward(indices, weights, offsets, fields,
                               vec_table, bias_table, global_bias)
    out = jax.block_until_ready(out)

    ref = _reference_forward(indices, weights, offsets, fields,
                             vec_table, bias_table, global_bias)
    assert out.shape == (B,), out.shape
    assert np.allclose(np.asarray(out), np.asarray(ref), atol=1e-4, rtol=1e-4), (out, ref)
    print("KERNEL_OK")
</pallas_src>

<mosaic_0001>
module attributes {stable_mosaic.version = 11 : i64} {
  func.func @_ffm_kernel(%arg0: i32, %arg1: memref<128x8xi32, #tpu.memory_space<vmem>>, %arg2: memref<128x8xf32, #tpu.memory_space<vmem>>, %arg3: memref<128x4xi32, #tpu.memory_space<vmem>>, %arg4: memref<128x4xi32, #tpu.memory_space<vmem>>, %arg5: memref<128x4xi32, #tpu.memory_space<vmem>>, %arg6: memref<32x17xf32, #tpu.memory_space<vmem>>, %arg7: memref<1x1x128xf32, #tpu.memory_space<vmem>>) attributes {dimension_semantics = [#tpu.dimension_semantics<parallel>], iteration_bounds = array<i64: 1>, scalar_prefetch = 0 : i64, scratch_operands = 0 : i64, tpu.core_type = #tpu.core_type<tc>, window_params = [{transform_indices = @transform_0, window_bounds = array<i64: 128, 8>}, {transform_indices = @transform_1, window_bounds = array<i64: 128, 8>}, {transform_indices = @transform_2, window_bounds = array<i64: 128, 4>}, {transform_indices = @transform_3, window_bounds = array<i64: 128, 4>}, {transform_indices = @transform_4, window_bounds = array<i64: 128, 4>}, {pipeline_mode = #tpu.pipeline_mode<synchronous>, transform_indices = @transform_5, window_bounds = array<i64: 32, 17>}, {transform_indices = @transform_6, window_bounds = array<i64: 1, 1, 128>}]} {
    %c0 = arith.constant 0 : index
    %c0_0 = arith.constant 0 : index
    %0 = vector.load %arg1[%c0, %c0_0] : memref<128x8xi32, #tpu.memory_space<vmem>>, vector<128x8xi32>
    %c0_1 = arith.constant 0 : index
    %c0_2 = arith.constant 0 : index
    %1 = vector.load %arg2[%c0_1, %c0_2] : memref<128x8xf32, #tpu.memory_space<vmem>>, vector<128x8xf32>
    %c0_3 = arith.constant 0 : index
    %c0_4 = arith.constant 0 : index
    %2 = vector.load %arg3[%c0_3, %c0_4] : memref<128x4xi32, #tpu.memory_space<vmem>>, vector<128x4xi32>
    %c0_5 = arith.constant 0 : index
    %c0_6 = arith.constant 0 : index
    %3 = vector.load %arg4[%c0_5, %c0_6] : memref<128x4xi32, #tpu.memory_space<vmem>>, vector<128x4xi32>
    %c0_7 = arith.constant 0 : index
    %c0_8 = arith.constant 0 : index
    %4 = vector.load %arg5[%c0_7, %c0_8] : memref<128x4xi32, #tpu.memory_space<vmem>>, vector<128x4xi32>
    %5 = tpu.iota {dimensions = array<i32: 1>} : vector<128x32xi32>
    %cst = arith.constant 0.000000e+00 : f32
    %6 = vector.broadcast %cst : f32 to vector<128x32xf32>
    %cst_9 = arith.constant 0.000000e+00 : f32
    %7 = vector.broadcast %cst_9 : f32 to vector<128x32xf32>
    %cst_10 = arith.constant 0.000000e+00 : f32
    %8 = vector.broadcast %cst_10 : f32 to vector<128x32xf32>
    %cst_11 = arith.constant 0.000000e+00 : f32
    %9 = vector.broadcast %cst_11 : f32 to vector<128x32xf32>
    %10 = vector.extract_strided_slice %0 {offsets = [0, 0], sizes = [128, 1], strides = [1, 1]} : vector<128x8xi32> to vector<128x1xi32>
    %11 = vector.broadcast %10 : vector<128x1xi32> to vector<128x32xi32>
    %12 = arith.cmpi eq, %5, %11 : vector<128x32xi32>
    %13 = vector.extract_strided_slice %1 {offsets = [0, 0], sizes = [128, 1], strides = [1, 1]} : vector<128x8xf32> to vector<128x1xf32>
    %cst_12 = arith.constant 0.000000e+00 : f32
    %14 = vector.shape_cast %13 : vector<128x1xf32> to vector<128x1xf32>
    %15 = vector.broadcast %14 : vector<128x1xf32> to vector<128x32xf32>
    %16 = vector.broadcast %cst_12 : f32 to vector<128x32xf32>
    %17 = arith.select %12, %15, %16 : vector<128x32xi1>, vector<128x32xf32>
    %18 = vector.extract_strided_slice %2 {offsets = [0, 0], sizes = [128, 1], strides = [1, 1]} : vector<128x4xi32> to vector<128x1xi32>
    %c0_i32 = arith.constant 0 : i32
    %19 = vector.broadcast %c0_i32 : i32 to vector<128x1xi32>
    %20 = arith.cmpi sle, %18, %19 : vector<128x1xi32>
    %21 = vector.extract_strided_slice %3 {offsets = [0, 0], sizes = [128, 1], strides = [1, 1]} : vector<128x4xi32> to vector<128x1xi32>
    %c0_i32_13 = arith.constant 0 : i32
    %22 = vector.broadcast %c0_i32_13 : i32 to vector<128x1xi32>
    %23 = arith.cmpi sgt, %21, %22 : vector<128x1xi32>
    %24 = arith.andi %20, %23 : vector<128x1xi1>
    %25 = arith.extui %24 : vector<128x1xi1> to vector<128x1xi32>
    %26 = arith.sitofp %25 : vector<128x1xi32> to vector<128x1xf32>
    %27 = vector.broadcast %26 : vector<128x1xf32> to vector<128x32xf32>
    %28 = arith.mulf %27, %17 : vector<128x32xf32>
    %29 = arith.addf %6, %28 : vector<128x32xf32>
    %30 = vector.extract_strided_slice %2 {offsets = [0, 1], sizes = [128, 1], strides = [1, 1]} : vector<128x4xi32> to vector<128x1xi32>
    %c0_i32_14 = arith.constant 0 : i32
    %31 = vector.broadcast %c0_i32_14 : i32 to vector<128x1xi32>
    %32 = arith.cmpi sle, %30, %31 : vector<128x1xi32>
    %33 = vector.extract_strided_slice %3 {offsets = [0, 1], sizes = [128, 1], strides = [1, 1]} : vector<128x4xi32> to vector<128x1xi32>
    %c0_i32_15 = arith.constant 0 : i32
    %34 = vector.broadcast %c0_i32_15 : i32 to vector<128x1xi32>
    %35 = arith.cmpi sgt, %33, %34 : vector<128x1xi32>
    %36 = arith.andi %32, %35 : vector<128x1xi1>
    %37 = arith.extui %36 : vector<128x1xi1> to vector<128x1xi32>
    %38 = arith.sitofp %37 : vector<128x1xi32> to vector<128x1xf32>
    %39 = vector.broadcast %38 : vector<128x1xf32> to vector<128x32xf32>
    %40 = arith.mulf %39, %17 : vector<128x32xf32>
    %41 = arith.addf %7, %40 : vector<128x32xf32>
    %42 = vector.extract_strided_slice %2 {offsets = [0, 2], sizes = [128, 1], strides = [1, 1]} : vector<128x4xi32> to vector<128x1xi32>
    %c0_i32_16 = arith.constant 0 : i32
    %43 = vector.broadcast %c0_i32_16 : i32 to vector<128x1xi32>
    %44 = arith.cmpi sle, %42, %43 : vector<128x1xi32>
    %45 = vector.extract_strided_slice %3 {offsets = [0, 2], sizes = [128, 1], strides = [1, 1]} : vector<128x4xi32> to vector<128x1xi32>
    %c0_i32_17 = arith.constant 0 : i32
    %46 = vector.broadcast %c0_i32_17 : i32 to vector<128x1xi32>
    %47 = arith.cmpi sgt, %45, %46 : vector<128x1xi32>
    %48 = arith.andi %44, %47 : vector<128x1xi1>
    %49 = arith.extui %48 : vector<128x1xi1> to vector<128x1xi32>
    %50 = arith.sitofp %49 : vector<128x1xi32> to vector<128x1xf32>
    %51 = vector.broadcast %50 : vector<128x1xf32> to vector<128x32xf32>
    %52 = arith.mulf %51, %17 : vector<128x32xf32>
    %53 = arith.addf %8, %52 : vector<128x32xf32>
    %54 = vector.extract_strided_slice %2 {offsets = [0, 3], sizes = [128, 1], strides = [1, 1]} : vector<128x4xi32> to vector<128x1xi32>
    %c0_i32_18 = arith.constant 0 : i32
    %55 = vector.broadcast %c0_i32_18 : i32 to vector<128x1xi32>
    %56 = arith.cmpi sle, %54, %55 : vector<128x1xi32>
    %57 = vector.extract_strided_slice %3 {offsets = [0, 3], sizes = [128, 1], strides = [1, 1]} : vector<128x4xi32> to vector<128x1xi32>
    %c0_i32_19 = arith.constant 0 : i32
    %58 = vector.broadcast %c0_i32_19 : i32 to vector<128x1xi32>
    %59 = arith.cmpi sgt, %57, %58 : vector<128x1xi32>
    %60 = arith.andi %56, %59 : vector<128x1xi1>
    %61 = arith.extui %60 : vector<128x1xi1> to vector<128x1xi32>
    %62 = arith.sitofp %61 : vector<128x1xi32> to vector<128x1xf32>
    %63 = vector.broadcast %62 : vector<128x1xf32> to vector<128x32xf32>
    %64 = arith.mulf %63, %17 : vector<128x32xf32>
    %65 = arith.addf %9, %64 : vector<128x32xf32>
    %66 = vector.extract_strided_slice %0 {offsets = [0, 1], sizes = [128, 1], strides = [1, 1]} : vector<128x8xi32> to vector<128x1xi32>
    %67 = vector.broadcast %66 : vector<128x1xi32> to vector<128x32xi32>
    %68 = arith.cmpi eq, %5, %67 : vector<128x32xi32>
    %69 = vector.extract_strided_slice %1 {offsets = [0, 1], sizes = [128, 1], strides = [1, 1]} : vector<128x8xf32> to vector<128x1xf32>
    %cst_20 = arith.constant 0.000000e+00 : f32
    %70 = vector.shape_cast %69 : vector<128x1xf32> to vector<128x1xf32>
    %71 = vector.broadcast %70 : vector<128x1xf32> to vector<128x32xf32>
    %72 = vector.broadcast %cst_20 : f32 to vector<128x32xf32>
    %73 = arith.select %68, %71, %72 : vector<128x32xi1>, vector<128x32xf32>
    %74 = vector.extract_strided_slice %2 {offsets = [0, 0], sizes = [128, 1], strides = [1, 1]} : vector<128x4xi32> to vector<128x1xi32>
    %c1_i32 = arith.constant 1 : i32
    %75 = vector.broadcast %c1_i32 : i32 to vector<128x1xi32>
    %76 = arith.cmpi sle, %74, %75 : vector<128x1xi32>
    %77 = vector.extract_strided_slice %3 {offsets = [0, 0], sizes = [128, 1], strides = [1, 1]} : vector<128x4xi32> to vector<128x1xi32>
    %c1_i32_21 = arith.constant 1 : i32
    %78 = vector.broadcast %c1_i32_21 : i32 to vector<128x1xi32>
    %79 = arith.cmpi sgt, %77, %78 : vector<128x1xi32>
    %80 = arith.andi %76, %79 : vector<128x1xi1>
    %81 = arith.extui %80 : vector<128x1xi1> to vector<128x1xi32>
    %82 = arith.sitofp %81 : vector<128x1xi32> to vector<128x1xf32>
    %83 = vector.broadcast %82 : vector<128x1xf32> to vector<128x32xf32>
    %84 = arith.mulf %83, %73 : vector<128x32xf32>
    %85 = arith.addf %29, %84 : vector<128x32xf32>
    %86 = vector.extract_strided_slice %2 {offsets = [0, 1], sizes = [128, 1], strides = [1, 1]} : vector<128x4xi32> to vector<128x1xi32>
    %c1_i32_22 = arith.constant 1 : i32
    %87 = vector.broadcast %c1_i32_22 : i32 to vector<128x1xi32>
    %88 = arith.cmpi sle, %86, %87 : vector<128x1xi32>
    %89 = vector.extract_strided_slice %3 {offsets = [0, 1], sizes = [128, 1], strides = [1, 1]} : vector<128x4xi32> to vector<128x1xi32>
    %c1_i32_23 = arith.constant 1 : i32
    %90 = vector.broadcast %c1_i32_23 : i32 to vector<128x1xi32>
    %91 = arith.cmpi sgt, %89, %90 : vector<128x1xi32>
    %92 = arith.andi %88, %91 : vector<128x1xi1>
    %93 = arith.extui %92 : vector<128x1xi1> to vector<128x1xi32>
    %94 = arith.sitofp %93 : vector<128x1xi32> to vector<128x1xf32>
    %95 = vector.broadcast %94 : vector<128x1xf32> to vector<128x32xf32>
    %96 = arith.mulf %95, %73 : vector<128x32xf32>
    %97 = arith.addf %41, %96 : vector<128x32xf32>
    %98 = vector.extract_strided_slice %2 {offsets = [0, 2], sizes = [128, 1], strides = [1, 1]} : vector<128x4xi32> to vector<128x1xi32>
    %c1_i32_24 = arith.constant 1 : i32
    %99 = vector.broadcast %c1_i32_24 : i32 to vector<128x1xi32>
    %100 = arith.cmpi sle, %98, %99 : vector<128x1xi32>
    %101 = vector.extract_strided_slice %3 {offsets = [0, 2], sizes = [128, 1], strides = [1, 1]} : vector<128x4xi32> to vector<128x1xi32>
    %c1_i32_25 = arith.constant 1 : i32
    %102 = vector.broadcast %c1_i32_25 : i32 to vector<128x1xi32>
    %103 = arith.cmpi sgt, %101, %102 : vector<128x1xi32>
    %104 = arith.andi %100, %103 : vector<128x1xi1>
    %105 = arith.extui %104 : vector<128x1xi1> to vector<128x1xi32>
    %106 = arith.sitofp %105 : vector<128x1xi32> to vector<128x1xf32>
    %107 = vector.broadcast %106 : vector<128x1xf32> to vector<128x32xf32>
    %108 = arith.mulf %107, %73 : vector<128x32xf32>
    %109 = arith.addf %53, %108 : vector<128x32xf32>
    %110 = vector.extract_strided_slice %2 {offsets = [0, 3], sizes = [128, 1], strides = [1, 1]} : vector<128x4xi32> to vector<128x1xi32>
    %c1_i32_26 = arith.constant 1 : i32
    %111 = vector.broadcast %c1_i32_26 : i32 to vector<128x1xi32>
    %112 = arith.cmpi sle, %110, %111 : vector<128x1xi32>
    %113 = vector.extract_strided_slice %3 {offsets = [0, 3], sizes = [128, 1], strides = [1, 1]} : vector<128x4xi32> to vector<128x1xi32>
    %c1_i32_27 = arith.constant 1 : i32
    %114 = vector.broadcast %c1_i32_27 : i32 to vector<128x1xi32>
    %115 = arith.cmpi sgt, %113, %114 : vector<128x1xi32>
    %116 = arith.andi %112, %115 : vector<128x1xi1>
    %117 = arith.extui %116 : vector<128x1xi1> to vector<128x1xi32>
    %118 = arith.sitofp %117 : vector<128x1xi32> to vector<128x1xf32>
    %119 = vector.broadcast %118 : vector<128x1xf32> to vector<128x32xf32>
    %120 = arith.mulf %119, %73 : vector<128x32xf32>
    %121 = arith.addf %65, %120 : vector<128x32xf32>
    %122 = vector.extract_strided_slice %0 {offsets = [0, 2], sizes = [128, 1], strides = [1, 1]} : vector<128x8xi32> to vector<128x1xi32>
    %123 = vector.broadcast %122 : vector<128x1xi32> to vector<128x32xi32>
    %124 = arith.cmpi eq, %5, %123 : vector<128x32xi32>
    %125 = vector.extract_strided_slice %1 {offsets = [0, 2], sizes = [128, 1], strides = [1, 1]} : vector<128x8xf32> to vector<128x1xf32>
    %cst_28 = arith.constant 0.000000e+00 : f32
    %126 = vector.shape_cast %125 : vector<128x1xf32> to vector<128x1xf32>
    %127 = vector.broadcast %126 : vector<128x1xf32> to vector<128x32xf32>
    %128 = vector.broadcast %cst_28 : f32 to vector<128x32xf32>
    %129 = arith.select %124, %127, %128 : vector<128x32xi1>, vector<128x32xf32>
    %130 = vector.extract_strided_slice %2 {offsets = [0, 0], sizes = [128, 1], strides = [1, 1]} : vector<128x4xi32> to vector<128x1xi32>
    %c2_i32 = arith.constant 2 : i32
    %131 = vector.broadcast %c2_i32 : i32 to vector<128x1xi32>
    %132 = arith.cmpi sle, %130, %131 : vector<128x1xi32>
    %133 = vector.extract_strided_slice %3 {offsets = [0, 0], sizes = [128, 1], strides = [1, 1]} : vector<128x4xi32> to vector<128x1xi32>
    %c2_i32_29 = arith.constant 2 : i32
    %134 = vector.broadcast %c2_i32_29 : i32 to vector<128x1xi32>
    %135 = arith.cmpi sgt, %133, %134 : vector<128x1xi32>
    %136 = arith.andi %132, %135 : vector<128x1xi1>
    %137 = arith.extui %136 : vector<128x1xi1> to vector<128x1xi32>
    %138 = arith.sitofp %137 : vector<128x1xi32> to vector<128x1xf32>
    %139 = vector.broadcast %138 : vector<128x1xf32> to vector<128x32xf32>
    %140 = arith.mulf %139, %129 : vector<128x32xf32>
    %141 = arith.addf %85, %140 : vector<128x32xf32>
    %142 = vector.extract_strided_slice %2 {offsets = [0, 1], sizes = [128, 1], strides = [1, 1]} : vector<128x4xi32> to vector<128x1xi32>
    %c2_i32_30 = arith.constant 2 : i32
    %143 = vector.broadcast %c2_i32_30 : i32 to vector<128x1xi32>
    %144 = arith.cmpi sle, %142, %143 : vector<128x1xi32>
    %145 = vector.extract_strided_slice %3 {offsets = [0, 1], sizes = [128, 1], strides = [1, 1]} : vector<128x4xi32> to vector<128x1xi32>
    %c2_i32_31 = arith.constant 2 : i32
    %146 = vector.broadcast %c2_i32_31 : i32 to vector<128x1xi32>
    %147 = arith.cmpi sgt, %145, %146 : vector<128x1xi32>
    %148 = arith.andi %144, %147 : vector<128x1xi1>
    %149 = arith.extui %148 : vector<128x1xi1> to vector<128x1xi32>
    %150 = arith.sitofp %149 : vector<128x1xi32> to vector<128x1xf32>
    %151 = vector.broadcast %150 : vector<128x1xf32> to vector<128x32xf32>
    %152 = arith.mulf %151, %129 : vector<128x32xf32>
    %153 = arith.addf %97, %152 : vector<128x32xf32>
    %154 = vector.extract_strided_slice %2 {offsets = [0, 2], sizes = [128, 1], strides = [1, 1]} : vector<128x4xi32> to vector<128x1xi32>
    %c2_i32_32 = arith.constant 2 : i32
    %155 = vector.broadcast %c2_i32_32 : i32 to vector<128x1xi32>
    %156 = arith.cmpi sle, %154, %155 : vector<128x1xi32>
    %157 = vector.extract_strided_slice %3 {offsets = [0, 2], sizes = [128, 1], strides = [1, 1]} : vector<128x4xi32> to vector<128x1xi32>
    %c2_i32_33 = arith.constant 2 : i32
    %158 = vector.broadcast %c2_i32_33 : i32 to vector<128x1xi32>
    %159 = arith.cmpi sgt, %157, %158 : vector<128x1xi32>
    %160 = arith.andi %156, %159 : vector<128x1xi1>
    %161 = arith.extui %160 : vector<128x1xi1> to vector<128x1xi32>
    %162 = arith.sitofp %161 : vector<128x1xi32> to vector<128x1xf32>
    %163 = vector.broadcast %162 : vector<128x1xf32> to vector<128x32xf32>
    %164 = arith.mulf %163, %129 : vector<128x32xf32>
    %165 = arith.addf %109, %164 : vector<128x32xf32>
    %166 = vector.extract_strided_slice %2 {offsets = [0, 3], sizes = [128, 1], strides = [1, 1]} : vector<128x4xi32> to vector<128x1xi32>
    %c2_i32_34 = arith.constant 2 : i32
    %167 = vector.broadcast %c2_i32_34 : i32 to vector<128x1xi32>
    %168 = arith.cmpi sle, %166, %167 : vector<128x1xi32>
    %169 = vector.extract_strided_slice %3 {offsets = [0, 3], sizes = [128, 1], strides = [1, 1]} : vector<128x4xi32> to vector<128x1xi32>
    %c2_i32_35 = arith.constant 2 : i32
    %170 = vector.broadcast %c2_i32_35 : i32 to vector<128x1xi32>
    %171 = arith.cmpi sgt, %169, %170 : vector<128x1xi32>
    %172 = arith.andi %168, %171 : vector<128x1xi1>
    %173 = arith.extui %172 : vector<128x1xi1> to vector<128x1xi32>
    %174 = arith.sitofp %173 : vector<128x1xi32> to vector<128x1xf32>
    %175 = vector.broadcast %174 : vector<128x1xf32> to vector<128x32xf32>
    %176 = arith.mulf %175, %129 : vector<128x32xf32>
    %177 = arith.addf %121, %176 : vector<128x32xf32>
    %178 = vector.extract_strided_slice %0 {offsets = [0, 3], sizes = [128, 1], strides = [1, 1]} : vector<128x8xi32> to vector<128x1xi32>
    %179 = vector.broadcast %178 : vector<128x1xi32> to vector<128x32xi32>
    %180 = arith.cmpi eq, %5, %179 : vector<128x32xi32>
    %181 = vector.extract_strided_slice %1 {offsets = [0, 3], sizes = [128, 1], strides = [1, 1]} : vector<128x8xf32> to vector<128x1xf32>
    %cst_36 = arith.constant 0.000000e+00 : f32
    %182 = vector.shape_cast %181 : vector<128x1xf32> to vector<128x1xf32>
    %183 = vector.broadcast %182 : vector<128x1xf32> to vector<128x32xf32>
    %184 = vector.broadcast %cst_36 : f32 to vector<128x32xf32>
    %185 = arith.select %180, %183, %184 : vector<128x32xi1>, vector<128x32xf32>
    %186 = vector.extract_strided_slice %2 {offsets = [0, 0], sizes = [128, 1], strides = [1, 1]} : vector<128x4xi32> to vector<128x1xi32>
    %c3_i32 = arith.constant 3 : i32
    %187 = vector.broadcast %c3_i32 : i32 to vector<128x1xi32>
    %188 = arith.cmpi sle, %186, %187 : vector<128x1xi32>
    %189 = vector.extract_strided_slice %3 {offsets = [0, 0], sizes = [128, 1], strides = [1, 1]} : vector<128x4xi32> to vector<128x1xi32>
    %c3_i32_37 = arith.constant 3 : i32
    %190 = vector.broadcast %c3_i32_37 : i32 to vector<128x1xi32>
    %191 = arith.cmpi sgt, %189, %190 : vector<128x1xi32>
    %192 = arith.andi %188, %191 : vector<128x1xi1>
    %193 = arith.extui %192 : vector<128x1xi1> to vector<128x1xi32>
    %194 = arith.sitofp %193 : vector<128x1xi32> to vector<128x1xf32>
    %195 = vector.broadcast %194 : vector<128x1xf32> to vector<128x32xf32>
    %196 = arith.mulf %195, %185 : vector<128x32xf32>
    %197 = arith.addf %141, %196 : vector<128x32xf32>
    %198 = vector.extract_strided_slice %2 {offsets = [0, 1], sizes = [128, 1], strides = [1, 1]} : vector<128x4xi32> to vector<128x1xi32>
    %c3_i32_38 = arith.constant 3 : i32
    %199 = vector.broadcast %c3_i32_38 : i32 to vector<128x1xi32>
    %200 = arith.cmpi sle, %198, %199 : vector<128x1xi32>
    %201 = vector.extract_strided_slice %3 {offsets = [0, 1], sizes = [128, 1], strides = [1, 1]} : vector<128x4xi32> to vector<128x1xi32>
    %c3_i32_39 = arith.constant 3 : i32
    %202 = vector.broadcast %c3_i32_39 : i32 to vector<128x1xi32>
    %203 = arith.cmpi sgt, %201, %202 : vector<128x1xi32>
    %204 = arith.andi %200, %203 : vector<128x1xi1>
    %205 = arith.extui %204 : vector<128x1xi1> to vector<128x1xi32>
    %206 = arith.sitofp %205 : vector<128x1xi32> to vector<128x1xf32>
    %207 = vector.broadcast %206 : vector<128x1xf32> to vector<128x32xf32>
    %208 = arith.mulf %207, %185 : vector<128x32xf32>
    %209 = arith.addf %153, %208 : vector<128x32xf32>
    %210 = vector.extract_strided_slice %2 {offsets = [0, 2], sizes = [128, 1], strides = [1, 1]} : vector<128x4xi32> to vector<128x1xi32>
    %c3_i32_40 = arith.constant 3 : i32
    %211 = vector.broadcast %c3_i32_40 : i32 to vector<128x1xi32>
    %212 = arith.cmpi sle, %210, %211 : vector<128x1xi32>
    %213 = vector.extract_strided_slice %3 {offsets = [0, 2], sizes = [128, 1], strides = [1, 1]} : vector<128x4xi32> to vector<128x1xi32>
    %c3_i32_41 = arith.constant 3 : i32
    %214 = vector.broadcast %c3_i32_41 : i32 to vector<128x1xi32>
    %215 = arith.cmpi sgt, %213, %214 : vector<128x1xi32>
    %216 = arith.andi %212, %215 : vector<128x1xi1>
    %217 = arith.extui %216 : vector<128x1xi1> to vector<128x1xi32>
    %218 = arith.sitofp %217 : vector<128x1xi32> to vector<128x1xf32>
    %219 = vector.broadcast %218 : vector<128x1xf32> to vector<128x32xf32>
    %220 = arith.mulf %219, %185 : vector<128x32xf32>
    %221 = arith.addf %165, %220 : vector<128x32xf32>
    %222 = vector.extract_strided_slice %2 {offsets = [0, 3], sizes = [128, 1], strides = [1, 1]} : vector<128x4xi32> to vector<128x1xi32>
    %c3_i32_42 = arith.constant 3 : i32
    %223 = vector.broadcast %c3_i32_42 : i32 to vector<128x1xi32>
    %224 = arith.cmpi sle, %222, %223 : vector<128x1xi32>
    %225 = vector.extract_strided_slice %3 {offsets = [0, 3], sizes = [128, 1], strides = [1, 1]} : vector<128x4xi32> to vector<128x1xi32>
    %c3_i32_43 = arith.constant 3 : i32
    %226 = vector.broadcast %c3_i32_43 : i32 to vector<128x1xi32>
    %227 = arith.cmpi sgt, %225, %226 : vector<128x1xi32>
    %228 = arith.andi %224, %227 : vector<128x1xi1>
    %229 = arith.extui %228 : vector<128x1xi1> to vector<128x1xi32>
    %230 = arith.sitofp %229 : vector<128x1xi32> to vector<128x1xf32>
    %231 = vector.broadcast %230 : vector<128x1xf32> to vector<128x32xf32>
    %232 = arith.mulf %231, %185 : vector<128x32xf32>
    %233 = arith.addf %177, %232 : vector<128x32xf32>
    %234 = vector.extract_strided_slice %0 {offsets = [0, 4], sizes = [128, 1], strides = [1, 1]} : vector<128x8xi32> to vector<128x1xi32>
    %235 = vector.broadcast %234 : vector<128x1xi32> to vector<128x32xi32>
    %236 = arith.cmpi eq, %5, %235 : vector<128x32xi32>
    %237 = vector.extract_strided_slice %1 {offsets = [0, 4], sizes = [128, 1], strides = [1, 1]} : vector<128x8xf32> to vector<128x1xf32>
    %cst_44 = arith.constant 0.000000e+00 : f32
    %238 = vector.shape_cast %237 : vector<128x1xf32> to vector<128x1xf32>
    %239 = vector.broadcast %238 : vector<128x1xf32> to vector<128x32xf32>
    %240 = vector.broadcast %cst_44 : f32 to vector<128x32xf32>
    %241 = arith.select %236, %239, %240 : vector<128x32xi1>, vector<128x32xf32>
    %242 = vector.extract_strided_slice %2 {offsets = [0, 0], sizes = [128, 1], strides = [1, 1]} : vector<128x4xi32> to vector<128x1xi32>
    %c4_i32 = arith.constant 4 : i32
    %243 = vector.broadcast %c4_i32 : i32 to vector<128x1xi32>
    %244 = arith.cmpi sle, %242, %243 : vector<128x1xi32>
    %245 = vector.extract_strided_slice %3 {offsets = [0, 0], sizes = [128, 1], strides = [1, 1]} : vector<128x4xi32> to vector<128x1xi32>
    %c4_i32_45 = arith.constant 4 : i32
    %246 = vector.broadcast %c4_i32_45 : i32 to vector<128x1xi32>
    %247 = arith.cmpi sgt, %245, %246 : vector<128x1xi32>
    %248 = arith.andi %244, %247 : vector<128x1xi1>
    %249 = arith.extui %248 : vector<128x1xi1> to vector<128x1xi32>
    %250 = arith.sitofp %249 : vector<128x1xi32> to vector<128x1xf32>
    %251 = vector.broadcast %250 : vector<128x1xf32> to vector<128x32xf32>
    %252 = arith.mulf %251, %241 : vector<128x32xf32>
    %253 = arith.addf %197, %252 : vector<128x32xf32>
    %254 = vector.extract_strided_slice %2 {offsets = [0, 1], sizes = [128, 1], strides = [1, 1]} : vector<128x4xi32> to vector<128x1xi32>
    %c4_i32_46 = arith.constant 4 : i32
    %255 = vector.broadcast %c4_i32_46 : i32 to vector<128x1xi32>
    %256 = arith.cmpi sle, %254, %255 : vector<128x1xi32>
    %257 = vector.extract_strided_slice %3 {offsets = [0, 1], sizes = [128, 1], strides = [1, 1]} : vector<128x4xi32> to vector<128x1xi32>
    %c4_i32_47 = arith.constant 4 : i32
    %258 = vector.broadcast %c4_i32_47 : i32 to vector<128x1xi32>
    %259 = arith.cmpi sgt, %257, %258 : vector<128x1xi32>
    %260 = arith.andi %256, %259 : vector<128x1xi1>
    %261 = arith.extui %260 : vector<128x1xi1> to vector<128x1xi32>
    %262 = arith.sitofp %261 : vector<128x1xi32> to vector<128x1xf32>
    %263 = vector.broadcast %262 : vector<128x1xf32> to vector<128x32xf32>
    %264 = arith.mulf %263, %241 : vector<128x32xf32>
    %265 = arith.addf %209, %264 : vector<128x32xf32>
    %266 = vector.extract_strided_slice %2 {offsets = [0, 2], sizes = [128, 1], strides = [1, 1]} : vector<128x4xi32> to vector<128x1xi32>
    %c4_i32_48 = arith.constant 4 : i32
    %267 = vector.broadcast %c4_i32_48 : i32 to vector<128x1xi32>
    %268 = arith.cmpi sle, %266, %267 : vector<128x1xi32>
    %269 = vector.extract_strided_slice %3 {offsets = [0, 2], sizes = [128, 1], strides = [1, 1]} : vector<128x4xi32> to vector<128x1xi32>
    %c4_i32_49 = arith.constant 4 : i32
    %270 = vector.broadcast %c4_i32_49 : i32 to vector<128x1xi32>
    %271 = arith.cmpi sgt, %269, %270 : vector<128x1xi32>
    %272 = arith.andi %268, %271 : vector<128x1xi1>
    %273 = arith.extui %272 : vector<128x1xi1> to vector<128x1xi32>
    %274 = arith.sitofp %273 : vector<128x1xi32> to vector<128x1xf32>
    %275 = vector.broadcast %274 : vector<128x1xf32> to vector<128x32xf32>
    %276 = arith.mulf %275, %241 : vector<128x32xf32>
    %277 = arith.addf %221, %276 : vector<128x32xf32>
    %278 = vector.extract_strided_slice %2 {offsets = [0, 3], sizes = [128, 1], strides = [1, 1]} : vector<128x4xi32> to vector<128x1xi32>
    %c4_i32_50 = arith.constant 4 : i32
    %279 = vector.broadcast %c4_i32_50 : i32 to vector<128x1xi32>
    %280 = arith.cmpi sle, %278, %279 : vector<128x1xi32>
    %281 = vector.extract_strided_slice %3 {offsets = [0, 3], sizes = [128, 1], strides = [1, 1]} : vector<128x4xi32> to vector<128x1xi32>
    %c4_i32_51 = arith.constant 4 : i32
    %282 = vector.broadcast %c4_i32_51 : i32 to vector<128x1xi32>
    %283 = arith.cmpi sgt, %281, %282 : vector<128x1xi32>
    %284 = arith.andi %280, %283 : vector<128x1xi1>
    %285 = arith.extui %284 : vector<128x1xi1> to vector<128x1xi32>
    %286 = arith.sitofp %285 : vector<128x1xi32> to vector<128x1xf32>
    %287 = vector.broadcast %286 : vector<128x1xf32> to vector<128x32xf32>
    %288 = arith.mulf %287, %241 : vector<128x32xf32>
    %289 = arith.addf %233, %288 : vector<128x32xf32>
    %290 = vector.extract_strided_slice %0 {offsets = [0, 5], sizes = [128, 1], strides = [1, 1]} : vector<128x8xi32> to vector<128x1xi32>
    %291 = vector.broadcast %290 : vector<128x1xi32> to vector<128x32xi32>
    %292 = arith.cmpi eq, %5, %291 : vector<128x32xi32>
    %293 = vector.extract_strided_slice %1 {offsets = [0, 5], sizes = [128, 1], strides = [1, 1]} : vector<128x8xf32> to vector<128x1xf32>
    %cst_52 = arith.constant 0.000000e+00 : f32
    %294 = vector.shape_cast %293 : vector<128x1xf32> to vector<128x1xf32>
    %295 = vector.broadcast %294 : vector<128x1xf32> to vector<128x32xf32>
    %296 = vector.broadcast %cst_52 : f32 to vector<128x32xf32>
    %297 = arith.select %292, %295, %296 : vector<128x32xi1>, vector<128x32xf32>
    %298 = vector.extract_strided_slice %2 {offsets = [0, 0], sizes = [128, 1], strides = [1, 1]} : vector<128x4xi32> to vector<128x1xi32>
    %c5_i32 = arith.constant 5 : i32
    %299 = vector.broadcast %c5_i32 : i32 to vector<128x1xi32>
    %300 = arith.cmpi sle, %298, %299 : vector<128x1xi32>
    %301 = vector.extract_strided_slice %3 {offsets = [0, 0], sizes = [128, 1], strides = [1, 1]} : vector<128x4xi32> to vector<128x1xi32>
    %c5_i32_53 = arith.constant 5 : i32
    %302 = vector.broadcast %c5_i32_53 : i32 to vector<128x1xi32>
    %303 = arith.cmpi sgt, %301, %302 : vector<128x1xi32>
    %304 = arith.andi %300, %303 : vector<128x1xi1>
    %305 = arith.extui %304 : vector<128x1xi1> to vector<128x1xi32>
    %306 = arith.sitofp %305 : vector<128x1xi32> to vector<128x1xf32>
    %307 = vector.broadcast %306 : vector<128x1xf32> to vector<128x32xf32>
    %308 = arith.mulf %307, %297 : vector<128x32xf32>
    %309 = arith.addf %253, %308 : vector<128x32xf32>
    %310 = vector.extract_strided_slice %2 {offsets = [0, 1], sizes = [128, 1], strides = [1, 1]} : vector<128x4xi32> to vector<128x1xi32>
    %c5_i32_54 = arith.constant 5 : i32
    %311 = vector.broadcast %c5_i32_54 : i32 to vector<128x1xi32>
    %312 = arith.cmpi sle, %310, %311 : vector<128x1xi32>
    %313 = vector.extract_strided_slice %3 {offsets = [0, 1], sizes = [128, 1], strides = [1, 1]} : vector<128x4xi32> to vector<128x1xi32>
    %c5_i32_55 = arith.constant 5 : i32
    %314 = vector.broadcast %c5_i32_55 : i32 to vector<128x1xi32>
    %315 = arith.cmpi sgt, %313, %314 : vector<128x1xi32>
    %316 = arith.andi %312, %315 : vector<128x1xi1>
    %317 = arith.extui %316 : vector<128x1xi1> to vector<128x1xi32>
    %318 = arith.sitofp %317 : vector<128x1xi32> to vector<128x1xf32>
    %319 = vector.broadcast %318 : vector<128x1xf32> to vector<128x32xf32>
    %320 = arith.mulf %319, %297 : vector<128x32xf32>
    %321 = arith.addf %265, %320 : vector<128x32xf32>
    %322 = vector.extract_strided_slice %2 {offsets = [0, 2], sizes = [128, 1], strides = [1, 1]} : vector<128x4xi32> to vector<128x1xi32>
    %c5_i32_56 = arith.constant 5 : i32
    %323 = vector.broadcast %c5_i32_56 : i32 to vector<128x1xi32>
    %324 = arith.cmpi sle, %322, %323 : vector<128x1xi32>
    %325 = vector.extract_strided_slice %3 {offsets = [0, 2], sizes = [128, 1], strides = [1, 1]} : vector<128x4xi32> to vector<128x1xi32>
    %c5_i32_57 = arith.constant 5 : i32
    %326 = vector.broadcast %c5_i32_57 : i32 to vector<128x1xi32>
    %327 = arith.cmpi sgt, %325, %326 : vector<128x1xi32>
    %328 = arith.andi %324, %327 : vector<128x1xi1>
    %329 = arith.extui %328 : vector<128x1xi1> to vector<128x1xi32>
    %330 = arith.sitofp %329 : vector<128x1xi32> to vector<128x1xf32>
    %331 = vector.broadcast %330 : vector<128x1xf32> to vector<128x32xf32>
    %332 = arith.mulf %331, %297 : vector<128x32xf32>
    %333 = arith.addf %277, %332 : vector<128x32xf32>
    %334 = vector.extract_strided_slice %2 {offsets = [0, 3], sizes = [128, 1], strides = [1, 1]} : vector<128x4xi32> to vector<128x1xi32>
    %c5_i32_58 = arith.constant 5 : i32
    %335 = vector.broadcast %c5_i32_58 : i32 to vector<128x1xi32>
    %336 = arith.cmpi sle, %334, %335 : vector<128x1xi32>
    %337 = vector.extract_strided_slice %3 {offsets = [0, 3], sizes = [128, 1], strides = [1, 1]} : vector<128x4xi32> to vector<128x1xi32>
    %c5_i32_59 = arith.constant 5 : i32
    %338 = vector.broadcast %c5_i32_59 : i32 to vector<128x1xi32>
    %339 = arith.cmpi sgt, %337, %338 : vector<128x1xi32>
    %340 = arith.andi %336, %339 : vector<128x1xi1>
    %341 = arith.extui %340 : vector<128x1xi1> to vector<128x1xi32>
    %342 = arith.sitofp %341 : vector<128x1xi32> to vector<128x1xf32>
    %343 = vector.broadcast %342 : vector<128x1xf32> to vector<128x32xf32>
    %344 = arith.mulf %343, %297 : vector<128x32xf32>
    %345 = arith.addf %289, %344 : vector<128x32xf32>
    %346 = vector.extract_strided_slice %0 {offsets = [0, 6], sizes = [128, 1], strides = [1, 1]} : vector<128x8xi32> to vector<128x1xi32>
    %347 = vector.broadcast %346 : vector<128x1xi32> to vector<128x32xi32>
    %348 = arith.cmpi eq, %5, %347 : vector<128x32xi32>
    %349 = vector.extract_strided_slice %1 {offsets = [0, 6], sizes = [128, 1], strides = [1, 1]} : vector<128x8xf32> to vector<128x1xf32>
    %cst_60 = arith.constant 0.000000e+00 : f32
    %350 = vector.shape_cast %349 : vector<128x1xf32> to vector<128x1xf32>
    %351 = vector.broadcast %350 : vector<128x1xf32> to vector<128x32xf32>
    %352 = vector.broadcast %cst_60 : f32 to vector<128x32xf32>
    %353 = arith.select %348, %351, %352 : vector<128x32xi1>, vector<128x32xf32>
    %354 = vector.extract_strided_slice %2 {offsets = [0, 0], sizes = [128, 1], strides = [1, 1]} : vector<128x4xi32> to vector<128x1xi32>
    %c6_i32 = arith.constant 6 : i32
    %355 = vector.broadcast %c6_i32 : i32 to vector<128x1xi32>
    %356 = arith.cmpi sle, %354, %355 : vector<128x1xi32>
    %357 = vector.extract_strided_slice %3 {offsets = [0, 0], sizes = [128, 1], strides = [1, 1]} : vector<128x4xi32> to vector<128x1xi32>
    %c6_i32_61 = arith.constant 6 : i32
    %358 = vector.broadcast %c6_i32_61 : i32 to vector<128x1xi32>
    %359 = arith.cmpi sgt, %357, %358 : vector<128x1xi32>
    %360 = arith.andi %356, %359 : vector<128x1xi1>
    %361 = arith.extui %360 : vector<128x1xi1> to vector<128x1xi32>
    %362 = arith.sitofp %361 : vector<128x1xi32> to vector<128x1xf32>
    %363 = vector.broadcast %362 : vector<128x1xf32> to vector<128x32xf32>
    %364 = arith.mulf %363, %353 : vector<128x32xf32>
    %365 = arith.addf %309, %364 : vector<128x32xf32>
    %366 = vector.extract_strided_slice %2 {offsets = [0, 1], sizes = [128, 1], strides = [1, 1]} : vector<128x4xi32> to vector<128x1xi32>
    %c6_i32_62 = arith.constant 6 : i32
    %367 = vector.broadcast %c6_i32_62 : i32 to vector<128x1xi32>
    %368 = arith.cmpi sle, %366, %367 : vector<128x1xi32>
    %369 = vector.extract_strided_slice %3 {offsets = [0, 1], sizes = [128, 1], strides = [1, 1]} : vector<128x4xi32> to vector<128x1xi32>
    %c6_i32_63 = arith.constant 6 : i32
    %370 = vector.broadcast %c6_i32_63 : i32 to vector<128x1xi32>
    %371 = arith.cmpi sgt, %369, %370 : vector<128x1xi32>
    %372 = arith.andi %368, %371 : vector<128x1xi1>
    %373 = arith.extui %372 : vector<128x1xi1> to vector<128x1xi32>
    %374 = arith.sitofp %373 : vector<128x1xi32> to vector<128x1xf32>
    %375 = vector.broadcast %374 : vector<128x1xf32> to vector<128x32xf32>
    %376 = arith.mulf %375, %353 : vector<128x32xf32>
    %377 = arith.addf %321, %376 : vector<128x32xf32>
    %378 = vector.extract_strided_slice %2 {offsets = [0, 2], sizes = [128, 1], strides = [1, 1]} : vector<128x4xi32> to vector<128x1xi32>
    %c6_i32_64 = arith.constant 6 : i32
    %379 = vector.broadcast %c6_i32_64 : i32 to vector<128x1xi32>
    %380 = arith.cmpi sle, %378, %379 : vector<128x1xi32>
    %381 = vector.extract_strided_slice %3 {offsets = [0, 2], sizes = [128, 1], strides = [1, 1]} : vector<128x4xi32> to vector<128x1xi32>
    %c6_i32_65 = arith.constant 6 : i32
    %382 = vector.broadcast %c6_i32_65 : i32 to vector<128x1xi32>
    %383 = arith.cmpi sgt, %381, %382 : vector<128x1xi32>
    %384 = arith.andi %380, %383 : vector<128x1xi1>
    %385 = arith.extui %384 : vector<128x1xi1> to vector<128x1xi32>
    %386 = arith.sitofp %385 : vector<128x1xi32> to vector<128x1xf32>
    %387 = vector.broadcast %386 : vector<128x1xf32> to vector<128x32xf32>
    %388 = arith.mulf %387, %353 : vector<128x32xf32>
    %389 = arith.addf %333, %388 : vector<128x32xf32>
    %390 = vector.extract_strided_slice %2 {offsets = [0, 3], sizes = [128, 1], strides = [1, 1]} : vector<128x4xi32> to vector<128x1xi32>
    %c6_i32_66 = arith.constant 6 : i32
    %391 = vector.broadcast %c6_i32_66 : i32 to vector<128x1xi32>
    %392 = arith.cmpi sle, %390, %391 : vector<128x1xi32>
    %393 = vector.extract_strided_slice %3 {offsets = [0, 3], sizes = [128, 1], strides = [1, 1]} : vector<128x4xi32> to vector<128x1xi32>
    %c6_i32_67 = arith.constant 6 : i32
    %394 = vector.broadcast %c6_i32_67 : i32 to vector<128x1xi32>
    %395 = arith.cmpi sgt, %393, %394 : vector<128x1xi32>
    %396 = arith.andi %392, %395 : vector<128x1xi1>
    %397 = arith.extui %396 : vector<128x1xi1> to vector<128x1xi32>
    %398 = arith.sitofp %397 : vector<128x1xi32> to vector<128x1xf32>
    %399 = vector.broadcast %398 : vector<128x1xf32> to vector<128x32xf32>
    %400 = arith.mulf %399, %353 : vector<128x32xf32>
    %401 = arith.addf %345, %400 : vector<128x32xf32>
    %402 = vector.extract_strided_slice %0 {offsets = [0, 7], sizes = [128, 1], strides = [1, 1]} : vector<128x8xi32> to vector<128x1xi32>
    %403 = vector.broadcast %402 : vector<128x1xi32> to vector<128x32xi32>
    %404 = arith.cmpi eq, %5, %403 : vector<128x32xi32>
    %405 = vector.extract_strided_slice %1 {offsets = [0, 7], sizes = [128, 1], strides = [1, 1]} : vector<128x8xf32> to vector<128x1xf32>
    %cst_68 = arith.constant 0.000000e+00 : f32
    %406 = vector.shape_cast %405 : vector<128x1xf32> to vector<128x1xf32>
    %407 = vector.broadcast %406 : vector<128x1xf32> to vector<128x32xf32>
    %408 = vector.broadcast %cst_68 : f32 to vector<128x32xf32>
    %409 = arith.select %404, %407, %408 : vector<128x32xi1>, vector<128x32xf32>
    %410 = vector.extract_strided_slice %2 {offsets = [0, 0], sizes = [128, 1], strides = [1, 1]} : vector<128x4xi32> to vector<128x1xi32>
    %c7_i32 = arith.constant 7 : i32
    %411 = vector.broadcast %c7_i32 : i32 to vector<128x1xi32>
    %412 = arith.cmpi sle, %410, %411 : vector<128x1xi32>
    %413 = vector.extract_strided_slice %3 {offsets = [0, 0], sizes = [128, 1], strides = [1, 1]} : vector<128x4xi32> to vector<128x1xi32>
    %c7_i32_69 = arith.constant 7 : i32
    %414 = vector.broadcast %c7_i32_69 : i32 to vector<128x1xi32>
    %415 = arith.cmpi sgt, %413, %414 : vector<128x1xi32>
    %416 = arith.andi %412, %415 : vector<128x1xi1>
    %417 = arith.extui %416 : vector<128x1xi1> to vector<128x1xi32>
    %418 = arith.sitofp %417 : vector<128x1xi32> to vector<128x1xf32>
    %419 = vector.broadcast %418 : vector<128x1xf32> to vector<128x32xf32>
    %420 = arith.mulf %419, %409 : vector<128x32xf32>
    %421 = arith.addf %365, %420 : vector<128x32xf32>
    %422 = vector.extract_strided_slice %2 {offsets = [0, 1], sizes = [128, 1], strides = [1, 1]} : vector<128x4xi32> to vector<128x1xi32>
    %c7_i32_70 = arith.constant 7 : i32
    %423 = vector.broadcast %c7_i32_70 : i32 to vector<128x1xi32>
    %424 = arith.cmpi sle, %422, %423 : vector<128x1xi32>
    %425 = vector.extract_strided_slice %3 {offsets = [0, 1], sizes = [128, 1], strides = [1, 1]} : vector<128x4xi32> to vector<128x1xi32>
    %c7_i32_71 = arith.constant 7 : i32
    %426 = vector.broadcast %c7_i32_71 : i32 to vector<128x1xi32>
    %427 = arith.cmpi sgt, %425, %426 : vector<128x1xi32>
    %428 = arith.andi %424, %427 : vector<128x1xi1>
    %429 = arith.extui %428 : vector<128x1xi1> to vector<128x1xi32>
    %430 = arith.sitofp %429 : vector<128x1xi32> to vector<128x1xf32>
    %431 = vector.broadcast %430 : vector<128x1xf32> to vector<128x32xf32>
    %432 = arith.mulf %431, %409 : vector<128x32xf32>
    %433 = arith.addf %377, %432 : vector<128x32xf32>
    %434 = vector.extract_strided_slice %2 {offsets = [0, 2], sizes = [128, 1], strides = [1, 1]} : vector<128x4xi32> to vector<128x1xi32>
    %c7_i32_72 = arith.constant 7 : i32
    %435 = vector.broadcast %c7_i32_72 : i32 to vector<128x1xi32>
    %436 = arith.cmpi sle, %434, %435 : vector<128x1xi32>
    %437 = vector.extract_strided_slice %3 {offsets = [0, 2], sizes = [128, 1], strides = [1, 1]} : vector<128x4xi32> to vector<128x1xi32>
    %c7_i32_73 = arith.constant 7 : i32
    %438 = vector.broadcast %c7_i32_73 : i32 to vector<128x1xi32>
    %439 = arith.cmpi sgt, %437, %438 : vector<128x1xi32>
    %440 = arith.andi %436, %439 : vector<128x1xi1>
    %441 = arith.extui %440 : vector<128x1xi1> to vector<128x1xi32>
    %442 = arith.sitofp %441 : vector<128x1xi32> to vector<128x1xf32>
    %443 = vector.broadcast %442 : vector<128x1xf32> to vector<128x32xf32>
    %444 = arith.mulf %443, %409 : vector<128x32xf32>
    %445 = arith.addf %389, %444 : vector<128x32xf32>
    %446 = vector.extract_strided_slice %2 {offsets = [0, 3], sizes = [128, 1], strides = [1, 1]} : vector<128x4xi32> to vector<128x1xi32>
    %c7_i32_74 = arith.constant 7 : i32
    %447 = vector.broadcast %c7_i32_74 : i32 to vector<128x1xi32>
    %448 = arith.cmpi sle, %446, %447 : vector<128x1xi32>
    %449 = vector.extract_strided_slice %3 {offsets = [0, 3], sizes = [128, 1], strides = [1, 1]} : vector<128x4xi32> to vector<128x1xi32>
    %c7_i32_75 = arith.constant 7 : i32
    %450 = vector.broadcast %c7_i32_75 : i32 to vector<128x1xi32>
    %451 = arith.cmpi sgt, %449, %450 : vector<128x1xi32>
    %452 = arith.andi %448, %451 : vector<128x1xi1>
    %453 = arith.extui %452 : vector<128x1xi1> to vector<128x1xi32>
    %454 = arith.sitofp %453 : vector<128x1xi32> to vector<128x1xf32>
    %455 = vector.broadcast %454 : vector<128x1xf32> to vector<128x32xf32>
    %456 = arith.mulf %455, %409 : vector<128x32xf32>
    %457 = arith.addf %401, %456 : vector<128x32xf32>
    %458 = tpu.concatenate %421, %433, %445, %457 in 0 : vector<128x32xf32>, vector<128x32xf32>, vector<128x32xf32>, vector<128x32xf32> -> vector<512x32xf32>
    %c0_76 = arith.constant 0 : index
    %c0_77 = arith.constant 0 : index
    %459 = vector.load %arg6[%c0_76, %c0_77] : memref<32x17xf32, #tpu.memory_space<vmem>>, vector<32x17xf32>
    %cst_78 = arith.constant dense<0.000000e+00> : vector<512x17xf32>
    %460 = tpu.matmul %458, %459, %cst_78 {dimension_numbers = #tpu.dot_dimension_numbers<[1], [0], [0], [1], [0, 0, 1, 1], [], []>} : vector<512x32xf32>, vector<32x17xf32>, vector<512x17xf32> -> vector<512x17xf32>
    %cst_79 = arith.constant 0.000000e+00 : f32
    %461 = vector.broadcast %cst_79 : f32 to vector<128x1xf32>
    %462 = vector.extract_strided_slice %460 {offsets = [0, 16], sizes = [128, 1], strides = [1, 1]} : vector<512x17xf32> to vector<128x1xf32>
    %463 = arith.addf %461, %462 : vector<128x1xf32>
    %464 = vector.extract_strided_slice %460 {offsets = [128, 16], sizes = [128, 1], strides = [1, 1]} : vector<512x17xf32> to vector<128x1xf32>
    %465 = arith.addf %463, %464 : vector<128x1xf32>
    %466 = vector.extract_strided_slice %460 {offsets = [256, 16], sizes = [128, 1], strides = [1, 1]} : vector<512x17xf32> to vector<128x1xf32>
    %467 = arith.addf %465, %466 : vector<128x1xf32>
    %468 = vector.extract_strided_slice %460 {offsets = [384, 16], sizes = [128, 1], strides = [1, 1]} : vector<512x17xf32> to vector<128x1xf32>
    %469 = arith.addf %467, %468 : vector<128x1xf32>
    %470 = vector.extract_strided_slice %4 {offsets = [0, 0], sizes = [128, 1], strides = [1, 1]} : vector<128x4xi32> to vector<128x1xi32>
    %c0_i32_80 = arith.constant 0 : i32
    %471 = vector.broadcast %c0_i32_80 : i32 to vector<128x1xi32>
    %472 = arith.cmpi eq, %470, %471 : vector<128x1xi32>
    %473 = arith.extui %472 : vector<128x1xi1> to vector<128x1xi32>
    %474 = arith.sitofp %473 : vector<128x1xi32> to vector<128x1xf32>
    %475 = vector.extract_strided_slice %4 {offsets = [0, 0], sizes = [128, 1], strides = [1, 1]} : vector<128x4xi32> to vector<128x1xi32>
    %c1_i32_81 = arith.constant 1 : i32
    %476 = vector.broadcast %c1_i32_81 : i32 to vector<128x1xi32>
    %477 = arith.cmpi eq, %475, %476 : vector<128x1xi32>
    %478 = arith.extui %477 : vector<128x1xi1> to vector<128x1xi32>
    %479 = arith.sitofp %478 : vector<128x1xi32> to vector<128x1xf32>
    %480 = vector.extract_strided_slice %4 {offsets = [0, 0], sizes = [128, 1], strides = [1, 1]} : vector<128x4xi32> to vector<128x1xi32>
    %c2_i32_82 = arith.constant 2 : i32
    %481 = vector.broadcast %c2_i32_82 : i32 to vector<128x1xi32>
    %482 = arith.cmpi eq, %480, %481 : vector<128x1xi32>
    %483 = arith.extui %482 : vector<128x1xi1> to vector<128x1xi32>
    %484 = arith.sitofp %483 : vector<128x1xi32> to vector<128x1xf32>
    %485 = vector.extract_strided_slice %4 {offsets = [0, 0], sizes = [128, 1], strides = [1, 1]} : vector<128x4xi32> to vector<128x1xi32>
    %c3_i32_83 = arith.constant 3 : i32
    %486 = vector.broadcast %c3_i32_83 : i32 to vector<128x1xi32>
    %487 = arith.cmpi eq, %485, %486 : vector<128x1xi32>
    %488 = arith.extui %487 : vector<128x1xi1> to vector<128x1xi32>
    %489 = arith.sitofp %488 : vector<128x1xi32> to vector<128x1xf32>
    %490 = vector.extract_strided_slice %4 {offsets = [0, 1], sizes = [128, 1], strides = [1, 1]} : vector<128x4xi32> to vector<128x1xi32>
    %c0_i32_84 = arith.constant 0 : i32
    %491 = vector.broadcast %c0_i32_84 : i32 to vector<128x1xi32>
    %492 = arith.cmpi eq, %490, %491 : vector<128x1xi32>
    %493 = arith.extui %492 : vector<128x1xi1> to vector<128x1xi32>
    %494 = arith.sitofp %493 : vector<128x1xi32> to vector<128x1xf32>
    %495 = vector.extract_strided_slice %4 {offsets = [0, 1], sizes = [128, 1], strides = [1, 1]} : vector<128x4xi32> to vector<128x1xi32>
    %c1_i32_85 = arith.constant 1 : i32
    %496 = vector.broadcast %c1_i32_85 : i32 to vector<128x1xi32>
    %497 = arith.cmpi eq, %495, %496 : vector<128x1xi32>
    %498 = arith.extui %497 : vector<128x1xi1> to vector<128x1xi32>
    %499 = arith.sitofp %498 : vector<128x1xi32> to vector<128x1xf32>
    %500 = vector.extract_strided_slice %4 {offsets = [0, 1], sizes = [128, 1], strides = [1, 1]} : vector<128x4xi32> to vector<128x1xi32>
    %c2_i32_86 = arith.constant 2 : i32
    %501 = vector.broadcast %c2_i32_86 : i32 to vector<128x1xi32>
    %502 = arith.cmpi eq, %500, %501 : vector<128x1xi32>
    %503 = arith.extui %502 : vector<128x1xi1> to vector<128x1xi32>
    %504 = arith.sitofp %503 : vector<128x1xi32> to vector<128x1xf32>
    %505 = vector.extract_strided_slice %4 {offsets = [0, 1], sizes = [128, 1], strides = [1, 1]} : vector<128x4xi32> to vector<128x1xi32>
    %c3_i32_87 = arith.constant 3 : i32
    %506 = vector.broadcast %c3_i32_87 : i32 to vector<128x1xi32>
    %507 = arith.cmpi eq, %505, %506 : vector<128x1xi32>
    %508 = arith.extui %507 : vector<128x1xi1> to vector<128x1xi32>
    %509 = arith.sitofp %508 : vector<128x1xi32> to vector<128x1xf32>
    %510 = vector.extract_strided_slice %4 {offsets = [0, 2], sizes = [128, 1], strides = [1, 1]} : vector<128x4xi32> to vector<128x1xi32>
    %c0_i32_88 = arith.constant 0 : i32
    %511 = vector.broadcast %c0_i32_88 : i32 to vector<128x1xi32>
    %512 = arith.cmpi eq, %510, %511 : vector<128x1xi32>
    %513 = arith.extui %512 : vector<128x1xi1> to vector<128x1xi32>
    %514 = arith.sitofp %513 : vector<128x1xi32> to vector<128x1xf32>
    %515 = vector.extract_strided_slice %4 {offsets = [0, 2], sizes = [128, 1], strides = [1, 1]} : vector<128x4xi32> to vector<128x1xi32>
    %c1_i32_89 = arith.constant 1 : i32
    %516 = vector.broadcast %c1_i32_89 : i32 to vector<128x1xi32>
    %517 = arith.cmpi eq, %515, %516 : vector<128x1xi32>
    %518 = arith.extui %517 : vector<128x1xi1> to vector<128x1xi32>
    %519 = arith.sitofp %518 : vector<128x1xi32> to vector<128x1xf32>
    %520 = vector.extract_strided_slice %4 {offsets = [0, 2], sizes = [128, 1], strides = [1, 1]} : vector<128x4xi32> to vector<128x1xi32>
    %c2_i32_90 = arith.constant 2 : i32
    %521 = vector.broadcast %c2_i32_90 : i32 to vector<128x1xi32>
    %522 = arith.cmpi eq, %520, %521 : vector<128x1xi32>
    %523 = arith.extui %522 : vector<128x1xi1> to vector<128x1xi32>
    %524 = arith.sitofp %523 : vector<128x1xi32> to vector<128x1xf32>
    %525 = vector.extract_strided_slice %4 {offsets = [0, 2], sizes = [128, 1], strides = [1, 1]} : vector<128x4xi32> to vector<128x1xi32>
    %c3_i32_91 = arith.constant 3 : i32
    %526 = vector.broadcast %c3_i32_91 : i32 to vector<128x1xi32>
    %527 = arith.cmpi eq, %525, %526 : vector<128x1xi32>
    %528 = arith.extui %527 : vector<128x1xi1> to vector<128x1xi32>
    %529 = arith.sitofp %528 : vector<128x1xi32> to vector<128x1xf32>
    %530 = vector.extract_strided_slice %4 {offsets = [0, 3], sizes = [128, 1], strides = [1, 1]} : vector<128x4xi32> to vector<128x1xi32>
    %c0_i32_92 = arith.constant 0 : i32
    %531 = vector.broadcast %c0_i32_92 : i32 to vector<128x1xi32>
    %532 = arith.cmpi eq, %530, %531 : vector<128x1xi32>
    %533 = arith.extui %532 : vector<128x1xi1> to vector<128x1xi32>
    %534 = arith.sitofp %533 : vector<128x1xi32> to vector<128x1xf32>
    %535 = vector.extract_strided_slice %4 {offsets = [0, 3], sizes = [128, 1], strides = [1, 1]} : vector<128x4xi32> to vector<128x1xi32>
    %c1_i32_93 = arith.constant 1 : i32
    %536 = vector.broadcast %c1_i32_93 : i32 to vector<128x1xi32>
    %537 = arith.cmpi eq, %535, %536 : vector<128x1xi32>
    %538 = arith.extui %537 : vector<128x1xi1> to vector<128x1xi32>
    %539 = arith.sitofp %538 : vector<128x1xi32> to vector<128x1xf32>
    %540 = vector.extract_strided_slice %4 {offsets = [0, 3], sizes = [128, 1], strides = [1, 1]} : vector<128x4xi32> to vector<128x1xi32>
    %c2_i32_94 = arith.constant 2 : i32
    %541 = vector.broadcast %c2_i32_94 : i32 to vector<128x1xi32>
    %542 = arith.cmpi eq, %540, %541 : vector<128x1xi32>
    %543 = arith.extui %542 : vector<128x1xi1> to vector<128x1xi32>
    %544 = arith.sitofp %543 : vector<128x1xi32> to vector<128x1xf32>
    %545 = vector.extract_strided_slice %4 {offsets = [0, 3], sizes = [128, 1], strides = [1, 1]} : vector<128x4xi32> to vector<128x1xi32>
    %c3_i32_95 = arith.constant 3 : i32
    %546 = vector.broadcast %c3_i32_95 : i32 to vector<128x1xi32>
    %547 = arith.cmpi eq, %545, %546 : vector<128x1xi32>
    %548 = arith.extui %547 : vector<128x1xi1> to vector<128x1xi32>
    %549 = arith.sitofp %548 : vector<128x1xi32> to vector<128x1xf32>
    %550 = vector.extract_strided_slice %460 {offsets = [0, 0], sizes = [128, 16], strides = [1, 1]} : vector<512x17xf32> to vector<128x16xf32>
    %551 = vector.extract_strided_slice %460 {offsets = [128, 0], sizes = [128, 16], strides = [1, 1]} : vector<512x17xf32> to vector<128x16xf32>
    %552 = vector.extract_strided_slice %460 {offsets = [256, 0], sizes = [128, 16], strides = [1, 1]} : vector<512x17xf32> to vector<128x16xf32>
    %553 = vector.extract_strided_slice %460 {offsets = [384, 0], sizes = [128, 16], strides = [1, 1]} : vector<512x17xf32> to vector<128x16xf32>
    %cst_96 = arith.constant 0.000000e+00 : f32
    %554 = vector.broadcast %cst_96 : f32 to vector<128x16xf32>
    %555 = vector.broadcast %474 : vector<128x1xf32> to vector<128x16xf32>
    %556 = arith.mulf %555, %550 : vector<128x16xf32>
    %557 = arith.addf %554, %556 : vector<128x16xf32>
    %558 = vector.broadcast %479 : vector<128x1xf32> to vector<128x16xf32>
    %559 = arith.mulf %558, %551 : vector<128x16xf32>
    %560 = arith.addf %557, %559 : vector<128x16xf32>
    %561 = vector.broadcast %484 : vector<128x1xf32> to vector<128x16xf32>
    %562 = arith.mulf %561, %552 : vector<128x16xf32>
    %563 = arith.addf %560, %562 : vector<128x16xf32>
    %564 = vector.broadcast %489 : vector<128x1xf32> to vector<128x16xf32>
    %565 = arith.mulf %564, %553 : vector<128x16xf32>
    %566 = arith.addf %563, %565 : vector<128x16xf32>
    %cst_97 = arith.constant 0.000000e+00 : f32
    %567 = vector.broadcast %cst_97 : f32 to vector<128x16xf32>
    %568 = vector.broadcast %494 : vector<128x1xf32> to vector<128x16xf32>
    %569 = arith.mulf %568, %550 : vector<128x16xf32>
    %570 = arith.addf %567, %569 : vector<128x16xf32>
    %571 = vector.broadcast %499 : vector<128x1xf32> to vector<128x16xf32>
    %572 = arith.mulf %571, %551 : vector<128x16xf32>
    %573 = arith.addf %570, %572 : vector<128x16xf32>
    %574 = vector.broadcast %504 : vector<128x1xf32> to vector<128x16xf32>
    %575 = arith.mulf %574, %552 : vector<128x16xf32>
    %576 = arith.addf %573, %575 : vector<128x16xf32>
    %577 = vector.broadcast %509 : vector<128x1xf32> to vector<128x16xf32>
    %578 = arith.mulf %577, %553 : vector<128x16xf32>
    %579 = arith.addf %576, %578 : vector<128x16xf32>
    %cst_98 = arith.constant 0.000000e+00 : f32
    %580 = vector.broadcast %cst_98 : f32 to vector<128x16xf32>
    %581 = vector.broadcast %514 : vector<128x1xf32> to vector<128x16xf32>
    %582 = arith.mulf %581, %550 : vector<128x16xf32>
    %583 = arith.addf %580, %582 : vector<128x16xf32>
    %584 = vector.broadcast %519 : vector<128x1xf32> to vector<128x16xf32>
    %585 = arith.mulf %584, %551 : vector<128x16xf32>
    %586 = arith.addf %583, %585 : vector<128x16xf32>
    %587 = vector.broadcast %524 : vector<128x1xf32> to vector<128x16xf32>
    %588 = arith.mulf %587, %552 : vector<128x16xf32>
    %589 = arith.addf %586, %588 : vector<128x16xf32>
    %590 = vector.broadcast %529 : vector<128x1xf32> to vector<128x16xf32>
    %591 = arith.mulf %590, %553 : vector<128x16xf32>
    %592 = arith.addf %589, %591 : vector<128x16xf32>
    %cst_99 = arith.constant 0.000000e+00 : f32
    %593 = vector.broadcast %cst_99 : f32 to vector<128x16xf32>
    %594 = vector.broadcast %534 : vector<128x1xf32> to vector<128x16xf32>
    %595 = arith.mulf %594, %550 : vector<128x16xf32>
    %596 = arith.addf %593, %595 : vector<128x16xf32>
    %597 = vector.broadcast %539 : vector<128x1xf32> to vector<128x16xf32>
    %598 = arith.mulf %597, %551 : vector<128x16xf32>
    %599 = arith.addf %596, %598 : vector<128x16xf32>
    %600 = vector.broadcast %544 : vector<128x1xf32> to vector<128x16xf32>
    %601 = arith.mulf %600, %552 : vector<128x16xf32>
    %602 = arith.addf %599, %601 : vector<128x16xf32>
    %603 = vector.broadcast %549 : vector<128x1xf32> to vector<128x16xf32>
    %604 = arith.mulf %603, %553 : vector<128x16xf32>
    %605 = arith.addf %602, %604 : vector<128x16xf32>
    %cst_100 = arith.constant 0.000000e+00 : f32
    %606 = vector.broadcast %cst_100 : f32 to vector<128x1xf32>
    %cst_101 = arith.constant 0.000000e+00 : f32
    %607 = vector.broadcast %cst_101 : f32 to vector<128x4xf32>
    %cst_102 = arith.constant 0.000000e+00 : f32
    %608 = vector.broadcast %cst_102 : f32 to vector<128x4xf32>
    %609 = vector.extract_strided_slice %579 {offsets = [0, 0], sizes = [128, 4], strides = [1, 1]} : vector<128x16xf32> to vector<128x4xf32>
    %610 = vector.broadcast %474 : vector<128x1xf32> to vector<128x4xf32>
    %611 = arith.mulf %610, %609 : vector<128x4xf32>
    %612 = arith.addf %607, %611 : vector<128x4xf32>
    %613 = vector.extract_strided_slice %566 {offsets = [0, 0], sizes = [128, 4], strides = [1, 1]} : vector<128x16xf32> to vector<128x4xf32>
    %614 = vector.broadcast %494 : vector<128x1xf32> to vector<128x4xf32>
    %615 = arith.mulf %614, %613 : vector<128x4xf32>
    %616 = arith.addf %608, %615 : vector<128x4xf32>
    %617 = vector.extract_strided_slice %579 {offsets = [0, 4], sizes = [128, 4], strides = [1, 1]} : vector<128x16xf32> to vector<128x4xf32>
    %618 = vector.broadcast %479 : vector<128x1xf32> to vector<128x4xf32>
    %619 = arith.mulf %618, %617 : vector<128x4xf32>
    %620 = arith.addf %612, %619 : vector<128x4xf32>
    %621 = vector.extract_strided_slice %566 {offsets = [0, 4], sizes = [128, 4], strides = [1, 1]} : vector<128x16xf32> to vector<128x4xf32>
    %622 = vector.broadcast %499 : vector<128x1xf32> to vector<128x4xf32>
    %623 = arith.mulf %622, %621 : vector<128x4xf32>
    %624 = arith.addf %616, %623 : vector<128x4xf32>
    %625 = vector.extract_strided_slice %579 {offsets = [0, 8], sizes = [128, 4], strides = [1, 1]} : vector<128x16xf32> to vector<128x4xf32>
    %626 = vector.broadcast %484 : vector<128x1xf32> to vector<128x4xf32>
    %627 = arith.mulf %626, %625 : vector<128x4xf32>
    %628 = arith.addf %620, %627 : vector<128x4xf32>
    %629 = vector.extract_strided_slice %566 {offsets = [0, 8], sizes = [128, 4], strides = [1, 1]} : vector<128x16xf32> to vector<128x4xf32>
    %630 = vector.broadcast %504 : vector<128x1xf32> to vector<128x4xf32>
    %631 = arith.mulf %630, %629 : vector<128x4xf32>
    %632 = arith.addf %624, %631 : vector<128x4xf32>
    %633 = vector.extract_strided_slice %579 {offsets = [0, 12], sizes = [128, 4], strides = [1, 1]} : vector<128x16xf32> to vector<128x4xf32>
    %634 = vector.broadcast %489 : vector<128x1xf32> to vector<128x4xf32>
    %635 = arith.mulf %634, %633 : vector<128x4xf32>
    %636 = arith.addf %628, %635 : vector<128x4xf32>
    %637 = vector.extract_strided_slice %566 {offsets = [0, 12], sizes = [128, 4], strides = [1, 1]} : vector<128x16xf32> to vector<128x4xf32>
    %638 = vector.broadcast %509 : vector<128x1xf32> to vector<128x4xf32>
    %639 = arith.mulf %638, %637 : vector<128x4xf32>
    %640 = arith.addf %632, %639 : vector<128x4xf32>
    %641 = arith.mulf %636, %640 : vector<128x4xf32>
    %cst_103 = arith.constant dense<0.000000e+00> : vector<128xf32>
    %642 = vector.multi_reduction <add>, %641, %cst_103 [1] : vector<128x4xf32> to vector<128xf32>
    %643 = vector.shape_cast %642 : vector<128xf32> to vector<128x1xf32>
    %644 = arith.addf %606, %643 : vector<128x1xf32>
    %cst_104 = arith.constant 0.000000e+00 : f32
    %645 = vector.broadcast %cst_104 : f32 to vector<128x4xf32>
    %cst_105 = arith.constant 0.000000e+00 : f32
    %646 = vector.broadcast %cst_105 : f32 to vector<128x4xf32>
    %647 = vector.extract_strided_slice %592 {offsets = [0, 0], sizes = [128, 4], strides = [1, 1]} : vector<128x16xf32> to vector<128x4xf32>
    %648 = vector.broadcast %474 : vector<128x1xf32> to vector<128x4xf32>
    %649 = arith.mulf %648, %647 : vector<128x4xf32>
    %650 = arith.addf %645, %649 : vector<128x4xf32>
    %651 = vector.extract_strided_slice %566 {offsets = [0, 0], sizes = [128, 4], strides = [1, 1]} : vector<128x16xf32> to vector<128x4xf32>
    %652 = vector.broadcast %514 : vector<128x1xf32> to vector<128x4xf32>
    %653 = arith.mulf %652, %651 : vector<128x4xf32>
    %654 = arith.addf %646, %653 : vector<128x4xf32>
    %655 = vector.extract_strided_slice %592 {offsets = [0, 4], sizes = [128, 4], strides = [1, 1]} : vector<128x16xf32> to vector<128x4xf32>
    %656 = vector.broadcast %479 : vector<128x1xf32> to vector<128x4xf32>
    %657 = arith.mulf %656, %655 : vector<128x4xf32>
    %658 = arith.addf %650, %657 : vector<128x4xf32>
    %659 = vector.extract_strided_slice %566 {offsets = [0, 4], sizes = [128, 4], strides = [1, 1]} : vector<128x16xf32> to vector<128x4xf32>
    %660 = vector.broadcast %519 : vector<128x1xf32> to vector<128x4xf32>
    %661 = arith.mulf %660, %659 : vector<128x4xf32>
    %662 = arith.addf %654, %661 : vector<128x4xf32>
    %663 = vector.extract_strided_slice %592 {offsets = [0, 8], sizes = [128, 4], strides = [1, 1]} : vector<128x16xf32> to vector<128x4xf32>
    %664 = vector.broadcast %484 : vector<128x1xf32> to vector<128x4xf32>
    %665 = arith.mulf %664, %663 : vector<128x4xf32>
    %666 = arith.addf %658, %665 : vector<128x4xf32>
    %667 = vector.extract_strided_slice %566 {offsets = [0, 8], sizes = [128, 4], strides = [1, 1]} : vector<128x16xf32> to vector<128x4xf32>
    %668 = vector.broadcast %524 : vector<128x1xf32> to vector<128x4xf32>
    %669 = arith.mulf %668, %667 : vector<128x4xf32>
    %670 = arith.addf %662, %669 : vector<128x4xf32>
    %671 = vector.extract_strided_slice %592 {offsets = [0, 12], sizes = [128, 4], strides = [1, 1]} : vector<128x16xf32> to vector<128x4xf32>
    %672 = vector.broadcast %489 : vector<128x1xf32> to vector<128x4xf32>
    %673 = arith.mulf %672, %671 : vector<128x4xf32>
    %674 = arith.addf %666, %673 : vector<128x4xf32>
    %675 = vector.extract_strided_slice %566 {offsets = [0, 12], sizes = [128, 4], strides = [1, 1]} : vector<128x16xf32> to vector<128x4xf32>
    %676 = vector.broadcast %529 : vector<128x1xf32> to vector<128x4xf32>
    %677 = arith.mulf %676, %675 : vector<128x4xf32>
    %678 = arith.addf %670, %677 : vector<128x4xf32>
    %679 = arith.mulf %674, %678 : vector<128x4xf32>
    %cst_106 = arith.constant dense<0.000000e+00> : vector<128xf32>
    %680 = vector.multi_reduction <add>, %679, %cst_106 [1] : vector<128x4xf32> to vector<128xf32>
    %681 = vector.shape_cast %680 : vector<128xf32> to vector<128x1xf32>
    %682 = arith.addf %644, %681 : vector<128x1xf32>
    %cst_107 = arith.constant 0.000000e+00 : f32
    %683 = vector.broadcast %cst_107 : f32 to vector<128x4xf32>
    %cst_108 = arith.constant 0.000000e+00 : f32
    %684 = vector.broadcast %cst_108 : f32 to vector<128x4xf32>
    %685 = vector.extract_strided_slice %592 {offsets = [0, 0], sizes = [128, 4], strides = [1, 1]} : vector<128x16xf32> to vector<128x4xf32>
    %686 = vector.broadcast %494 : vector<128x1xf32> to vector<128x4xf32>
    %687 = arith.mulf %686, %685 : vector<128x4xf32>
    %688 = arith.addf %683, %687 : vector<128x4xf32>
    %689 = vector.extract_strided_slice %579 {offsets = [0, 0], sizes = [128, 4], strides = [1, 1]} : vector<128x16xf32> to vector<128x4xf32>
    %690 = vector.broadcast %514 : vector<128x1xf32> to vector<128x4xf32>
    %691 = arith.mulf %690, %689 : vector<128x4xf32>
    %692 = arith.addf %684, %691 : vector<128x4xf32>
    %693 = vector.extract_strided_slice %592 {offsets = [0, 4], sizes = [128, 4], strides = [1, 1]} : vector<128x16xf32> to vector<128x4xf32>
    %694 = vector.broadcast %499 : vector<128x1xf32> to vector<128x4xf32>
    %695 = arith.mulf %694, %693 : vector<128x4xf32>
    %696 = arith.addf %688, %695 : vector<128x4xf32>
    %697 = vector.extract_strided_slice %579 {offsets = [0, 4], sizes = [128, 4], strides = [1, 1]} : vector<128x16xf32> to vector<128x4xf32>
    %698 = vector.broadcast %519 : vector<128x1xf32> to vector<128x4xf32>
    %699 = arith.mulf %698, %697 : vector<128x4xf32>
    %700 = arith.addf %692, %699 : vector<128x4xf32>
    %701 = vector.extract_strided_slice %592 {offsets = [0, 8], sizes = [128, 4], strides = [1, 1]} : vector<128x16xf32> to vector<128x4xf32>
    %702 = vector.broadcast %504 : vector<128x1xf32> to vector<128x4xf32>
    %703 = arith.mulf %702, %701 : vector<128x4xf32>
    %704 = arith.addf %696, %703 : vector<128x4xf32>
    %705 = vector.extract_strided_slice %579 {offsets = [0, 8], sizes = [128, 4], strides = [1, 1]} : vector<128x16xf32> to vector<128x4xf32>
    %706 = vector.broadcast %524 : vector<128x1xf32> to vector<128x4xf32>
    %707 = arith.mulf %706, %705 : vector<128x4xf32>
    %708 = arith.addf %700, %707 : vector<128x4xf32>
    %709 = vector.extract_strided_slice %592 {offsets = [0, 12], sizes = [128, 4], strides = [1, 1]} : vector<128x16xf32> to vector<128x4xf32>
    %710 = vector.broadcast %509 : vector<128x1xf32> to vector<128x4xf32>
    %711 = arith.mulf %710, %709 : vector<128x4xf32>
    %712 = arith.addf %704, %711 : vector<128x4xf32>
    %713 = vector.extract_strided_slice %579 {offsets = [0, 12], sizes = [128, 4], strides = [1, 1]} : vector<128x16xf32> to vector<128x4xf32>
    %714 = vector.broadcast %529 : vector<128x1xf32> to vector<128x4xf32>
    %715 = arith.mulf %714, %713 : vector<128x4xf32>
    %716 = arith.addf %708, %715 : vector<128x4xf32>
    %717 = arith.mulf %712, %716 : vector<128x4xf32>
    %cst_109 = arith.constant dense<0.000000e+00> : vector<128xf32>
    %718 = vector.multi_reduction <add>, %717, %cst_109 [1] : vector<128x4xf32> to vector<128xf32>
    %719 = vector.shape_cast %718 : vector<128xf32> to vector<128x1xf32>
    %720 = arith.addf %682, %719 : vector<128x1xf32>
    %cst_110 = arith.constant 0.000000e+00 : f32
    %721 = vector.broadcast %cst_110 : f32 to vector<128x4xf32>
    %cst_111 = arith.constant 0.000000e+00 : f32
    %722 = vector.broadcast %cst_111 : f32 to vector<128x4xf32>
    %723 = vector.extract_strided_slice %605 {offsets = [0, 0], sizes = [128, 4], strides = [1, 1]} : vector<128x16xf32> to vector<128x4xf32>
    %724 = vector.broadcast %474 : vector<128x1xf32> to vector<128x4xf32>
    %725 = arith.mulf %724, %723 : vector<128x4xf32>
    %726 = arith.addf %721, %725 : vector<128x4xf32>
    %727 = vector.extract_strided_slice %566 {offsets = [0, 0], sizes = [128, 4], strides = [1, 1]} : vector<128x16xf32> to vector<128x4xf32>
    %728 = vector.broadcast %534 : vector<128x1xf32> to vector<128x4xf32>
    %729 = arith.mulf %728, %727 : vector<128x4xf32>
    %730 = arith.addf %722, %729 : vector<128x4xf32>
    %731 = vector.extract_strided_slice %605 {offsets = [0, 4], sizes = [128, 4], strides = [1, 1]} : vector<128x16xf32> to vector<128x4xf32>
    %732 = vector.broadcast %479 : vector<128x1xf32> to vector<128x4xf32>
    %733 = arith.mulf %732, %731 : vector<128x4xf32>
    %734 = arith.addf %726, %733 : vector<128x4xf32>
    %735 = vector.extract_strided_slice %566 {offsets = [0, 4], sizes = [128, 4], strides = [1, 1]} : vector<128x16xf32> to vector<128x4xf32>
    %736 = vector.broadcast %539 : vector<128x1xf32> to vector<128x4xf32>
    %737 = arith.mulf %736, %735 : vector<128x4xf32>
    %738 = arith.addf %730, %737 : vector<128x4xf32>
    %739 = vector.extract_strided_slice %605 {offsets = [0, 8], sizes = [128, 4], strides = [1, 1]} : vector<128x16xf32> to vector<128x4xf32>
    %740 = vector.broadcast %484 : vector<128x1xf32> to vector<128x4xf32>
    %741 = arith.mulf %740, %739 : vector<128x4xf32>
    %742 = arith.addf %734, %741 : vector<128x4xf32>
    %743 = vector.extract_strided_slice %566 {offsets = [0, 8], sizes = [128, 4], strides = [1, 1]} : vector<128x16xf32> to vector<128x4xf32>
    %744 = vector.broadcast %544 : vector<128x1xf32> to vector<128x4xf32>
    %745 = arith.mulf %744, %743 : vector<128x4xf32>
    %746 = arith.addf %738, %745 : vector<128x4xf32>
    %747 = vector.extract_strided_slice %605 {offsets = [0, 12], sizes = [128, 4], strides = [1, 1]} : vector<128x16xf32> to vector<128x4xf32>
    %748 = vector.broadcast %489 : vector<128x1xf32> to vector<128x4xf32>
    %749 = arith.mulf %748, %747 : vector<128x4xf32>
    %750 = arith.addf %742, %749 : vector<128x4xf32>
    %751 = vector.extract_strided_slice %566 {offsets = [0, 12], sizes = [128, 4], strides = [1, 1]} : vector<128x16xf32> to vector<128x4xf32>
    %752 = vector.broadcast %549 : vector<128x1xf32> to vector<128x4xf32>
    %753 = arith.mulf %752, %751 : vector<128x4xf32>
    %754 = arith.addf %746, %753 : vector<128x4xf32>
    %755 = arith.mulf %750, %754 : vector<128x4xf32>
    %cst_112 = arith.constant dense<0.000000e+00> : vector<128xf32>
    %756 = vector.multi_reduction <add>, %755, %cst_112 [1] : vector<128x4xf32> to vector<128xf32>
    %757 = vector.shape_cast %756 : vector<128xf32> to vector<128x1xf32>
    %758 = arith.addf %720, %757 : vector<128x1xf32>
    %cst_113 = arith.constant 0.000000e+00 : f32
    %759 = vector.broadcast %cst_113 : f32 to vector<128x4xf32>
    %cst_114 = arith.constant 0.000000e+00 : f32
    %760 = vector.broadcast %cst_114 : f32 to vector<128x4xf32>
    %761 = vector.extract_strided_slice %605 {offsets = [0, 0], sizes = [128, 4], strides = [1, 1]} : vector<128x16xf32> to vector<128x4xf32>
    %762 = vector.broadcast %494 : vector<128x1xf32> to vector<128x4xf32>
    %763 = arith.mulf %762, %761 : vector<128x4xf32>
    %764 = arith.addf %759, %763 : vector<128x4xf32>
    %765 = vector.extract_strided_slice %579 {offsets = [0, 0], sizes = [128, 4], strides = [1, 1]} : vector<128x16xf32> to vector<128x4xf32>
    %766 = vector.broadcast %534 : vector<128x1xf32> to vector<128x4xf32>
    %767 = arith.mulf %766, %765 : vector<128x4xf32>
    %768 = arith.addf %760, %767 : vector<128x4xf32>
    %769 = vector.extract_strided_slice %605 {offsets = [0, 4], sizes = [128, 4], strides = [1, 1]} : vector<128x16xf32> to vector<128x4xf32>
    %770 = vector.broadcast %499 : vector<128x1xf32> to vector<128x4xf32>
    %771 = arith.mulf %770, %769 : vector<128x4xf32>
    %772 = arith.addf %764, %771 : vector<128x4xf32>
    %773 = vector.extract_strided_slice %579 {offsets = [0, 4], sizes = [128, 4], strides = [1, 1]} : vector<128x16xf32> to vector<128x4xf32>
    %774 = vector.broadcast %539 : vector<128x1xf32> to vector<128x4xf32>
    %775 = arith.mulf %774, %773 : vector<128x4xf32>
    %776 = arith.addf %768, %775 : vector<128x4xf32>
    %777 = vector.extract_strided_slice %605 {offsets = [0, 8], sizes = [128, 4], strides = [1, 1]} : vector<128x16xf32> to vector<128x4xf32>
    %778 = vector.broadcast %504 : vector<128x1xf32> to vector<128x4xf32>
    %779 = arith.mulf %778, %777 : vector<128x4xf32>
    %780 = arith.addf %772, %779 : vector<128x4xf32>
    %781 = vector.extract_strided_slice %579 {offsets = [0, 8], sizes = [128, 4], strides = [1, 1]} : vector<128x16xf32> to vector<128x4xf32>
    %782 = vector.broadcast %544 : vector<128x1xf32> to vector<128x4xf32>
    %783 = arith.mulf %782, %781 : vector<128x4xf32>
    %784 = arith.addf %776, %783 : vector<128x4xf32>
    %785 = vector.extract_strided_slice %605 {offsets = [0, 12], sizes = [128, 4], strides = [1, 1]} : vector<128x16xf32> to vector<128x4xf32>
    %786 = vector.broadcast %509 : vector<128x1xf32> to vector<128x4xf32>
    %787 = arith.mulf %786, %785 : vector<128x4xf32>
    %788 = arith.addf %780, %787 : vector<128x4xf32>
    %789 = vector.extract_strided_slice %579 {offsets = [0, 12], sizes = [128, 4], strides = [1, 1]} : vector<128x16xf32> to vector<128x4xf32>
    %790 = vector.broadcast %549 : vector<128x1xf32> to vector<128x4xf32>
    %791 = arith.mulf %790, %789 : vector<128x4xf32>
    %792 = arith.addf %784, %791 : vector<128x4xf32>
    %793 = arith.mulf %788, %792 : vector<128x4xf32>
    %cst_115 = arith.constant dense<0.000000e+00> : vector<128xf32>
    %794 = vector.multi_reduction <add>, %793, %cst_115 [1] : vector<128x4xf32> to vector<128xf32>
    %795 = vector.shape_cast %794 : vector<128xf32> to vector<128x1xf32>
    %796 = arith.addf %758, %795 : vector<128x1xf32>
    %cst_116 = arith.constant 0.000000e+00 : f32
    %797 = vector.broadcast %cst_116 : f32 to vector<128x4xf32>
    %cst_117 = arith.constant 0.000000e+00 : f32
    %798 = vector.broadcast %cst_117 : f32 to vector<128x4xf32>
    %799 = vector.extract_strided_slice %605 {offsets = [0, 0], sizes = [128, 4], strides = [1, 1]} : vector<128x16xf32> to vector<128x4xf32>
    %800 = vector.broadcast %514 : vector<128x1xf32> to vector<128x4xf32>
    %801 = arith.mulf %800, %799 : vector<128x4xf32>
    %802 = arith.addf %797, %801 : vector<128x4xf32>
    %803 = vector.extract_strided_slice %592 {offsets = [0, 0], sizes = [128, 4], strides = [1, 1]} : vector<128x16xf32> to vector<128x4xf32>
    %804 = vector.broadcast %534 : vector<128x1xf32> to vector<128x4xf32>
    %805 = arith.mulf %804, %803 : vector<128x4xf32>
    %806 = arith.addf %798, %805 : vector<128x4xf32>
    %807 = vector.extract_strided_slice %605 {offsets = [0, 4], sizes = [128, 4], strides = [1, 1]} : vector<128x16xf32> to vector<128x4xf32>
    %808 = vector.broadcast %519 : vector<128x1xf32> to vector<128x4xf32>
    %809 = arith.mulf %808, %807 : vector<128x4xf32>
    %810 = arith.addf %802, %809 : vector<128x4xf32>
    %811 = vector.extract_strided_slice %592 {offsets = [0, 4], sizes = [128, 4], strides = [1, 1]} : vector<128x16xf32> to vector<128x4xf32>
    %812 = vector.broadcast %539 : vector<128x1xf32> to vector<128x4xf32>
    %813 = arith.mulf %812, %811 : vector<128x4xf32>
    %814 = arith.addf %806, %813 : vector<128x4xf32>
    %815 = vector.extract_strided_slice %605 {offsets = [0, 8], sizes = [128, 4], strides = [1, 1]} : vector<128x16xf32> to vector<128x4xf32>
    %816 = vector.broadcast %524 : vector<128x1xf32> to vector<128x4xf32>
    %817 = arith.mulf %816, %815 : vector<128x4xf32>
    %818 = arith.addf %810, %817 : vector<128x4xf32>
    %819 = vector.extract_strided_slice %592 {offsets = [0, 8], sizes = [128, 4], strides = [1, 1]} : vector<128x16xf32> to vector<128x4xf32>
    %820 = vector.broadcast %544 : vector<128x1xf32> to vector<128x4xf32>
    %821 = arith.mulf %820, %819 : vector<128x4xf32>
    %822 = arith.addf %814, %821 : vector<128x4xf32>
    %823 = vector.extract_strided_slice %605 {offsets = [0, 12], sizes = [128, 4], strides = [1, 1]} : vector<128x16xf32> to vector<128x4xf32>
    %824 = vector.broadcast %529 : vector<128x1xf32> to vector<128x4xf32>
    %825 = arith.mulf %824, %823 : vector<128x4xf32>
    %826 = arith.addf %818, %825 : vector<128x4xf32>
    %827 = vector.extract_strided_slice %592 {offsets = [0, 12], sizes = [128, 4], strides = [1, 1]} : vector<128x16xf32> to vector<128x4xf32>
    %828 = vector.broadcast %549 : vector<128x1xf32> to vector<128x4xf32>
    %829 = arith.mulf %828, %827 : vector<128x4xf32>
    %830 = arith.addf %822, %829 : vector<128x4xf32>
    %831 = arith.mulf %826, %830 : vector<128x4xf32>
    %cst_118 = arith.constant dense<0.000000e+00> : vector<128xf32>
    %832 = vector.multi_reduction <add>, %831, %cst_118 [1] : vector<128x4xf32> to vector<128xf32>
    %833 = vector.shape_cast %832 : vector<128xf32> to vector<128x1xf32>
    %834 = arith.addf %796, %833 : vector<128x1xf32>
    %835 = arith.addf %834, %469 : vector<128x1xf32>
    %cst_119 = arith.constant 0.000000e+00 : f32
    %836 = vector.broadcast %cst_119 : f32 to vector<128x1xf32>
    %837 = arith.addf %835, %836 : vector<128x1xf32>
    %838 = vector.shape_cast %837 : vector<128x1xf32> to vector<1x1x128xf32>
    %c0_120 = arith.constant 0 : index
    %c0_121 = arith.constant 0 : index
    %c0_122 = arith.constant 0 : index
    %839 = vector.load %arg7[%c0_120, %c0_121, %c0_122] : memref<1x1x128xf32, #tpu.memory_space<vmem>>, vector<1x1x128xf32>
    tpu.vector_store %arg7[%c0_120, %c0_121, %c0_122], %838 {strides = array<i32>} : memref<1x1x128xf32, #tpu.memory_space<vmem>>, vector<1x1x128xf32>,
    return
  }
  func.func @transform_0(%arg0: i32) -> (i32, i32) {
    %c0_i32 = arith.constant 0 : i32
    %c0_i32_0 = arith.constant 0 : i32
    return %arg0, %c0_i32 : i32, i32
  }
  func.func @transform_1(%arg0: i32) -> (i32, i32) {
    %c0_i32 = arith.constant 0 : i32
    %c0_i32_0 = arith.constant 0 : i32
    return %arg0, %c0_i32 : i32, i32
  }
  func.func @transform_2(%arg0: i32) -> (i32, i32) {
    %c0_i32 = arith.constant 0 : i32
    %c0_i32_0 = arith.constant 0 : i32
    return %arg0, %c0_i32 : i32, i32
  }
  func.func @transform_3(%arg0: i32) -> (i32, i32) {
    %c0_i32 = arith.constant 0 : i32
    %c0_i32_0 = arith.constant 0 : i32
    return %arg0, %c0_i32 : i32, i32
  }
  func.func @transform_4(%arg0: i32) -> (i32, i32) {
    %c0_i32 = arith.constant 0 : i32
    %c0_i32_0 = arith.constant 0 : i32
    return %arg0, %c0_i32 : i32, i32
  }
  func.func @transform_5(%arg0: i32) -> (i32, i32) {
    %c0_i32 = arith.constant 0 : i32
    %c0_i32_0 = arith.constant 0 : i32
    %c0_i32_1 = arith.constant 0 : i32
    return %c0_i32, %c0_i32_0 : i32, i32
  }
  func.func @transform_6(%arg0: i32) -> (i32, i32, i32) {
    %c0_i32 = arith.constant 0 : i32
    %c0_i32_0 = arith.constant 0 : i32
    %c0_i32_1 = arith.constant 0 : i32
    return %arg0, %c0_i32, %c0_i32_0 : i32, i32, i32
  }
}

</mosaic_0001>

<llo_original>
// kernel: tpu_custom_call.1
$region0: #{tpu_custom_call.1}
  #allocation0 [shape = 'u32[]', space=smem, size = 0x4, offset = 0x4, fixed_abs, tag = 'smem constant byte address 0x4 - core index']
  #allocation1 [shape = 'u32[144,128]{1,0:T(1,128)}', space=vmem, size = 0x12000, scoped, tag = 'internal scratch']
  %s0 = inlined_call_operand.vmem [shape: s32[128,8], index: 0, kind: input, shape index: {}]
  %s1 = inlined_call_operand.vmem [shape: f32[128,8], index: 1, kind: input, shape index: {}]
  %s2 = inlined_call_operand.vmem [shape: s32[128,4], index: 2, kind: input, shape index: {}]
  %s3 = inlined_call_operand.vmem [shape: s32[128,4], index: 3, kind: input, shape index: {}]
  %s4 = inlined_call_operand.vmem [shape: s32[128,4], index: 4, kind: input, shape index: {}]
  %s5 = inlined_call_operand.vmem [shape: f32[32,17], index: 5, kind: input, shape index: {}]
  %s6 = inlined_call_operand.hbm [shape: f32[1,1,128], index: 6, kind: output, shape index: {}]
  %s7 = sld [smem:[#allocation0]]
  $region34: #{tpu_custom_call.1} parent=0
    _
  %s9 = ssub.s32 1, %s7
  %s10 = scalar_select 0, %s9, %s7
  $region1: #{tpu_custom_call.1} parent=0
    #allocation2 [shape = 'u8[512]{0}', space=vmem, size = 0x400, scoped, tag = 'output window, operand 0, single buffered']
    #allocation3 [shape = 's32[1]{0}', space=sflag, size = 0x4, scoped, tag = 'scoped memory for tpu_custom_call.1']
    %11 = vsyncpa [#allocation3], 0
    // Predicated region
    $region2: #{tpu_custom_call.1} parent=1 // pred_check
      _
    $region3: #{tpu_custom_call.1} parent=1 // pred_check_branch
      %13 = sbr.rel (0) target = $region5
    $region4: #{tpu_custom_call.1} parent=1 // pred_region
      _
    $region5: #{tpu_custom_call.1} parent=1 // pred_fallthru
      _
    // Predicated region
    $region6: #{tpu_custom_call.1} parent=1 // pred_check
      _
    $region7: #{tpu_custom_call.1} parent=1 // pred_check_branch
      %15 = sbr.rel (0) target = $region9
    $region8: #{tpu_custom_call.1} parent=1 // pred_region
      _
    $region9: #{tpu_custom_call.1} parent=1 // pred_fallthru
      _
    // Predicated region
    $region10: #{tpu_custom_call.1} parent=1 // pred_check
      _
    $region11: #{tpu_custom_call.1} parent=1 // pred_check_branch
      %17 = sbr.rel (0) target = $region13
    $region12: #{tpu_custom_call.1} parent=1 // pred_region
      _
    $region13: #{tpu_custom_call.1} parent=1 // pred_fallthru
      _
    // Predicated region
    $region14: #{tpu_custom_call.1} parent=1 // pred_check
      _
    $region15: #{tpu_custom_call.1} parent=1 // pred_check_branch
      %19 = sbr.rel (0) target = $region17
    $region16: #{tpu_custom_call.1} parent=1 // pred_region
      _
    $region17: #{tpu_custom_call.1} parent=1 // pred_fallthru
      _
    // Predicated region
    $region18: #{tpu_custom_call.1} parent=1 // pred_check
      _
    $region19: #{tpu_custom_call.1} parent=1 // pred_check_branch
      %21 = sbr.rel (0) target = $region21
    $region20: #{tpu_custom_call.1} parent=1 // pred_region
      _
    $region21: #{tpu_custom_call.1} parent=1 // pred_fallthru
      _
    // Predicated region
    $region22: #{tpu_custom_call.1} parent=1 // pred_check
      _
    $region23: #{tpu_custom_call.1} parent=1 // pred_check_branch
      %23 = sbr.rel (0) target = $region25
    $region24: #{tpu_custom_call.1} parent=1 // pred_region
      _
    $region25: #{tpu_custom_call.1} parent=1 // pred_fallthru
      _
    %v24 = vld [vmem:[%s0] sm:$0xff]
    %v25 = vld [vmem:[%s0 + $0x8] sm:$0xff]
    %v26 = vld [vmem:[%s0 + $0x10] sm:$0xff]
    %v27 = vld [vmem:[%s0 + $0x18] sm:$0xff]
    %v28 = vld [vmem:[%s0 + $0x20] sm:$0xff]
    %v29 = vld [vmem:[%s0 + $0x28] sm:$0xff]
    %v30 = vld [vmem:[%s0 + $0x30] sm:$0xff]
    %v31 = vld [vmem:[%s0 + $0x38] sm:$0xff]
    %v32 = vld [vmem:[%s0 + $0x40] sm:$0xff]
    %v33 = vld [vmem:[%s0 + $0x48] sm:$0xff]
    %v34 = vld [vmem:[%s0 + $0x50] sm:$0xff]
    %v35 = vld [vmem:[%s0 + $0x58] sm:$0xff]
    %v36 = vld [vmem:[%s0 + $0x60] sm:$0xff]
    %v37 = vld [vmem:[%s0 + $0x68] sm:$0xff]
    %v38 = vld [vmem:[%s0 + $0x70] sm:$0xff]
    %v39 = vld [vmem:[%s0 + $0x78] sm:$0xff]
    %v40 = vld [vmem:[%s1] sm:$0xff]
    %v41 = vld [vmem:[%s1 + $0x8] sm:$0xff]
    %v42 = vld [vmem:[%s1 + $0x10] sm:$0xff]
    %v43 = vld [vmem:[%s1 + $0x18] sm:$0xff]
    %v44 = vld [vmem:[%s1 + $0x20] sm:$0xff]
    %v45 = vld [vmem:[%s1 + $0x28] sm:$0xff]
    %v46 = vld [vmem:[%s1 + $0x30] sm:$0xff]
    %v47 = vld [vmem:[%s1 + $0x38] sm:$0xff]
    %v48 = vld [vmem:[%s1 + $0x40] sm:$0xff]
    %v49 = vld [vmem:[%s1 + $0x48] sm:$0xff]
    %v50 = vld [vmem:[%s1 + $0x50] sm:$0xff]
    %v51 = vld [vmem:[%s1 + $0x58] sm:$0xff]
    %v52 = vld [vmem:[%s1 + $0x60] sm:$0xff]
    %v53 = vld [vmem:[%s1 + $0x68] sm:$0xff]
    %v54 = vld [vmem:[%s1 + $0x70] sm:$0xff]
    %v55 = vld [vmem:[%s1 + $0x78] sm:$0xff]
    %v56 = vld [vmem:[%s2] sm:$0xff]
    %v57 = vld [vmem:[%s2 + $0x8] sm:$0xff]
    %v58 = vld [vmem:[%s2 + $0x10] sm:$0xff]
    %v59 = vld [vmem:[%s2 + $0x18] sm:$0xff]
    %v60 = vld [vmem:[%s2 + $0x20] sm:$0xff]
    %v61 = vld [vmem:[%s2 + $0x28] sm:$0xff]
    %v62 = vld [vmem:[%s2 + $0x30] sm:$0xff]
    %v63 = vld [vmem:[%s2 + $0x38] sm:$0xff]
    %v64 = vld [vmem:[%s2 + $0x40] sm:$0xff]
    %v65 = vld [vmem:[%s2 + $0x48] sm:$0xff]
    %v66 = vld [vmem:[%s2 + $0x50] sm:$0xff]
    %v67 = vld [vmem:[%s2 + $0x58] sm:$0xff]
    %v68 = vld [vmem:[%s2 + $0x60] sm:$0xff]
    %v69 = vld [vmem:[%s2 + $0x68] sm:$0xff]
    %v70 = vld [vmem:[%s2 + $0x70] sm:$0xff]
    %v71 = vld [vmem:[%s2 + $0x78] sm:$0xff]
    %v72 = vld [vmem:[%s3] sm:$0xff]
    %v73 = vld [vmem:[%s3 + $0x8] sm:$0xff]
    %v74 = vld [vmem:[%s3 + $0x10] sm:$0xff]
    %v75 = vld [vmem:[%s3 + $0x18] sm:$0xff]
    %v76 = vld [vmem:[%s3 + $0x20] sm:$0xff]
    %v77 = vld [vmem:[%s3 + $0x28] sm:$0xff]
    %v78 = vld [vmem:[%s3 + $0x30] sm:$0xff]
    %v79 = vld [vmem:[%s3 + $0x38] sm:$0xff]
    %v80 = vld [vmem:[%s3 + $0x40] sm:$0xff]
    %v81 = vld [vmem:[%s3 + $0x48] sm:$0xff]
    %v82 = vld [vmem:[%s3 + $0x50] sm:$0xff]
    %v83 = vld [vmem:[%s3 + $0x58] sm:$0xff]
    %v84 = vld [vmem:[%s3 + $0x60] sm:$0xff]
    %v85 = vld [vmem:[%s3 + $0x68] sm:$0xff]
    %v86 = vld [vmem:[%s3 + $0x70] sm:$0xff]
    %v87 = vld [vmem:[%s3 + $0x78] sm:$0xff]
    %v88 = vld [vmem:[%s4] sm:$0xff]
    %v89 = vld [vmem:[%s4 + $0x8] sm:$0xff]
    %v90 = vld [vmem:[%s4 + $0x10] sm:$0xff]
    %v91 = vld [vmem:[%s4 + $0x18] sm:$0xff]
    %v92 = vld [vmem:[%s4 + $0x20] sm:$0xff]
    %v93 = vld [vmem:[%s4 + $0x28] sm:$0xff]
    %v94 = vld [vmem:[%s4 + $0x30] sm:$0xff]
    %v95 = vld [vmem:[%s4 + $0x38] sm:$0xff]
    %v96 = vld [vmem:[%s4 + $0x40] sm:$0xff]
    %v97 = vld [vmem:[%s4 + $0x48] sm:$0xff]
    %v98 = vld [vmem:[%s4 + $0x50] sm:$0xff]
    %v99 = vld [vmem:[%s4 + $0x58] sm:$0xff]
    %v100 = vld [vmem:[%s4 + $0x60] sm:$0xff]
    %v101 = vld [vmem:[%s4 + $0x68] sm:$0xff]
    %v102 = vld [vmem:[%s4 + $0x70] sm:$0xff]
    %v103 = vld [vmem:[%s4 + $0x78] sm:$0xff]
    %v104 = vlaneseq
    %v105 = vand.u32 %v104, 127
    %106 = vset.pattern.permute.xlu0 0
    %107 = vperm.xlu0 %106, %v24
    %v108 = vpop.permute.xlu0 %107
    %109 = vset.pattern.permute.xlu0 0
    %110 = vperm.xlu0 %109, %v25
    %v111 = vpop.permute.xlu0 %110
    %112 = vset.pattern.permute.xlu0 0
    %113 = vperm.xlu0 %112, %v26
    %v114 = vpop.permute.xlu0 %113
    %115 = vset.pattern.permute.xlu0 0
    %116 = vperm.xlu0 %115, %v27
    %v117 = vpop.permute.xlu0 %116
    %118 = vset.pattern.permute.xlu0 0
    %119 = vperm.xlu0 %118, %v28
    %v120 = vpop.permute.xlu0 %119
    %121 = vset.pattern.permute.xlu0 0
    %122 = vperm.xlu0 %121, %v29
    %v123 = vpop.permute.xlu0 %122
    %124 = vset.pattern.permute.xlu0 0
    %125 = vperm.xlu0 %124, %v30
    %v126 = vpop.permute.xlu0 %125
    %127 = vset.pattern.permute.xlu0 0
    %128 = vperm.xlu0 %127, %v31
    %v129 = vpop.permute.xlu0 %128
    %130 = vset.pattern.permute.xlu0 0
    %131 = vperm.xlu0 %130, %v32
    %v132 = vpop.permute.xlu0 %131
    %133 = vset.pattern.permute.xlu0 0
    %134 = vperm.xlu0 %133, %v33
    %v135 = vpop.permute.xlu0 %134
    %136 = vset.pattern.permute.xlu0 0
    %137 = vperm.xlu0 %136, %v34
    %v138 = vpop.permute.xlu0 %137
    %139 = vset.pattern.permute.xlu0 0
    %140 = vperm.xlu0 %139, %v35
    %v141 = vpop.permute.xlu0 %140
    %142 = vset.pattern.permute.xlu0 0
    %143 = vperm.xlu0 %142, %v36
    %v144 = vpop.permute.xlu0 %143
    %145 = vset.pattern.permute.xlu0 0
    %146 = vperm.xlu0 %145, %v37
    %v147 = vpop.permute.xlu0 %146
    %148 = vset.pattern.permute.xlu0 0
    %149 = vperm.xlu0 %148, %v38
    %v150 = vpop.permute.xlu0 %149
    %151 = vset.pattern.permute.xlu0 0
    %152 = vperm.xlu0 %151, %v39
    %v153 = vpop.permute.xlu0 %152
    %vm154 = vcmp.eq.s32.totalorder %v105, %v108
    %vm155 = vcmp.eq.s32.totalorder %v105, %v111
    %vm156 = vcmp.eq.s32.totalorder %v105, %v114
    %vm157 = vcmp.eq.s32.totalorder %v105, %v117
    %vm158 = vcmp.eq.s32.totalorder %v105, %v120
    %vm159 = vcmp.eq.s32.totalorder %v105, %v123
    %vm160 = vcmp.eq.s32.totalorder %v105, %v126
    %vm161 = vcmp.eq.s32.totalorder %v105, %v129
    %vm162 = vcmp.eq.s32.totalorder %v105, %v132
    %vm163 = vcmp.eq.s32.totalorder %v105, %v135
    %vm164 = vcmp.eq.s32.totalorder %v105, %v138
    %vm165 = vcmp.eq.s32.totalorder %v105, %v141
    %vm166 = vcmp.eq.s32.totalorder %v105, %v144
    %vm167 = vcmp.eq.s32.totalorder %v105, %v147
    %vm168 = vcmp.eq.s32.totalorder %v105, %v150
    %vm169 = vcmp.eq.s32.totalorder %v105, %v153
    %171 = vset.pattern.permute.xlu0 0
    %172 = vperm.xlu0 %171, %v40
    %v173 = vpop.permute.xlu0 %172
    %176 = vset.pattern.permute.xlu0 0
    %177 = vperm.xlu0 %176, %v41
    %v178 = vpop.permute.xlu0 %177
    %181 = vset.pattern.permute.xlu0 0
    %182 = vperm.xlu0 %181, %v42
    %v183 = vpop.permute.xlu0 %182
    %186 = vset.pattern.permute.xlu0 0
    %187 = vperm.xlu0 %186, %v43
    %v188 = vpop.permute.xlu0 %187
    %191 = vset.pattern.permute.xlu0 0
    %192 = vperm.xlu0 %191, %v44
    %v193 = vpop.permute.xlu0 %192
    %196 = vset.pattern.permute.xlu0 0
    %197 = vperm.xlu0 %196, %v45
    %v198 = vpop.permute.xlu0 %197
    %201 = vset.pattern.permute.xlu0 0
    %202 = vperm.xlu0 %201, %v46
    %v203 = vpop.permute.xlu0 %202
    %206 = vset.pattern.permute.xlu0 0
    %207 = vperm.xlu0 %206, %v47
    %v208 = vpop.permute.xlu0 %207
    %211 = vset.pattern.permute.xlu0 0
    %212 = vperm.xlu0 %211, %v48
    %v213 = vpop.permute.xlu0 %212
    %216 = vset.pattern.permute.xlu0 0
    %217 = vperm.xlu0 %216, %v49
    %v218 = vpop.permute.xlu0 %217
    %221 = vset.pattern.permute.xlu0 0
    %222 = vperm.xlu0 %221, %v50
    %v223 = vpop.permute.xlu0 %222
    %226 = vset.pattern.permute.xlu0 0
    %227 = vperm.xlu0 %226, %v51
    %v228 = vpop.permute.xlu0 %227
    %231 = vset.pattern.permute.xlu0 0
    %232 = vperm.xlu0 %231, %v52
    %v233 = vpop.permute.xlu0 %232
    %236 = vset.pattern.permute.xlu0 0
    %237 = vperm.xlu0 %236, %v53
    %v238 = vpop.permute.xlu0 %237
    %241 = vset.pattern.permute.xlu0 0
    %242 = vperm.xlu0 %241, %v54
    %v243 = vpop.permute.xlu0 %242
    %246 = vset.pattern.permute.xlu0 0
    %247 = vperm.xlu0 %246, %v55
    %v248 = vpop.permute.xlu0 %247
    %v250 = vsel %vm154, %v173, 0.0
    %v251 = vsel %vm155, %v178, 0.0
    %v252 = vsel %vm156, %v183, 0.0
    %v253 = vsel %vm157, %v188, 0.0
    %v254 = vsel %vm158, %v193, 0.0
    %v255 = vsel %vm159, %v198, 0.0
    %v256 = vsel %vm160, %v203, 0.0
    %v257 = vsel %vm161, %v208, 0.0
    %v258 = vsel %vm162, %v213, 0.0
    %v259 = vsel %vm163, %v218, 0.0
    %v260 = vsel %vm164, %v223, 0.0
    %v261 = vsel %vm165, %v228, 0.0
    %v262 = vsel %vm166, %v233, 0.0
    %v263 = vsel %vm167, %v238, 0.0
    %v264 = vsel %vm168, %v243, 0.0
    %v265 = vsel %vm169, %v248, 0.0
    %vm266 = vcmp.le.s32.totalorder %v56, 0
    %vm267 = vcmp.le.s32.totalorder %v57, 0
    %vm268 = vcmp.le.s32.totalorder %v58, 0
    %vm269 = vcmp.le.s32.totalorder %v59, 0
    %vm270 = vcmp.le.s32.totalorder %v60, 0
    %vm271 = vcmp.le.s32.totalorder %v61, 0
    %vm272 = vcmp.le.s32.totalorder %v62, 0
    %vm273 = vcmp.le.s32.totalorder %v63, 0
    %vm274 = vcmp.le.s32.totalorder %v64, 0
    %vm275 = vcmp.le.s32.totalorder %v65, 0
    %vm276 = vcmp.le.s32.totalorder %v66, 0
    %vm277 = vcmp.le.s32.totalorder %v67, 0
    %vm278 = vcmp.le.s32.totalorder %v68, 0
    %vm279 = vcmp.le.s32.totalorder %v69, 0
    %vm280 = vcmp.le.s32.totalorder %v70, 0
    %vm281 = vcmp.le.s32.totalorder %v71, 0
    %vm282 = vcmp.gt.s32.totalorder %v72, 0
    %vm283 = vcmp.gt.s32.totalorder %v73, 0
    %vm284 = vcmp.gt.s32.totalorder %v74, 0
    %vm285 = vcmp.gt.s32.totalorder %v75, 0
    %vm286 = vcmp.gt.s32.totalorder %v76, 0
    %vm287 = vcmp.gt.s32.totalorder %v77, 0
    %vm288 = vcmp.gt.s32.totalorder %v78, 0
    %vm289 = vcmp.gt.s32.totalorder %v79, 0
    %vm290 = vcmp.gt.s32.totalorder %v80, 0
    %vm291 = vcmp.gt.s32.totalorder %v81, 0
    %vm292 = vcmp.gt.s32.totalorder %v82, 0
    %vm293 = vcmp.gt.s32.totalorder %v83, 0
    %vm294 = vcmp.gt.s32.totalorder %v84, 0
    %vm295 = vcmp.gt.s32.totalorder %v85, 0
    %vm296 = vcmp.gt.s32.totalorder %v86, 0
    %vm297 = vcmp.gt.s32.totalorder %v87, 0
    %vm298 = vmand %vm266, %vm282
    %vm299 = vmand %vm267, %vm283
    %vm300 = vmand %vm268, %vm284
    %vm301 = vmand %vm269, %vm285
    %vm302 = vmand %vm270, %vm286
    %vm303 = vmand %vm271, %vm287
    %vm304 = vmand %vm272, %vm288
    %vm305 = vmand %vm273, %vm289
    %vm306 = vmand %vm274, %vm290
    %vm307 = vmand %vm275, %vm291
    %vm308 = vmand %vm276, %vm292
    %vm309 = vmand %vm277, %vm293
    %vm310 = vmand %vm278, %vm294
    %vm311 = vmand %vm279, %vm295
    %vm312 = vmand %vm280, %vm296
    %vm313 = vmand %vm281, %vm297
    %v314 = vsel %vm298, 1, 0
    %v315 = vsel %vm299, 1, 0
    %v316 = vsel %vm300, 1, 0
    %v317 = vsel %vm301, 1, 0
    %v318 = vsel %vm302, 1, 0
    %v319 = vsel %vm303, 1, 0
    %v320 = vsel %vm304, 1, 0
    %v321 = vsel %vm305, 1, 0
    %v322 = vsel %vm306, 1, 0
    %v323 = vsel %vm307, 1, 0
    %v324 = vsel %vm308, 1, 0
    %v325 = vsel %vm309, 1, 0
    %v326 = vsel %vm310, 1, 0
    %v327 = vsel %vm311, 1, 0
    %v328 = vsel %vm312, 1, 0
    %v329 = vsel %vm313, 1, 0
    %v330 = vcvt.s32.f32 %v314
    %v331 = vcvt.s32.f32 %v315
    %v332 = vcvt.s32.f32 %v316
    %v333 = vcvt.s32.f32 %v317
    %v334 = vcvt.s32.f32 %v318
    %v335 = vcvt.s32.f32 %v319
    %v336 = vcvt.s32.f32 %v320
    %v337 = vcvt.s32.f32 %v321
    %v338 = vcvt.s32.f32 %v322
    %v339 = vcvt.s32.f32 %v323
    %v340 = vcvt.s32.f32 %v324
    %v341 = vcvt.s32.f32 %v325
    %v342 = vcvt.s32.f32 %v326
    %v343 = vcvt.s32.f32 %v327
    %v344 = vcvt.s32.f32 %v328
    %v345 = vcvt.s32.f32 %v329
    %347 = vset.pattern.permute.xlu0 0
    %348 = vperm.xlu0 %347, %v330
    %v349 = vpop.permute.xlu0 %348
    %352 = vset.pattern.permute.xlu0 0
    %353 = vperm.xlu0 %352, %v331
    %v354 = vpop.permute.xlu0 %353
    %357 = vset.pattern.permute.xlu0 0
    %358 = vperm.xlu0 %357, %v332
    %v359 = vpop.permute.xlu0 %358
    %362 = vset.pattern.permute.xlu0 0
    %363 = vperm.xlu0 %362, %v333
    %v364 = vpop.permute.xlu0 %363
    %367 = vset.pattern.permute.xlu0 0
    %368 = vperm.xlu0 %367, %v334
    %v369 = vpop.permute.xlu0 %368
    %372 = vset.pattern.permute.xlu0 0
    %373 = vperm.xlu0 %372, %v335
    %v374 = vpop.permute.xlu0 %373
    %377 = vset.pattern.permute.xlu0 0
    %378 = vperm.xlu0 %377, %v336
    %v379 = vpop.permute.xlu0 %378
    %382 = vset.pattern.permute.xlu0 0
    %383 = vperm.xlu0 %382, %v337
    %v384 = vpop.permute.xlu0 %383
    %387 = vset.pattern.permute.xlu0 0
    %388 = vperm.xlu0 %387, %v338
    %v389 = vpop.permute.xlu0 %388
    %392 = vset.pattern.permute.xlu0 0
    %393 = vperm.xlu0 %392, %v339
    %v394 = vpop.permute.xlu0 %393
    %397 = vset.pattern.permute.xlu0 0
    %398 = vperm.xlu0 %397, %v340
    %v399 = vpop.permute.xlu0 %398
    %402 = vset.pattern.permute.xlu0 0
    %403 = vperm.xlu0 %402, %v341
    %v404 = vpop.permute.xlu0 %403
    %407 = vset.pattern.permute.xlu0 0
    %408 = vperm.xlu0 %407, %v342
    %v409 = vpop.permute.xlu0 %408
    %412 = vset.pattern.permute.xlu0 0
    %413 = vperm.xlu0 %412, %v343
    %v414 = vpop.permute.xlu0 %413
    %417 = vset.pattern.permute.xlu0 0
    %418 = vperm.xlu0 %417, %v344
    %v419 = vpop.permute.xlu0 %418
    %422 = vset.pattern.permute.xlu0 0
    %423 = vperm.xlu0 %422, %v345
    %v424 = vpop.permute.xlu0 %423
    %v426 = vmul.f32 %v349, %v250
    %v427 = vmul.f32 %v354, %v251
    %v428 = vmul.f32 %v359, %v252
    %v429 = vmul.f32 %v364, %v253
    %v430 = vmul.f32 %v369, %v254
    %v431 = vmul.f32 %v374, %v255
    %v432 = vmul.f32 %v379, %v256
    %v433 = vmul.f32 %v384, %v257
    %v434 = vmul.f32 %v389, %v258
    %v435 = vmul.f32 %v394, %v259
    %v436 = vmul.f32 %v399, %v260
    %v437 = vmul.f32 %v404, %v261
    %v438 = vmul.f32 %v409, %v262
    %v439 = vmul.f32 %v414, %v263
    %v440 = vmul.f32 %v419, %v264
    %v441 = vmul.f32 %v424, %v265
    %v442 = vadd.f32 %v426, 0.0
    %v443 = vadd.f32 %v427, 0.0
    %v444 = vadd.f32 %v428, 0.0
    %v445 = vadd.f32 %v429, 0.0
    %v446 = vadd.f32 %v430, 0.0
    %v447 = vadd.f32 %v431, 0.0
    %v448 = vadd.f32 %v432, 0.0
    %v449 = vadd.f32 %v433, 0.0
    %v450 = vadd.f32 %v434, 0.0
    %v451 = vadd.f32 %v435, 0.0
    %v452 = vadd.f32 %v436, 0.0
    %v453 = vadd.f32 %v437, 0.0
    %v454 = vadd.f32 %v438, 0.0
    %v455 = vadd.f32 %v439, 0.0
    %v456 = vadd.f32 %v440, 0.0
    %v457 = vadd.f32 %v441, 0.0
    %458 = vset.pattern.permute.xlu0 1
    %459 = vperm.xlu0 %458, %v330
    %v460 = vpop.permute.xlu0 %459
    %462 = vset.pattern.permute.xlu0 1
    %463 = vperm.xlu0 %462, %v331
    %v464 = vpop.permute.xlu0 %463
    %466 = vset.pattern.permute.xlu0 1
    %467 = vperm.xlu0 %466, %v332
    %v468 = vpop.permute.xlu0 %467
    %470 = vset.pattern.permute.xlu0 1
    %471 = vperm.xlu0 %470, %v333
    %v472 = vpop.permute.xlu0 %471
    %474 = vset.pattern.permute.xlu0 1
    %475 = vperm.xlu0 %474, %v334
    %v476 = vpop.permute.xlu0 %475
    %478 = vset.pattern.permute.xlu0 1
    %479 = vperm.xlu0 %478, %v335
    %v480 = vpop.permute.xlu0 %479
    %482 = vset.pattern.permute.xlu0 1
    %483 = vperm.xlu0 %482, %v336
    %v484 = vpop.permute.xlu0 %483
    %486 = vset.pattern.permute.xlu0 1
    %487 = vperm.xlu0 %486, %v337
    %v488 = vpop.permute.xlu0 %487
    %490 = vset.pattern.permute.xlu0 1
    %491 = vperm.xlu0 %490, %v338
    %v492 = vpop.permute.xlu0 %491
    %494 = vset.pattern.permute.xlu0 1
    %495 = vperm.xlu0 %494, %v339
    %v496 = vpop.permute.xlu0 %495
    %498 = vset.pattern.permute.xlu0 1
    %499 = vperm.xlu0 %498, %v340
    %v500 = vpop.permute.xlu0 %499
    %502 = vset.pattern.permute.xlu0 1
    %503 = vperm.xlu0 %502, %v341
    %v504 = vpop.permute.xlu0 %503
    %506 = vset.pattern.permute.xlu0 1
    %507 = vperm.xlu0 %506, %v342
    %v508 = vpop.permute.xlu0 %507
    %510 = vset.pattern.permute.xlu0 1
    %511 = vperm.xlu0 %510, %v343
    %v512 = vpop.permute.xlu0 %511
    %514 = vset.pattern.permute.xlu0 1
    %515 = vperm.xlu0 %514, %v344
    %v516 = vpop.permute.xlu0 %515
    %518 = vset.pattern.permute.xlu0 1
    %519 = vperm.xlu0 %518, %v345
    %v520 = vpop.permute.xlu0 %519
    %v522 = vmul.f32 %v460, %v250
    %v523 = vmul.f32 %v464, %v251
    %v524 = vmul.f32 %v468, %v252
    %v525 = vmul.f32 %v472, %v253
    %v526 = vmul.f32 %v476, %v254
    %v527 = vmul.f32 %v480, %v255
    %v528 = vmul.f32 %v484, %v256
    %v529 = vmul.f32 %v488, %v257
    %v530 = vmul.f32 %v492, %v258
    %v531 = vmul.f32 %v496, %v259
    %v532 = vmul.f32 %v500, %v260
    %v533 = vmul.f32 %v504, %v261
    %v534 = vmul.f32 %v508, %v262
    %v535 = vmul.f32 %v512, %v263
    %v536 = vmul.f32 %v516, %v264
    %v537 = vmul.f32 %v520, %v265
    %v538 = vadd.f32 %v522, 0.0
    %v539 = vadd.f32 %v523, 0.0
    %v540 = vadd.f32 %v524, 0.0
    %v541 = vadd.f32 %v525, 0.0
    %v542 = vadd.f32 %v526, 0.0
    %v543 = vadd.f32 %v527, 0.0
    %v544 = vadd.f32 %v528, 0.0
    %v545 = vadd.f32 %v529, 0.0
    %v546 = vadd.f32 %v530, 0.0
    %v547 = vadd.f32 %v531, 0.0
    %v548 = vadd.f32 %v532, 0.0
    %v549 = vadd.f32 %v533, 0.0
    %v550 = vadd.f32 %v534, 0.0
    %v551 = vadd.f32 %v535, 0.0
    %v552 = vadd.f32 %v536, 0.0
    %v553 = vadd.f32 %v537, 0.0
    %554 = vset.pattern.permute.xlu0 2
    %555 = vperm.xlu0 %554, %v330
    %v556 = vpop.permute.xlu0 %555
    %558 = vset.pattern.permute.xlu0 2
    %559 = vperm.xlu0 %558, %v331
    %v560 = vpop.permute.xlu0 %559
    %562 = vset.pattern.permute.xlu0 2
    %563 = vperm.xlu0 %562, %v332
    %v564 = vpop.permute.xlu0 %563
    %566 = vset.pattern.permute.xlu0 2
    %567 = vperm.xlu0 %566, %v333
    %v568 = vpop.permute.xlu0 %567
    %570 = vset.pattern.permute.xlu0 2
    %571 = vperm.xlu0 %570, %v334
    %v572 = vpop.permute.xlu0 %571
    %574 = vset.pattern.permute.xlu0 2
    %575 = vperm.xlu0 %574, %v335
    %v576 = vpop.permute.xlu0 %575
    %578 = vset.pattern.permute.xlu0 2
    %579 = vperm.xlu0 %578, %v336
    %v580 = vpop.permute.xlu0 %579
    %582 = vset.pattern.permute.xlu0 2
    %583 = vperm.xlu0 %582, %v337
    %v584 = vpop.permute.xlu0 %583
    %586 = vset.pattern.permute.xlu0 2
    %587 = vperm.xlu0 %586, %v338
    %v588 = vpop.permute.xlu0 %587
    %590 = vset.pattern.permute.xlu0 2
    %591 = vperm.xlu0 %590, %v339
    %v592 = vpop.permute.xlu0 %591
    %594 = vset.pattern.permute.xlu0 2
    %595 = vperm.xlu0 %594, %v340
    %v596 = vpop.permute.xlu0 %595
    %598 = vset.pattern.permute.xlu0 2
    %599 = vperm.xlu0 %598, %v341
    %v600 = vpop.permute.xlu0 %599
    %602 = vset.pattern.permute.xlu0 2
    %603 = vperm.xlu0 %602, %v342
    %v604 = vpop.permute.xlu0 %603
    %606 = vset.pattern.permute.xlu0 2
    %607 = vperm.xlu0 %606, %v343
    %v608 = vpop.permute.xlu0 %607
    %610 = vset.pattern.permute.xlu0 2
    %611 = vperm.xlu0 %610, %v344
    %v612 = vpop.permute.xlu0 %611
    %614 = vset.pattern.permute.xlu0 2
    %615 = vperm.xlu0 %614, %v345
    %v616 = vpop.permute.xlu0 %615
    %v618 = vmul.f32 %v556, %v250
    %v619 = vmul.f32 %v560, %v251
    %v620 = vmul.f32 %v564, %v252
    %v621 = vmul.f32 %v568, %v253
    %v622 = vmul.f32 %v572, %v254
    %v623 = vmul.f32 %v576, %v255
    %v624 = vmul.f32 %v580, %v256
    %v625 = vmul.f32 %v584, %v257
    %v626 = vmul.f32 %v588, %v258
    %v627 = vmul.f32 %v592, %v259
    %v628 = vmul.f32 %v596, %v260
    %v629 = vmul.f32 %v600, %v261
    %v630 = vmul.f32 %v604, %v262
    %v631 = vmul.f32 %v608, %v263
    %v632 = vmul.f32 %v612, %v264
    %v633 = vmul.f32 %v616, %v265
    %v634 = vadd.f32 %v618, 0.0
    %v635 = vadd.f32 %v619, 0.0
    %v636 = vadd.f32 %v620, 0.0
    %v637 = vadd.f32 %v621, 0.0
    %v638 = vadd.f32 %v622, 0.0
    %v639 = vadd.f32 %v623, 0.0
    %v640 = vadd.f32 %v624, 0.0
    %v641 = vadd.f32 %v625, 0.0
    %v642 = vadd.f32 %v626, 0.0
    %v643 = vadd.f32 %v627, 0.0
    %v644 = vadd.f32 %v628, 0.0
    %v645 = vadd.f32 %v629, 0.0
    %v646 = vadd.f32 %v630, 0.0
    %v647 = vadd.f32 %v631, 0.0
    %v648 = vadd.f32 %v632, 0.0
    %v649 = vadd.f32 %v633, 0.0
    %650 = vset.pattern.permute.xlu0 3
    %651 = vperm.xlu0 %650, %v330
    %v652 = vpop.permute.xlu0 %651
    %654 = vset.pattern.permute.xlu0 3
    %655 = vperm.xlu0 %654, %v331
    %v656 = vpop.permute.xlu0 %655
    %658 = vset.pattern.permute.xlu0 3
    %659 = vperm.xlu0 %658, %v332
    %v660 = vpop.permute.xlu0 %659
    %662 = vset.pattern.permute.xlu0 3
    %663 = vperm.xlu0 %662, %v333
    %v664 = vpop.permute.xlu0 %663
    %666 = vset.pattern.permute.xlu0 3
    %667 = vperm.xlu0 %666, %v334
    %v668 = vpop.permute.xlu0 %667
    %670 = vset.pattern.permute.xlu0 3
    %671 = vperm.xlu0 %670, %v335
    %v672 = vpop.permute.xlu0 %671
    %674 = vset.pattern.permute.xlu0 3
    %675 = vperm.xlu0 %674, %v336
    %v676 = vpop.permute.xlu0 %675
    %678 = vset.pattern.permute.xlu0 3
    %679 = vperm.xlu0 %678, %v337
    %v680 = vpop.permute.xlu0 %679
    %682 = vset.pattern.permute.xlu0 3
    %683 = vperm.xlu0 %682, %v338
    %v684 = vpop.permute.xlu0 %683
    %686 = vset.pattern.permute.xlu0 3
    %687 = vperm.xlu0 %686, %v339
    %v688 = vpop.permute.xlu0 %687
    %690 = vset.pattern.permute.xlu0 3
    %691 = vperm.xlu0 %690, %v340
    %v692 = vpop.permute.xlu0 %691
    %694 = vset.pattern.permute.xlu0 3
    %695 = vperm.xlu0 %694, %v341
    %v696 = vpop.permute.xlu0 %695
    %698 = vset.pattern.permute.xlu0 3
    %699 = vperm.xlu0 %698, %v342
    %v700 = vpop.permute.xlu0 %699
    %702 = vset.pattern.permute.xlu0 3
    %703 = vperm.xlu0 %702, %v343
    %v704 = vpop.permute.xlu0 %703
    %706 = vset.pattern.permute.xlu0 3
    %707 = vperm.xlu0 %706, %v344
    %v708 = vpop.permute.xlu0 %707
    %710 = vset.pattern.permute.xlu0 3
    %711 = vperm.xlu0 %710, %v345
    %v712 = vpop.permute.xlu0 %711
    %v714 = vmul.f32 %v652, %v250
    %v715 = vmul.f32 %v656, %v251
    %v716 = vmul.f32 %v660, %v252
    %v717 = vmul.f32 %v664, %v253
    %v718 = vmul.f32 %v668, %v254
    %v719 = vmul.f32 %v672, %v255
    %v720 = vmul.f32 %v676, %v256
    %v721 = vmul.f32 %v680, %v257
    %v722 = vmul.f32 %v684, %v258
    %v723 = vmul.f32 %v688, %v259
    %v724 = vmul.f32 %v692, %v260
    %v725 = vmul.f32 %v696, %v261
    %v726 = vmul.f32 %v700, %v262
    %v727 = vmul.f32 %v704, %v263
    %v728 = vmul.f32 %v708, %v264
    %v729 = vmul.f32 %v712, %v265
    %v730 = vadd.f32 %v714, 0.0
    %v731 = vadd.f32 %v715, 0.0
    %v732 = vadd.f32 %v716, 0.0
    %v733 = vadd.f32 %v717, 0.0
    %v734 = vadd.f32 %v718, 0.0
    %v735 = vadd.f32 %v719, 0.0
    %v736 = vadd.f32 %v720, 0.0
    %v737 = vadd.f32 %v721, 0.0
    %v738 = vadd.f32 %v722, 0.0
    %v739 = vadd.f32 %v723, 0.0
    %v740 = vadd.f32 %v724, 0.0
    %v741 = vadd.f32 %v725, 0.0
    %v742 = vadd.f32 %v726, 0.0
    %v743 = vadd.f32 %v727, 0.0
    %v744 = vadd.f32 %v728, 0.0
    %v745 = vadd.f32 %v729, 0.0
    %746 = vset.pattern.permute.xlu0 1
    %747 = vperm.xlu0 %746, %v24
    %v748 = vpop.permute.xlu0 %747
    %749 = vset.pattern.permute.xlu0 1
    %750 = vperm.xlu0 %749, %v25
    %v751 = vpop.permute.xlu0 %750
    %752 = vset.pattern.permute.xlu0 1
    %753 = vperm.xlu0 %752, %v26
    %v754 = vpop.permute.xlu0 %753
    %755 = vset.pattern.permute.xlu0 1
    %756 = vperm.xlu0 %755, %v27
    %v757 = vpop.permute.xlu0 %756
    %758 = vset.pattern.permute.xlu0 1
    %759 = vperm.xlu0 %758, %v28
    %v760 = vpop.permute.xlu0 %759
    %761 = vset.pattern.permute.xlu0 1
    %762 = vperm.xlu0 %761, %v29
    %v763 = vpop.permute.xlu0 %762
    %764 = vset.pattern.permute.xlu0 1
    %765 = vperm.xlu0 %764, %v30
    %v766 = vpop.permute.xlu0 %765
    %767 = vset.pattern.permute.xlu0 1
    %768 = vperm.xlu0 %767, %v31
    %v769 = vpop.permute.xlu0 %768
    %770 = vset.pattern.permute.xlu0 1
    %771 = vperm.xlu0 %770, %v32
    %v772 = vpop.permute.xlu0 %771
    %773 = vset.pattern.permute.xlu0 1
    %774 = vperm.xlu0 %773, %v33
    %v775 = vpop.permute.xlu0 %774
    %776 = vset.pattern.permute.xlu0 1
    %777 = vperm.xlu0 %776, %v34
    %v778 = vpop.permute.xlu0 %777
    %779 = vset.pattern.permute.xlu0 1
    %780 = vperm.xlu0 %779, %v35
    %v781 = vpop.permute.xlu0 %780
    %782 = vset.pattern.permute.xlu0 1
    %783 = vperm.xlu0 %782, %v36
    %v784 = vpop.permute.xlu0 %783
    %785 = vset.pattern.permute.xlu0 1
    %786 = vperm.xlu0 %785, %v37
    %v787 = vpop.permute.xlu0 %786
    %788 = vset.pattern.permute.xlu0 1
    %789 = vperm.xlu0 %788, %v38
    %v790 = vpop.permute.xlu0 %789
    %791 = vset.pattern.permute.xlu0 1
    %792 = vperm.xlu0 %791, %v39
    %v793 = vpop.permute.xlu0 %792
    %vm794 = vcmp.eq.s32.totalorder %v105, %v748
    %vm795 = vcmp.eq.s32.totalorder %v105, %v751
    %vm796 = vcmp.eq.s32.totalorder %v105, %v754
    %vm797 = vcmp.eq.s32.totalorder %v105, %v757
    %vm798 = vcmp.eq.s32.totalorder %v105, %v760
    %vm799 = vcmp.eq.s32.totalorder %v105, %v763
    %vm800 = vcmp.eq.s32.totalorder %v105, %v766
    %vm801 = vcmp.eq.s32.totalorder %v105, %v769
    %vm802 = vcmp.eq.s32.totalorder %v105, %v772
    %vm803 = vcmp.eq.s32.totalorder %v105, %v775
    %vm804 = vcmp.eq.s32.totalorder %v105, %v778
    %vm805 = vcmp.eq.s32.totalorder %v105, %v781
    %vm806 = vcmp.eq.s32.totalorder %v105, %v784
    %vm807 = vcmp.eq.s32.totalorder %v105, %v787
    %vm808 = vcmp.eq.s32.totalorder %v105, %v790
    %vm809 = vcmp.eq.s32.totalorder %v105, %v793
    %810 = vset.pattern.permute.xlu0 1
    %811 = vperm.xlu0 %810, %v40
    %v812 = vpop.permute.xlu0 %811
    %814 = vset.pattern.permute.xlu0 1
    %815 = vperm.xlu0 %814, %v41
    %v816 = vpop.permute.xlu0 %815
    %818 = vset.pattern.permute.xlu0 1
    %819 = vperm.xlu0 %818, %v42
    %v820 = vpop.permute.xlu0 %819
    %822 = vset.pattern.permute.xlu0 1
    %823 = vperm.xlu0 %822, %v43
    %v824 = vpop.permute.xlu0 %823
    %826 = vset.pattern.permute.xlu0 1
    %827 = vperm.xlu0 %826, %v44
    %v828 = vpop.permute.xlu0 %827
    %830 = vset.pattern.permute.xlu0 1
    %831 = vperm.xlu0 %830, %v45
    %v832 = vpop.permute.xlu0 %831
    %834 = vset.pattern.permute.xlu0 1
    %835 = vperm.xlu0 %834, %v46
    %v836 = vpop.permute.xlu0 %835
    %838 = vset.pattern.permute.xlu0 1
    %839 = vperm.xlu0 %838, %v47
    %v840 = vpop.permute.xlu0 %839
    %842 = vset.pattern.permute.xlu0 1
    %843 = vperm.xlu0 %842, %v48
    %v844 = vpop.permute.xlu0 %843
    %846 = vset.pattern.permute.xlu0 1
    %847 = vperm.xlu0 %846, %v49
    %v848 = vpop.permute.xlu0 %847
    %850 = vset.pattern.permute.xlu0 1
    %851 = vperm.xlu0 %850, %v50
    %v852 = vpop.permute.xlu0 %851
    %854 = vset.pattern.permute.xlu0 1
    %855 = vperm.xlu0 %854, %v51
    %v856 = vpop.permute.xlu0 %855
    %858 = vset.pattern.permute.xlu0 1
    %859 = vperm.xlu0 %858, %v52
    %v860 = vpop.permute.xlu0 %859
    %862 = vset.pattern.permute.xlu0 1
    %863 = vperm.xlu0 %862, %v53
    %v864 = vpop.permute.xlu0 %863
    %866 = vset.pattern.permute.xlu0 1
    %867 = vperm.xlu0 %866, %v54
    %v868 = vpop.permute.xlu0 %867
    %870 = vset.pattern.permute.xlu0 1
    %871 = vperm.xlu0 %870, %v55
    %v872 = vpop.permute.xlu0 %871
    %v874 = vsel %vm794, %v812, 0.0
    %v875 = vsel %vm795, %v816, 0.0
    %v876 = vsel %vm796, %v820, 0.0
    %v877 = vsel %vm797, %v824, 0.0
    %v878 = vsel %vm798, %v828, 0.0
    %v879 = vsel %vm799, %v832, 0.0
    %v880 = vsel %vm800, %v836, 0.0
    %v881 = vsel %vm801, %v840, 0.0
    %v882 = vsel %vm802, %v844, 0.0
    %v883 = vsel %vm803, %v848, 0.0
    %v884 = vsel %vm804, %v852, 0.0
    %v885 = vsel %vm805, %v856, 0.0
    %v886 = vsel %vm806, %v860, 0.0
    %v887 = vsel %vm807, %v864, 0.0
    %v888 = vsel %vm808, %v868, 0.0
    %v889 = vsel %vm809, %v872, 0.0
    %vm890 = vcmp.le.s32.totalorder %v56, 1
    %vm891 = vcmp.le.s32.totalorder %v57, 1
    %vm892 = vcmp.le.s32.totalorder %v58, 1
    %vm893 = vcmp.le.s32.totalorder %v59, 1
    %vm894 = vcmp.le.s32.totalorder %v60, 1
    %vm895 = vcmp.le.s32.totalorder %v61, 1
    %vm896 = vcmp.le.s32.totalorder %v62, 1
    %vm897 = vcmp.le.s32.totalorder %v63, 1
    %vm898 = vcmp.le.s32.totalorder %v64, 1
    %vm899 = vcmp.le.s32.totalorder %v65, 1
    %vm900 = vcmp.le.s32.totalorder %v66, 1
    %vm901 = vcmp.le.s32.totalorder %v67, 1
    %vm902 = vcmp.le.s32.totalorder %v68, 1
    %vm903 = vcmp.le.s32.totalorder %v69, 1
    %vm904 = vcmp.le.s32.totalorder %v70, 1
    %vm905 = vcmp.le.s32.totalorder %v71, 1
    %vm906 = vcmp.gt.s32.totalorder %v72, 1
    %vm907 = vcmp.gt.s32.totalorder %v73, 1
    %vm908 = vcmp.gt.s32.totalorder %v74, 1
    %vm909 = vcmp.gt.s32.totalorder %v75, 1
    %vm910 = vcmp.gt.s32.totalorder %v76, 1
    %vm911 = vcmp.gt.s32.totalorder %v77, 1
    %vm912 = vcmp.gt.s32.totalorder %v78, 1
    %vm913 = vcmp.gt.s32.totalorder %v79, 1
    %vm914 = vcmp.gt.s32.totalorder %v80, 1
    %vm915 = vcmp.gt.s32.totalorder %v81, 1
    %vm916 = vcmp.gt.s32.totalorder %v82, 1
    %vm917 = vcmp.gt.s32.totalorder %v83, 1
    %vm918 = vcmp.gt.s32.totalorder %v84, 1
    %vm919 = vcmp.gt.s32.totalorder %v85, 1
    %vm920 = vcmp.gt.s32.totalorder %v86, 1
    %vm921 = vcmp.gt.s32.totalorder %v87, 1
    %vm922 = vmand %vm890, %vm906
    %vm923 = vmand %vm891, %vm907
    %vm924 = vmand %vm892, %vm908
    %vm925 = vmand %vm893, %vm909
    %vm926 = vmand %vm894, %vm910
    %vm927 = vmand %vm895, %vm911
    %vm928 = vmand %vm896, %vm912
    %vm929 = vmand %vm897, %vm913
    %vm930 = vmand %vm898, %vm914
    %vm931 = vmand %vm899, %vm915
    %vm932 = vmand %vm900, %vm916
    %vm933 = vmand %vm901, %vm917
    %vm934 = vmand %vm902, %vm918
    %vm935 = vmand %vm903, %vm919
    %vm936 = vmand %vm904, %vm920
    %vm937 = vmand %vm905, %vm921
    %v938 = vsel %vm922, 1, 0
    %v939 = vsel %vm923, 1, 0
    %v940 = vsel %vm924, 1, 0
    %v941 = vsel %vm925, 1, 0
    %v942 = vsel %vm926, 1, 0
    %v943 = vsel %vm927, 1, 0
    %v944 = vsel %vm928, 1, 0
    %v945 = vsel %vm929, 1, 0
    %v946 = vsel %vm930, 1, 0
    %v947 = vsel %vm931, 1, 0
    %v948 = vsel %vm932, 1, 0
    %v949 = vsel %vm933, 1, 0
    %v950 = vsel %vm934, 1, 0
    %v951 = vsel %vm935, 1, 0
    %v952 = vsel %vm936, 1, 0
    %v953 = vsel %vm937, 1, 0
    %v954 = vcvt.s32.f32 %v938
    %v955 = vcvt.s32.f32 %v939
    %v956 = vcvt.s32.f32 %v940
    %v957 = vcvt.s32.f32 %v941
    %v958 = vcvt.s32.f32 %v942
    %v959 = vcvt.s32.f32 %v943
    %v960 = vcvt.s32.f32 %v944
    %v961 = vcvt.s32.f32 %v945
    %v962 = vcvt.s32.f32 %v946
    %v963 = vcvt.s32.f32 %v947
    %v964 = vcvt.s32.f32 %v948
    %v965 = vcvt.s32.f32 %v949
    %v966 = vcvt.s32.f32 %v950
    %v967 = vcvt.s32.f32 %v951
    %v968 = vcvt.s32.f32 %v952
    %v969 = vcvt.s32.f32 %v953
    %971 = vset.pattern.permute.xlu0 0
    %972 = vperm.xlu0 %971, %v954
    %v973 = vpop.permute.xlu0 %972
    %976 = vset.pattern.permute.xlu0 0
    %977 = vperm.xlu0 %976, %v955
    %v978 = vpop.permute.xlu0 %977
    %981 = vset.pattern.permute.xlu0 0
    %982 = vperm.xlu0 %981, %v956
    %v983 = vpop.permute.xlu0 %982
    %986 = vset.pattern.permute.xlu0 0
    %987 = vperm.xlu0 %986, %v957
    %v988 = vpop.permute.xlu0 %987
    %991 = vset.pattern.permute.xlu0 0
    %992 = vperm.xlu0 %991, %v958
    %v993 = vpop.permute.xlu0 %992
    %996 = vset.pattern.permute.xlu0 0
    %997 = vperm.xlu0 %996, %v959
    %v998 = vpop.permute.xlu0 %997
    %1001 = vset.pattern.permute.xlu0 0
    %1002 = vperm.xlu0 %1001, %v960
    %v1003 = vpop.permute.xlu0 %1002
    %1006 = vset.pattern.permute.xlu0 0
    %1007 = vperm.xlu0 %1006, %v961
    %v1008 = vpop.permute.xlu0 %1007
    %1011 = vset.pattern.permute.xlu0 0
    %1012 = vperm.xlu0 %1011, %v962
    %v1013 = vpop.permute.xlu0 %1012
    %1016 = vset.pattern.permute.xlu0 0
    %1017 = vperm.xlu0 %1016, %v963
    %v1018 = vpop.permute.xlu0 %1017
    %1021 = vset.pattern.permute.xlu0 0
    %1022 = vperm.xlu0 %1021, %v964
    %v1023 = vpop.permute.xlu0 %1022
    %1026 = vset.pattern.permute.xlu0 0
    %1027 = vperm.xlu0 %1026, %v965
    %v1028 = vpop.permute.xlu0 %1027
    %1031 = vset.pattern.permute.xlu0 0
    %1032 = vperm.xlu0 %1031, %v966
    %v1033 = vpop.permute.xlu0 %1032
    %1036 = vset.pattern.permute.xlu0 0
    %1037 = vperm.xlu0 %1036, %v967
    %v1038 = vpop.permute.xlu0 %1037
    %1041 = vset.pattern.permute.xlu0 0
    %1042 = vperm.xlu0 %1041, %v968
    %v1043 = vpop.permute.xlu0 %1042
    %1046 = vset.pattern.permute.xlu0 0
    %1047 = vperm.xlu0 %1046, %v969
    %v1048 = vpop.permute.xlu0 %1047
    %v1050 = vmul.f32 %v973, %v874
    %v1051 = vmul.f32 %v978, %v875
    %v1052 = vmul.f32 %v983, %v876
    %v1053 = vmul.f32 %v988, %v877
    %v1054 = vmul.f32 %v993, %v878
    %v1055 = vmul.f32 %v998, %v879
    %v1056 = vmul.f32 %v1003, %v880
    %v1057 = vmul.f32 %v1008, %v881
    %v1058 = vmul.f32 %v1013, %v882
    %v1059 = vmul.f32 %v1018, %v883
    %v1060 = vmul.f32 %v1023, %v884
    %v1061 = vmul.f32 %v1028, %v885
    %v1062 = vmul.f32 %v1033, %v886
    %v1063 = vmul.f32 %v1038, %v887
    %v1064 = vmul.f32 %v1043, %v888
    %v1065 = vmul.f32 %v1048, %v889
    %v1066 = vadd.f32 %v442, %v1050
    %v1067 = vadd.f32 %v443, %v1051
    %v1068 = vadd.f32 %v444, %v1052
    %v1069 = vadd.f32 %v445, %v1053
    %v1070 = vadd.f32 %v446, %v1054
    %v1071 = vadd.f32 %v447, %v1055
    %v1072 = vadd.f32 %v448, %v1056
    %v1073 = vadd.f32 %v449, %v1057
    %v1074 = vadd.f32 %v450, %v1058
    %v1075 = vadd.f32 %v451, %v1059
    %v1076 = vadd.f32 %v452, %v1060
    %v1077 = vadd.f32 %v453, %v1061
    %v1078 = vadd.f32 %v454, %v1062
    %v1079 = vadd.f32 %v455, %v1063
    %v1080 = vadd.f32 %v456, %v1064
    %v1081 = vadd.f32 %v457, %v1065
    %1082 = vset.pattern.permute.xlu0 1
    %1083 = vperm.xlu0 %1082, %v954
    %v1084 = vpop.permute.xlu0 %1083
    %1086 = vset.pattern.permute.xlu0 1
    %1087 = vperm.xlu0 %1086, %v955
    %v1088 = vpop.permute.xlu0 %1087
    %1090 = vset.pattern.permute.xlu0 1
    %1091 = vperm.xlu0 %1090, %v956
    %v1092 = vpop.permute.xlu0 %1091
    %1094 = vset.pattern.permute.xlu0 1
    %1095 = vperm.xlu0 %1094, %v957
    %v1096 = vpop.permute.xlu0 %1095
    %1098 = vset.pattern.permute.xlu0 1
    %1099 = vperm.xlu0 %1098, %v958
    %v1100 = vpop.permute.xlu0 %1099
    %1102 = vset.pattern.permute.xlu0 1
    %1103 = vperm.xlu0 %1102, %v959
    %v1104 = vpop.permute.xlu0 %1103
    %1106 = vset.pattern.permute.xlu0 1
    %1107 = vperm.xlu0 %1106, %v960
    %v1108 = vpop.permute.xlu0 %1107
    %1110 = vset.pattern.permute.xlu0 1
    %1111 = vperm.xlu0 %1110, %v961
    %v1112 = vpop.permute.xlu0 %1111
    %1114 = vset.pattern.permute.xlu0 1
    %1115 = vperm.xlu0 %1114, %v962
    %v1116 = vpop.permute.xlu0 %1115
    %1118 = vset.pattern.permute.xlu0 1
    %1119 = vperm.xlu0 %1118, %v963
    %v1120 = vpop.permute.xlu0 %1119
    %1122 = vset.pattern.permute.xlu0 1
    %1123 = vperm.xlu0 %1122, %v964
    %v1124 = vpop.permute.xlu0 %1123
    %1126 = vset.pattern.permute.xlu0 1
    %1127 = vperm.xlu0 %1126, %v965
    %v1128 = vpop.permute.xlu0 %1127
    %1130 = vset.pattern.permute.xlu0 1
    %1131 = vperm.xlu0 %1130, %v966
    %v1132 = vpop.permute.xlu0 %1131
    %1134 = vset.pattern.permute.xlu0 1
    %1135 = vperm.xlu0 %1134, %v967
    %v1136 = vpop.permute.xlu0 %1135
    %1138 = vset.pattern.permute.xlu0 1
    %1139 = vperm.xlu0 %1138, %v968
    %v1140 = vpop.permute.xlu0 %1139
    %1142 = vset.pattern.permute.xlu0 1
    %1143 = vperm.xlu0 %1142, %v969
    %v1144 = vpop.permute.xlu0 %1143
    %v1146 = vmul.f32 %v1084, %v874
    %v1147 = vmul.f32 %v1088, %v875
    %v1148 = vmul.f32 %v1092, %v876
    %v1149 = vmul.f32 %v1096, %v877
    %v1150 = vmul.f32 %v1100, %v878
    %v1151 = vmul.f32 %v1104, %v879
    %v1152 = vmul.f32 %v1108, %v880
    %v1153 = vmul.f32 %v1112, %v881
    %v1154 = vmul.f32 %v1116, %v882
    %v1155 = vmul.f32 %v1120, %v883
    %v1156 = vmul.f32 %v1124, %v884
    %v1157 = vmul.f32 %v1128, %v885
    %v1158 = vmul.f32 %v1132, %v886
    %v1159 = vmul.f32 %v1136, %v887
    %v1160 = vmul.f32 %v1140, %v888
    %v1161 = vmul.f32 %v1144, %v889
    %v1162 = vadd.f32 %v538, %v1146
    %v1163 = vadd.f32 %v539, %v1147
    %v1164 = vadd.f32 %v540, %v1148
    %v1165 = vadd.f32 %v541, %v1149
    %v1166 = vadd.f32 %v542, %v1150
    %v1167 = vadd.f32 %v543, %v1151
    %v1168 = vadd.f32 %v544, %v1152
    %v1169 = vadd.f32 %v545, %v1153
    %v1170 = vadd.f32 %v546, %v1154
    %v1171 = vadd.f32 %v547, %v1155
    %v1172 = vadd.f32 %v548, %v1156
    %v1173 = vadd.f32 %v549, %v1157
    %v1174 = vadd.f32 %v550, %v1158
    %v1175 = vadd.f32 %v551, %v1159
    %v1176 = vadd.f32 %v552, %v1160
    %v1177 = vadd.f32 %v553, %v1161
    %1178 = vset.pattern.permute.xlu0 2
    %1179 = vperm.xlu0 %1178, %v954
    %v1180 = vpop.permute.xlu0 %1179
    %1182 = vset.pattern.permute.xlu0 2
    %1183 = vperm.xlu0 %1182, %v955
    %v1184 = vpop.permute.xlu0 %1183
    %1186 = vset.pattern.permute.xlu0 2
    %1187 = vperm.xlu0 %1186, %v956
    %v1188 = vpop.permute.xlu0 %1187
    %1190 = vset.pattern.permute.xlu0 2
    %1191 = vperm.xlu0 %1190, %v957
    %v1192 = vpop.permute.xlu0 %1191
    %1194 = vset.pattern.permute.xlu0 2
    %1195 = vperm.xlu0 %1194, %v958
    %v1196 = vpop.permute.xlu0 %1195
    %1198 = vset.pattern.permute.xlu0 2
    %1199 = vperm.xlu0 %1198, %v959
    %v1200 = vpop.permute.xlu0 %1199
    %1202 = vset.pattern.permute.xlu0 2
    %1203 = vperm.xlu0 %1202, %v960
    %v1204 = vpop.permute.xlu0 %1203
    %1206 = vset.pattern.permute.xlu0 2
    %1207 = vperm.xlu0 %1206, %v961
    %v1208 = vpop.permute.xlu0 %1207
    %1210 = vset.pattern.permute.xlu0 2
    %1211 = vperm.xlu0 %1210, %v962
    %v1212 = vpop.permute.xlu0 %1211
    %1214 = vset.pattern.permute.xlu0 2
    %1215 = vperm.xlu0 %1214, %v963
    %v1216 = vpop.permute.xlu0 %1215
    %1218 = vset.pattern.permute.xlu0 2
    %1219 = vperm.xlu0 %1218, %v964
    %v1220 = vpop.permute.xlu0 %1219
    %1222 = vset.pattern.permute.xlu0 2
    %1223 = vperm.xlu0 %1222, %v965
    %v1224 = vpop.permute.xlu0 %1223
    %1226 = vset.pattern.permute.xlu0 2
    %1227 = vperm.xlu0 %1226, %v966
    %v1228 = vpop.permute.xlu0 %1227
    %1230 = vset.pattern.permute.xlu0 2
    %1231 = vperm.xlu0 %1230, %v967
    %v1232 = vpop.permute.xlu0 %1231
    %1234 = vset.pattern.permute.xlu0 2
    %1235 = vperm.xlu0 %1234, %v968
    %v1236 = vpop.permute.xlu0 %1235
    %1238 = vset.pattern.permute.xlu0 2
    %1239 = vperm.xlu0 %1238, %v969
    %v1240 = vpop.permute.xlu0 %1239
    %v1242 = vmul.f32 %v1180, %v874
    %v1243 = vmul.f32 %v1184, %v875
    %v1244 = vmul.f32 %v1188, %v876
    %v1245 = vmul.f32 %v1192, %v877
    %v1246 = vmul.f32 %v1196, %v878
    %v1247 = vmul.f32 %v1200, %v879
    %v1248 = vmul.f32 %v1204, %v880
    %v1249 = vmul.f32 %v1208, %v881
    %v1250 = vmul.f32 %v1212, %v882
    %v1251 = vmul.f32 %v1216, %v883
    %v1252 = vmul.f32 %v1220, %v884
    %v1253 = vmul.f32 %v1224, %v885
    %v1254 = vmul.f32 %v1228, %v886
    %v1255 = vmul.f32 %v1232, %v887
    %v1256 = vmul.f32 %v1236, %v888
    %v1257 = vmul.f32 %v1240, %v889
    %v1258 = vadd.f32 %v634, %v1242
    %v1259 = vadd.f32 %v635, %v1243
    %v1260 = vadd.f32 %v636, %v1244
    %v1261 = vadd.f32 %v637, %v1245
    %v1262 = vadd.f32 %v638, %v1246
    %v1263 = vadd.f32 %v639, %v1247
    %v1264 = vadd.f32 %v640, %v1248
    %v1265 = vadd.f32 %v641, %v1249
    %v1266 = vadd.f32 %v642, %v1250
    %v1267 = vadd.f32 %v643, %v1251
    %v1268 = vadd.f32 %v644, %v1252
    %v1269 = vadd.f32 %v645, %v1253
    %v1270 = vadd.f32 %v646, %v1254
    %v1271 = vadd.f32 %v647, %v1255
    %v1272 = vadd.f32 %v648, %v1256
    %v1273 = vadd.f32 %v649, %v1257
    %1274 = vset.pattern.permute.xlu0 3
    %1275 = vperm.xlu0 %1274, %v954
    %v1276 = vpop.permute.xlu0 %1275
    %1278 = vset.pattern.permute.xlu0 3
    %1279 = vperm.xlu0 %1278, %v955
    %v1280 = vpop.permute.xlu0 %1279
    %1282 = vset.pattern.permute.xlu0 3
    %1283 = vperm.xlu0 %1282, %v956
    %v1284 = vpop.permute.xlu0 %1283
    %1286 = vset.pattern.permute.xlu0 3
    %1287 = vperm.xlu0 %1286, %v957
    %v1288 = vpop.permute.xlu0 %1287
    %1290 = vset.pattern.permute.xlu0 3
    %1291 = vperm.xlu0 %1290, %v958
    %v1292 = vpop.permute.xlu0 %1291
    %1294 = vset.pattern.permute.xlu0 3
    %1295 = vperm.xlu0 %1294, %v959
    %v1296 = vpop.permute.xlu0 %1295
    %1298 = vset.pattern.permute.xlu0 3
    %1299 = vperm.xlu0 %1298, %v960
    %v1300 = vpop.permute.xlu0 %1299
    %1302 = vset.pattern.permute.xlu0 3
    %1303 = vperm.xlu0 %1302, %v961
    %v1304 = vpop.permute.xlu0 %1303
    %1306 = vset.pattern.permute.xlu0 3
    %1307 = vperm.xlu0 %1306, %v962
    %v1308 = vpop.permute.xlu0 %1307
    %1310 = vset.pattern.permute.xlu0 3
    %1311 = vperm.xlu0 %1310, %v963
    %v1312 = vpop.permute.xlu0 %1311
    %1314 = vset.pattern.permute.xlu0 3
    %1315 = vperm.xlu0 %1314, %v964
    %v1316 = vpop.permute.xlu0 %1315
    %1318 = vset.pattern.permute.xlu0 3
    %1319 = vperm.xlu0 %1318, %v965
    %v1320 = vpop.permute.xlu0 %1319
    %1322 = vset.pattern.permute.xlu0 3
    %1323 = vperm.xlu0 %1322, %v966
    %v1324 = vpop.permute.xlu0 %1323
    %1326 = vset.pattern.permute.xlu0 3
    %1327 = vperm.xlu0 %1326, %v967
    %v1328 = vpop.permute.xlu0 %1327
    %1330 = vset.pattern.permute.xlu0 3
    %1331 = vperm.xlu0 %1330, %v968
    %v1332 = vpop.permute.xlu0 %1331
    %1334 = vset.pattern.permute.xlu0 3
    %1335 = vperm.xlu0 %1334, %v969
    %v1336 = vpop.permute.xlu0 %1335
    %v1338 = vmul.f32 %v1276, %v874
    %v1339 = vmul.f32 %v1280, %v875
    %v1340 = vmul.f32 %v1284, %v876
    %v1341 = vmul.f32 %v1288, %v877
    %v1342 = vmul.f32 %v1292, %v878
    %v1343 = vmul.f32 %v1296, %v879
    %v1344 = vmul.f32 %v1300, %v880
    %v1345 = vmul.f32 %v1304, %v881
    %v1346 = vmul.f32 %v1308, %v882
    %v1347 = vmul.f32 %v1312, %v883
    %v1348 = vmul.f32 %v1316, %v884
    %v1349 = vmul.f32 %v1320, %v885
    %v1350 = vmul.f32 %v1324, %v886
    %v1351 = vmul.f32 %v1328, %v887
    %v1352 = vmul.f32 %v1332, %v888
    %v1353 = vmul.f32 %v1336, %v889
    %v1354 = vadd.f32 %v730, %v1338
    %v1355 = vadd.f32 %v731, %v1339
    %v1356 = vadd.f32 %v732, %v1340
    %v1357 = vadd.f32 %v733, %v1341
    %v1358 = vadd.f32 %v734, %v1342
    %v1359 = vadd.f32 %v735, %v1343
    %v1360 = vadd.f32 %v736, %v1344
    %v1361 = vadd.f32 %v737, %v1345
    %v1362 = vadd.f32 %v738, %v1346
    %v1363 = vadd.f32 %v739, %v1347
    %v1364 = vadd.f32 %v740, %v1348
    %v1365 = vadd.f32 %v741, %v1349
    %v1366 = vadd.f32 %v742, %v1350
    %v1367 = vadd.f32 %v743, %v1351
    %v1368 = vadd.f32 %v744, %v1352
    %v1369 = vadd.f32 %v745, %v1353
    %1370 = vset.pattern.permute.xlu0 2
    %1371 = vperm.xlu0 %1370, %v24
    %v1372 = vpop.permute.xlu0 %1371
    %1373 = vset.pattern.permute.xlu0 2
    %1374 = vperm.xlu0 %1373, %v25
    %v1375 = vpop.permute.xlu0 %1374
    %1376 = vset.pattern.permute.xlu0 2
    %1377 = vperm.xlu0 %1376, %v26
    %v1378 = vpop.permute.xlu0 %1377
    %1379 = vset.pattern.permute.xlu0 2
    %1380 = vperm.xlu0 %1379, %v27
    %v1381 = vpop.permute.xlu0 %1380
    %1382 = vset.pattern.permute.xlu0 2
    %1383 = vperm.xlu0 %1382, %v28
    %v1384 = vpop.permute.xlu0 %1383
    %1385 = vset.pattern.permute.xlu0 2
    %1386 = vperm.xlu0 %1385, %v29
    %v1387 = vpop.permute.xlu0 %1386
    %1388 = vset.pattern.permute.xlu0 2
    %1389 = vperm.xlu0 %1388, %v30
    %v1390 = vpop.permute.xlu0 %1389
    %1391 = vset.pattern.permute.xlu0 2
    %1392 = vperm.xlu0 %1391, %v31
    %v1393 = vpop.permute.xlu0 %1392
    %1394 = vset.pattern.permute.xlu0 2
    %1395 = vperm.xlu0 %1394, %v32
    %v1396 = vpop.permute.xlu0 %1395
    %1397 = vset.pattern.permute.xlu0 2
    %1398 = vperm.xlu0 %1397, %v33
    %v1399 = vpop.permute.xlu0 %1398
    %1400 = vset.pattern.permute.xlu0 2
    %1401 = vperm.xlu0 %1400, %v34
    %v1402 = vpop.permute.xlu0 %1401
    %1403 = vset.pattern.permute.xlu0 2
    %1404 = vperm.xlu0 %1403, %v35
    %v1405 = vpop.permute.xlu0 %1404
    %1406 = vset.pattern.permute.xlu0 2
    %1407 = vperm.xlu0 %1406, %v36
    %v1408 = vpop.permute.xlu0 %1407
    %1409 = vset.pattern.permute.xlu0 2
    %1410 = vperm.xlu0 %1409, %v37
    %v1411 = vpop.permute.xlu0 %1410
    %1412 = vset.pattern.permute.xlu0 2
    %1413 = vperm.xlu0 %1412, %v38
    %v1414 = vpop.permute.xlu0 %1413
    %1415 = vset.pattern.permute.xlu0 2
    %1416 = vperm.xlu0 %1415, %v39
    %v1417 = vpop.permute.xlu0 %1416
    %vm1418 = vcmp.eq.s32.totalorder %v105, %v1372
    %vm1419 = vcmp.eq.s32.totalorder %v105, %v1375
    %vm1420 = vcmp.eq.s32.totalorder %v105, %v1378
    %vm1421 = vcmp.eq.s32.totalorder %v105, %v1381
    %vm1422 = vcmp.eq.s32.totalorder %v105, %v1384
    %vm1423 = vcmp.eq.s32.totalorder %v105, %v1387
    %vm1424 = vcmp.eq.s32.totalorder %v105, %v1390
    %vm1425 = vcmp.eq.s32.totalorder %v105, %v1393
    %vm1426 = vcmp.eq.s32.totalorder %v105, %v1396
    %vm1427 = vcmp.eq.s32.totalorder %v105, %v1399
    %vm1428 = vcmp.eq.s32.totalorder %v105, %v1402
    %vm1429 = vcmp.eq.s32.totalorder %v105, %v1405
    %vm1430 = vcmp.eq.s32.totalorder %v105, %v1408
    %vm1431 = vcmp.eq.s32.totalorder %v105, %v1411
    %vm1432 = vcmp.eq.s32.totalorder %v105, %v1414
    %vm1433 = vcmp.eq.s32.totalorder %v105, %v1417
    %1434 = vset.pattern.permute.xlu0 2
    %1435 = vperm.xlu0 %1434, %v40
    %v1436 = vpop.permute.xlu0 %1435
    %1438 = vset.pattern.permute.xlu0 2
    %1439 = vperm.xlu0 %1438, %v41
    %v1440 = vpop.permute.xlu0 %1439
    %1442 = vset.pattern.permute.xlu0 2
    %1443 = vperm.xlu0 %1442, %v42
    %v1444 = vpop.permute.xlu0 %1443
    %1446 = vset.pattern.permute.xlu0 2
    %1447 = vperm.xlu0 %1446, %v43
    %v1448 = vpop.permute.xlu0 %1447
    %1450 = vset.pattern.permute.xlu0 2
    %1451 = vperm.xlu0 %1450, %v44
    %v1452 = vpop.permute.xlu0 %1451
    %1454 = vset.pattern.permute.xlu0 2
    %1455 = vperm.xlu0 %1454, %v45
    %v1456 = vpop.permute.xlu0 %1455
    %1458 = vset.pattern.permute.xlu0 2
    %1459 = vperm.xlu0 %1458, %v46
    %v1460 = vpop.permute.xlu0 %1459
    %1462 = vset.pattern.permute.xlu0 2
    %1463 = vperm.xlu0 %1462, %v47
    %v1464 = vpop.permute.xlu0 %1463
    %1466 = vset.pattern.permute.xlu0 2
    %1467 = vperm.xlu0 %1466, %v48
    %v1468 = vpop.permute.xlu0 %1467
    %1470 = vset.pattern.permute.xlu0 2
    %1471 = vperm.xlu0 %1470, %v49
    %v1472 = vpop.permute.xlu0 %1471
    %1474 = vset.pattern.permute.xlu0 2
    %1475 = vperm.xlu0 %1474, %v50
    %v1476 = vpop.permute.xlu0 %1475
    %1478 = vset.pattern.permute.xlu0 2
    %1479 = vperm.xlu0 %1478, %v51
    %v1480 = vpop.permute.xlu0 %1479
    %1482 = vset.pattern.permute.xlu0 2
    %1483 = vperm.xlu0 %1482, %v52
    %v1484 = vpop.permute.xlu0 %1483
    %1486 = vset.pattern.permute.xlu0 2
    %1487 = vperm.xlu0 %1486, %v53
    %v1488 = vpop.permute.xlu0 %1487
    %1490 = vset.pattern.permute.xlu0 2
    %1491 = vperm.xlu0 %1490, %v54
    %v1492 = vpop.permute.xlu0 %1491
    %1494 = vset.pattern.permute.xlu0 2
    %1495 = vperm.xlu0 %1494, %v55
    %v1496 = vpop.permute.xlu0 %1495
    %v1498 = vsel %vm1418, %v1436, 0.0
    %v1499 = vsel %vm1419, %v1440, 0.0
    %v1500 = vsel %vm1420, %v1444, 0.0
    %v1501 = vsel %vm1421, %v1448, 0.0
    %v1502 = vsel %vm1422, %v1452, 0.0
    %v1503 = vsel %vm1423, %v1456, 0.0
    %v1504 = vsel %vm1424, %v1460, 0.0
    %v1505 = vsel %vm1425, %v1464, 0.0
    %v1506 = vsel %vm1426, %v1468, 0.0
    %v1507 = vsel %vm1427, %v1472, 0.0
    %v1508 = vsel %vm1428, %v1476, 0.0
    %v1509 = vsel %vm1429, %v1480, 0.0
    %v1510 = vsel %vm1430, %v1484, 0.0
    %v1511 = vsel %vm1431, %v1488, 0.0
    %v1512 = vsel %vm1432, %v1492, 0.0
    %v1513 = vsel %vm1433, %v1496, 0.0
    %vm1514 = vcmp.le.s32.totalorder %v56, 2
    %vm1515 = vcmp.le.s32.totalorder %v57, 2
    %vm1516 = vcmp.le.s32.totalorder %v58, 2
    %vm1517 = vcmp.le.s32.totalorder %v59, 2
    %vm1518 = vcmp.le.s32.totalorder %v60, 2
    %vm1519 = vcmp.le.s32.totalorder %v61, 2
    %vm1520 = vcmp.le.s32.totalorder %v62, 2
    %vm1521 = vcmp.le.s32.totalorder %v63, 2
    %vm1522 = vcmp.le.s32.totalorder %v64, 2
    %vm1523 = vcmp.le.s32.totalorder %v65, 2
    %vm1524 = vcmp.le.s32.totalorder %v66, 2
    %vm1525 = vcmp.le.s32.totalorder %v67, 2
    %vm1526 = vcmp.le.s32.totalorder %v68, 2
    %vm1527 = vcmp.le.s32.totalorder %v69, 2
    %vm1528 = vcmp.le.s32.totalorder %v70, 2
    %vm1529 = vcmp.le.s32.totalorder %v71, 2
    %vm1530 = vcmp.gt.s32.totalorder %v72, 2
    %vm1531 = vcmp.gt.s32.totalorder %v73, 2
    %vm1532 = vcmp.gt.s32.totalorder %v74, 2
    %vm1533 = vcmp.gt.s32.totalorder %v75, 2
    %vm1534 = vcmp.gt.s32.totalorder %v76, 2
    %vm1535 = vcmp.gt.s32.totalorder %v77, 2
    %vm1536 = vcmp.gt.s32.totalorder %v78, 2
    %vm1537 = vcmp.gt.s32.totalorder %v79, 2
    %vm1538 = vcmp.gt.s32.totalorder %v80, 2
    %vm1539 = vcmp.gt.s32.totalorder %v81, 2
    %vm1540 = vcmp.gt.s32.totalorder %v82, 2
    %vm1541 = vcmp.gt.s32.totalorder %v83, 2
    %vm1542 = vcmp.gt.s32.totalorder %v84, 2
    %vm1543 = vcmp.gt.s32.totalorder %v85, 2
    %vm1544 = vcmp.gt.s32.totalorder %v86, 2
    %vm1545 = vcmp.gt.s32.totalorder %v87, 2
    %vm1546 = vmand %vm1514, %vm1530
    %vm1547 = vmand %vm1515, %vm1531
    %vm1548 = vmand %vm1516, %vm1532
    %vm1549 = vmand %vm1517, %vm1533
    %vm1550 = vmand %vm1518, %vm1534
    %vm1551 = vmand %vm1519, %vm1535
    %vm1552 = vmand %vm1520, %vm1536
    %vm1553 = vmand %vm1521, %vm1537
    %vm1554 = vmand %vm1522, %vm1538
    %vm1555 = vmand %vm1523, %vm1539
    %vm1556 = vmand %vm1524, %vm1540
    %vm1557 = vmand %vm1525, %vm1541
    %vm1558 = vmand %vm1526, %vm1542
    %vm1559 = vmand %vm1527, %vm1543
    %vm1560 = vmand %vm1528, %vm1544
    %vm1561 = vmand %vm1529, %vm1545
    %v1562 = vsel %vm1546, 1, 0
    %v1563 = vsel %vm1547, 1, 0
    %v1564 = vsel %vm1548, 1, 0
    %v1565 = vsel %vm1549, 1, 0
    %v1566 = vsel %vm1550, 1, 0
    %v1567 = vsel %vm1551, 1, 0
    %v1568 = vsel %vm1552, 1, 0
    %v1569 = vsel %vm1553, 1, 0
    %v1570 = vsel %vm1554, 1, 0
    %v1571 = vsel %vm1555, 1, 0
    %v1572 = vsel %vm1556, 1, 0
    %v1573 = vsel %vm1557, 1, 0
    %v1574 = vsel %vm1558, 1, 0
    %v1575 = vsel %vm1559, 1, 0
    %v1576 = vsel %vm1560, 1, 0
    %v1577 = vsel %vm1561, 1, 0
    %v1578 = vcvt.s32.f32 %v1562
    %v1579 = vcvt.s32.f32 %v1563
    %v1580 = vcvt.s32.f32 %v1564
    %v1581 = vcvt.s32.f32 %v1565
    %v1582 = vcvt.s32.f32 %v1566
    %v1583 = vcvt.s32.f32 %v1567
    %v1584 = vcvt.s32.f32 %v1568
    %v1585 = vcvt.s32.f32 %v1569
    %v1586 = vcvt.s32.f32 %v1570
    %v1587 = vcvt.s32.f32 %v1571
    %v1588 = vcvt.s32.f32 %v1572
    %v1589 = vcvt.s32.f32 %v1573
    %v1590 = vcvt.s32.f32 %v1574
    %v1591 = vcvt.s32.f32 %v1575
    %v1592 = vcvt.s32.f32 %v1576
    %v1593 = vcvt.s32.f32 %v1577
    %1595 = vset.pattern.permute.xlu0 0
    %1596 = vperm.xlu0 %1595, %v1578
    %v1597 = vpop.permute.xlu0 %1596
    %1600 = vset.pattern.permute.xlu0 0
    %1601 = vperm.xlu0 %1600, %v1579
    %v1602 = vpop.permute.xlu0 %1601
    %1605 = vset.pattern.permute.xlu0 0
    %1606 = vperm.xlu0 %1605, %v1580
    %v1607 = vpop.permute.xlu0 %1606
    %1610 = vset.pattern.permute.xlu0 0
    %1611 = vperm.xlu0 %1610, %v1581
    %v1612 = vpop.permute.xlu0 %1611
    %1615 = vset.pattern.permute.xlu0 0
    %1616 = vperm.xlu0 %1615, %v1582
    %v1617 = vpop.permute.xlu0 %1616
    %1620 = vset.pattern.permute.xlu0 0
    %1621 = vperm.xlu0 %1620, %v1583
    %v1622 = vpop.permute.xlu0 %1621
    %1625 = vset.pattern.permute.xlu0 0
    %1626 = vperm.xlu0 %1625, %v1584
    %v1627 = vpop.permute.xlu0 %1626
    %1630 = vset.pattern.permute.xlu0 0
    %1631 = vperm.xlu0 %1630, %v1585
    %v1632 = vpop.permute.xlu0 %1631
    %1635 = vset.pattern.permute.xlu0 0
    %1636 = vperm.xlu0 %1635, %v1586
    %v1637 = vpop.permute.xlu0 %1636
    %1640 = vset.pattern.permute.xlu0 0
    %1641 = vperm.xlu0 %1640, %v1587
    %v1642 = vpop.permute.xlu0 %1641
    %1645 = vset.pattern.permute.xlu0 0
    %1646 = vperm.xlu0 %1645, %v1588
    %v1647 = vpop.permute.xlu0 %1646
    %1650 = vset.pattern.permute.xlu0 0
    %1651 = vperm.xlu0 %1650, %v1589
    %v1652 = vpop.permute.xlu0 %1651
    %1655 = vset.pattern.permute.xlu0 0
    %1656 = vperm.xlu0 %1655, %v1590
    %v1657 = vpop.permute.xlu0 %1656
    %1660 = vset.pattern.permute.xlu0 0
    %1661 = vperm.xlu0 %1660, %v1591
    %v1662 = vpop.permute.xlu0 %1661
    %1665 = vset.pattern.permute.xlu0 0
    %1666 = vperm.xlu0 %1665, %v1592
    %v1667 = vpop.permute.xlu0 %1666
    %1670 = vset.pattern.permute.xlu0 0
    %1671 = vperm.xlu0 %1670, %v1593
    %v1672 = vpop.permute.xlu0 %1671
    %v1674 = vmul.f32 %v1597, %v1498
    %v1675 = vmul.f32 %v1602, %v1499
    %v1676 = vmul.f32 %v1607, %v1500
    %v1677 = vmul.f32 %v1612, %v1501
    %v1678 = vmul.f32 %v1617, %v1502
    %v1679 = vmul.f32 %v1622, %v1503
    %v1680 = vmul.f32 %v1627, %v1504
    %v1681 = vmul.f32 %v1632, %v1505
    %v1682 = vmul.f32 %v1637, %v1506
    %v1683 = vmul.f32 %v1642, %v1507
    %v1684 = vmul.f32 %v1647, %v1508
    %v1685 = vmul.f32 %v1652, %v1509
    %v1686 = vmul.f32 %v1657, %v1510
    %v1687 = vmul.f32 %v1662, %v1511
    %v1688 = vmul.f32 %v1667, %v1512
    %v1689 = vmul.f32 %v1672, %v1513
    %v1690 = vadd.f32 %v1066, %v1674
    %v1691 = vadd.f32 %v1067, %v1675
    %v1692 = vadd.f32 %v1068, %v1676
    %v1693 = vadd.f32 %v1069, %v1677
    %v1694 = vadd.f32 %v1070, %v1678
    %v1695 = vadd.f32 %v1071, %v1679
    %v1696 = vadd.f32 %v1072, %v1680
    %v1697 = vadd.f32 %v1073, %v1681
    %v1698 = vadd.f32 %v1074, %v1682
    %v1699 = vadd.f32 %v1075, %v1683
    %v1700 = vadd.f32 %v1076, %v1684
    %v1701 = vadd.f32 %v1077, %v1685
    %v1702 = vadd.f32 %v1078, %v1686
    %v1703 = vadd.f32 %v1079, %v1687
    %v1704 = vadd.f32 %v1080, %v1688
    %v1705 = vadd.f32 %v1081, %v1689
    %1706 = vset.pattern.permute.xlu0 1
    %1707 = vperm.xlu0 %1706, %v1578
    %v1708 = vpop.permute.xlu0 %1707
    %1710 = vset.pattern.permute.xlu0 1
    %1711 = vperm.xlu0 %1710, %v1579
    %v1712 = vpop.permute.xlu0 %1711
    %1714 = vset.pattern.permute.xlu0 1
    %1715 = vperm.xlu0 %1714, %v1580
    %v1716 = vpop.permute.xlu0 %1715
    %1718 = vset.pattern.permute.xlu0 1
    %1719 = vperm.xlu0 %1718, %v1581
    %v1720 = vpop.permute.xlu0 %1719
    %1722 = vset.pattern.permute.xlu0 1
    %1723 = vperm.xlu0 %1722, %v1582
    %v1724 = vpop.permute.xlu0 %1723
    %1726 = vset.pattern.permute.xlu0 1
    %1727 = vperm.xlu0 %1726, %v1583
    %v1728 = vpop.permute.xlu0 %1727
    %1730 = vset.pattern.permute.xlu0 1
    %1731 = vperm.xlu0 %1730, %v1584
    %v1732 = vpop.permute.xlu0 %1731
    %1734 = vset.pattern.permute.xlu0 1
    %1735 = vperm.xlu0 %1734, %v1585
    %v1736 = vpop.permute.xlu0 %1735
    %1738 = vset.pattern.permute.xlu0 1
    %1739 = vperm.xlu0 %1738, %v1586
    %v1740 = vpop.permute.xlu0 %1739
    %1742 = vset.pattern.permute.xlu0 1
    %1743 = vperm.xlu0 %1742, %v1587
    %v1744 = vpop.permute.xlu0 %1743
    %1746 = vset.pattern.permute.xlu0 1
    %1747 = vperm.xlu0 %1746, %v1588
    %v1748 = vpop.permute.xlu0 %1747
    %1750 = vset.pattern.permute.xlu0 1
    %1751 = vperm.xlu0 %1750, %v1589
    %v1752 = vpop.permute.xlu0 %1751
    %1754 = vset.pattern.permute.xlu0 1
    %1755 = vperm.xlu0 %1754, %v1590
    %v1756 = vpop.permute.xlu0 %1755
    %1758 = vset.pattern.permute.xlu0 1
    %1759 = vperm.xlu0 %1758, %v1591
    %v1760 = vpop.permute.xlu0 %1759
    %1762 = vset.pattern.permute.xlu0 1
    %1763 = vperm.xlu0 %1762, %v1592
    %v1764 = vpop.permute.xlu0 %1763
    %1766 = vset.pattern.permute.xlu0 1
    %1767 = vperm.xlu0 %1766, %v1593
    %v1768 = vpop.permute.xlu0 %1767
    %v1770 = vmul.f32 %v1708, %v1498
    %v1771 = vmul.f32 %v1712, %v1499
    %v1772 = vmul.f32 %v1716, %v1500
    %v1773 = vmul.f32 %v1720, %v1501
    %v1774 = vmul.f32 %v1724, %v1502
    %v1775 = vmul.f32 %v1728, %v1503
    %v1776 = vmul.f32 %v1732, %v1504
    %v1777 = vmul.f32 %v1736, %v1505
    %v1778 = vmul.f32 %v1740, %v1506
    %v1779 = vmul.f32 %v1744, %v1507
    %v1780 = vmul.f32 %v1748, %v1508
    %v1781 = vmul.f32 %v1752, %v1509
    %v1782 = vmul.f32 %v1756, %v1510
    %v1783 = vmul.f32 %v1760, %v1511
    %v1784 = vmul.f32 %v1764, %v1512
    %v1785 = vmul.f32 %v1768, %v1513
    %v1786 = vadd.f32 %v1162, %v1770
    %v1787 = vadd.f32 %v1163, %v1771
    %v1788 = vadd.f32 %v1164, %v1772
    %v1789 = vadd.f32 %v1165, %v1773
    %v1790 = vadd.f32 %v1166, %v1774
    %v1791 = vadd.f32 %v1167, %v1775
    %v1792 = vadd.f32 %v1168, %v1776
    %v1793 = vadd.f32 %v1169, %v1777
    %v1794 = vadd.f32 %v1170, %v1778
    %v1795 = vadd.f32 %v1171, %v1779
    %v1796 = vadd.f32 %v1172, %v1780
    %v1797 = vadd.f32 %v1173, %v1781
    %v1798 = vadd.f32 %v1174, %v1782
    %v1799 = vadd.f32 %v1175, %v1783
    %v1800 = vadd.f32 %v1176, %v1784
    %v1801 = vadd.f32 %v1177, %v1785
    %1802 = vset.pattern.permute.xlu0 2
    %1803 = vperm.xlu0 %1802, %v1578
    %v1804 = vpop.permute.xlu0 %1803
    %1806 = vset.pattern.permute.xlu0 2
    %1807 = vperm.xlu0 %1806, %v1579
    %v1808 = vpop.permute.xlu0 %1807
    %1810 = vset.pattern.permute.xlu0 2
    %1811 = vperm.xlu0 %1810, %v1580
    %v1812 = vpop.permute.xlu0 %1811
    %1814 = vset.pattern.permute.xlu0 2
    %1815 = vperm.xlu0 %1814, %v1581
    %v1816 = vpop.permute.xlu0 %1815
    %1818 = vset.pattern.permute.xlu0 2
    %1819 = vperm.xlu0 %1818, %v1582
    %v1820 = vpop.permute.xlu0 %1819
    %1822 = vset.pattern.permute.xlu0 2
    %1823 = vperm.xlu0 %1822, %v1583
    %v1824 = vpop.permute.xlu0 %1823
    %1826 = vset.pattern.permute.xlu0 2
    %1827 = vperm.xlu0 %1826, %v1584
    %v1828 = vpop.permute.xlu0 %1827
    %1830 = vset.pattern.permute.xlu0 2
    %1831 = vperm.xlu0 %1830, %v1585
    %v1832 = vpop.permute.xlu0 %1831
    %1834 = vset.pattern.permute.xlu0 2
    %1835 = vperm.xlu0 %1834, %v1586
    %v1836 = vpop.permute.xlu0 %1835
    %1838 = vset.pattern.permute.xlu0 2
    %1839 = vperm.xlu0 %1838, %v1587
    %v1840 = vpop.permute.xlu0 %1839
    %1842 = vset.pattern.permute.xlu0 2
    %1843 = vperm.xlu0 %1842, %v1588
    %v1844 = vpop.permute.xlu0 %1843
    %1846 = vset.pattern.permute.xlu0 2
    %1847 = vperm.xlu0 %1846, %v1589
    %v1848 = vpop.permute.xlu0 %1847
    %1850 = vset.pattern.permute.xlu0 2
    %1851 = vperm.xlu0 %1850, %v1590
    %v1852 = vpop.permute.xlu0 %1851
    %1854 = vset.pattern.permute.xlu0 2
    %1855 = vperm.xlu0 %1854, %v1591
    %v1856 = vpop.permute.xlu0 %1855
    %1858 = vset.pattern.permute.xlu0 2
    %1859 = vperm.xlu0 %1858, %v1592
    %v1860 = vpop.permute.xlu0 %1859
    %1862 = vset.pattern.permute.xlu0 2
    %1863 = vperm.xlu0 %1862, %v1593
    %v1864 = vpop.permute.xlu0 %1863
    %v1866 = vmul.f32 %v1804, %v1498
    %v1867 = vmul.f32 %v1808, %v1499
    %v1868 = vmul.f32 %v1812, %v1500
    %v1869 = vmul.f32 %v1816, %v1501
    %v1870 = vmul.f32 %v1820, %v1502
    %v1871 = vmul.f32 %v1824, %v1503
    %v1872 = vmul.f32 %v1828, %v1504
    %v1873 = vmul.f32 %v1832, %v1505
    %v1874 = vmul.f32 %v1836, %v1506
    %v1875 = vmul.f32 %v1840, %v1507
    %v1876 = vmul.f32 %v1844, %v1508
    %v1877 = vmul.f32 %v1848, %v1509
    %v1878 = vmul.f32 %v1852, %v1510
    %v1879 = vmul.f32 %v1856, %v1511
    %v1880 = vmul.f32 %v1860, %v1512
    %v1881 = vmul.f32 %v1864, %v1513
    %v1882 = vadd.f32 %v1258, %v1866
    %v1883 = vadd.f32 %v1259, %v1867
    %v1884 = vadd.f32 %v1260, %v1868
    %v1885 = vadd.f32 %v1261, %v1869
    %v1886 = vadd.f32 %v1262, %v1870
    %v1887 = vadd.f32 %v1263, %v1871
    %v1888 = vadd.f32 %v1264, %v1872
    %v1889 = vadd.f32 %v1265, %v1873
    %v1890 = vadd.f32 %v1266, %v1874
    %v1891 = vadd.f32 %v1267, %v1875
    %v1892 = vadd.f32 %v1268, %v1876
    %v1893 = vadd.f32 %v1269, %v1877
    %v1894 = vadd.f32 %v1270, %v1878
    %v1895 = vadd.f32 %v1271, %v1879
    %v1896 = vadd.f32 %v1272, %v1880
    %v1897 = vadd.f32 %v1273, %v1881
    %1898 = vset.pattern.permute.xlu0 3
    %1899 = vperm.xlu0 %1898, %v1578
    %v1900 = vpop.permute.xlu0 %1899
    %1902 = vset.pattern.permute.xlu0 3
    %1903 = vperm.xlu0 %1902, %v1579
    %v1904 = vpop.permute.xlu0 %1903
    %1906 = vset.pattern.permute.xlu0 3
    %1907 = vperm.xlu0 %1906, %v1580
    %v1908 = vpop.permute.xlu0 %1907
    %1910 = vset.pattern.permute.xlu0 3
    %1911 = vperm.xlu0 %1910, %v1581
    %v1912 = vpop.permute.xlu0 %1911
    %1914 = vset.pattern.permute.xlu0 3
    %1915 = vperm.xlu0 %1914, %v1582
    %v1916 = vpop.permute.xlu0 %1915
    %1918 = vset.pattern.permute.xlu0 3
    %1919 = vperm.xlu0 %1918, %v1583
    %v1920 = vpop.permute.xlu0 %1919
    %1922 = vset.pattern.permute.xlu0 3
    %1923 = vperm.xlu0 %1922, %v1584
    %v1924 = vpop.permute.xlu0 %1923
    %1926 = vset.pattern.permute.xlu0 3
    %1927 = vperm.xlu0 %1926, %v1585
    %v1928 = vpop.permute.xlu0 %1927
    %1930 = vset.pattern.permute.xlu0 3
    %1931 = vperm.xlu0 %1930, %v1586
    %v1932 = vpop.permute.xlu0 %1931
    %1934 = vset.pattern.permute.xlu0 3
    %1935 = vperm.xlu0 %1934, %v1587
    %v1936 = vpop.permute.xlu0 %1935
    %1938 = vset.pattern.permute.xlu0 3
    %1939 = vperm.xlu0 %1938, %v1588
    %v1940 = vpop.permute.xlu0 %1939
    %1942 = vset.pattern.permute.xlu0 3
    %1943 = vperm.xlu0 %1942, %v1589
    %v1944 = vpop.permute.xlu0 %1943
    %1946 = vset.pattern.permute.xlu0 3
    %1947 = vperm.xlu0 %1946, %v1590
    %v1948 = vpop.permute.xlu0 %1947
    %1950 = vset.pattern.permute.xlu0 3
    %1951 = vperm.xlu0 %1950, %v1591
    %v1952 = vpop.permute.xlu0 %1951
    %1954 = vset.pattern.permute.xlu0 3
    %1955 = vperm.xlu0 %1954, %v1592
    %v1956 = vpop.permute.xlu0 %1955
    %1958 = vset.pattern.permute.xlu0 3
    %1959 = vperm.xlu0 %1958, %v1593
    %v1960 = vpop.permute.xlu0 %1959
    %v1962 = vmul.f32 %v1900, %v1498
    %v1963 = vmul.f32 %v1904, %v1499
    %v1964 = vmul.f32 %v1908, %v1500
    %v1965 = vmul.f32 %v1912, %v1501
    %v1966 = vmul.f32 %v1916, %v1502
    %v1967 = vmul.f32 %v1920, %v1503
    %v1968 = vmul.f32 %v1924, %v1504
    %v1969 = vmul.f32 %v1928, %v1505
    %v1970 = vmul.f32 %v1932, %v1506
    %v1971 = vmul.f32 %v1936, %v1507
    %v1972 = vmul.f32 %v1940, %v1508
    %v1973 = vmul.f32 %v1944, %v1509
    %v1974 = vmul.f32 %v1948, %v1510
    %v1975 = vmul.f32 %v1952, %v1511
    %v1976 = vmul.f32 %v1956, %v1512
    %v1977 = vmul.f32 %v1960, %v1513
    %v1978 = vadd.f32 %v1354, %v1962
    %v1979 = vadd.f32 %v1355, %v1963
    %v1980 = vadd.f32 %v1356, %v1964
    %v1981 = vadd.f32 %v1357, %v1965
    %v1982 = vadd.f32 %v1358, %v1966
    %v1983 = vadd.f32 %v1359, %v1967
    %v1984 = vadd.f32 %v1360, %v1968
    %v1985 = vadd.f32 %v1361, %v1969
    %v1986 = vadd.f32 %v1362, %v1970
    %v1987 = vadd.f32 %v1363, %v1971
    %v1988 = vadd.f32 %v1364, %v1972
    %v1989 = vadd.f32 %v1365, %v1973
    %v1990 = vadd.f32 %v1366, %v1974
    %v1991 = vadd.f32 %v1367, %v1975
    %v1992 = vadd.f32 %v1368, %v1976
    %v1993 = vadd.f32 %v1369, %v1977
    %1994 = vset.pattern.permute.xlu0 3
    %1995 = vperm.xlu0 %1994, %v24
    %v1996 = vpop.permute.xlu0 %1995
    %1997 = vset.pattern.permute.xlu0 3
    %1998 = vperm.xlu0 %1997, %v25
    %v1999 = vpop.permute.xlu0 %1998
    %2000 = vset.pattern.permute.xlu0 3
    %2001 = vperm.xlu0 %2000, %v26
    %v2002 = vpop.permute.xlu0 %2001
    %2003 = vset.pattern.permute.xlu0 3
    %2004 = vperm.xlu0 %2003, %v27
    %v2005 = vpop.permute.xlu0 %2004
    %2006 = vset.pattern.permute.xlu0 3
    %2007 = vperm.xlu0 %2006, %v28
    %v2008 = vpop.permute.xlu0 %2007
    %2009 = vset.pattern.permute.xlu0 3
    %2010 = vperm.xlu0 %2009, %v29
    %v2011 = vpop.permute.xlu0 %2010
    %2012 = vset.pattern.permute.xlu0 3
    %2013 = vperm.xlu0 %2012, %v30
    %v2014 = vpop.permute.xlu0 %2013
    %2015 = vset.pattern.permute.xlu0 3
    %2016 = vperm.xlu0 %2015, %v31
    %v2017 = vpop.permute.xlu0 %2016
    %2018 = vset.pattern.permute.xlu0 3
    %2019 = vperm.xlu0 %2018, %v32
    %v2020 = vpop.permute.xlu0 %2019
    %2021 = vset.pattern.permute.xlu0 3
    %2022 = vperm.xlu0 %2021, %v33
    %v2023 = vpop.permute.xlu0 %2022
    %2024 = vset.pattern.permute.xlu0 3
    %2025 = vperm.xlu0 %2024, %v34
    %v2026 = vpop.permute.xlu0 %2025
    %2027 = vset.pattern.permute.xlu0 3
    %2028 = vperm.xlu0 %2027, %v35
    %v2029 = vpop.permute.xlu0 %2028
    %2030 = vset.pattern.permute.xlu0 3
    %2031 = vperm.xlu0 %2030, %v36
    %v2032 = vpop.permute.xlu0 %2031
    %2033 = vset.pattern.permute.xlu0 3
    %2034 = vperm.xlu0 %2033, %v37
    %v2035 = vpop.permute.xlu0 %2034
    %2036 = vset.pattern.permute.xlu0 3
    %2037 = vperm.xlu0 %2036, %v38
    %v2038 = vpop.permute.xlu0 %2037
    %2039 = vset.pattern.permute.xlu0 3
    %2040 = vperm.xlu0 %2039, %v39
    %v2041 = vpop.permute.xlu0 %2040
    %vm2042 = vcmp.eq.s32.totalorder %v105, %v1996
    %vm2043 = vcmp.eq.s32.totalorder %v105, %v1999
    %vm2044 = vcmp.eq.s32.totalorder %v105, %v2002
    %vm2045 = vcmp.eq.s32.totalorder %v105, %v2005
    %vm2046 = vcmp.eq.s32.totalorder %v105, %v2008
    %vm2047 = vcmp.eq.s32.totalorder %v105, %v2011
    %vm2048 = vcmp.eq.s32.totalorder %v105, %v2014
    %vm2049 = vcmp.eq.s32.totalorder %v105, %v2017
    %vm2050 = vcmp.eq.s32.totalorder %v105, %v2020
    %vm2051 = vcmp.eq.s32.totalorder %v105, %v2023
    %vm2052 = vcmp.eq.s32.totalorder %v105, %v2026
    %vm2053 = vcmp.eq.s32.totalorder %v105, %v2029
    %vm2054 = vcmp.eq.s32.totalorder %v105, %v2032
    %vm2055 = vcmp.eq.s32.totalorder %v105, %v2035
    %vm2056 = vcmp.eq.s32.totalorder %v105, %v2038
    %vm2057 = vcmp.eq.s32.totalorder %v105, %v2041
    %2058 = vset.pattern.permute.xlu0 3
    %2059 = vperm.xlu0 %2058, %v40
    %v2060 = vpop.permute.xlu0 %2059
    %2062 = vset.pattern.permute.xlu0 3
    %2063 = vperm.xlu0 %2062, %v41
    %v2064 = vpop.permute.xlu0 %2063
    %2066 = vset.pattern.permute.xlu0 3
    %2067 = vperm.xlu0 %2066, %v42
    %v2068 = vpop.permute.xlu0 %2067
    %2070 = vset.pattern.permute.xlu0 3
    %2071 = vperm.xlu0 %2070, %v43
    %v2072 = vpop.permute.xlu0 %2071
    %2074 = vset.pattern.permute.xlu0 3
    %2075 = vperm.xlu0 %2074, %v44
    %v2076 = vpop.permute.xlu0 %2075
    %2078 = vset.pattern.permute.xlu0 3
    %2079 = vperm.xlu0 %2078, %v45
    %v2080 = vpop.permute.xlu0 %2079
    %2082 = vset.pattern.permute.xlu0 3
    %2083 = vperm.xlu0 %2082, %v46
    %v2084 = vpop.permute.xlu0 %2083
    %2086 = vset.pattern.permute.xlu0 3
    %2087 = vperm.xlu0 %2086, %v47
    %v2088 = vpop.permute.xlu0 %2087
    %2090 = vset.pattern.permute.xlu0 3
    %2091 = vperm.xlu0 %2090, %v48
    %v2092 = vpop.permute.xlu0 %2091
    %2094 = vset.pattern.permute.xlu0 3
    %2095 = vperm.xlu0 %2094, %v49
    %v2096 = vpop.permute.xlu0 %2095
    %2098 = vset.pattern.permute.xlu0 3
    %2099 = vperm.xlu0 %2098, %v50
    %v2100 = vpop.permute.xlu0 %2099
    %2102 = vset.pattern.permute.xlu0 3
    %2103 = vperm.xlu0 %2102, %v51
    %v2104 = vpop.permute.xlu0 %2103
    %2106 = vset.pattern.permute.xlu0 3
    %2107 = vperm.xlu0 %2106, %v52
    %v2108 = vpop.permute.xlu0 %2107
    %2110 = vset.pattern.permute.xlu0 3
    %2111 = vperm.xlu0 %2110, %v53
    %v2112 = vpop.permute.xlu0 %2111
    %2114 = vset.pattern.permute.xlu0 3
    %2115 = vperm.xlu0 %2114, %v54
    %v2116 = vpop.permute.xlu0 %2115
    %2118 = vset.pattern.permute.xlu0 3
    %2119 = vperm.xlu0 %2118, %v55
    %v2120 = vpop.permute.xlu0 %2119
    %v2122 = vsel %vm2042, %v2060, 0.0
    %v2123 = vsel %vm2043, %v2064, 0.0
    %v2124 = vsel %vm2044, %v2068, 0.0
    %v2125 = vsel %vm2045, %v2072, 0.0
    %v2126 = vsel %vm2046, %v2076, 0.0
    %v2127 = vsel %vm2047, %v2080, 0.0
    %v2128 = vsel %vm2048, %v2084, 0.0
    %v2129 = vsel %vm2049, %v2088, 0.0
    %v2130 = vsel %vm2050, %v2092, 0.0
    %v2131 = vsel %vm2051, %v2096, 0.0
    %v2132 = vsel %vm2052, %v2100, 0.0
    %v2133 = vsel %vm2053, %v2104, 0.0
    %v2134 = vsel %vm2054, %v2108, 0.0
    %v2135 = vsel %vm2055, %v2112, 0.0
    %v2136 = vsel %vm2056, %v2116, 0.0
    %v2137 = vsel %vm2057, %v2120, 0.0
    %vm2138 = vcmp.le.s32.totalorder %v56, 3
    %vm2139 = vcmp.le.s32.totalorder %v57, 3
    %vm2140 = vcmp.le.s32.totalorder %v58, 3
    %vm2141 = vcmp.le.s32.totalorder %v59, 3
    %vm2142 = vcmp.le.s32.totalorder %v60, 3
    %vm2143 = vcmp.le.s32.totalorder %v61, 3
    %vm2144 = vcmp.le.s32.totalorder %v62, 3
    %vm2145 = vcmp.le.s32.totalorder %v63, 3
    %vm2146 = vcmp.le.s32.totalorder %v64, 3
    %vm2147 = vcmp.le.s32.totalorder %v65, 3
    %vm2148 = vcmp.le.s32.totalorder %v66, 3
    %vm2149 = vcmp.le.s32.totalorder %v67, 3
    %vm2150 = vcmp.le.s32.totalorder %v68, 3
    %vm2151 = vcmp.le.s32.totalorder %v69, 3
    %vm2152 = vcmp.le.s32.totalorder %v70, 3
    %vm2153 = vcmp.le.s32.totalorder %v71, 3
    %vm2154 = vcmp.gt.s32.totalorder %v72, 3
    %vm2155 = vcmp.gt.s32.totalorder %v73, 3
    %vm2156 = vcmp.gt.s32.totalorder %v74, 3
    %vm2157 = vcmp.gt.s32.totalorder %v75, 3
    %vm2158 = vcmp.gt.s32.totalorder %v76, 3
    %vm2159 = vcmp.gt.s32.totalorder %v77, 3
    %vm2160 = vcmp.gt.s32.totalorder %v78, 3
    %vm2161 = vcmp.gt.s32.totalorder %v79, 3
    %vm2162 = vcmp.gt.s32.totalorder %v80, 3
    %vm2163 = vcmp.gt.s32.totalorder %v81, 3
    %vm2164 = vcmp.gt.s32.totalorder %v82, 3
    %vm2165 = vcmp.gt.s32.totalorder %v83, 3
    %vm2166 = vcmp.gt.s32.totalorder %v84, 3
    %vm2167 = vcmp.gt.s32.totalorder %v85, 3
    %vm2168 = vcmp.gt.s32.totalorder %v86, 3
    %vm2169 = vcmp.gt.s32.totalorder %v87, 3
    %vm2170 = vmand %vm2138, %vm2154
    %vm2171 = vmand %vm2139, %vm2155
    %vm2172 = vmand %vm2140, %vm2156
    %vm2173 = vmand %vm2141, %vm2157
    %vm2174 = vmand %vm2142, %vm2158
    %vm2175 = vmand %vm2143, %vm2159
    %vm2176 = vmand %vm2144, %vm2160
    %vm2177 = vmand %vm2145, %vm2161
    %vm2178 = vmand %vm2146, %vm2162
    %vm2179 = vmand %vm2147, %vm2163
    %vm2180 = vmand %vm2148, %vm2164
    %vm2181 = vmand %vm2149, %vm2165
    %vm2182 = vmand %vm2150, %vm2166
    %vm2183 = vmand %vm2151, %vm2167
    %vm2184 = vmand %vm2152, %vm2168
    %vm2185 = vmand %vm2153, %vm2169
    %v2186 = vsel %vm2170, 1, 0
    %v2187 = vsel %vm2171, 1, 0
    %v2188 = vsel %vm2172, 1, 0
    %v2189 = vsel %vm2173, 1, 0
    %v2190 = vsel %vm2174, 1, 0
    %v2191 = vsel %vm2175, 1, 0
    %v2192 = vsel %vm2176, 1, 0
    %v2193 = vsel %vm2177, 1, 0
    %v2194 = vsel %vm2178, 1, 0
    %v2195 = vsel %vm2179, 1, 0
    %v2196 = vsel %vm2180, 1, 0
    %v2197 = vsel %vm2181, 1, 0
    %v2198 = vsel %vm2182, 1, 0
    %v2199 = vsel %vm2183, 1, 0
    %v2200 = vsel %vm2184, 1, 0
    %v2201 = vsel %vm2185, 1, 0
    %v2202 = vcvt.s32.f32 %v2186
    %v2203 = vcvt.s32.f32 %v2187
    %v2204 = vcvt.s32.f32 %v2188
    %v2205 = vcvt.s32.f32 %v2189
    %v2206 = vcvt.s32.f32 %v2190
    %v2207 = vcvt.s32.f32 %v2191
    %v2208 = vcvt.s32.f32 %v2192
    %v2209 = vcvt.s32.f32 %v2193
    %v2210 = vcvt.s32.f32 %v2194
    %v2211 = vcvt.s32.f32 %v2195
    %v2212 = vcvt.s32.f32 %v2196
    %v2213 = vcvt.s32.f32 %v2197
    %v2214 = vcvt.s32.f32 %v2198
    %v2215 = vcvt.s32.f32 %v2199
    %v2216 = vcvt.s32.f32 %v2200
    %v2217 = vcvt.s32.f32 %v2201
    %2219 = vset.pattern.permute.xlu0 0
    %2220 = vperm.xlu0 %2219, %v2202
    %v2221 = vpop.permute.xlu0 %2220
    %2224 = vset.pattern.permute.xlu0 0
    %2225 = vperm.xlu0 %2224, %v2203
    %v2226 = vpop.permute.xlu0 %2225
    %2229 = vset.pattern.permute.xlu0 0
    %2230 = vperm.xlu0 %2229, %v2204
    %v2231 = vpop.permute.xlu0 %2230
    %2234 = vset.pattern.permute.xlu0 0
    %2235 = vperm.xlu0 %2234, %v2205
    %v2236 = vpop.permute.xlu0 %2235
    %2239 = vset.pattern.permute.xlu0 0
    %2240 = vperm.xlu0 %2239, %v2206
    %v2241 = vpop.permute.xlu0 %2240
    %2244 = vset.pattern.permute.xlu0 0
    %2245 = vperm.xlu0 %2244, %v2207
    %v2246 = vpop.permute.xlu0 %2245
    %2249 = vset.pattern.permute.xlu0 0
    %2250 = vperm.xlu0 %2249, %v2208
    %v2251 = vpop.permute.xlu0 %2250
    %2254 = vset.pattern.permute.xlu0 0
    %2255 = vperm.xlu0 %2254, %v2209
    %v2256 = vpop.permute.xlu0 %2255
    %2259 = vset.pattern.permute.xlu0 0
    %2260 = vperm.xlu0 %2259, %v2210
    %v2261 = vpop.permute.xlu0 %2260
    %2264 = vset.pattern.permute.xlu0 0
    %2265 = vperm.xlu0 %2264, %v2211
    %v2266 = vpop.permute.xlu0 %2265
    %2269 = vset.pattern.permute.xlu0 0
    %2270 = vperm.xlu0 %2269, %v2212
    %v2271 = vpop.permute.xlu0 %2270
    %2274 = vset.pattern.permute.xlu0 0
    %2275 = vperm.xlu0 %2274, %v2213
    %v2276 = vpop.permute.xlu0 %2275
    %2279 = vset.pattern.permute.xlu0 0
    %2280 = vperm.xlu0 %2279, %v2214
    %v2281 = vpop.permute.xlu0 %2280
    %2284 = vset.pattern.permute.xlu0 0
    %2285 = vperm.xlu0 %2284, %v2215
    %v2286 = vpop.permute.xlu0 %2285
    %2289 = vset.pattern.permute.xlu0 0
    %2290 = vperm.xlu0 %2289, %v2216
    %v2291 = vpop.permute.xlu0 %2290
    %2294 = vset.pattern.permute.xlu0 0
    %2295 = vperm.xlu0 %2294, %v2217
    %v2296 = vpop.permute.xlu0 %2295
    %v2298 = vmul.f32 %v2221, %v2122
    %v2299 = vmul.f32 %v2226, %v2123
    %v2300 = vmul.f32 %v2231, %v2124
    %v2301 = vmul.f32 %v2236, %v2125
    %v2302 = vmul.f32 %v2241, %v2126
    %v2303 = vmul.f32 %v2246, %v2127
    %v2304 = vmul.f32 %v2251, %v2128
    %v2305 = vmul.f32 %v2256, %v2129
    %v2306 = vmul.f32 %v2261, %v2130
    %v2307 = vmul.f32 %v2266, %v2131
    %v2308 = vmul.f32 %v2271, %v2132
    %v2309 = vmul.f32 %v2276, %v2133
    %v2310 = vmul.f32 %v2281, %v2134
    %v2311 = vmul.f32 %v2286, %v2135
    %v2312 = vmul.f32 %v2291, %v2136
    %v2313 = vmul.f32 %v2296, %v2137
    %v2314 = vadd.f32 %v1690, %v2298
    %v2315 = vadd.f32 %v1691, %v2299
    %v2316 = vadd.f32 %v1692, %v2300
    %v2317 = vadd.f32 %v1693, %v2301
    %v2318 = vadd.f32 %v1694, %v2302
    %v2319 = vadd.f32 %v1695, %v2303
    %v2320 = vadd.f32 %v1696, %v2304
    %v2321 = vadd.f32 %v1697, %v2305
    %v2322 = vadd.f32 %v1698, %v2306
    %v2323 = vadd.f32 %v1699, %v2307
    %v2324 = vadd.f32 %v1700, %v2308
    %v2325 = vadd.f32 %v1701, %v2309
    %v2326 = vadd.f32 %v1702, %v2310
    %v2327 = vadd.f32 %v1703, %v2311
    %v2328 = vadd.f32 %v1704, %v2312
    %v2329 = vadd.f32 %v1705, %v2313
    %2330 = vset.pattern.permute.xlu0 1
    %2331 = vperm.xlu0 %2330, %v2202
    %v2332 = vpop.permute.xlu0 %2331
    %2334 = vset.pattern.permute.xlu0 1
    %2335 = vperm.xlu0 %2334, %v2203
    %v2336 = vpop.permute.xlu0 %2335
    %2338 = vset.pattern.permute.xlu0 1
    %2339 = vperm.xlu0 %2338, %v2204
    %v2340 = vpop.permute.xlu0 %2339
    %2342 = vset.pattern.permute.xlu0 1
    %2343 = vperm.xlu0 %2342, %v2205
    %v2344 = vpop.permute.xlu0 %2343
    %2346 = vset.pattern.permute.xlu0 1
    %2347 = vperm.xlu0 %2346, %v2206
    %v2348 = vpop.permute.xlu0 %2347
    %2350 = vset.pattern.permute.xlu0 1
    %2351 = vperm.xlu0 %2350, %v2207
    %v2352 = vpop.permute.xlu0 %2351
    %2354 = vset.pattern.permute.xlu0 1
    %2355 = vperm.xlu0 %2354, %v2208
    %v2356 = vpop.permute.xlu0 %2355
    %2358 = vset.pattern.permute.xlu0 1
    %2359 = vperm.xlu0 %2358, %v2209
    %v2360 = vpop.permute.xlu0 %2359
    %2362 = vset.pattern.permute.xlu0 1
    %2363 = vperm.xlu0 %2362, %v2210
    %v2364 = vpop.permute.xlu0 %2363
    %2366 = vset.pattern.permute.xlu0 1
    %2367 = vperm.xlu0 %2366, %v2211
    %v2368 = vpop.permute.xlu0 %2367
    %2370 = vset.pattern.permute.xlu0 1
    %2371 = vperm.xlu0 %2370, %v2212
    %v2372 = vpop.permute.xlu0 %2371
    %2374 = vset.pattern.permute.xlu0 1
    %2375 = vperm.xlu0 %2374, %v2213
    %v2376 = vpop.permute.xlu0 %2375
    %2378 = vset.pattern.permute.xlu0 1
    %2379 = vperm.xlu0 %2378, %v2214
    %v2380 = vpop.permute.xlu0 %2379
    %2382 = vset.pattern.permute.xlu0 1
    %2383 = vperm.xlu0 %2382, %v2215
    %v2384 = vpop.permute.xlu0 %2383
    %2386 = vset.pattern.permute.xlu0 1
    %2387 = vperm.xlu0 %2386, %v2216
    %v2388 = vpop.permute.xlu0 %2387
    %2390 = vset.pattern.permute.xlu0 1
    %2391 = vperm.xlu0 %2390, %v2217
    %v2392 = vpop.permute.xlu0 %2391
    %v2394 = vmul.f32 %v2332, %v2122
    %v2395 = vmul.f32 %v2336, %v2123
    %v2396 = vmul.f32 %v2340, %v2124
    %v2397 = vmul.f32 %v2344, %v2125
    %v2398 = vmul.f32 %v2348, %v2126
    %v2399 = vmul.f32 %v2352, %v2127
    %v2400 = vmul.f32 %v2356, %v2128
    %v2401 = vmul.f32 %v2360, %v2129
    %v2402 = vmul.f32 %v2364, %v2130
    %v2403 = vmul.f32 %v2368, %v2131
    %v2404 = vmul.f32 %v2372, %v2132
    %v2405 = vmul.f32 %v2376, %v2133
    %v2406 = vmul.f32 %v2380, %v2134
    %v2407 = vmul.f32 %v2384, %v2135
    %v2408 = vmul.f32 %v2388, %v2136
    %v2409 = vmul.f32 %v2392, %v2137
    %v2410 = vadd.f32 %v1786, %v2394
    %v2411 = vadd.f32 %v1787, %v2395
    %v2412 = vadd.f32 %v1788, %v2396
    %v2413 = vadd.f32 %v1789, %v2397
    %v2414 = vadd.f32 %v1790, %v2398
    %v2415 = vadd.f32 %v1791, %v2399
    %v2416 = vadd.f32 %v1792, %v2400
    %v2417 = vadd.f32 %v1793, %v2401
    %v2418 = vadd.f32 %v1794, %v2402
    %v2419 = vadd.f32 %v1795, %v2403
    %v2420 = vadd.f32 %v1796, %v2404
    %v2421 = vadd.f32 %v1797, %v2405
    %v2422 = vadd.f32 %v1798, %v2406
    %v2423 = vadd.f32 %v1799, %v2407
    %v2424 = vadd.f32 %v1800, %v2408
    %v2425 = vadd.f32 %v1801, %v2409
    %2426 = vset.pattern.permute.xlu0 2
    %2427 = vperm.xlu0 %2426, %v2202
    %v2428 = vpop.permute.xlu0 %2427
    %2430 = vset.pattern.permute.xlu0 2
    %2431 = vperm.xlu0 %2430, %v2203
    %v2432 = vpop.permute.xlu0 %2431
    %2434 = vset.pattern.permute.xlu0 2
    %2435 = vperm.xlu0 %2434, %v2204
    %v2436 = vpop.permute.xlu0 %2435
    %2438 = vset.pattern.permute.xlu0 2
    %2439 = vperm.xlu0 %2438, %v2205
    %v2440 = vpop.permute.xlu0 %2439
    %2442 = vset.pattern.permute.xlu0 2
    %2443 = vperm.xlu0 %2442, %v2206
    %v2444 = vpop.permute.xlu0 %2443
    %2446 = vset.pattern.permute.xlu0 2
    %2447 = vperm.xlu0 %2446, %v2207
    %v2448 = vpop.permute.xlu0 %2447
    %2450 = vset.pattern.permute.xlu0 2
    %2451 = vperm.xlu0 %2450, %v2208
    %v2452 = vpop.permute.xlu0 %2451
    %2454 = vset.pattern.permute.xlu0 2
    %2455 = vperm.xlu0 %2454, %v2209
    %v2456 = vpop.permute.xlu0 %2455
    %2458 = vset.pattern.permute.xlu0 2
    %2459 = vperm.xlu0 %2458, %v2210
    %v2460 = vpop.permute.xlu0 %2459
    %2462 = vset.pattern.permute.xlu0 2
    %2463 = vperm.xlu0 %2462, %v2211
    %v2464 = vpop.permute.xlu0 %2463
    %2466 = vset.pattern.permute.xlu0 2
    %2467 = vperm.xlu0 %2466, %v2212
    %v2468 = vpop.permute.xlu0 %2467
    %2470 = vset.pattern.permute.xlu0 2
    %2471 = vperm.xlu0 %2470, %v2213
    %v2472 = vpop.permute.xlu0 %2471
    %2474 = vset.pattern.permute.xlu0 2
    %2475 = vperm.xlu0 %2474, %v2214
    %v2476 = vpop.permute.xlu0 %2475
    %2478 = vset.pattern.permute.xlu0 2
    %2479 = vperm.xlu0 %2478, %v2215
    %v2480 = vpop.permute.xlu0 %2479
    %2482 = vset.pattern.permute.xlu0 2
    %2483 = vperm.xlu0 %2482, %v2216
    %v2484 = vpop.permute.xlu0 %2483
    %2486 = vset.pattern.permute.xlu0 2
    %2487 = vperm.xlu0 %2486, %v2217
    %v2488 = vpop.permute.xlu0 %2487
    %v2490 = vmul.f32 %v2428, %v2122
    %v2491 = vmul.f32 %v2432, %v2123
    %v2492 = vmul.f32 %v2436, %v2124
    %v2493 = vmul.f32 %v2440, %v2125
    %v2494 = vmul.f32 %v2444, %v2126
    %v2495 = vmul.f32 %v2448, %v2127
    %v2496 = vmul.f32 %v2452, %v2128
    %v2497 = vmul.f32 %v2456, %v2129
    %v2498 = vmul.f32 %v2460, %v2130
    %v2499 = vmul.f32 %v2464, %v2131
    %v2500 = vmul.f32 %v2468, %v2132
    %v2501 = vmul.f32 %v2472, %v2133
    %v2502 = vmul.f32 %v2476, %v2134
    %v2503 = vmul.f32 %v2480, %v2135
    %v2504 = vmul.f32 %v2484, %v2136
    %v2505 = vmul.f32 %v2488, %v2137
    %v2506 = vadd.f32 %v1882, %v2490
    %v2507 = vadd.f32 %v1883, %v2491
    %v2508 = vadd.f32 %v1884, %v2492
    %v2509 = vadd.f32 %v1885, %v2493
    %v2510 = vadd.f32 %v1886, %v2494
    %v2511 = vadd.f32 %v1887, %v2495
    %v2512 = vadd.f32 %v1888, %v2496
    %v2513 = vadd.f32 %v1889, %v2497
    %v2514 = vadd.f32 %v1890, %v2498
    %v2515 = vadd.f32 %v1891, %v2499
    %v2516 = vadd.f32 %v1892, %v2500
    %v2517 = vadd.f32 %v1893, %v2501
    %v2518 = vadd.f32 %v1894, %v2502
    %v2519 = vadd.f32 %v1895, %v2503
    %v2520 = vadd.f32 %v1896, %v2504
    %v2521 = vadd.f32 %v1897, %v2505
    %2522 = vset.pattern.permute.xlu0 3
    %2523 = vperm.xlu0 %2522, %v2202
    %v2524 = vpop.permute.xlu0 %2523
    %2526 = vset.pattern.permute.xlu0 3
    %2527 = vperm.xlu0 %2526, %v2203
    %v2528 = vpop.permute.xlu0 %2527
    %2530 = vset.pattern.permute.xlu0 3
    %2531 = vperm.xlu0 %2530, %v2204
    %v2532 = vpop.permute.xlu0 %2531
    %2534 = vset.pattern.permute.xlu0 3
    %2535 = vperm.xlu0 %2534, %v2205
    %v2536 = vpop.permute.xlu0 %2535
    %2538 = vset.pattern.permute.xlu0 3
    %2539 = vperm.xlu0 %2538, %v2206
    %v2540 = vpop.permute.xlu0 %2539
    %2542 = vset.pattern.permute.xlu0 3
    %2543 = vperm.xlu0 %2542, %v2207
    %v2544 = vpop.permute.xlu0 %2543
    %2546 = vset.pattern.permute.xlu0 3
    %2547 = vperm.xlu0 %2546, %v2208
    %v2548 = vpop.permute.xlu0 %2547
    %2550 = vset.pattern.permute.xlu0 3
    %2551 = vperm.xlu0 %2550, %v2209
    %v2552 = vpop.permute.xlu0 %2551
    %2554 = vset.pattern.permute.xlu0 3
    %2555 = vperm.xlu0 %2554, %v2210
    %v2556 = vpop.permute.xlu0 %2555
    %2558 = vset.pattern.permute.xlu0 3
    %2559 = vperm.xlu0 %2558, %v2211
    %v2560 = vpop.permute.xlu0 %2559
    %2562 = vset.pattern.permute.xlu0 3
    %2563 = vperm.xlu0 %2562, %v2212
    %v2564 = vpop.permute.xlu0 %2563
    %2566 = vset.pattern.permute.xlu0 3
    %2567 = vperm.xlu0 %2566, %v2213
    %v2568 = vpop.permute.xlu0 %2567
    %2570 = vset.pattern.permute.xlu0 3
    %2571 = vperm.xlu0 %2570, %v2214
    %v2572 = vpop.permute.xlu0 %2571
    %2574 = vset.pattern.permute.xlu0 3
    %2575 = vperm.xlu0 %2574, %v2215
    %v2576 = vpop.permute.xlu0 %2575
    %2578 = vset.pattern.permute.xlu0 3
    %2579 = vperm.xlu0 %2578, %v2216
    %v2580 = vpop.permute.xlu0 %2579
    %2582 = vset.pattern.permute.xlu0 3
    %2583 = vperm.xlu0 %2582, %v2217
    %v2584 = vpop.permute.xlu0 %2583
    %v2586 = vmul.f32 %v2524, %v2122
    %v2587 = vmul.f32 %v2528, %v2123
    %v2588 = vmul.f32 %v2532, %v2124
    %v2589 = vmul.f32 %v2536, %v2125
    %v2590 = vmul.f32 %v2540, %v2126
    %v2591 = vmul.f32 %v2544, %v2127
    %v2592 = vmul.f32 %v2548, %v2128
    %v2593 = vmul.f32 %v2552, %v2129
    %v2594 = vmul.f32 %v2556, %v2130
    %v2595 = vmul.f32 %v2560, %v2131
    %v2596 = vmul.f32 %v2564, %v2132
    %v2597 = vmul.f32 %v2568, %v2133
    %v2598 = vmul.f32 %v2572, %v2134
    %v2599 = vmul.f32 %v2576, %v2135
    %v2600 = vmul.f32 %v2580, %v2136
    %v2601 = vmul.f32 %v2584, %v2137
    %v2602 = vadd.f32 %v1978, %v2586
    %v2603 = vadd.f32 %v1979, %v2587
    %v2604 = vadd.f32 %v1980, %v2588
    %v2605 = vadd.f32 %v1981, %v2589
    %v2606 = vadd.f32 %v1982, %v2590
    %v2607 = vadd.f32 %v1983, %v2591
    %v2608 = vadd.f32 %v1984, %v2592
    %v2609 = vadd.f32 %v1985, %v2593
    %v2610 = vadd.f32 %v1986, %v2594
    %v2611 = vadd.f32 %v1987, %v2595
    %v2612 = vadd.f32 %v1988, %v2596
    %v2613 = vadd.f32 %v1989, %v2597
    %v2614 = vadd.f32 %v1990, %v2598
    %v2615 = vadd.f32 %v1991, %v2599
    %v2616 = vadd.f32 %v1992, %v2600
    %v2617 = vadd.f32 %v1993, %v2601
    %2618 = vset.pattern.permute.xlu0 4
    %2619 = vperm.xlu0 %2618, %v24
    %v2620 = vpop.permute.xlu0 %2619
    %2621 = vset.pattern.permute.xlu0 4
    %2622 = vperm.xlu0 %2621, %v25
    %v2623 = vpop.permute.xlu0 %2622
    %2624 = vset.pattern.permute.xlu0 4
    %2625 = vperm.xlu0 %2624, %v26
    %v2626 = vpop.permute.xlu0 %2625
    %2627 = vset.pattern.permute.xlu0 4
    %2628 = vperm.xlu0 %2627, %v27
    %v2629 = vpop.permute.xlu0 %2628
    %2630 = vset.pattern.permute.xlu0 4
    %2631 = vperm.xlu0 %2630, %v28
    %v2632 = vpop.permute.xlu0 %2631
    %2633 = vset.pattern.permute.xlu0 4
    %2634 = vperm.xlu0 %2633, %v29
    %v2635 = vpop.permute.xlu0 %2634
    %2636 = vset.pattern.permute.xlu0 4
    %2637 = vperm.xlu0 %2636, %v30
    %v2638 = vpop.permute.xlu0 %2637
    %2639 = vset.pattern.permute.xlu0 4
    %2640 = vperm.xlu0 %2639, %v31
    %v2641 = vpop.permute.xlu0 %2640
    %2642 = vset.pattern.permute.xlu0 4
    %2643 = vperm.xlu0 %2642, %v32
    %v2644 = vpop.permute.xlu0 %2643
    %2645 = vset.pattern.permute.xlu0 4
    %2646 = vperm.xlu0 %2645, %v33
    %v2647 = vpop.permute.xlu0 %2646
    %2648 = vset.pattern.permute.xlu0 4
    %2649 = vperm.xlu0 %2648, %v34
    %v2650 = vpop.permute.xlu0 %2649
    %2651 = vset.pattern.permute.xlu0 4
    %2652 = vperm.xlu0 %2651, %v35
    %v2653 = vpop.permute.xlu0 %2652
    %2654 = vset.pattern.permute.xlu0 4
    %2655 = vperm.xlu0 %2654, %v36
    %v2656 = vpop.permute.xlu0 %2655
    %2657 = vset.pattern.permute.xlu0 4
    %2658 = vperm.xlu0 %2657, %v37
    %v2659 = vpop.permute.xlu0 %2658
    %2660 = vset.pattern.permute.xlu0 4
    %2661 = vperm.xlu0 %2660, %v38
    %v2662 = vpop.permute.xlu0 %2661
    %2663 = vset.pattern.permute.xlu0 4
    %2664 = vperm.xlu0 %2663, %v39
    %v2665 = vpop.permute.xlu0 %2664
    %vm2666 = vcmp.eq.s32.totalorder %v105, %v2620
    %vm2667 = vcmp.eq.s32.totalorder %v105, %v2623
    %vm2668 = vcmp.eq.s32.totalorder %v105, %v2626
    %vm2669 = vcmp.eq.s32.totalorder %v105, %v2629
    %vm2670 = vcmp.eq.s32.totalorder %v105, %v2632
    %vm2671 = vcmp.eq.s32.totalorder %v105, %v2635
    %vm2672 = vcmp.eq.s32.totalorder %v105, %v2638
    %vm2673 = vcmp.eq.s32.totalorder %v105, %v2641
    %vm2674 = vcmp.eq.s32.totalorder %v105, %v2644
    %vm2675 = vcmp.eq.s32.totalorder %v105, %v2647
    %vm2676 = vcmp.eq.s32.totalorder %v105, %v2650
    %vm2677 = vcmp.eq.s32.totalorder %v105, %v2653
    %vm2678 = vcmp.eq.s32.totalorder %v105, %v2656
    %vm2679 = vcmp.eq.s32.totalorder %v105, %v2659
    %vm2680 = vcmp.eq.s32.totalorder %v105, %v2662
    %vm2681 = vcmp.eq.s32.totalorder %v105, %v2665
    %2682 = vset.pattern.permute.xlu0 4
    %2683 = vperm.xlu0 %2682, %v40
    %v2684 = vpop.permute.xlu0 %2683
    %2686 = vset.pattern.permute.xlu0 4
    %2687 = vperm.xlu0 %2686, %v41
    %v2688 = vpop.permute.xlu0 %2687
    %2690 = vset.pattern.permute.xlu0 4
    %2691 = vperm.xlu0 %2690, %v42
    %v2692 = vpop.permute.xlu0 %2691
    %2694 = vset.pattern.permute.xlu0 4
    %2695 = vperm.xlu0 %2694, %v43
    %v2696 = vpop.permute.xlu0 %2695
    %2698 = vset.pattern.permute.xlu0 4
    %2699 = vperm.xlu0 %2698, %v44
    %v2700 = vpop.permute.xlu0 %2699
    %2702 = vset.pattern.permute.xlu0 4
    %2703 = vperm.xlu0 %2702, %v45
    %v2704 = vpop.permute.xlu0 %2703
    %2706 = vset.pattern.permute.xlu0 4
    %2707 = vperm.xlu0 %2706, %v46
    %v2708 = vpop.permute.xlu0 %2707
    %2710 = vset.pattern.permute.xlu0 4
    %2711 = vperm.xlu0 %2710, %v47
    %v2712 = vpop.permute.xlu0 %2711
    %2714 = vset.pattern.permute.xlu0 4
    %2715 = vperm.xlu0 %2714, %v48
    %v2716 = vpop.permute.xlu0 %2715
    %2718 = vset.pattern.permute.xlu0 4
    %2719 = vperm.xlu0 %2718, %v49
    %v2720 = vpop.permute.xlu0 %2719
    %2722 = vset.pattern.permute.xlu0 4
    %2723 = vperm.xlu0 %2722, %v50
    %v2724 = vpop.permute.xlu0 %2723
    %2726 = vset.pattern.permute.xlu0 4
    %2727 = vperm.xlu0 %2726, %v51
    %v2728 = vpop.permute.xlu0 %2727
    %2730 = vset.pattern.permute.xlu0 4
    %2731 = vperm.xlu0 %2730, %v52
    %v2732 = vpop.permute.xlu0 %2731
    %2734 = vset.pattern.permute.xlu0 4
    %2735 = vperm.xlu0 %2734, %v53
    %v2736 = vpop.permute.xlu0 %2735
    %2738 = vset.pattern.permute.xlu0 4
    %2739 = vperm.xlu0 %2738, %v54
    %v2740 = vpop.permute.xlu0 %2739
    %2742 = vset.pattern.permute.xlu0 4
    %2743 = vperm.xlu0 %2742, %v55
    %v2744 = vpop.permute.xlu0 %2743
    %v2746 = vsel %vm2666, %v2684, 0.0
    %v2747 = vsel %vm2667, %v2688, 0.0
    %v2748 = vsel %vm2668, %v2692, 0.0
    %v2749 = vsel %vm2669, %v2696, 0.0
    %v2750 = vsel %vm2670, %v2700, 0.0
    %v2751 = vsel %vm2671, %v2704, 0.0
    %v2752 = vsel %vm2672, %v2708, 0.0
    %v2753 = vsel %vm2673, %v2712, 0.0
    %v2754 = vsel %vm2674, %v2716, 0.0
    %v2755 = vsel %vm2675, %v2720, 0.0
    %v2756 = vsel %vm2676, %v2724, 0.0
    %v2757 = vsel %vm2677, %v2728, 0.0
    %v2758 = vsel %vm2678, %v2732, 0.0
    %v2759 = vsel %vm2679, %v2736, 0.0
    %v2760 = vsel %vm2680, %v2740, 0.0
    %v2761 = vsel %vm2681, %v2744, 0.0
    %vm2762 = vcmp.le.s32.totalorder %v56, 4
    %vm2763 = vcmp.le.s32.totalorder %v57, 4
    %vm2764 = vcmp.le.s32.totalorder %v58, 4
    %vm2765 = vcmp.le.s32.totalorder %v59, 4
    %vm2766 = vcmp.le.s32.totalorder %v60, 4
    %vm2767 = vcmp.le.s32.totalorder %v61, 4
    %vm2768 = vcmp.le.s32.totalorder %v62, 4
    %vm2769 = vcmp.le.s32.totalorder %v63, 4
    %vm2770 = vcmp.le.s32.totalorder %v64, 4
    %vm2771 = vcmp.le.s32.totalorder %v65, 4
    %vm2772 = vcmp.le.s32.totalorder %v66, 4
    %vm2773 = vcmp.le.s32.totalorder %v67, 4
    %vm2774 = vcmp.le.s32.totalorder %v68, 4
    %vm2775 = vcmp.le.s32.totalorder %v69, 4
    %vm2776 = vcmp.le.s32.totalorder %v70, 4
    %vm2777 = vcmp.le.s32.totalorder %v71, 4
    %vm2778 = vcmp.gt.s32.totalorder %v72, 4
    %vm2779 = vcmp.gt.s32.totalorder %v73, 4
    %vm2780 = vcmp.gt.s32.totalorder %v74, 4
    %vm2781 = vcmp.gt.s32.totalorder %v75, 4
    %vm2782 = vcmp.gt.s32.totalorder %v76, 4
    %vm2783 = vcmp.gt.s32.totalorder %v77, 4
    %vm2784 = vcmp.gt.s32.totalorder %v78, 4
    %vm2785 = vcmp.gt.s32.totalorder %v79, 4
    %vm2786 = vcmp.gt.s32.totalorder %v80, 4
    %vm2787 = vcmp.gt.s32.totalorder %v81, 4
    %vm2788 = vcmp.gt.s32.totalorder %v82, 4
    %vm2789 = vcmp.gt.s32.totalorder %v83, 4
    %vm2790 = vcmp.gt.s32.totalorder %v84, 4
    %vm2791 = vcmp.gt.s32.totalorder %v85, 4
    %vm2792 = vcmp.gt.s32.totalorder %v86, 4
    %vm2793 = vcmp.gt.s32.totalorder %v87, 4
    %vm2794 = vmand %vm2762, %vm2778
    %vm2795 = vmand %vm2763, %vm2779
    %vm2796 = vmand %vm2764, %vm2780
    %vm2797 = vmand %vm2765, %vm2781
    %vm2798 = vmand %vm2766, %vm2782
    %vm2799 = vmand %vm2767, %vm2783
    %vm2800 = vmand %vm2768, %vm2784
    %vm2801 = vmand %vm2769, %vm2785
    %vm2802 = vmand %vm2770, %vm2786
    %vm2803 = vmand %vm2771, %vm2787
    %vm2804 = vmand %vm2772, %vm2788
    %vm2805 = vmand %vm2773, %vm2789
    %vm2806 = vmand %vm2774, %vm2790
    %vm2807 = vmand %vm2775, %vm2791
    %vm2808 = vmand %vm2776, %vm2792
    %vm2809 = vmand %vm2777, %vm2793
    %v2810 = vsel %vm2794, 1, 0
    %v2811 = vsel %vm2795, 1, 0
    %v2812 = vsel %vm2796, 1, 0
    %v2813 = vsel %vm2797, 1, 0
    %v2814 = vsel %vm2798, 1, 0
    %v2815 = vsel %vm2799, 1, 0
    %v2816 = vsel %vm2800, 1, 0
    %v2817 = vsel %vm2801, 1, 0
    %v2818 = vsel %vm2802, 1, 0
    %v2819 = vsel %vm2803, 1, 0
    %v2820 = vsel %vm2804, 1, 0
    %v2821 = vsel %vm2805, 1, 0
    %v2822 = vsel %vm2806, 1, 0
    %v2823 = vsel %vm2807, 1, 0
    %v2824 = vsel %vm2808, 1, 0
    %v2825 = vsel %vm2809, 1, 0
    %v2826 = vcvt.s32.f32 %v2810
    %v2827 = vcvt.s32.f32 %v2811
    %v2828 = vcvt.s32.f32 %v2812
    %v2829 = vcvt.s32.f32 %v2813
    %v2830 = vcvt.s32.f32 %v2814
    %v2831 = vcvt.s32.f32 %v2815
    %v2832 = vcvt.s32.f32 %v2816
    %v2833 = vcvt.s32.f32 %v2817
    %v2834 = vcvt.s32.f32 %v2818
    %v2835 = vcvt.s32.f32 %v2819
    %v2836 = vcvt.s32.f32 %v2820
    %v2837 = vcvt.s32.f32 %v2821
    %v2838 = vcvt.s32.f32 %v2822
    %v2839 = vcvt.s32.f32 %v2823
    %v2840 = vcvt.s32.f32 %v2824
    %v2841 = vcvt.s32.f32 %v2825
    %2843 = vset.pattern.permute.xlu0 0
    %2844 = vperm.xlu0 %2843, %v2826
    %v2845 = vpop.permute.xlu0 %2844
    %2848 = vset.pattern.permute.xlu0 0
    %2849 = vperm.xlu0 %2848, %v2827
    %v2850 = vpop.permute.xlu0 %2849
    %2853 = vset.pattern.permute.xlu0 0
    %2854 = vperm.xlu0 %2853, %v2828
    %v2855 = vpop.permute.xlu0 %2854
    %2858 = vset.pattern.permute.xlu0 0
    %2859 = vperm.xlu0 %2858, %v2829
    %v2860 = vpop.permute.xlu0 %2859
    %2863 = vset.pattern.permute.xlu0 0
    %2864 = vperm.xlu0 %2863, %v2830
    %v2865 = vpop.permute.xlu0 %2864
    %2868 = vset.pattern.permute.xlu0 0
    %2869 = vperm.xlu0 %2868, %v2831
    %v2870 = vpop.permute.xlu0 %2869
    %2873 = vset.pattern.permute.xlu0 0
    %2874 = vperm.xlu0 %2873, %v2832
    %v2875 = vpop.permute.xlu0 %2874
    %2878 = vset.pattern.permute.xlu0 0
    %2879 = vperm.xlu0 %2878, %v2833
    %v2880 = vpop.permute.xlu0 %2879
    %2883 = vset.pattern.permute.xlu0 0
    %2884 = vperm.xlu0 %2883, %v2834
    %v2885 = vpop.permute.xlu0 %2884
    %2888 = vset.pattern.permute.xlu0 0
    %2889 = vperm.xlu0 %2888, %v2835
    %v2890 = vpop.permute.xlu0 %2889
    %2893 = vset.pattern.permute.xlu0 0
    %2894 = vperm.xlu0 %2893, %v2836
    %v2895 = vpop.permute.xlu0 %2894
    %2898 = vset.pattern.permute.xlu0 0
    %2899 = vperm.xlu0 %2898, %v2837
    %v2900 = vpop.permute.xlu0 %2899
    %2903 = vset.pattern.permute.xlu0 0
    %2904 = vperm.xlu0 %2903, %v2838
    %v2905 = vpop.permute.xlu0 %2904
    %2908 = vset.pattern.permute.xlu0 0
    %2909 = vperm.xlu0 %2908, %v2839
    %v2910 = vpop.permute.xlu0 %2909
    %2913 = vset.pattern.permute.xlu0 0
    %2914 = vperm.xlu0 %2913, %v2840
    %v2915 = vpop.permute.xlu0 %2914
    %2918 = vset.pattern.permute.xlu0 0
    %2919 = vperm.xlu0 %2918, %v2841
    %v2920 = vpop.permute.xlu0 %2919
    %v2922 = vmul.f32 %v2845, %v2746
    %v2923 = vmul.f32 %v2850, %v2747
    %v2924 = vmul.f32 %v2855, %v2748
    %v2925 = vmul.f32 %v2860, %v2749
    %v2926 = vmul.f32 %v2865, %v2750
    %v2927 = vmul.f32 %v2870, %v2751
    %v2928 = vmul.f32 %v2875, %v2752
    %v2929 = vmul.f32 %v2880, %v2753
    %v2930 = vmul.f32 %v2885, %v2754
    %v2931 = vmul.f32 %v2890, %v2755
    %v2932 = vmul.f32 %v2895, %v2756
    %v2933 = vmul.f32 %v2900, %v2757
    %v2934 = vmul.f32 %v2905, %v2758
    %v2935 = vmul.f32 %v2910, %v2759
    %v2936 = vmul.f32 %v2915, %v2760
    %v2937 = vmul.f32 %v2920, %v2761
    %v2938 = vadd.f32 %v2314, %v2922
    %v2939 = vadd.f32 %v2315, %v2923
    %v2940 = vadd.f32 %v2316, %v2924
    %v2941 = vadd.f32 %v2317, %v2925
    %v2942 = vadd.f32 %v2318, %v2926
    %v2943 = vadd.f32 %v2319, %v2927
    %v2944 = vadd.f32 %v2320, %v2928
    %v2945 = vadd.f32 %v2321, %v2929
    %v2946 = vadd.f32 %v2322, %v2930
    %v2947 = vadd.f32 %v2323, %v2931
    %v2948 = vadd.f32 %v2324, %v2932
    %v2949 = vadd.f32 %v2325, %v2933
    %v2950 = vadd.f32 %v2326, %v2934
    %v2951 = vadd.f32 %v2327, %v2935
    %v2952 = vadd.f32 %v2328, %v2936
    %v2953 = vadd.f32 %v2329, %v2937
    %2954 = vset.pattern.permute.xlu0 1
    %2955 = vperm.xlu0 %2954, %v2826
    %v2956 = vpop.permute.xlu0 %2955
    %2958 = vset.pattern.permute.xlu0 1
    %2959 = vperm.xlu0 %2958, %v2827
    %v2960 = vpop.permute.xlu0 %2959
    %2962 = vset.pattern.permute.xlu0 1
    %2963 = vperm.xlu0 %2962, %v2828
    %v2964 = vpop.permute.xlu0 %2963
    %2966 = vset.pattern.permute.xlu0 1
    %2967 = vperm.xlu0 %2966, %v2829
    %v2968 = vpop.permute.xlu0 %2967
    %2970 = vset.pattern.permute.xlu0 1
    %2971 = vperm.xlu0 %2970, %v2830
    %v2972 = vpop.permute.xlu0 %2971
    %2974 = vset.pattern.permute.xlu0 1
    %2975 = vperm.xlu0 %2974, %v2831
    %v2976 = vpop.permute.xlu0 %2975
    %2978 = vset.pattern.permute.xlu0 1
    %2979 = vperm.xlu0 %2978, %v2832
    %v2980 = vpop.permute.xlu0 %2979
    %2982 = vset.pattern.permute.xlu0 1
    %2983 = vperm.xlu0 %2982, %v2833
    %v2984 = vpop.permute.xlu0 %2983
    %2986 = vset.pattern.permute.xlu0 1
    %2987 = vperm.xlu0 %2986, %v2834
    %v2988 = vpop.permute.xlu0 %2987
    %2990 = vset.pattern.permute.xlu0 1
    %2991 = vperm.xlu0 %2990, %v2835
    %v2992 = vpop.permute.xlu0 %2991
    %2994 = vset.pattern.permute.xlu0 1
    %2995 = vperm.xlu0 %2994, %v2836
    %v2996 = vpop.permute.xlu0 %2995
    %2998 = vset.pattern.permute.xlu0 1
    %2999 = vperm.xlu0 %2998, %v2837
    %v3000 = vpop.permute.xlu0 %2999
    %3002 = vset.pattern.permute.xlu0 1
    %3003 = vperm.xlu0 %3002, %v2838
    %v3004 = vpop.permute.xlu0 %3003
    %3006 = vset.pattern.permute.xlu0 1
    %3007 = vperm.xlu0 %3006, %v2839
    %v3008 = vpop.permute.xlu0 %3007
    %3010 = vset.pattern.permute.xlu0 1
    %3011 = vperm.xlu0 %3010, %v2840
    %v3012 = vpop.permute.xlu0 %3011
    %3014 = vset.pattern.permute.xlu0 1
    %3015 = vperm.xlu0 %3014, %v2841
    %v3016 = vpop.permute.xlu0 %3015
    %v3018 = vmul.f32 %v2956, %v2746
    %v3019 = vmul.f32 %v2960, %v2747
    %v3020 = vmul.f32 %v2964, %v2748
    %v3021 = vmul.f32 %v2968, %v2749
    %v3022 = vmul.f32 %v2972, %v2750
    %v3023 = vmul.f32 %v2976, %v2751
    %v3024 = vmul.f32 %v2980, %v2752
    %v3025 = vmul.f32 %v2984, %v2753
    %v3026 = vmul.f32 %v2988, %v2754
    %v3027 = vmul.f32 %v2992, %v2755
    %v3028 = vmul.f32 %v2996, %v2756
    %v3029 = vmul.f32 %v3000, %v2757
    %v3030 = vmul.f32 %v3004, %v2758
    %v3031 = vmul.f32 %v3008, %v2759
    %v3032 = vmul.f32 %v3012, %v2760
    %v3033 = vmul.f32 %v3016, %v2761
    %v3034 = vadd.f32 %v2410, %v3018
    %v3035 = vadd.f32 %v2411, %v3019
    %v3036 = vadd.f32 %v2412, %v3020
    %v3037 = vadd.f32 %v2413, %v3021
    %v3038 = vadd.f32 %v2414, %v3022
    %v3039 = vadd.f32 %v2415, %v3023
    %v3040 = vadd.f32 %v2416, %v3024
    %v3041 = vadd.f32 %v2417, %v3025
    %v3042 = vadd.f32 %v2418, %v3026
    %v3043 = vadd.f32 %v2419, %v3027
    %v3044 = vadd.f32 %v2420, %v3028
    %v3045 = vadd.f32 %v2421, %v3029
    %v3046 = vadd.f32 %v2422, %v3030
    %v3047 = vadd.f32 %v2423, %v3031
    %v3048 = vadd.f32 %v2424, %v3032
    %v3049 = vadd.f32 %v2425, %v3033
    %3050 = vset.pattern.permute.xlu0 2
    %3051 = vperm.xlu0 %3050, %v2826
    %v3052 = vpop.permute.xlu0 %3051
    %3054 = vset.pattern.permute.xlu0 2
    %3055 = vperm.xlu0 %3054, %v2827
    %v3056 = vpop.permute.xlu0 %3055
    %3058 = vset.pattern.permute.xlu0 2
    %3059 = vperm.xlu0 %3058, %v2828
    %v3060 = vpop.permute.xlu0 %3059
    %3062 = vset.pattern.permute.xlu0 2
    %3063 = vperm.xlu0 %3062, %v2829
    %v3064 = vpop.permute.xlu0 %3063
    %3066 = vset.pattern.permute.xlu0 2
    %3067 = vperm.xlu0 %3066, %v2830
    %v3068 = vpop.permute.xlu0 %3067
    %3070 = vset.pattern.permute.xlu0 2
    %3071 = vperm.xlu0 %3070, %v2831
    %v3072 = vpop.permute.xlu0 %3071
    %3074 = vset.pattern.permute.xlu0 2
    %3075 = vperm.xlu0 %3074, %v2832
    %v3076 = vpop.permute.xlu0 %3075
    %3078 = vset.pattern.permute.xlu0 2
    %3079 = vperm.xlu0 %3078, %v2833
    %v3080 = vpop.permute.xlu0 %3079
    %3082 = vset.pattern.permute.xlu0 2
    %3083 = vperm.xlu0 %3082, %v2834
    %v3084 = vpop.permute.xlu0 %3083
    %3086 = vset.pattern.permute.xlu0 2
    %3087 = vperm.xlu0 %3086, %v2835
    %v3088 = vpop.permute.xlu0 %3087
    %3090 = vset.pattern.permute.xlu0 2
    %3091 = vperm.xlu0 %3090, %v2836
    %v3092 = vpop.permute.xlu0 %3091
    %3094 = vset.pattern.permute.xlu0 2
    %3095 = vperm.xlu0 %3094, %v2837
    %v3096 = vpop.permute.xlu0 %3095
    %3098 = vset.pattern.permute.xlu0 2
    %3099 = vperm.xlu0 %3098, %v2838
    %v3100 = vpop.permute.xlu0 %3099
    %3102 = vset.pattern.permute.xlu0 2
    %3103 = vperm.xlu0 %3102, %v2839
    %v3104 = vpop.permute.xlu0 %3103
    %3106 = vset.pattern.permute.xlu0 2
    %3107 = vperm.xlu0 %3106, %v2840
    %v3108 = vpop.permute.xlu0 %3107
    %3110 = vset.pattern.permute.xlu0 2
    %3111 = vperm.xlu0 %3110, %v2841
    %v3112 = vpop.permute.xlu0 %3111
    %v3114 = vmul.f32 %v3052, %v2746
    %v3115 = vmul.f32 %v3056, %v2747
    %v3116 = vmul.f32 %v3060, %v2748
    %v3117 = vmul.f32 %v3064, %v2749
    %v3118 = vmul.f32 %v3068, %v2750
    %v3119 = vmul.f32 %v3072, %v2751
    %v3120 = vmul.f32 %v3076, %v2752
    %v3121 = vmul.f32 %v3080, %v2753
    %v3122 = vmul.f32 %v3084, %v2754
    %v3123 = vmul.f32 %v3088, %v2755
    %v3124 = vmul.f32 %v3092, %v2756
    %v3125 = vmul.f32 %v3096, %v2757
    %v3126 = vmul.f32 %v3100, %v2758
    %v3127 = vmul.f32 %v3104, %v2759
    %v3128 = vmul.f32 %v3108, %v2760
    %v3129 = vmul.f32 %v3112, %v2761
    %v3130 = vadd.f32 %v2506, %v3114
    %v3131 = vadd.f32 %v2507, %v3115
    %v3132 = vadd.f32 %v2508, %v3116
    %v3133 = vadd.f32 %v2509, %v3117
    %v3134 = vadd.f32 %v2510, %v3118
    %v3135 = vadd.f32 %v2511, %v3119
    %v3136 = vadd.f32 %v2512, %v3120
    %v3137 = vadd.f32 %v2513, %v3121
    %v3138 = vadd.f32 %v2514, %v3122
    %v3139 = vadd.f32 %v2515, %v3123
    %v3140 = vadd.f32 %v2516, %v3124
    %v3141 = vadd.f32 %v2517, %v3125
    %v3142 = vadd.f32 %v2518, %v3126
    %v3143 = vadd.f32 %v2519, %v3127
    %v3144 = vadd.f32 %v2520, %v3128
    %v3145 = vadd.f32 %v2521, %v3129
    %3146 = vset.pattern.permute.xlu0 3
    %3147 = vperm.xlu0 %3146, %v2826
    %v3148 = vpop.permute.xlu0 %3147
    %3150 = vset.pattern.permute.xlu0 3
    %3151 = vperm.xlu0 %3150, %v2827
    %v3152 = vpop.permute.xlu0 %3151
    %3154 = vset.pattern.permute.xlu0 3
    %3155 = vperm.xlu0 %3154, %v2828
    %v3156 = vpop.permute.xlu0 %3155
    %3158 = vset.pattern.permute.xlu0 3
    %3159 = vperm.xlu0 %3158, %v2829
    %v3160 = vpop.permute.xlu0 %3159
    %3162 = vset.pattern.permute.xlu0 3
    %3163 = vperm.xlu0 %3162, %v2830
    %v3164 = vpop.permute.xlu0 %3163
    %3166 = vset.pattern.permute.xlu0 3
    %3167 = vperm.xlu0 %3166, %v2831
    %v3168 = vpop.permute.xlu0 %3167
    %3170 = vset.pattern.permute.xlu0 3
    %3171 = vperm.xlu0 %3170, %v2832
    %v3172 = vpop.permute.xlu0 %3171
    %3174 = vset.pattern.permute.xlu0 3
    %3175 = vperm.xlu0 %3174, %v2833
    %v3176 = vpop.permute.xlu0 %3175
    %3178 = vset.pattern.permute.xlu0 3
    %3179 = vperm.xlu0 %3178, %v2834
    %v3180 = vpop.permute.xlu0 %3179
    %3182 = vset.pattern.permute.xlu0 3
    %3183 = vperm.xlu0 %3182, %v2835
    %v3184 = vpop.permute.xlu0 %3183
    %3186 = vset.pattern.permute.xlu0 3
    %3187 = vperm.xlu0 %3186, %v2836
    %v3188 = vpop.permute.xlu0 %3187
    %3190 = vset.pattern.permute.xlu0 3
    %3191 = vperm.xlu0 %3190, %v2837
    %v3192 = vpop.permute.xlu0 %3191
    %3194 = vset.pattern.permute.xlu0 3
    %3195 = vperm.xlu0 %3194, %v2838
    %v3196 = vpop.permute.xlu0 %3195
    %3198 = vset.pattern.permute.xlu0 3
    %3199 = vperm.xlu0 %3198, %v2839
    %v3200 = vpop.permute.xlu0 %3199
    %3202 = vset.pattern.permute.xlu0 3
    %3203 = vperm.xlu0 %3202, %v2840
    %v3204 = vpop.permute.xlu0 %3203
    %3206 = vset.pattern.permute.xlu0 3
    %3207 = vperm.xlu0 %3206, %v2841
    %v3208 = vpop.permute.xlu0 %3207
    %v3210 = vmul.f32 %v3148, %v2746
    %v3211 = vmul.f32 %v3152, %v2747
    %v3212 = vmul.f32 %v3156, %v2748
    %v3213 = vmul.f32 %v3160, %v2749
    %v3214 = vmul.f32 %v3164, %v2750
    %v3215 = vmul.f32 %v3168, %v2751
    %v3216 = vmul.f32 %v3172, %v2752
    %v3217 = vmul.f32 %v3176, %v2753
    %v3218 = vmul.f32 %v3180, %v2754
    %v3219 = vmul.f32 %v3184, %v2755
    %v3220 = vmul.f32 %v3188, %v2756
    %v3221 = vmul.f32 %v3192, %v2757
    %v3222 = vmul.f32 %v3196, %v2758
    %v3223 = vmul.f32 %v3200, %v2759
    %v3224 = vmul.f32 %v3204, %v2760
    %v3225 = vmul.f32 %v3208, %v2761
    %v3226 = vadd.f32 %v2602, %v3210
    %v3227 = vadd.f32 %v2603, %v3211
    %v3228 = vadd.f32 %v2604, %v3212
    %v3229 = vadd.f32 %v2605, %v3213
    %v3230 = vadd.f32 %v2606, %v3214
    %v3231 = vadd.f32 %v2607, %v3215
    %v3232 = vadd.f32 %v2608, %v3216
    %v3233 = vadd.f32 %v2609, %v3217
    %v3234 = vadd.f32 %v2610, %v3218
    %v3235 = vadd.f32 %v2611, %v3219
    %v3236 = vadd.f32 %v2612, %v3220
    %v3237 = vadd.f32 %v2613, %v3221
    %v3238 = vadd.f32 %v2614, %v3222
    %v3239 = vadd.f32 %v2615, %v3223
    %v3240 = vadd.f32 %v2616, %v3224
    %v3241 = vadd.f32 %v2617, %v3225
    %3242 = vset.pattern.permute.xlu0 5
    %3243 = vperm.xlu0 %3242, %v24
    %v3244 = vpop.permute.xlu0 %3243
    %3245 = vset.pattern.permute.xlu0 5
    %3246 = vperm.xlu0 %3245, %v25
    %v3247 = vpop.permute.xlu0 %3246
    %3248 = vset.pattern.permute.xlu0 5
    %3249 = vperm.xlu0 %3248, %v26
    %v3250 = vpop.permute.xlu0 %3249
    %3251 = vset.pattern.permute.xlu0 5
    %3252 = vperm.xlu0 %3251, %v27
    %v3253 = vpop.permute.xlu0 %3252
    %3254 = vset.pattern.permute.xlu0 5
    %3255 = vperm.xlu0 %3254, %v28
    %v3256 = vpop.permute.xlu0 %3255
    %3257 = vset.pattern.permute.xlu0 5
    %3258 = vperm.xlu0 %3257, %v29
    %v3259 = vpop.permute.xlu0 %3258
    %3260 = vset.pattern.permute.xlu0 5
    %3261 = vperm.xlu0 %3260, %v30
    %v3262 = vpop.permute.xlu0 %3261
    %3263 = vset.pattern.permute.xlu0 5
    %3264 = vperm.xlu0 %3263, %v31
    %v3265 = vpop.permute.xlu0 %3264
    %3266 = vset.pattern.permute.xlu0 5
    %3267 = vperm.xlu0 %3266, %v32
    %v3268 = vpop.permute.xlu0 %3267
    %3269 = vset.pattern.permute.xlu0 5
    %3270 = vperm.xlu0 %3269, %v33
    %v3271 = vpop.permute.xlu0 %3270
    %3272 = vset.pattern.permute.xlu0 5
    %3273 = vperm.xlu0 %3272, %v34
    %v3274 = vpop.permute.xlu0 %3273
    %3275 = vset.pattern.permute.xlu0 5
    %3276 = vperm.xlu0 %3275, %v35
    %v3277 = vpop.permute.xlu0 %3276
    %3278 = vset.pattern.permute.xlu0 5
    %3279 = vperm.xlu0 %3278, %v36
    %v3280 = vpop.permute.xlu0 %3279
    %3281 = vset.pattern.permute.xlu0 5
    %3282 = vperm.xlu0 %3281, %v37
    %v3283 = vpop.permute.xlu0 %3282
    %3284 = vset.pattern.permute.xlu0 5
    %3285 = vperm.xlu0 %3284, %v38
    %v3286 = vpop.permute.xlu0 %3285
    %3287 = vset.pattern.permute.xlu0 5
    %3288 = vperm.xlu0 %3287, %v39
    %v3289 = vpop.permute.xlu0 %3288
    %vm3290 = vcmp.eq.s32.totalorder %v105, %v3244
    %vm3291 = vcmp.eq.s32.totalorder %v105, %v3247
    %vm3292 = vcmp.eq.s32.totalorder %v105, %v3250
    %vm3293 = vcmp.eq.s32.totalorder %v105, %v3253
    %vm3294 = vcmp.eq.s32.totalorder %v105, %v3256
    %vm3295 = vcmp.eq.s32.totalorder %v105, %v3259
    %vm3296 = vcmp.eq.s32.totalorder %v105, %v3262
    %vm3297 = vcmp.eq.s32.totalorder %v105, %v3265
    %vm3298 = vcmp.eq.s32.totalorder %v105, %v3268
    %vm3299 = vcmp.eq.s32.totalorder %v105, %v3271
    %vm3300 = vcmp.eq.s32.totalorder %v105, %v3274
    %vm3301 = vcmp.eq.s32.totalorder %v105, %v3277
    %vm3302 = vcmp.eq.s32.totalorder %v105, %v3280
    %vm3303 = vcmp.eq.s32.totalorder %v105, %v3283
    %vm3304 = vcmp.eq.s32.totalorder %v105, %v3286
    %vm3305 = vcmp.eq.s32.totalorder %v105, %v3289
    %3306 = vset.pattern.permute.xlu0 5
    %3307 = vperm.xlu0 %3306, %v40
    %v3308 = vpop.permute.xlu0 %3307
    %3310 = vset.pattern.permute.xlu0 5
    %3311 = vperm.xlu0 %3310, %v41
    %v3312 = vpop.permute.xlu0 %3311
    %3314 = vset.pattern.permute.xlu0 5
    %3315 = vperm.xlu0 %3314, %v42
    %v3316 = vpop.permute.xlu0 %3315
    %3318 = vset.pattern.permute.xlu0 5
    %3319 = vperm.xlu0 %3318, %v43
    %v3320 = vpop.permute.xlu0 %3319
    %3322 = vset.pattern.permute.xlu0 5
    %3323 = vperm.xlu0 %3322, %v44
    %v3324 = vpop.permute.xlu0 %3323
    %3326 = vset.pattern.permute.xlu0 5
    %3327 = vperm.xlu0 %3326, %v45
    %v3328 = vpop.permute.xlu0 %3327
    %3330 = vset.pattern.permute.xlu0 5
    %3331 = vperm.xlu0 %3330, %v46
    %v3332 = vpop.permute.xlu0 %3331
    %3334 = vset.pattern.permute.xlu0 5
    %3335 = vperm.xlu0 %3334, %v47
    %v3336 = vpop.permute.xlu0 %3335
    %3338 = vset.pattern.permute.xlu0 5
    %3339 = vperm.xlu0 %3338, %v48
    %v3340 = vpop.permute.xlu0 %3339
    %3342 = vset.pattern.permute.xlu0 5
    %3343 = vperm.xlu0 %3342, %v49
    %v3344 = vpop.permute.xlu0 %3343
    %3346 = vset.pattern.permute.xlu0 5
    %3347 = vperm.xlu0 %3346, %v50
    %v3348 = vpop.permute.xlu0 %3347
    %3350 = vset.pattern.permute.xlu0 5
    %3351 = vperm.xlu0 %3350, %v51
    %v3352 = vpop.permute.xlu0 %3351
    %3354 = vset.pattern.permute.xlu0 5
    %3355 = vperm.xlu0 %3354, %v52
    %v3356 = vpop.permute.xlu0 %3355
    %3358 = vset.pattern.permute.xlu0 5
    %3359 = vperm.xlu0 %3358, %v53
    %v3360 = vpop.permute.xlu0 %3359
    %3362 = vset.pattern.permute.xlu0 5
    %3363 = vperm.xlu0 %3362, %v54
    %v3364 = vpop.permute.xlu0 %3363
    %3366 = vset.pattern.permute.xlu0 5
    %3367 = vperm.xlu0 %3366, %v55
    %v3368 = vpop.permute.xlu0 %3367
    %v3370 = vsel %vm3290, %v3308, 0.0
    %v3371 = vsel %vm3291, %v3312, 0.0
    %v3372 = vsel %vm3292, %v3316, 0.0
    %v3373 = vsel %vm3293, %v3320, 0.0
    %v3374 = vsel %vm3294, %v3324, 0.0
    %v3375 = vsel %vm3295, %v3328, 0.0
    %v3376 = vsel %vm3296, %v3332, 0.0
    %v3377 = vsel %vm3297, %v3336, 0.0
    %v3378 = vsel %vm3298, %v3340, 0.0
    %v3379 = vsel %vm3299, %v3344, 0.0
    %v3380 = vsel %vm3300, %v3348, 0.0
    %v3381 = vsel %vm3301, %v3352, 0.0
    %v3382 = vsel %vm3302, %v3356, 0.0
    %v3383 = vsel %vm3303, %v3360, 0.0
    %v3384 = vsel %vm3304, %v3364, 0.0
    %v3385 = vsel %vm3305, %v3368, 0.0
    %vm3386 = vcmp.le.s32.totalorder %v56, 5
    %vm3387 = vcmp.le.s32.totalorder %v57, 5
    %vm3388 = vcmp.le.s32.totalorder %v58, 5
    %vm3389 = vcmp.le.s32.totalorder %v59, 5
    %vm3390 = vcmp.le.s32.totalorder %v60, 5
    %vm3391 = vcmp.le.s32.totalorder %v61, 5
    %vm3392 = vcmp.le.s32.totalorder %v62, 5
    %vm3393 = vcmp.le.s32.totalorder %v63, 5
    %vm3394 = vcmp.le.s32.totalorder %v64, 5
    %vm3395 = vcmp.le.s32.totalorder %v65, 5
    %vm3396 = vcmp.le.s32.totalorder %v66, 5
    %vm3397 = vcmp.le.s32.totalorder %v67, 5
    %vm3398 = vcmp.le.s32.totalorder %v68, 5
    %vm3399 = vcmp.le.s32.totalorder %v69, 5
    %vm3400 = vcmp.le.s32.totalorder %v70, 5
    %vm3401 = vcmp.le.s32.totalorder %v71, 5
    %vm3402 = vcmp.gt.s32.totalorder %v72, 5
    %vm3403 = vcmp.gt.s32.totalorder %v73, 5
    %vm3404 = vcmp.gt.s32.totalorder %v74, 5
    %vm3405 = vcmp.gt.s32.totalorder %v75, 5
    %vm3406 = vcmp.gt.s32.totalorder %v76, 5
    %vm3407 = vcmp.gt.s32.totalorder %v77, 5
    %vm3408 = vcmp.gt.s32.totalorder %v78, 5
    %vm3409 = vcmp.gt.s32.totalorder %v79, 5
    %vm3410 = vcmp.gt.s32.totalorder %v80, 5
    %vm3411 = vcmp.gt.s32.totalorder %v81, 5
    %vm3412 = vcmp.gt.s32.totalorder %v82, 5
    %vm3413 = vcmp.gt.s32.totalorder %v83, 5
    %vm3414 = vcmp.gt.s32.totalorder %v84, 5
    %vm3415 = vcmp.gt.s32.totalorder %v85, 5
    %vm3416 = vcmp.gt.s32.totalorder %v86, 5
    %vm3417 = vcmp.gt.s32.totalorder %v87, 5
    %vm3418 = vmand %vm3386, %vm3402
    %vm3419 = vmand %vm3387, %vm3403
    %vm3420 = vmand %vm3388, %vm3404
    %vm3421 = vmand %vm3389, %vm3405
    %vm3422 = vmand %vm3390, %vm3406
    %vm3423 = vmand %vm3391, %vm3407
    %vm3424 = vmand %vm3392, %vm3408
    %vm3425 = vmand %vm3393, %vm3409
    %vm3426 = vmand %vm3394, %vm3410
    %vm3427 = vmand %vm3395, %vm3411
    %vm3428 = vmand %vm3396, %vm3412
    %vm3429 = vmand %vm3397, %vm3413
    %vm3430 = vmand %vm3398, %vm3414
    %vm3431 = vmand %vm3399, %vm3415
    %vm3432 = vmand %vm3400, %vm3416
    %vm3433 = vmand %vm3401, %vm3417
    %v3434 = vsel %vm3418, 1, 0
    %v3435 = vsel %vm3419, 1, 0
    %v3436 = vsel %vm3420, 1, 0
    %v3437 = vsel %vm3421, 1, 0
    %v3438 = vsel %vm3422, 1, 0
    %v3439 = vsel %vm3423, 1, 0
    %v3440 = vsel %vm3424, 1, 0
    %v3441 = vsel %vm3425, 1, 0
    %v3442 = vsel %vm3426, 1, 0
    %v3443 = vsel %vm3427, 1, 0
    %v3444 = vsel %vm3428, 1, 0
    %v3445 = vsel %vm3429, 1, 0
    %v3446 = vsel %vm3430, 1, 0
    %v3447 = vsel %vm3431, 1, 0
    %v3448 = vsel %vm3432, 1, 0
    %v3449 = vsel %vm3433, 1, 0
    %v3450 = vcvt.s32.f32 %v3434
    %v3451 = vcvt.s32.f32 %v3435
    %v3452 = vcvt.s32.f32 %v3436
    %v3453 = vcvt.s32.f32 %v3437
    %v3454 = vcvt.s32.f32 %v3438
    %v3455 = vcvt.s32.f32 %v3439
    %v3456 = vcvt.s32.f32 %v3440
    %v3457 = vcvt.s32.f32 %v3441
    %v3458 = vcvt.s32.f32 %v3442
    %v3459 = vcvt.s32.f32 %v3443
    %v3460 = vcvt.s32.f32 %v3444
    %v3461 = vcvt.s32.f32 %v3445
    %v3462 = vcvt.s32.f32 %v3446
    %v3463 = vcvt.s32.f32 %v3447
    %v3464 = vcvt.s32.f32 %v3448
    %v3465 = vcvt.s32.f32 %v3449
    %3467 = vset.pattern.permute.xlu0 0
    %3468 = vperm.xlu0 %3467, %v3450
    %v3469 = vpop.permute.xlu0 %3468
    %3472 = vset.pattern.permute.xlu0 0
    %3473 = vperm.xlu0 %3472, %v3451
    %v3474 = vpop.permute.xlu0 %3473
    %3477 = vset.pattern.permute.xlu0 0
    %3478 = vperm.xlu0 %3477, %v3452
    %v3479 = vpop.permute.xlu0 %3478
    %3482 = vset.pattern.permute.xlu0 0
    %3483 = vperm.xlu0 %3482, %v3453
    %v3484 = vpop.permute.xlu0 %3483
    %3487 = vset.pattern.permute.xlu0 0
    %3488 = vperm.xlu0 %3487, %v3454
    %v3489 = vpop.permute.xlu0 %3488
    %3492 = vset.pattern.permute.xlu0 0
    %3493 = vperm.xlu0 %3492, %v3455
    %v3494 = vpop.permute.xlu0 %3493
    %3497 = vset.pattern.permute.xlu0 0
    %3498 = vperm.xlu0 %3497, %v3456
    %v3499 = vpop.permute.xlu0 %3498
    %3502 = vset.pattern.permute.xlu0 0
    %3503 = vperm.xlu0 %3502, %v3457
    %v3504 = vpop.permute.xlu0 %3503
    %3507 = vset.pattern.permute.xlu0 0
    %3508 = vperm.xlu0 %3507, %v3458
    %v3509 = vpop.permute.xlu0 %3508
    %3512 = vset.pattern.permute.xlu0 0
    %3513 = vperm.xlu0 %3512, %v3459
    %v3514 = vpop.permute.xlu0 %3513
    %3517 = vset.pattern.permute.xlu0 0
    %3518 = vperm.xlu0 %3517, %v3460
    %v3519 = vpop.permute.xlu0 %3518
    %3522 = vset.pattern.permute.xlu0 0
    %3523 = vperm.xlu0 %3522, %v3461
    %v3524 = vpop.permute.xlu0 %3523
    %3527 = vset.pattern.permute.xlu0 0
    %3528 = vperm.xlu0 %3527, %v3462
    %v3529 = vpop.permute.xlu0 %3528
    %3532 = vset.pattern.permute.xlu0 0
    %3533 = vperm.xlu0 %3532, %v3463
    %v3534 = vpop.permute.xlu0 %3533
    %3537 = vset.pattern.permute.xlu0 0
    %3538 = vperm.xlu0 %3537, %v3464
    %v3539 = vpop.permute.xlu0 %3538
    %3542 = vset.pattern.permute.xlu0 0
    %3543 = vperm.xlu0 %3542, %v3465
    %v3544 = vpop.permute.xlu0 %3543
    %v3546 = vmul.f32 %v3469, %v3370
    %v3547 = vmul.f32 %v3474, %v3371
    %v3548 = vmul.f32 %v3479, %v3372
    %v3549 = vmul.f32 %v3484, %v3373
    %v3550 = vmul.f32 %v3489, %v3374
    %v3551 = vmul.f32 %v3494, %v3375
    %v3552 = vmul.f32 %v3499, %v3376
    %v3553 = vmul.f32 %v3504, %v3377
    %v3554 = vmul.f32 %v3509, %v3378
    %v3555 = vmul.f32 %v3514, %v3379
    %v3556 = vmul.f32 %v3519, %v3380
    %v3557 = vmul.f32 %v3524, %v3381
    %v3558 = vmul.f32 %v3529, %v3382
    %v3559 = vmul.f32 %v3534, %v3383
    %v3560 = vmul.f32 %v3539, %v3384
    %v3561 = vmul.f32 %v3544, %v3385
    %v3562 = vadd.f32 %v2938, %v3546
    %v3563 = vadd.f32 %v2939, %v3547
    %v3564 = vadd.f32 %v2940, %v3548
    %v3565 = vadd.f32 %v2941, %v3549
    %v3566 = vadd.f32 %v2942, %v3550
    %v3567 = vadd.f32 %v2943, %v3551
    %v3568 = vadd.f32 %v2944, %v3552
    %v3569 = vadd.f32 %v2945, %v3553
    %v3570 = vadd.f32 %v2946, %v3554
    %v3571 = vadd.f32 %v2947, %v3555
    %v3572 = vadd.f32 %v2948, %v3556
    %v3573 = vadd.f32 %v2949, %v3557
    %v3574 = vadd.f32 %v2950, %v3558
    %v3575 = vadd.f32 %v2951, %v3559
    %v3576 = vadd.f32 %v2952, %v3560
    %v3577 = vadd.f32 %v2953, %v3561
    %3578 = vset.pattern.permute.xlu0 1
    %3579 = vperm.xlu0 %3578, %v3450
    %v3580 = vpop.permute.xlu0 %3579
    %3582 = vset.pattern.permute.xlu0 1
    %3583 = vperm.xlu0 %3582, %v3451
    %v3584 = vpop.permute.xlu0 %3583
    %3586 = vset.pattern.permute.xlu0 1
    %3587 = vperm.xlu0 %3586, %v3452
    %v3588 = vpop.permute.xlu0 %3587
    %3590 = vset.pattern.permute.xlu0 1
    %3591 = vperm.xlu0 %3590, %v3453
    %v3592 = vpop.permute.xlu0 %3591
    %3594 = vset.pattern.permute.xlu0 1
    %3595 = vperm.xlu0 %3594, %v3454
    %v3596 = vpop.permute.xlu0 %3595
    %3598 = vset.pattern.permute.xlu0 1
    %3599 = vperm.xlu0 %3598, %v3455
    %v3600 = vpop.permute.xlu0 %3599
    %3602 = vset.pattern.permute.xlu0 1
    %3603 = vperm.xlu0 %3602, %v3456
    %v3604 = vpop.permute.xlu0 %3603
    %3606 = vset.pattern.permute.xlu0 1
    %3607 = vperm.xlu0 %3606, %v3457
    %v3608 = vpop.permute.xlu0 %3607
    %3610 = vset.pattern.permute.xlu0 1
    %3611 = vperm.xlu0 %3610, %v3458
    %v3612 = vpop.permute.xlu0 %3611
    %3614 = vset.pattern.permute.xlu0 1
    %3615 = vperm.xlu0 %3614, %v3459
    %v3616 = vpop.permute.xlu0 %3615
    %3618 = vset.pattern.permute.xlu0 1
    %3619 = vperm.xlu0 %3618, %v3460
    %v3620 = vpop.permute.xlu0 %3619
    %3622 = vset.pattern.permute.xlu0 1
    %3623 = vperm.xlu0 %3622, %v3461
    %v3624 = vpop.permute.xlu0 %3623
    %3626 = vset.pattern.permute.xlu0 1
    %3627 = vperm.xlu0 %3626, %v3462
    %v3628 = vpop.permute.xlu0 %3627
    %3630 = vset.pattern.permute.xlu0 1
    %3631 = vperm.xlu0 %3630, %v3463
    %v3632 = vpop.permute.xlu0 %3631
    %3634 = vset.pattern.permute.xlu0 1
    %3635 = vperm.xlu0 %3634, %v3464
    %v3636 = vpop.permute.xlu0 %3635
    %3638 = vset.pattern.permute.xlu0 1
    %3639 = vperm.xlu0 %3638, %v3465
    %v3640 = vpop.permute.xlu0 %3639
    %v3642 = vmul.f32 %v3580, %v3370
    %v3643 = vmul.f32 %v3584, %v3371
    %v3644 = vmul.f32 %v3588, %v3372
    %v3645 = vmul.f32 %v3592, %v3373
    %v3646 = vmul.f32 %v3596, %v3374
    %v3647 = vmul.f32 %v3600, %v3375
    %v3648 = vmul.f32 %v3604, %v3376
    %v3649 = vmul.f32 %v3608, %v3377
    %v3650 = vmul.f32 %v3612, %v3378
    %v3651 = vmul.f32 %v3616, %v3379
    %v3652 = vmul.f32 %v3620, %v3380
    %v3653 = vmul.f32 %v3624, %v3381
    %v3654 = vmul.f32 %v3628, %v3382
    %v3655 = vmul.f32 %v3632, %v3383
    %v3656 = vmul.f32 %v3636, %v3384
    %v3657 = vmul.f32 %v3640, %v3385
    %v3658 = vadd.f32 %v3034, %v3642
    %v3659 = vadd.f32 %v3035, %v3643
    %v3660 = vadd.f32 %v3036, %v3644
    %v3661 = vadd.f32 %v3037, %v3645
    %v3662 = vadd.f32 %v3038, %v3646
    %v3663 = vadd.f32 %v3039, %v3647
    %v3664 = vadd.f32 %v3040, %v3648
    %v3665 = vadd.f32 %v3041, %v3649
    %v3666 = vadd.f32 %v3042, %v3650
    %v3667 = vadd.f32 %v3043, %v3651
    %v3668 = vadd.f32 %v3044, %v3652
    %v3669 = vadd.f32 %v3045, %v3653
    %v3670 = vadd.f32 %v3046, %v3654
    %v3671 = vadd.f32 %v3047, %v3655
    %v3672 = vadd.f32 %v3048, %v3656
    %v3673 = vadd.f32 %v3049, %v3657
    %3674 = vset.pattern.permute.xlu0 2
    %3675 = vperm.xlu0 %3674, %v3450
    %v3676 = vpop.permute.xlu0 %3675
    %3678 = vset.pattern.permute.xlu0 2
    %3679 = vperm.xlu0 %3678, %v3451
    %v3680 = vpop.permute.xlu0 %3679
    %3682 = vset.pattern.permute.xlu0 2
    %3683 = vperm.xlu0 %3682, %v3452
    %v3684 = vpop.permute.xlu0 %3683
    %3686 = vset.pattern.permute.xlu0 2
    %3687 = vperm.xlu0 %3686, %v3453
    %v3688 = vpop.permute.xlu0 %3687
    %3690 = vset.pattern.permute.xlu0 2
    %3691 = vperm.xlu0 %3690, %v3454
    %v3692 = vpop.permute.xlu0 %3691
    %3694 = vset.pattern.permute.xlu0 2
    %3695 = vperm.xlu0 %3694, %v3455
    %v3696 = vpop.permute.xlu0 %3695
    %3698 = vset.pattern.permute.xlu0 2
    %3699 = vperm.xlu0 %3698, %v3456
    %v3700 = vpop.permute.xlu0 %3699
    %3702 = vset.pattern.permute.xlu0 2
    %3703 = vperm.xlu0 %3702, %v3457
    %v3704 = vpop.permute.xlu0 %3703
    %3706 = vset.pattern.permute.xlu0 2
    %3707 = vperm.xlu0 %3706, %v3458
    %v3708 = vpop.permute.xlu0 %3707
    %3710 = vset.pattern.permute.xlu0 2
    %3711 = vperm.xlu0 %3710, %v3459
    %v3712 = vpop.permute.xlu0 %3711
    %3714 = vset.pattern.permute.xlu0 2
    %3715 = vperm.xlu0 %3714, %v3460
    %v3716 = vpop.permute.xlu0 %3715
    %3718 = vset.pattern.permute.xlu0 2
    %3719 = vperm.xlu0 %3718, %v3461
    %v3720 = vpop.permute.xlu0 %3719
    %3722 = vset.pattern.permute.xlu0 2
    %3723 = vperm.xlu0 %3722, %v3462
    %v3724 = vpop.permute.xlu0 %3723
    %3726 = vset.pattern.permute.xlu0 2
    %3727 = vperm.xlu0 %3726, %v3463
    %v3728 = vpop.permute.xlu0 %3727
    %3730 = vset.pattern.permute.xlu0 2
    %3731 = vperm.xlu0 %3730, %v3464
    %v3732 = vpop.permute.xlu0 %3731
    %3734 = vset.pattern.permute.xlu0 2
    %3735 = vperm.xlu0 %3734, %v3465
    %v3736 = vpop.permute.xlu0 %3735
    %v3738 = vmul.f32 %v3676, %v3370
    %v3739 = vmul.f32 %v3680, %v3371
    %v3740 = vmul.f32 %v3684, %v3372
    %v3741 = vmul.f32 %v3688, %v3373
    %v3742 = vmul.f32 %v3692, %v3374
    %v3743 = vmul.f32 %v3696, %v3375
    %v3744 = vmul.f32 %v3700, %v3376
    %v3745 = vmul.f32 %v3704, %v3377
    %v3746 = vmul.f32 %v3708, %v3378
    %v3747 = vmul.f32 %v3712, %v3379
    %v3748 = vmul.f32 %v3716, %v3380
    %v3749 = vmul.f32 %v3720, %v3381
    %v3750 = vmul.f32 %v3724, %v3382
    %v3751 = vmul.f32 %v3728, %v3383
    %v3752 = vmul.f32 %v3732, %v3384
    %v3753 = vmul.f32 %v3736, %v3385
    %v3754 = vadd.f32 %v3130, %v3738
    %v3755 = vadd.f32 %v3131, %v3739
    %v3756 = vadd.f32 %v3132, %v3740
    %v3757 = vadd.f32 %v3133, %v3741
    %v3758 = vadd.f32 %v3134, %v3742
    %v3759 = vadd.f32 %v3135, %v3743
    %v3760 = vadd.f32 %v3136, %v3744
    %v3761 = vadd.f32 %v3137, %v3745
    %v3762 = vadd.f32 %v3138, %v3746
    %v3763 = vadd.f32 %v3139, %v3747
    %v3764 = vadd.f32 %v3140, %v3748
    %v3765 = vadd.f32 %v3141, %v3749
    %v3766 = vadd.f32 %v3142, %v3750
    %v3767 = vadd.f32 %v3143, %v3751
    %v3768 = vadd.f32 %v3144, %v3752
    %v3769 = vadd.f32 %v3145, %v3753
    %3770 = vset.pattern.permute.xlu0 3
    %3771 = vperm.xlu0 %3770, %v3450
    %v3772 = vpop.permute.xlu0 %3771
    %3774 = vset.pattern.permute.xlu0 3
    %3775 = vperm.xlu0 %3774, %v3451
    %v3776 = vpop.permute.xlu0 %3775
    %3778 = vset.pattern.permute.xlu0 3
    %3779 = vperm.xlu0 %3778, %v3452
    %v3780 = vpop.permute.xlu0 %3779
    %3782 = vset.pattern.permute.xlu0 3
    %3783 = vperm.xlu0 %3782, %v3453
    %v3784 = vpop.permute.xlu0 %3783
    %3786 = vset.pattern.permute.xlu0 3
    %3787 = vperm.xlu0 %3786, %v3454
    %v3788 = vpop.permute.xlu0 %3787
    %3790 = vset.pattern.permute.xlu0 3
    %3791 = vperm.xlu0 %3790, %v3455
    %v3792 = vpop.permute.xlu0 %3791
    %3794 = vset.pattern.permute.xlu0 3
    %3795 = vperm.xlu0 %3794, %v3456
    %v3796 = vpop.permute.xlu0 %3795
    %3798 = vset.pattern.permute.xlu0 3
    %3799 = vperm.xlu0 %3798, %v3457
    %v3800 = vpop.permute.xlu0 %3799
    %3802 = vset.pattern.permute.xlu0 3
    %3803 = vperm.xlu0 %3802, %v3458
    %v3804 = vpop.permute.xlu0 %3803
    %3806 = vset.pattern.permute.xlu0 3
    %3807 = vperm.xlu0 %3806, %v3459
    %v3808 = vpop.permute.xlu0 %3807
    %3810 = vset.pattern.permute.xlu0 3
    %3811 = vperm.xlu0 %3810, %v3460
    %v3812 = vpop.permute.xlu0 %3811
    %3814 = vset.pattern.permute.xlu0 3
    %3815 = vperm.xlu0 %3814, %v3461
    %v3816 = vpop.permute.xlu0 %3815
    %3818 = vset.pattern.permute.xlu0 3
    %3819 = vperm.xlu0 %3818, %v3462
    %v3820 = vpop.permute.xlu0 %3819
    %3822 = vset.pattern.permute.xlu0 3
    %3823 = vperm.xlu0 %3822, %v3463
    %v3824 = vpop.permute.xlu0 %3823
    %3826 = vset.pattern.permute.xlu0 3
    %3827 = vperm.xlu0 %3826, %v3464
    %v3828 = vpop.permute.xlu0 %3827
    %3830 = vset.pattern.permute.xlu0 3
    %3831 = vperm.xlu0 %3830, %v3465
    %v3832 = vpop.permute.xlu0 %3831
    %v3834 = vmul.f32 %v3772, %v3370
    %v3835 = vmul.f32 %v3776, %v3371
    %v3836 = vmul.f32 %v3780, %v3372
    %v3837 = vmul.f32 %v3784, %v3373
    %v3838 = vmul.f32 %v3788, %v3374
    %v3839 = vmul.f32 %v3792, %v3375
    %v3840 = vmul.f32 %v3796, %v3376
    %v3841 = vmul.f32 %v3800, %v3377
    %v3842 = vmul.f32 %v3804, %v3378
    %v3843 = vmul.f32 %v3808, %v3379
    %v3844 = vmul.f32 %v3812, %v3380
    %v3845 = vmul.f32 %v3816, %v3381
    %v3846 = vmul.f32 %v3820, %v3382
    %v3847 = vmul.f32 %v3824, %v3383
    %v3848 = vmul.f32 %v3828, %v3384
    %v3849 = vmul.f32 %v3832, %v3385
    %v3850 = vadd.f32 %v3226, %v3834
    %v3851 = vadd.f32 %v3227, %v3835
    %v3852 = vadd.f32 %v3228, %v3836
    %v3853 = vadd.f32 %v3229, %v3837
    %v3854 = vadd.f32 %v3230, %v3838
    %v3855 = vadd.f32 %v3231, %v3839
    %v3856 = vadd.f32 %v3232, %v3840
    %v3857 = vadd.f32 %v3233, %v3841
    %v3858 = vadd.f32 %v3234, %v3842
    %v3859 = vadd.f32 %v3235, %v3843
    %v3860 = vadd.f32 %v3236, %v3844
    %v3861 = vadd.f32 %v3237, %v3845
    %v3862 = vadd.f32 %v3238, %v3846
    %v3863 = vadd.f32 %v3239, %v3847
    %v3864 = vadd.f32 %v3240, %v3848
    %v3865 = vadd.f32 %v3241, %v3849
    %3866 = vset.pattern.permute.xlu0 6
    %3867 = vperm.xlu0 %3866, %v24
    %v3868 = vpop.permute.xlu0 %3867
    %3869 = vset.pattern.permute.xlu0 6
    %3870 = vperm.xlu0 %3869, %v25
    %v3871 = vpop.permute.xlu0 %3870
    %3872 = vset.pattern.permute.xlu0 6
    %3873 = vperm.xlu0 %3872, %v26
    %v3874 = vpop.permute.xlu0 %3873
    %3875 = vset.pattern.permute.xlu0 6
    %3876 = vperm.xlu0 %3875, %v27
    %v3877 = vpop.permute.xlu0 %3876
    %3878 = vset.pattern.permute.xlu0 6
    %3879 = vperm.xlu0 %3878, %v28
    %v3880 = vpop.permute.xlu0 %3879
    %3881 = vset.pattern.permute.xlu0 6
    %3882 = vperm.xlu0 %3881, %v29
    %v3883 = vpop.permute.xlu0 %3882
    %3884 = vset.pattern.permute.xlu0 6
    %3885 = vperm.xlu0 %3884, %v30
    %v3886 = vpop.permute.xlu0 %3885
    %3887 = vset.pattern.permute.xlu0 6
    %3888 = vperm.xlu0 %3887, %v31
    %v3889 = vpop.permute.xlu0 %3888
    %3890 = vset.pattern.permute.xlu0 6
    %3891 = vperm.xlu0 %3890, %v32
    %v3892 = vpop.permute.xlu0 %3891
    %3893 = vset.pattern.permute.xlu0 6
    %3894 = vperm.xlu0 %3893, %v33
    %v3895 = vpop.permute.xlu0 %3894
    %3896 = vset.pattern.permute.xlu0 6
    %3897 = vperm.xlu0 %3896, %v34
    %v3898 = vpop.permute.xlu0 %3897
    %3899 = vset.pattern.permute.xlu0 6
    %3900 = vperm.xlu0 %3899, %v35
    %v3901 = vpop.permute.xlu0 %3900
    %3902 = vset.pattern.permute.xlu0 6
    %3903 = vperm.xlu0 %3902, %v36
    %v3904 = vpop.permute.xlu0 %3903
    %3905 = vset.pattern.permute.xlu0 6
    %3906 = vperm.xlu0 %3905, %v37
    %v3907 = vpop.permute.xlu0 %3906
    %3908 = vset.pattern.permute.xlu0 6
    %3909 = vperm.xlu0 %3908, %v38
    %v3910 = vpop.permute.xlu0 %3909
    %3911 = vset.pattern.permute.xlu0 6
    %3912 = vperm.xlu0 %3911, %v39
    %v3913 = vpop.permute.xlu0 %3912
    %vm3914 = vcmp.eq.s32.totalorder %v105, %v3868
    %vm3915 = vcmp.eq.s32.totalorder %v105, %v3871
    %vm3916 = vcmp.eq.s32.totalorder %v105, %v3874
    %vm3917 = vcmp.eq.s32.totalorder %v105, %v3877
    %vm3918 = vcmp.eq.s32.totalorder %v105, %v3880
    %vm3919 = vcmp.eq.s32.totalorder %v105, %v3883
    %vm3920 = vcmp.eq.s32.totalorder %v105, %v3886
    %vm3921 = vcmp.eq.s32.totalorder %v105, %v3889
    %vm3922 = vcmp.eq.s32.totalorder %v105, %v3892
    %vm3923 = vcmp.eq.s32.totalorder %v105, %v3895
    %vm3924 = vcmp.eq.s32.totalorder %v105, %v3898
    %vm3925 = vcmp.eq.s32.totalorder %v105, %v3901
    %vm3926 = vcmp.eq.s32.totalorder %v105, %v3904
    %vm3927 = vcmp.eq.s32.totalorder %v105, %v3907
    %vm3928 = vcmp.eq.s32.totalorder %v105, %v3910
    %vm3929 = vcmp.eq.s32.totalorder %v105, %v3913
    %3930 = vset.pattern.permute.xlu0 6
    %3931 = vperm.xlu0 %3930, %v40
    %v3932 = vpop.permute.xlu0 %3931
    %3934 = vset.pattern.permute.xlu0 6
    %3935 = vperm.xlu0 %3934, %v41
    %v3936 = vpop.permute.xlu0 %3935
    %3938 = vset.pattern.permute.xlu0 6
    %3939 = vperm.xlu0 %3938, %v42
    %v3940 = vpop.permute.xlu0 %3939
    %3942 = vset.pattern.permute.xlu0 6
    %3943 = vperm.xlu0 %3942, %v43
    %v3944 = vpop.permute.xlu0 %3943
    %3946 = vset.pattern.permute.xlu0 6
    %3947 = vperm.xlu0 %3946, %v44
    %v3948 = vpop.permute.xlu0 %3947
    %3950 = vset.pattern.permute.xlu0 6
    %3951 = vperm.xlu0 %3950, %v45
    %v3952 = vpop.permute.xlu0 %3951
    %3954 = vset.pattern.permute.xlu0 6
    %3955 = vperm.xlu0 %3954, %v46
    %v3956 = vpop.permute.xlu0 %3955
    %3958 = vset.pattern.permute.xlu0 6
    %3959 = vperm.xlu0 %3958, %v47
    %v3960 = vpop.permute.xlu0 %3959
    %3962 = vset.pattern.permute.xlu0 6
    %3963 = vperm.xlu0 %3962, %v48
    %v3964 = vpop.permute.xlu0 %3963
    %3966 = vset.pattern.permute.xlu0 6
    %3967 = vperm.xlu0 %3966, %v49
    %v3968 = vpop.permute.xlu0 %3967
    %3970 = vset.pattern.permute.xlu0 6
    %3971 = vperm.xlu0 %3970, %v50
    %v3972 = vpop.permute.xlu0 %3971
    %3974 = vset.pattern.permute.xlu0 6
    %3975 = vperm.xlu0 %3974, %v51
    %v3976 = vpop.permute.xlu0 %3975
    %3978 = vset.pattern.permute.xlu0 6
    %3979 = vperm.xlu0 %3978, %v52
    %v3980 = vpop.permute.xlu0 %3979
    %3982 = vset.pattern.permute.xlu0 6
    %3983 = vperm.xlu0 %3982, %v53
    %v3984 = vpop.permute.xlu0 %3983
    %3986 = vset.pattern.permute.xlu0 6
    %3987 = vperm.xlu0 %3986, %v54
    %v3988 = vpop.permute.xlu0 %3987
    %3990 = vset.pattern.permute.xlu0 6
    %3991 = vperm.xlu0 %3990, %v55
    %v3992 = vpop.permute.xlu0 %3991
    %v3994 = vsel %vm3914, %v3932, 0.0
    %v3995 = vsel %vm3915, %v3936, 0.0
    %v3996 = vsel %vm3916, %v3940, 0.0
    %v3997 = vsel %vm3917, %v3944, 0.0
    %v3998 = vsel %vm3918, %v3948, 0.0
    %v3999 = vsel %vm3919, %v3952, 0.0
    %v4000 = vsel %vm3920, %v3956, 0.0
    %v4001 = vsel %vm3921, %v3960, 0.0
    %v4002 = vsel %vm3922, %v3964, 0.0
    %v4003 = vsel %vm3923, %v3968, 0.0
    %v4004 = vsel %vm3924, %v3972, 0.0
    %v4005 = vsel %vm3925, %v3976, 0.0
    %v4006 = vsel %vm3926, %v3980, 0.0
    %v4007 = vsel %vm3927, %v3984, 0.0
    %v4008 = vsel %vm3928, %v3988, 0.0
    %v4009 = vsel %vm3929, %v3992, 0.0
    %vm4010 = vcmp.le.s32.totalorder %v56, 6
    %vm4011 = vcmp.le.s32.totalorder %v57, 6
    %vm4012 = vcmp.le.s32.totalorder %v58, 6
    %vm4013 = vcmp.le.s32.totalorder %v59, 6
    %vm4014 = vcmp.le.s32.totalorder %v60, 6
    %vm4015 = vcmp.le.s32.totalorder %v61, 6
    %vm4016 = vcmp.le.s32.totalorder %v62, 6
    %vm4017 = vcmp.le.s32.totalorder %v63, 6
    %vm4018 = vcmp.le.s32.totalorder %v64, 6
    %vm4019 = vcmp.le.s32.totalorder %v65, 6
    %vm4020 = vcmp.le.s32.totalorder %v66, 6
    %vm4021 = vcmp.le.s32.totalorder %v67, 6
    %vm4022 = vcmp.le.s32.totalorder %v68, 6
    %vm4023 = vcmp.le.s32.totalorder %v69, 6
    %vm4024 = vcmp.le.s32.totalorder %v70, 6
    %vm4025 = vcmp.le.s32.totalorder %v71, 6
    %vm4026 = vcmp.gt.s32.totalorder %v72, 6
    %vm4027 = vcmp.gt.s32.totalorder %v73, 6
    %vm4028 = vcmp.gt.s32.totalorder %v74, 6
    %vm4029 = vcmp.gt.s32.totalorder %v75, 6
    %vm4030 = vcmp.gt.s32.totalorder %v76, 6
    %vm4031 = vcmp.gt.s32.totalorder %v77, 6
    %vm4032 = vcmp.gt.s32.totalorder %v78, 6
    %vm4033 = vcmp.gt.s32.totalorder %v79, 6
    %vm4034 = vcmp.gt.s32.totalorder %v80, 6
    %vm4035 = vcmp.gt.s32.totalorder %v81, 6
    %vm4036 = vcmp.gt.s32.totalorder %v82, 6
    %vm4037 = vcmp.gt.s32.totalorder %v83, 6
    %vm4038 = vcmp.gt.s32.totalorder %v84, 6
    %vm4039 = vcmp.gt.s32.totalorder %v85, 6
    %vm4040 = vcmp.gt.s32.totalorder %v86, 6
    %vm4041 = vcmp.gt.s32.totalorder %v87, 6
    %vm4042 = vmand %vm4010, %vm4026
    %vm4043 = vmand %vm4011, %vm4027
    %vm4044 = vmand %vm4012, %vm4028
    %vm4045 = vmand %vm4013, %vm4029
    %vm4046 = vmand %vm4014, %vm4030
    %vm4047 = vmand %vm4015, %vm4031
    %vm4048 = vmand %vm4016, %vm4032
    %vm4049 = vmand %vm4017, %vm4033
    %vm4050 = vmand %vm4018, %vm4034
    %vm4051 = vmand %vm4019, %vm4035
    %vm4052 = vmand %vm4020, %vm4036
    %vm4053 = vmand %vm4021, %vm4037
    %vm4054 = vmand %vm4022, %vm4038
    %vm4055 = vmand %vm4023, %vm4039
    %vm4056 = vmand %vm4024, %vm4040
    %vm4057 = vmand %vm4025, %vm4041
    %v4058 = vsel %vm4042, 1, 0
    %v4059 = vsel %vm4043, 1, 0
    %v4060 = vsel %vm4044, 1, 0
    %v4061 = vsel %vm4045, 1, 0
    %v4062 = vsel %vm4046, 1, 0
    %v4063 = vsel %vm4047, 1, 0
    %v4064 = vsel %vm4048, 1, 0
    %v4065 = vsel %vm4049, 1, 0
    %v4066 = vsel %vm4050, 1, 0
    %v4067 = vsel %vm4051, 1, 0
    %v4068 = vsel %vm4052, 1, 0
    %v4069 = vsel %vm4053, 1, 0
    %v4070 = vsel %vm4054, 1, 0
    %v4071 = vsel %vm4055, 1, 0
    %v4072 = vsel %vm4056, 1, 0
    %v4073 = vsel %vm4057, 1, 0
    %v4074 = vcvt.s32.f32 %v4058
    %v4075 = vcvt.s32.f32 %v4059
    %v4076 = vcvt.s32.f32 %v4060
    %v4077 = vcvt.s32.f32 %v4061
    %v4078 = vcvt.s32.f32 %v4062
    %v4079 = vcvt.s32.f32 %v4063
    %v4080 = vcvt.s32.f32 %v4064
    %v4081 = vcvt.s32.f32 %v4065
    %v4082 = vcvt.s32.f32 %v4066
    %v4083 = vcvt.s32.f32 %v4067
    %v4084 = vcvt.s32.f32 %v4068
    %v4085 = vcvt.s32.f32 %v4069
    %v4086 = vcvt.s32.f32 %v4070
    %v4087 = vcvt.s32.f32 %v4071
    %v4088 = vcvt.s32.f32 %v4072
    %v4089 = vcvt.s32.f32 %v4073
    %4091 = vset.pattern.permute.xlu0 0
    %4092 = vperm.xlu0 %4091, %v4074
    %v4093 = vpop.permute.xlu0 %4092
    %4096 = vset.pattern.permute.xlu0 0
    %4097 = vperm.xlu0 %4096, %v4075
    %v4098 = vpop.permute.xlu0 %4097
    %4101 = vset.pattern.permute.xlu0 0
    %4102 = vperm.xlu0 %4101, %v4076
    %v4103 = vpop.permute.xlu0 %4102
    %4106 = vset.pattern.permute.xlu0 0
    %4107 = vperm.xlu0 %4106, %v4077
    %v4108 = vpop.permute.xlu0 %4107
    %4111 = vset.pattern.permute.xlu0 0
    %4112 = vperm.xlu0 %4111, %v4078
    %v4113 = vpop.permute.xlu0 %4112
    %4116 = vset.pattern.permute.xlu0 0
    %4117 = vperm.xlu0 %4116, %v4079
    %v4118 = vpop.permute.xlu0 %4117
    %4121 = vset.pattern.permute.xlu0 0
    %4122 = vperm.xlu0 %4121, %v4080
    %v4123 = vpop.permute.xlu0 %4122
    %4126 = vset.pattern.permute.xlu0 0
    %4127 = vperm.xlu0 %4126, %v4081
    %v4128 = vpop.permute.xlu0 %4127
    %4131 = vset.pattern.permute.xlu0 0
    %4132 = vperm.xlu0 %4131, %v4082
    %v4133 = vpop.permute.xlu0 %4132
    %4136 = vset.pattern.permute.xlu0 0
    %4137 = vperm.xlu0 %4136, %v4083
    %v4138 = vpop.permute.xlu0 %4137
    %4141 = vset.pattern.permute.xlu0 0
    %4142 = vperm.xlu0 %4141, %v4084
    %v4143 = vpop.permute.xlu0 %4142
    %4146 = vset.pattern.permute.xlu0 0
    %4147 = vperm.xlu0 %4146, %v4085
    %v4148 = vpop.permute.xlu0 %4147
    %4151 = vset.pattern.permute.xlu0 0
    %4152 = vperm.xlu0 %4151, %v4086
    %v4153 = vpop.permute.xlu0 %4152
    %4156 = vset.pattern.permute.xlu0 0
    %4157 = vperm.xlu0 %4156, %v4087
    %v4158 = vpop.permute.xlu0 %4157
    %4161 = vset.pattern.permute.xlu0 0
    %4162 = vperm.xlu0 %4161, %v4088
    %v4163 = vpop.permute.xlu0 %4162
    %4166 = vset.pattern.permute.xlu0 0
    %4167 = vperm.xlu0 %4166, %v4089
    %v4168 = vpop.permute.xlu0 %4167
    %v4170 = vmul.f32 %v4093, %v3994
    %v4171 = vmul.f32 %v4098, %v3995
    %v4172 = vmul.f32 %v4103, %v3996
    %v4173 = vmul.f32 %v4108, %v3997
    %v4174 = vmul.f32 %v4113, %v3998
    %v4175 = vmul.f32 %v4118, %v3999
    %v4176 = vmul.f32 %v4123, %v4000
    %v4177 = vmul.f32 %v4128, %v4001
    %v4178 = vmul.f32 %v4133, %v4002
    %v4179 = vmul.f32 %v4138, %v4003
    %v4180 = vmul.f32 %v4143, %v4004
    %v4181 = vmul.f32 %v4148, %v4005
    %v4182 = vmul.f32 %v4153, %v4006
    %v4183 = vmul.f32 %v4158, %v4007
    %v4184 = vmul.f32 %v4163, %v4008
    %v4185 = vmul.f32 %v4168, %v4009
    %v4186 = vadd.f32 %v3562, %v4170
    %v4187 = vadd.f32 %v3563, %v4171
    %v4188 = vadd.f32 %v3564, %v4172
    %v4189 = vadd.f32 %v3565, %v4173
    %v4190 = vadd.f32 %v3566, %v4174
    %v4191 = vadd.f32 %v3567, %v4175
    %v4192 = vadd.f32 %v3568, %v4176
    %v4193 = vadd.f32 %v3569, %v4177
    %v4194 = vadd.f32 %v3570, %v4178
    %v4195 = vadd.f32 %v3571, %v4179
    %v4196 = vadd.f32 %v3572, %v4180
    %v4197 = vadd.f32 %v3573, %v4181
    %v4198 = vadd.f32 %v3574, %v4182
    %v4199 = vadd.f32 %v3575, %v4183
    %v4200 = vadd.f32 %v3576, %v4184
    %v4201 = vadd.f32 %v3577, %v4185
    %4202 = vset.pattern.permute.xlu0 1
    %4203 = vperm.xlu0 %4202, %v4074
    %v4204 = vpop.permute.xlu0 %4203
    %4206 = vset.pattern.permute.xlu0 1
    %4207 = vperm.xlu0 %4206, %v4075
    %v4208 = vpop.permute.xlu0 %4207
    %4210 = vset.pattern.permute.xlu0 1
    %4211 = vperm.xlu0 %4210, %v4076
    %v4212 = vpop.permute.xlu0 %4211
    %4214 = vset.pattern.permute.xlu0 1
    %4215 = vperm.xlu0 %4214, %v4077
    %v4216 = vpop.permute.xlu0 %4215
    %4218 = vset.pattern.permute.xlu0 1
    %4219 = vperm.xlu0 %4218, %v4078
    %v4220 = vpop.permute.xlu0 %4219
    %4222 = vset.pattern.permute.xlu0 1
    %4223 = vperm.xlu0 %4222, %v4079
    %v4224 = vpop.permute.xlu0 %4223
    %4226 = vset.pattern.permute.xlu0 1
    %4227 = vperm.xlu0 %4226, %v4080
    %v4228 = vpop.permute.xlu0 %4227
    %4230 = vset.pattern.permute.xlu0 1
    %4231 = vperm.xlu0 %4230, %v4081
    %v4232 = vpop.permute.xlu0 %4231
    %4234 = vset.pattern.permute.xlu0 1
    %4235 = vperm.xlu0 %4234, %v4082
    %v4236 = vpop.permute.xlu0 %4235
    %4238 = vset.pattern.permute.xlu0 1
    %4239 = vperm.xlu0 %4238, %v4083
    %v4240 = vpop.permute.xlu0 %4239
    %4242 = vset.pattern.permute.xlu0 1
    %4243 = vperm.xlu0 %4242, %v4084
    %v4244 = vpop.permute.xlu0 %4243
    %4246 = vset.pattern.permute.xlu0 1
    %4247 = vperm.xlu0 %4246, %v4085
    %v4248 = vpop.permute.xlu0 %4247
    %4250 = vset.pattern.permute.xlu0 1
    %4251 = vperm.xlu0 %4250, %v4086
    %v4252 = vpop.permute.xlu0 %4251
    %4254 = vset.pattern.permute.xlu0 1
    %4255 = vperm.xlu0 %4254, %v4087
    %v4256 = vpop.permute.xlu0 %4255
    %4258 = vset.pattern.permute.xlu0 1
    %4259 = vperm.xlu0 %4258, %v4088
    %v4260 = vpop.permute.xlu0 %4259
    %4262 = vset.pattern.permute.xlu0 1
    %4263 = vperm.xlu0 %4262, %v4089
    %v4264 = vpop.permute.xlu0 %4263
    %v4266 = vmul.f32 %v4204, %v3994
    %v4267 = vmul.f32 %v4208, %v3995
    %v4268 = vmul.f32 %v4212, %v3996
    %v4269 = vmul.f32 %v4216, %v3997
    %v4270 = vmul.f32 %v4220, %v3998
    %v4271 = vmul.f32 %v4224, %v3999
    %v4272 = vmul.f32 %v4228, %v4000
    %v4273 = vmul.f32 %v4232, %v4001
    %v4274 = vmul.f32 %v4236, %v4002
    %v4275 = vmul.f32 %v4240, %v4003
    %v4276 = vmul.f32 %v4244, %v4004
    %v4277 = vmul.f32 %v4248, %v4005
    %v4278 = vmul.f32 %v4252, %v4006
    %v4279 = vmul.f32 %v4256, %v4007
    %v4280 = vmul.f32 %v4260, %v4008
    %v4281 = vmul.f32 %v4264, %v4009
    %v4282 = vadd.f32 %v3658, %v4266
    %v4283 = vadd.f32 %v3659, %v4267
    %v4284 = vadd.f32 %v3660, %v4268
    %v4285 = vadd.f32 %v3661, %v4269
    %v4286 = vadd.f32 %v3662, %v4270
    %v4287 = vadd.f32 %v3663, %v4271
    %v4288 = vadd.f32 %v3664, %v4272
    %v4289 = vadd.f32 %v3665, %v4273
    %v4290 = vadd.f32 %v3666, %v4274
    %v4291 = vadd.f32 %v3667, %v4275
    %v4292 = vadd.f32 %v3668, %v4276
    %v4293 = vadd.f32 %v3669, %v4277
    %v4294 = vadd.f32 %v3670, %v4278
    %v4295 = vadd.f32 %v3671, %v4279
    %v4296 = vadd.f32 %v3672, %v4280
    %v4297 = vadd.f32 %v3673, %v4281
    %4298 = vset.pattern.permute.xlu0 2
    %4299 = vperm.xlu0 %4298, %v4074
    %v4300 = vpop.permute.xlu0 %4299
    %4302 = vset.pattern.permute.xlu0 2
    %4303 = vperm.xlu0 %4302, %v4075
    %v4304 = vpop.permute.xlu0 %4303
    %4306 = vset.pattern.permute.xlu0 2
    %4307 = vperm.xlu0 %4306, %v4076
    %v4308 = vpop.permute.xlu0 %4307
    %4310 = vset.pattern.permute.xlu0 2
    %4311 = vperm.xlu0 %4310, %v4077
    %v4312 = vpop.permute.xlu0 %4311
    %4314 = vset.pattern.permute.xlu0 2
    %4315 = vperm.xlu0 %4314, %v4078
    %v4316 = vpop.permute.xlu0 %4315
    %4318 = vset.pattern.permute.xlu0 2
    %4319 = vperm.xlu0 %4318, %v4079
    %v4320 = vpop.permute.xlu0 %4319
    %4322 = vset.pattern.permute.xlu0 2
    %4323 = vperm.xlu0 %4322, %v4080
    %v4324 = vpop.permute.xlu0 %4323
    %4326 = vset.pattern.permute.xlu0 2
    %4327 = vperm.xlu0 %4326, %v4081
    %v4328 = vpop.permute.xlu0 %4327
    %4330 = vset.pattern.permute.xlu0 2
    %4331 = vperm.xlu0 %4330, %v4082
    %v4332 = vpop.permute.xlu0 %4331
    %4334 = vset.pattern.permute.xlu0 2
    %4335 = vperm.xlu0 %4334, %v4083
    %v4336 = vpop.permute.xlu0 %4335
    %4338 = vset.pattern.permute.xlu0 2
    %4339 = vperm.xlu0 %4338, %v4084
    %v4340 = vpop.permute.xlu0 %4339
    %4342 = vset.pattern.permute.xlu0 2
    %4343 = vperm.xlu0 %4342, %v4085
    %v4344 = vpop.permute.xlu0 %4343
    %4346 = vset.pattern.permute.xlu0 2
    %4347 = vperm.xlu0 %4346, %v4086
    %v4348 = vpop.permute.xlu0 %4347
    %4350 = vset.pattern.permute.xlu0 2
    %4351 = vperm.xlu0 %4350, %v4087
    %v4352 = vpop.permute.xlu0 %4351
    %4354 = vset.pattern.permute.xlu0 2
    %4355 = vperm.xlu0 %4354, %v4088
    %v4356 = vpop.permute.xlu0 %4355
    %4358 = vset.pattern.permute.xlu0 2
    %4359 = vperm.xlu0 %4358, %v4089
    %v4360 = vpop.permute.xlu0 %4359
    %v4362 = vmul.f32 %v4300, %v3994
    %v4363 = vmul.f32 %v4304, %v3995
    %v4364 = vmul.f32 %v4308, %v3996
    %v4365 = vmul.f32 %v4312, %v3997
    %v4366 = vmul.f32 %v4316, %v3998
    %v4367 = vmul.f32 %v4320, %v3999
    %v4368 = vmul.f32 %v4324, %v4000
    %v4369 = vmul.f32 %v4328, %v4001
    %v4370 = vmul.f32 %v4332, %v4002
    %v4371 = vmul.f32 %v4336, %v4003
    %v4372 = vmul.f32 %v4340, %v4004
    %v4373 = vmul.f32 %v4344, %v4005
    %v4374 = vmul.f32 %v4348, %v4006
    %v4375 = vmul.f32 %v4352, %v4007
    %v4376 = vmul.f32 %v4356, %v4008
    %v4377 = vmul.f32 %v4360, %v4009
    %v4378 = vadd.f32 %v3754, %v4362
    %v4379 = vadd.f32 %v3755, %v4363
    %v4380 = vadd.f32 %v3756, %v4364
    %v4381 = vadd.f32 %v3757, %v4365
    %v4382 = vadd.f32 %v3758, %v4366
    %v4383 = vadd.f32 %v3759, %v4367
    %v4384 = vadd.f32 %v3760, %v4368
    %v4385 = vadd.f32 %v3761, %v4369
    %v4386 = vadd.f32 %v3762, %v4370
    %v4387 = vadd.f32 %v3763, %v4371
    %v4388 = vadd.f32 %v3764, %v4372
    %v4389 = vadd.f32 %v3765, %v4373
    %v4390 = vadd.f32 %v3766, %v4374
    %v4391 = vadd.f32 %v3767, %v4375
    %v4392 = vadd.f32 %v3768, %v4376
    %v4393 = vadd.f32 %v3769, %v4377
    %4394 = vset.pattern.permute.xlu0 3
    %4395 = vperm.xlu0 %4394, %v4074
    %v4396 = vpop.permute.xlu0 %4395
    %4398 = vset.pattern.permute.xlu0 3
    %4399 = vperm.xlu0 %4398, %v4075
    %v4400 = vpop.permute.xlu0 %4399
    %4402 = vset.pattern.permute.xlu0 3
    %4403 = vperm.xlu0 %4402, %v4076
    %v4404 = vpop.permute.xlu0 %4403
    %4406 = vset.pattern.permute.xlu0 3
    %4407 = vperm.xlu0 %4406, %v4077
    %v4408 = vpop.permute.xlu0 %4407
    %4410 = vset.pattern.permute.xlu0 3
    %4411 = vperm.xlu0 %4410, %v4078
    %v4412 = vpop.permute.xlu0 %4411
    %4414 = vset.pattern.permute.xlu0 3
    %4415 = vperm.xlu0 %4414, %v4079
    %v4416 = vpop.permute.xlu0 %4415
    %4418 = vset.pattern.permute.xlu0 3
    %4419 = vperm.xlu0 %4418, %v4080
    %v4420 = vpop.permute.xlu0 %4419
    %4422 = vset.pattern.permute.xlu0 3
    %4423 = vperm.xlu0 %4422, %v4081
    %v4424 = vpop.permute.xlu0 %4423
    %4426 = vset.pattern.permute.xlu0 3
    %4427 = vperm.xlu0 %4426, %v4082
    %v4428 = vpop.permute.xlu0 %4427
    %4430 = vset.pattern.permute.xlu0 3
    %4431 = vperm.xlu0 %4430, %v4083
    %v4432 = vpop.permute.xlu0 %4431
    %4434 = vset.pattern.permute.xlu0 3
    %4435 = vperm.xlu0 %4434, %v4084
    %v4436 = vpop.permute.xlu0 %4435
    %4438 = vset.pattern.permute.xlu0 3
    %4439 = vperm.xlu0 %4438, %v4085
    %v4440 = vpop.permute.xlu0 %4439
    %4442 = vset.pattern.permute.xlu0 3
    %4443 = vperm.xlu0 %4442, %v4086
    %v4444 = vpop.permute.xlu0 %4443
    %4446 = vset.pattern.permute.xlu0 3
    %4447 = vperm.xlu0 %4446, %v4087
    %v4448 = vpop.permute.xlu0 %4447
    %4450 = vset.pattern.permute.xlu0 3
    %4451 = vperm.xlu0 %4450, %v4088
    %v4452 = vpop.permute.xlu0 %4451
    %4454 = vset.pattern.permute.xlu0 3
    %4455 = vperm.xlu0 %4454, %v4089
    %v4456 = vpop.permute.xlu0 %4455
    %v4458 = vmul.f32 %v4396, %v3994
    %v4459 = vmul.f32 %v4400, %v3995
    %v4460 = vmul.f32 %v4404, %v3996
    %v4461 = vmul.f32 %v4408, %v3997
    %v4462 = vmul.f32 %v4412, %v3998
    %v4463 = vmul.f32 %v4416, %v3999
    %v4464 = vmul.f32 %v4420, %v4000
    %v4465 = vmul.f32 %v4424, %v4001
    %v4466 = vmul.f32 %v4428, %v4002
    %v4467 = vmul.f32 %v4432, %v4003
    %v4468 = vmul.f32 %v4436, %v4004
    %v4469 = vmul.f32 %v4440, %v4005
    %v4470 = vmul.f32 %v4444, %v4006
    %v4471 = vmul.f32 %v4448, %v4007
    %v4472 = vmul.f32 %v4452, %v4008
    %v4473 = vmul.f32 %v4456, %v4009
    %v4474 = vadd.f32 %v3850, %v4458
    %v4475 = vadd.f32 %v3851, %v4459
    %v4476 = vadd.f32 %v3852, %v4460
    %v4477 = vadd.f32 %v3853, %v4461
    %v4478 = vadd.f32 %v3854, %v4462
    %v4479 = vadd.f32 %v3855, %v4463
    %v4480 = vadd.f32 %v3856, %v4464
    %v4481 = vadd.f32 %v3857, %v4465
    %v4482 = vadd.f32 %v3858, %v4466
    %v4483 = vadd.f32 %v3859, %v4467
    %v4484 = vadd.f32 %v3860, %v4468
    %v4485 = vadd.f32 %v3861, %v4469
    %v4486 = vadd.f32 %v3862, %v4470
    %v4487 = vadd.f32 %v3863, %v4471
    %v4488 = vadd.f32 %v3864, %v4472
    %v4489 = vadd.f32 %v3865, %v4473
    %4490 = vset.pattern.permute.xlu0 7
    %4491 = vperm.xlu0 %4490, %v24
    %v4492 = vpop.permute.xlu0 %4491
    %4493 = vset.pattern.permute.xlu0 7
    %4494 = vperm.xlu0 %4493, %v25
    %v4495 = vpop.permute.xlu0 %4494
    %4496 = vset.pattern.permute.xlu0 7
    %4497 = vperm.xlu0 %4496, %v26
    %v4498 = vpop.permute.xlu0 %4497
    %4499 = vset.pattern.permute.xlu0 7
    %4500 = vperm.xlu0 %4499, %v27
    %v4501 = vpop.permute.xlu0 %4500
    %4502 = vset.pattern.permute.xlu0 7
    %4503 = vperm.xlu0 %4502, %v28
    %v4504 = vpop.permute.xlu0 %4503
    %4505 = vset.pattern.permute.xlu0 7
    %4506 = vperm.xlu0 %4505, %v29
    %v4507 = vpop.permute.xlu0 %4506
    %4508 = vset.pattern.permute.xlu0 7
    %4509 = vperm.xlu0 %4508, %v30
    %v4510 = vpop.permute.xlu0 %4509
    %4511 = vset.pattern.permute.xlu0 7
    %4512 = vperm.xlu0 %4511, %v31
    %v4513 = vpop.permute.xlu0 %4512
    %4514 = vset.pattern.permute.xlu0 7
    %4515 = vperm.xlu0 %4514, %v32
    %v4516 = vpop.permute.xlu0 %4515
    %4517 = vset.pattern.permute.xlu0 7
    %4518 = vperm.xlu0 %4517, %v33
    %v4519 = vpop.permute.xlu0 %4518
    %4520 = vset.pattern.permute.xlu0 7
    %4521 = vperm.xlu0 %4520, %v34
    %v4522 = vpop.permute.xlu0 %4521
    %4523 = vset.pattern.permute.xlu0 7
    %4524 = vperm.xlu0 %4523, %v35
    %v4525 = vpop.permute.xlu0 %4524
    %4526 = vset.pattern.permute.xlu0 7
    %4527 = vperm.xlu0 %4526, %v36
    %v4528 = vpop.permute.xlu0 %4527
    %4529 = vset.pattern.permute.xlu0 7
    %4530 = vperm.xlu0 %4529, %v37
    %v4531 = vpop.permute.xlu0 %4530
    %4532 = vset.pattern.permute.xlu0 7
    %4533 = vperm.xlu0 %4532, %v38
    %v4534 = vpop.permute.xlu0 %4533
    %4535 = vset.pattern.permute.xlu0 7
    %4536 = vperm.xlu0 %4535, %v39
    %v4537 = vpop.permute.xlu0 %4536
    %vm4538 = vcmp.eq.s32.totalorder %v105, %v4492
    %vm4539 = vcmp.eq.s32.totalorder %v105, %v4495
    %vm4540 = vcmp.eq.s32.totalorder %v105, %v4498
    %vm4541 = vcmp.eq.s32.totalorder %v105, %v4501
    %vm4542 = vcmp.eq.s32.totalorder %v105, %v4504
    %vm4543 = vcmp.eq.s32.totalorder %v105, %v4507
    %vm4544 = vcmp.eq.s32.totalorder %v105, %v4510
    %vm4545 = vcmp.eq.s32.totalorder %v105, %v4513
    %vm4546 = vcmp.eq.s32.totalorder %v105, %v4516
    %vm4547 = vcmp.eq.s32.totalorder %v105, %v4519
    %vm4548 = vcmp.eq.s32.totalorder %v105, %v4522
    %vm4549 = vcmp.eq.s32.totalorder %v105, %v4525
    %vm4550 = vcmp.eq.s32.totalorder %v105, %v4528
    %vm4551 = vcmp.eq.s32.totalorder %v105, %v4531
    %vm4552 = vcmp.eq.s32.totalorder %v105, %v4534
    %vm4553 = vcmp.eq.s32.totalorder %v105, %v4537
    %4554 = vset.pattern.permute.xlu0 7
    %4555 = vperm.xlu0 %4554, %v40
    %v4556 = vpop.permute.xlu0 %4555
    %4558 = vset.pattern.permute.xlu0 7
    %4559 = vperm.xlu0 %4558, %v41
    %v4560 = vpop.permute.xlu0 %4559
    %4562 = vset.pattern.permute.xlu0 7
    %4563 = vperm.xlu0 %4562, %v42
    %v4564 = vpop.permute.xlu0 %4563
    %4566 = vset.pattern.permute.xlu0 7
    %4567 = vperm.xlu0 %4566, %v43
    %v4568 = vpop.permute.xlu0 %4567
    %4570 = vset.pattern.permute.xlu0 7
    %4571 = vperm.xlu0 %4570, %v44
    %v4572 = vpop.permute.xlu0 %4571
    %4574 = vset.pattern.permute.xlu0 7
    %4575 = vperm.xlu0 %4574, %v45
    %v4576 = vpop.permute.xlu0 %4575
    %4578 = vset.pattern.permute.xlu0 7
    %4579 = vperm.xlu0 %4578, %v46
    %v4580 = vpop.permute.xlu0 %4579
    %4582 = vset.pattern.permute.xlu0 7
    %4583 = vperm.xlu0 %4582, %v47
    %v4584 = vpop.permute.xlu0 %4583
    %4586 = vset.pattern.permute.xlu0 7
    %4587 = vperm.xlu0 %4586, %v48
    %v4588 = vpop.permute.xlu0 %4587
    %4590 = vset.pattern.permute.xlu0 7
    %4591 = vperm.xlu0 %4590, %v49
    %v4592 = vpop.permute.xlu0 %4591
    %4594 = vset.pattern.permute.xlu0 7
    %4595 = vperm.xlu0 %4594, %v50
    %v4596 = vpop.permute.xlu0 %4595
    %4598 = vset.pattern.permute.xlu0 7
    %4599 = vperm.xlu0 %4598, %v51
    %v4600 = vpop.permute.xlu0 %4599
    %4602 = vset.pattern.permute.xlu0 7
    %4603 = vperm.xlu0 %4602, %v52
    %v4604 = vpop.permute.xlu0 %4603
    %4606 = vset.pattern.permute.xlu0 7
    %4607 = vperm.xlu0 %4606, %v53
    %v4608 = vpop.permute.xlu0 %4607
    %4610 = vset.pattern.permute.xlu0 7
    %4611 = vperm.xlu0 %4610, %v54
    %v4612 = vpop.permute.xlu0 %4611
    %4614 = vset.pattern.permute.xlu0 7
    %4615 = vperm.xlu0 %4614, %v55
    %v4616 = vpop.permute.xlu0 %4615
    %v4618 = vsel %vm4538, %v4556, 0.0
    %v4619 = vsel %vm4539, %v4560, 0.0
    %v4620 = vsel %vm4540, %v4564, 0.0
    %v4621 = vsel %vm4541, %v4568, 0.0
    %v4622 = vsel %vm4542, %v4572, 0.0
    %v4623 = vsel %vm4543, %v4576, 0.0
    %v4624 = vsel %vm4544, %v4580, 0.0
    %v4625 = vsel %vm4545, %v4584, 0.0
    %v4626 = vsel %vm4546, %v4588, 0.0
    %v4627 = vsel %vm4547, %v4592, 0.0
    %v4628 = vsel %vm4548, %v4596, 0.0
    %v4629 = vsel %vm4549, %v4600, 0.0
    %v4630 = vsel %vm4550, %v4604, 0.0
    %v4631 = vsel %vm4551, %v4608, 0.0
    %v4632 = vsel %vm4552, %v4612, 0.0
    %v4633 = vsel %vm4553, %v4616, 0.0
    %vm4634 = vcmp.le.s32.totalorder %v56, 7
    %vm4635 = vcmp.le.s32.totalorder %v57, 7
    %vm4636 = vcmp.le.s32.totalorder %v58, 7
    %vm4637 = vcmp.le.s32.totalorder %v59, 7
    %vm4638 = vcmp.le.s32.totalorder %v60, 7
    %vm4639 = vcmp.le.s32.totalorder %v61, 7
    %vm4640 = vcmp.le.s32.totalorder %v62, 7
    %vm4641 = vcmp.le.s32.totalorder %v63, 7
    %vm4642 = vcmp.le.s32.totalorder %v64, 7
    %vm4643 = vcmp.le.s32.totalorder %v65, 7
    %vm4644 = vcmp.le.s32.totalorder %v66, 7
    %vm4645 = vcmp.le.s32.totalorder %v67, 7
    %vm4646 = vcmp.le.s32.totalorder %v68, 7
    %vm4647 = vcmp.le.s32.totalorder %v69, 7
    %vm4648 = vcmp.le.s32.totalorder %v70, 7
    %vm4649 = vcmp.le.s32.totalorder %v71, 7
    %vm4650 = vcmp.gt.s32.totalorder %v72, 7
    %vm4651 = vcmp.gt.s32.totalorder %v73, 7
    %vm4652 = vcmp.gt.s32.totalorder %v74, 7
    %vm4653 = vcmp.gt.s32.totalorder %v75, 7
    %vm4654 = vcmp.gt.s32.totalorder %v76, 7
    %vm4655 = vcmp.gt.s32.totalorder %v77, 7
    %vm4656 = vcmp.gt.s32.totalorder %v78, 7
    %vm4657 = vcmp.gt.s32.totalorder %v79, 7
    %vm4658 = vcmp.gt.s32.totalorder %v80, 7
    %vm4659 = vcmp.gt.s32.totalorder %v81, 7
    %vm4660 = vcmp.gt.s32.totalorder %v82, 7
    %vm4661 = vcmp.gt.s32.totalorder %v83, 7
    %vm4662 = vcmp.gt.s32.totalorder %v84, 7
    %vm4663 = vcmp.gt.s32.totalorder %v85, 7
    %vm4664 = vcmp.gt.s32.totalorder %v86, 7
    %vm4665 = vcmp.gt.s32.totalorder %v87, 7
    %vm4666 = vmand %vm4634, %vm4650
    %vm4667 = vmand %vm4635, %vm4651
    %vm4668 = vmand %vm4636, %vm4652
    %vm4669 = vmand %vm4637, %vm4653
    %vm4670 = vmand %vm4638, %vm4654
    %vm4671 = vmand %vm4639, %vm4655
    %vm4672 = vmand %vm4640, %vm4656
    %vm4673 = vmand %vm4641, %vm4657
    %vm4674 = vmand %vm4642, %vm4658
    %vm4675 = vmand %vm4643, %vm4659
    %vm4676 = vmand %vm4644, %vm4660
    %vm4677 = vmand %vm4645, %vm4661
    %vm4678 = vmand %vm4646, %vm4662
    %vm4679 = vmand %vm4647, %vm4663
    %vm4680 = vmand %vm4648, %vm4664
    %vm4681 = vmand %vm4649, %vm4665
    %v4682 = vsel %vm4666, 1, 0
    %v4683 = vsel %vm4667, 1, 0
    %v4684 = vsel %vm4668, 1, 0
    %v4685 = vsel %vm4669, 1, 0
    %v4686 = vsel %vm4670, 1, 0
    %v4687 = vsel %vm4671, 1, 0
    %v4688 = vsel %vm4672, 1, 0
    %v4689 = vsel %vm4673, 1, 0
    %v4690 = vsel %vm4674, 1, 0
    %v4691 = vsel %vm4675, 1, 0
    %v4692 = vsel %vm4676, 1, 0
    %v4693 = vsel %vm4677, 1, 0
    %v4694 = vsel %vm4678, 1, 0
    %v4695 = vsel %vm4679, 1, 0
    %v4696 = vsel %vm4680, 1, 0
    %v4697 = vsel %vm4681, 1, 0
    %v4698 = vcvt.s32.f32 %v4682
    %v4699 = vcvt.s32.f32 %v4683
    %v4700 = vcvt.s32.f32 %v4684
    %v4701 = vcvt.s32.f32 %v4685
    %v4702 = vcvt.s32.f32 %v4686
    %v4703 = vcvt.s32.f32 %v4687
    %v4704 = vcvt.s32.f32 %v4688
    %v4705 = vcvt.s32.f32 %v4689
    %v4706 = vcvt.s32.f32 %v4690
    %v4707 = vcvt.s32.f32 %v4691
    %v4708 = vcvt.s32.f32 %v4692
    %v4709 = vcvt.s32.f32 %v4693
    %v4710 = vcvt.s32.f32 %v4694
    %v4711 = vcvt.s32.f32 %v4695
    %v4712 = vcvt.s32.f32 %v4696
    %v4713 = vcvt.s32.f32 %v4697
    %4715 = vset.pattern.permute.xlu0 0
    %4716 = vperm.xlu0 %4715, %v4698
    %v4717 = vpop.permute.xlu0 %4716
    %4720 = vset.pattern.permute.xlu0 0
    %4721 = vperm.xlu0 %4720, %v4699
    %v4722 = vpop.permute.xlu0 %4721
    %4725 = vset.pattern.permute.xlu0 0
    %4726 = vperm.xlu0 %4725, %v4700
    %v4727 = vpop.permute.xlu0 %4726
    %4730 = vset.pattern.permute.xlu0 0
    %4731 = vperm.xlu0 %4730, %v4701
    %v4732 = vpop.permute.xlu0 %4731
    %4735 = vset.pattern.permute.xlu0 0
    %4736 = vperm.xlu0 %4735, %v4702
    %v4737 = vpop.permute.xlu0 %4736
    %4740 = vset.pattern.permute.xlu0 0
    %4741 = vperm.xlu0 %4740, %v4703
    %v4742 = vpop.permute.xlu0 %4741
    %4745 = vset.pattern.permute.xlu0 0
    %4746 = vperm.xlu0 %4745, %v4704
    %v4747 = vpop.permute.xlu0 %4746
    %4750 = vset.pattern.permute.xlu0 0
    %4751 = vperm.xlu0 %4750, %v4705
    %v4752 = vpop.permute.xlu0 %4751
    %4755 = vset.pattern.permute.xlu0 0
    %4756 = vperm.xlu0 %4755, %v4706
    %v4757 = vpop.permute.xlu0 %4756
    %4760 = vset.pattern.permute.xlu0 0
    %4761 = vperm.xlu0 %4760, %v4707
    %v4762 = vpop.permute.xlu0 %4761
    %4765 = vset.pattern.permute.xlu0 0
    %4766 = vperm.xlu0 %4765, %v4708
    %v4767 = vpop.permute.xlu0 %4766
    %4770 = vset.pattern.permute.xlu0 0
    %4771 = vperm.xlu0 %4770, %v4709
    %v4772 = vpop.permute.xlu0 %4771
    %4775 = vset.pattern.permute.xlu0 0
    %4776 = vperm.xlu0 %4775, %v4710
    %v4777 = vpop.permute.xlu0 %4776
    %4780 = vset.pattern.permute.xlu0 0
    %4781 = vperm.xlu0 %4780, %v4711
    %v4782 = vpop.permute.xlu0 %4781
    %4785 = vset.pattern.permute.xlu0 0
    %4786 = vperm.xlu0 %4785, %v4712
    %v4787 = vpop.permute.xlu0 %4786
    %4790 = vset.pattern.permute.xlu0 0
    %4791 = vperm.xlu0 %4790, %v4713
    %v4792 = vpop.permute.xlu0 %4791
    %v4794 = vmul.f32 %v4717, %v4618
    %v4795 = vmul.f32 %v4722, %v4619
    %v4796 = vmul.f32 %v4727, %v4620
    %v4797 = vmul.f32 %v4732, %v4621
    %v4798 = vmul.f32 %v4737, %v4622
    %v4799 = vmul.f32 %v4742, %v4623
    %v4800 = vmul.f32 %v4747, %v4624
    %v4801 = vmul.f32 %v4752, %v4625
    %v4802 = vmul.f32 %v4757, %v4626
    %v4803 = vmul.f32 %v4762, %v4627
    %v4804 = vmul.f32 %v4767, %v4628
    %v4805 = vmul.f32 %v4772, %v4629
    %v4806 = vmul.f32 %v4777, %v4630
    %v4807 = vmul.f32 %v4782, %v4631
    %v4808 = vmul.f32 %v4787, %v4632
    %v4809 = vmul.f32 %v4792, %v4633
    %v4810 = vadd.f32 %v4186, %v4794
    %v4811 = vadd.f32 %v4187, %v4795
    %v4812 = vadd.f32 %v4188, %v4796
    %v4813 = vadd.f32 %v4189, %v4797
    %v4814 = vadd.f32 %v4190, %v4798
    %v4815 = vadd.f32 %v4191, %v4799
    %v4816 = vadd.f32 %v4192, %v4800
    %v4817 = vadd.f32 %v4193, %v4801
    %v4818 = vadd.f32 %v4194, %v4802
    %v4819 = vadd.f32 %v4195, %v4803
    %v4820 = vadd.f32 %v4196, %v4804
    %v4821 = vadd.f32 %v4197, %v4805
    %v4822 = vadd.f32 %v4198, %v4806
    %v4823 = vadd.f32 %v4199, %v4807
    %v4824 = vadd.f32 %v4200, %v4808
    %v4825 = vadd.f32 %v4201, %v4809
    %4826 = vset.pattern.permute.xlu0 1
    %4827 = vperm.xlu0 %4826, %v4698
    %v4828 = vpop.permute.xlu0 %4827
    %4830 = vset.pattern.permute.xlu0 1
    %4831 = vperm.xlu0 %4830, %v4699
    %v4832 = vpop.permute.xlu0 %4831
    %4834 = vset.pattern.permute.xlu0 1
    %4835 = vperm.xlu0 %4834, %v4700
    %v4836 = vpop.permute.xlu0 %4835
    %4838 = vset.pattern.permute.xlu0 1
    %4839 = vperm.xlu0 %4838, %v4701
    %v4840 = vpop.permute.xlu0 %4839
    %4842 = vset.pattern.permute.xlu0 1
    %4843 = vperm.xlu0 %4842, %v4702
    %v4844 = vpop.permute.xlu0 %4843
    %4846 = vset.pattern.permute.xlu0 1
    %4847 = vperm.xlu0 %4846, %v4703
    %v4848 = vpop.permute.xlu0 %4847
    %4850 = vset.pattern.permute.xlu0 1
    %4851 = vperm.xlu0 %4850, %v4704
    %v4852 = vpop.permute.xlu0 %4851
    %4854 = vset.pattern.permute.xlu0 1
    %4855 = vperm.xlu0 %4854, %v4705
    %v4856 = vpop.permute.xlu0 %4855
    %4858 = vset.pattern.permute.xlu0 1
    %4859 = vperm.xlu0 %4858, %v4706
    %v4860 = vpop.permute.xlu0 %4859
    %4862 = vset.pattern.permute.xlu0 1
    %4863 = vperm.xlu0 %4862, %v4707
    %v4864 = vpop.permute.xlu0 %4863
    %4866 = vset.pattern.permute.xlu0 1
    %4867 = vperm.xlu0 %4866, %v4708
    %v4868 = vpop.permute.xlu0 %4867
    %4870 = vset.pattern.permute.xlu0 1
    %4871 = vperm.xlu0 %4870, %v4709
    %v4872 = vpop.permute.xlu0 %4871
    %4874 = vset.pattern.permute.xlu0 1
    %4875 = vperm.xlu0 %4874, %v4710
    %v4876 = vpop.permute.xlu0 %4875
    %4878 = vset.pattern.permute.xlu0 1
    %4879 = vperm.xlu0 %4878, %v4711
    %v4880 = vpop.permute.xlu0 %4879
    %4882 = vset.pattern.permute.xlu0 1
    %4883 = vperm.xlu0 %4882, %v4712
    %v4884 = vpop.permute.xlu0 %4883
    %4886 = vset.pattern.permute.xlu0 1
    %4887 = vperm.xlu0 %4886, %v4713
    %v4888 = vpop.permute.xlu0 %4887
    %v4890 = vmul.f32 %v4828, %v4618
    %v4891 = vmul.f32 %v4832, %v4619
    %v4892 = vmul.f32 %v4836, %v4620
    %v4893 = vmul.f32 %v4840, %v4621
    %v4894 = vmul.f32 %v4844, %v4622
    %v4895 = vmul.f32 %v4848, %v4623
    %v4896 = vmul.f32 %v4852, %v4624
    %v4897 = vmul.f32 %v4856, %v4625
    %v4898 = vmul.f32 %v4860, %v4626
    %v4899 = vmul.f32 %v4864, %v4627
    %v4900 = vmul.f32 %v4868, %v4628
    %v4901 = vmul.f32 %v4872, %v4629
    %v4902 = vmul.f32 %v4876, %v4630
    %v4903 = vmul.f32 %v4880, %v4631
    %v4904 = vmul.f32 %v4884, %v4632
    %v4905 = vmul.f32 %v4888, %v4633
    %v4906 = vadd.f32 %v4282, %v4890
    %v4907 = vadd.f32 %v4283, %v4891
    %v4908 = vadd.f32 %v4284, %v4892
    %v4909 = vadd.f32 %v4285, %v4893
    %v4910 = vadd.f32 %v4286, %v4894
    %v4911 = vadd.f32 %v4287, %v4895
    %v4912 = vadd.f32 %v4288, %v4896
    %v4913 = vadd.f32 %v4289, %v4897
    %v4914 = vadd.f32 %v4290, %v4898
    %v4915 = vadd.f32 %v4291, %v4899
    %v4916 = vadd.f32 %v4292, %v4900
    %v4917 = vadd.f32 %v4293, %v4901
    %v4918 = vadd.f32 %v4294, %v4902
    %v4919 = vadd.f32 %v4295, %v4903
    %v4920 = vadd.f32 %v4296, %v4904
    %v4921 = vadd.f32 %v4297, %v4905
    %4922 = vset.pattern.permute.xlu0 2
    %4923 = vperm.xlu0 %4922, %v4698
    %v4924 = vpop.permute.xlu0 %4923
    %4926 = vset.pattern.permute.xlu0 2
    %4927 = vperm.xlu0 %4926, %v4699
    %v4928 = vpop.permute.xlu0 %4927
    %4930 = vset.pattern.permute.xlu0 2
    %4931 = vperm.xlu0 %4930, %v4700
    %v4932 = vpop.permute.xlu0 %4931
    %4934 = vset.pattern.permute.xlu0 2
    %4935 = vperm.xlu0 %4934, %v4701
    %v4936 = vpop.permute.xlu0 %4935
    %4938 = vset.pattern.permute.xlu0 2
    %4939 = vperm.xlu0 %4938, %v4702
    %v4940 = vpop.permute.xlu0 %4939
    %4942 = vset.pattern.permute.xlu0 2
    %4943 = vperm.xlu0 %4942, %v4703
    %v4944 = vpop.permute.xlu0 %4943
    %4946 = vset.pattern.permute.xlu0 2
    %4947 = vperm.xlu0 %4946, %v4704
    %v4948 = vpop.permute.xlu0 %4947
    %4950 = vset.pattern.permute.xlu0 2
    %4951 = vperm.xlu0 %4950, %v4705
    %v4952 = vpop.permute.xlu0 %4951
    %4954 = vset.pattern.permute.xlu0 2
    %4955 = vperm.xlu0 %4954, %v4706
    %v4956 = vpop.permute.xlu0 %4955
    %4958 = vset.pattern.permute.xlu0 2
    %4959 = vperm.xlu0 %4958, %v4707
    %v4960 = vpop.permute.xlu0 %4959
    %4962 = vset.pattern.permute.xlu0 2
    %4963 = vperm.xlu0 %4962, %v4708
    %v4964 = vpop.permute.xlu0 %4963
    %4966 = vset.pattern.permute.xlu0 2
    %4967 = vperm.xlu0 %4966, %v4709
    %v4968 = vpop.permute.xlu0 %4967
    %4970 = vset.pattern.permute.xlu0 2
    %4971 = vperm.xlu0 %4970, %v4710
    %v4972 = vpop.permute.xlu0 %4971
    %4974 = vset.pattern.permute.xlu0 2
    %4975 = vperm.xlu0 %4974, %v4711
    %v4976 = vpop.permute.xlu0 %4975
    %4978 = vset.pattern.permute.xlu0 2
    %4979 = vperm.xlu0 %4978, %v4712
    %v4980 = vpop.permute.xlu0 %4979
    %4982 = vset.pattern.permute.xlu0 2
    %4983 = vperm.xlu0 %4982, %v4713
    %v4984 = vpop.permute.xlu0 %4983
    %v4986 = vmul.f32 %v4924, %v4618
    %v4987 = vmul.f32 %v4928, %v4619
    %v4988 = vmul.f32 %v4932, %v4620
    %v4989 = vmul.f32 %v4936, %v4621
    %v4990 = vmul.f32 %v4940, %v4622
    %v4991 = vmul.f32 %v4944, %v4623
    %v4992 = vmul.f32 %v4948, %v4624
    %v4993 = vmul.f32 %v4952, %v4625
    %v4994 = vmul.f32 %v4956, %v4626
    %v4995 = vmul.f32 %v4960, %v4627
    %v4996 = vmul.f32 %v4964, %v4628
    %v4997 = vmul.f32 %v4968, %v4629
    %v4998 = vmul.f32 %v4972, %v4630
    %v4999 = vmul.f32 %v4976, %v4631
    %v5000 = vmul.f32 %v4980, %v4632
    %v5001 = vmul.f32 %v4984, %v4633
    %v5002 = vadd.f32 %v4378, %v4986
    %v5003 = vadd.f32 %v4379, %v4987
    %v5004 = vadd.f32 %v4380, %v4988
    %v5005 = vadd.f32 %v4381, %v4989
    %v5006 = vadd.f32 %v4382, %v4990
    %v5007 = vadd.f32 %v4383, %v4991
    %v5008 = vadd.f32 %v4384, %v4992
    %v5009 = vadd.f32 %v4385, %v4993
    %v5010 = vadd.f32 %v4386, %v4994
    %v5011 = vadd.f32 %v4387, %v4995
    %v5012 = vadd.f32 %v4388, %v4996
    %v5013 = vadd.f32 %v4389, %v4997
    %v5014 = vadd.f32 %v4390, %v4998
    %v5015 = vadd.f32 %v4391, %v4999
    %v5016 = vadd.f32 %v4392, %v5000
    %v5017 = vadd.f32 %v4393, %v5001
    %5018 = vset.pattern.permute.xlu0 3
    %5019 = vperm.xlu0 %5018, %v4698
    %v5020 = vpop.permute.xlu0 %5019
    %5022 = vset.pattern.permute.xlu0 3
    %5023 = vperm.xlu0 %5022, %v4699
    %v5024 = vpop.permute.xlu0 %5023
    %5026 = vset.pattern.permute.xlu0 3
    %5027 = vperm.xlu0 %5026, %v4700
    %v5028 = vpop.permute.xlu0 %5027
    %5030 = vset.pattern.permute.xlu0 3
    %5031 = vperm.xlu0 %5030, %v4701
    %v5032 = vpop.permute.xlu0 %5031
    %5034 = vset.pattern.permute.xlu0 3
    %5035 = vperm.xlu0 %5034, %v4702
    %v5036 = vpop.permute.xlu0 %5035
    %5038 = vset.pattern.permute.xlu0 3
    %5039 = vperm.xlu0 %5038, %v4703
    %v5040 = vpop.permute.xlu0 %5039
    %5042 = vset.pattern.permute.xlu0 3
    %5043 = vperm.xlu0 %5042, %v4704
    %v5044 = vpop.permute.xlu0 %5043
    %5046 = vset.pattern.permute.xlu0 3
    %5047 = vperm.xlu0 %5046, %v4705
    %v5048 = vpop.permute.xlu0 %5047
    %5050 = vset.pattern.permute.xlu0 3
    %5051 = vperm.xlu0 %5050, %v4706
    %v5052 = vpop.permute.xlu0 %5051
    %5054 = vset.pattern.permute.xlu0 3
    %5055 = vperm.xlu0 %5054, %v4707
    %v5056 = vpop.permute.xlu0 %5055
    %5058 = vset.pattern.permute.xlu0 3
    %5059 = vperm.xlu0 %5058, %v4708
    %v5060 = vpop.permute.xlu0 %5059
    %5062 = vset.pattern.permute.xlu0 3
    %5063 = vperm.xlu0 %5062, %v4709
    %v5064 = vpop.permute.xlu0 %5063
    %5066 = vset.pattern.permute.xlu0 3
    %5067 = vperm.xlu0 %5066, %v4710
    %v5068 = vpop.permute.xlu0 %5067
    %5070 = vset.pattern.permute.xlu0 3
    %5071 = vperm.xlu0 %5070, %v4711
    %v5072 = vpop.permute.xlu0 %5071
    %5074 = vset.pattern.permute.xlu0 3
    %5075 = vperm.xlu0 %5074, %v4712
    %v5076 = vpop.permute.xlu0 %5075
    %5078 = vset.pattern.permute.xlu0 3
    %5079 = vperm.xlu0 %5078, %v4713
    %v5080 = vpop.permute.xlu0 %5079
    %v5082 = vmul.f32 %v5020, %v4618
    %v5083 = vmul.f32 %v5024, %v4619
    %v5084 = vmul.f32 %v5028, %v4620
    %v5085 = vmul.f32 %v5032, %v4621
    %v5086 = vmul.f32 %v5036, %v4622
    %v5087 = vmul.f32 %v5040, %v4623
    %v5088 = vmul.f32 %v5044, %v4624
    %v5089 = vmul.f32 %v5048, %v4625
    %v5090 = vmul.f32 %v5052, %v4626
    %v5091 = vmul.f32 %v5056, %v4627
    %v5092 = vmul.f32 %v5060, %v4628
    %v5093 = vmul.f32 %v5064, %v4629
    %v5094 = vmul.f32 %v5068, %v4630
    %v5095 = vmul.f32 %v5072, %v4631
    %v5096 = vmul.f32 %v5076, %v4632
    %v5097 = vmul.f32 %v5080, %v4633
    %v5098 = vadd.f32 %v4474, %v5082
    %v5099 = vadd.f32 %v4475, %v5083
    %v5100 = vadd.f32 %v4476, %v5084
    %v5101 = vadd.f32 %v4477, %v5085
    %v5102 = vadd.f32 %v4478, %v5086
    %v5103 = vadd.f32 %v4479, %v5087
    %v5104 = vadd.f32 %v4480, %v5088
    %v5105 = vadd.f32 %v4481, %v5089
    %v5106 = vadd.f32 %v4482, %v5090
    %v5107 = vadd.f32 %v4483, %v5091
    %v5108 = vadd.f32 %v4484, %v5092
    %v5109 = vadd.f32 %v4485, %v5093
    %v5110 = vadd.f32 %v4486, %v5094
    %v5111 = vadd.f32 %v4487, %v5095
    %v5112 = vadd.f32 %v4488, %v5096
    %v5113 = vadd.f32 %v4489, %v5097
    %v5114 = vld [vmem:[%s5] sm:$0xff]
    %v5115 = vld [vmem:[%s5 + $0x8] sm:$0xff]
    %v5116 = vld [vmem:[%s5 + $0x10] sm:$0xff]
    %v5117 = vld [vmem:[%s5 + $0x18] sm:$0xff]
    %vm5118 = vcmask 261120
    %v5120 = vsel %vm5118, %v4810, 0
    %v5123 = vsel %vm5118, %v4811, 0
    %v5126 = vsel %vm5118, %v4812, 0
    %v5129 = vsel %vm5118, %v4813, 0
    %v5132 = vsel %vm5118, %v4814, 0
    %v5135 = vsel %vm5118, %v4815, 0
    %v5138 = vsel %vm5118, %v4816, 0
    %v5141 = vsel %vm5118, %v4817, 0
    %v5144 = vsel %vm5118, %v4818, 0
    %v5147 = vsel %vm5118, %v4819, 0
    %v5150 = vsel %vm5118, %v4820, 0
    %v5153 = vsel %vm5118, %v4821, 0
    %v5156 = vsel %vm5118, %v4822, 0
    %v5159 = vsel %vm5118, %v4823, 0
    %v5162 = vsel %vm5118, %v4824, 0
    %v5165 = vsel %vm5118, %v4825, 0
    %v5168 = vsel %vm5118, %v4906, 0
    %v5171 = vsel %vm5118, %v4907, 0
    %v5174 = vsel %vm5118, %v4908, 0
    %v5177 = vsel %vm5118, %v4909, 0
    %v5180 = vsel %vm5118, %v4910, 0
    %v5183 = vsel %vm5118, %v4911, 0
    %v5186 = vsel %vm5118, %v4912, 0
    %v5189 = vsel %vm5118, %v4913, 0
    %v5192 = vsel %vm5118, %v4914, 0
    %v5195 = vsel %vm5118, %v4915, 0
    %v5198 = vsel %vm5118, %v4916, 0
    %v5201 = vsel %vm5118, %v4917, 0
    %v5204 = vsel %vm5118, %v4918, 0
    %v5207 = vsel %vm5118, %v4919, 0
    %v5210 = vsel %vm5118, %v4920, 0
    %v5213 = vsel %vm5118, %v4921, 0
    %v5216 = vsel %vm5118, %v5002, 0
    %v5219 = vsel %vm5118, %v5003, 0
    %v5222 = vsel %vm5118, %v5004, 0
    %v5225 = vsel %vm5118, %v5005, 0
    %v5228 = vsel %vm5118, %v5006, 0
    %v5231 = vsel %vm5118, %v5007, 0
    %v5234 = vsel %vm5118, %v5008, 0
    %v5237 = vsel %vm5118, %v5009, 0
    %v5240 = vsel %vm5118, %v5010, 0
    %v5243 = vsel %vm5118, %v5011, 0
    %v5246 = vsel %vm5118, %v5012, 0
    %v5249 = vsel %vm5118, %v5013, 0
    %v5252 = vsel %vm5118, %v5014, 0
    %v5255 = vsel %vm5118, %v5015, 0
    %v5258 = vsel %vm5118, %v5016, 0
    %v5261 = vsel %vm5118, %v5017, 0
    %v5264 = vsel %vm5118, %v5098, 0
    %v5267 = vsel %vm5118, %v5099, 0
    %v5270 = vsel %vm5118, %v5100, 0
    %v5273 = vsel %vm5118, %v5101, 0
    %v5276 = vsel %vm5118, %v5102, 0
    %v5279 = vsel %vm5118, %v5103, 0
    %v5282 = vsel %vm5118, %v5104, 0
    %v5285 = vsel %vm5118, %v5105, 0
    %v5288 = vsel %vm5118, %v5106, 0
    %v5291 = vsel %vm5118, %v5107, 0
    %v5294 = vsel %vm5118, %v5108, 0
    %v5297 = vsel %vm5118, %v5109, 0
    %v5300 = vsel %vm5118, %v5110, 0
    %v5303 = vsel %vm5118, %v5111, 0
    %v5306 = vsel %vm5118, %v5112, 0
    %v5309 = vsel %vm5118, %v5113, 0
    %5311 = vmatprep.subr.mxu0 0.0
    %5312 = vmatpush1.msra.mxu0 %v5114
    %5313 = vmatprep.subr.mxu0 0.0
    %5314 = vmatpush1.msra.mxu0 %v5115
    %5315 = vmatprep.subr.mxu0 0.0
    %5316 = vmatpush1.msra.mxu0 %v5116
    %5317 = vmatprep.subr.mxu0 0.0
    %5318 = vmatpush1.msra.mxu0 %v5117
    %5319 = vmatprep.subr.mxu0 0.0
    %5320 = vmatpush1.msra.mxu0 0.0
    %5321 = vmatprep.subr.mxu0 0.0
    %5322 = vmatpush1.msra.mxu0 0.0
    %5323 = vmatprep.subr.mxu0 0.0
    %5324 = vmatpush1.msra.mxu0 0.0
    %5325 = vmatprep.subr.mxu0 0.0
    %5326 = vmatpush1.msra.mxu0 0.0
    %5327 = vmatprep.subr.mxu0 0.0
    %5328 = vmatpush1.msra.mxu0 0.0
    %5329 = vmatprep.subr.mxu0 0.0
    %5330 = vmatpush1.msra.mxu0 0.0
    %5331 = vmatprep.subr.mxu0 0.0
    %5332 = vmatpush1.msra.mxu0 0.0
    %5333 = vmatprep.subr.mxu0 0.0
    %5334 = vmatpush1.msra.mxu0 0.0
    %5335 = vmatprep.subr.mxu0 0.0
    %5336 = vmatpush1.msra.mxu0 0.0
    %5337 = vmatprep.subr.mxu0 0.0
    %5338 = vmatpush1.msra.mxu0 0.0
    %5339 = vmatprep.subr.mxu0 0.0
    %5340 = vmatpush1.msra.mxu0 0.0
    %5341 = vmatprep.subr.mxu0 0.0
    %5342 = vmatpush1.msra.mxu0 0.0
    %5343 = vmatprep.subr.mxu0 0.0
    %5344 = vmatpush1.msra.mxu0 0.0
    %5345 = vmatprep.subr.mxu0 0.0
    %5346 = vmatpush1.msra.mxu0 0.0
    %5347 = vmatprep.subr.mxu0 0.0
    %5348 = vmatpush1.msra.mxu0 0.0
    %5349 = vmatprep.subr.mxu0 0.0
    %5350 = vmatpush1.msra.mxu0 0.0
    %5351 = vmatprep.subr.mxu0 0.0
    %5352 = vmatpush1.msra.mxu0 0.0
    %5353 = vmatprep.subr.mxu0 0.0
    %5354 = vmatpush1.msra.mxu0 0.0
    %5355 = vmatprep.subr.mxu0 0.0
    %5356 = vmatpush1.msra.mxu0 0.0
    %5357 = vmatprep.subr.mxu0 0.0
    %5358 = vmatpush1.msra.mxu0 0.0
    %5359 = vmatprep.subr.mxu0 0.0
    %5360 = vmatpush1.msra.mxu0 0.0
    %5361 = vmatprep.subr.mxu0 0.0
    %5362 = vmatpush1.msra.mxu0 0.0
    %5363 = vmatprep.subr.mxu0 0.0
    %5364 = vmatpush1.msra.mxu0 0.0
    %5365 = vmatprep.subr.mxu0 0.0
    %5366 = vmatpush1.msra.mxu0 0.0
    %5367 = vmatprep.subr.mxu0 0.0
    %5368 = vmatpush1.msra.mxu0 0.0
    %5369 = vmatprep.subr.mxu0 0.0
    %5370 = vmatpush1.msra.mxu0 0.0
    %5371 = vmatprep.subr.mxu0 0.0
    %5372 = vmatpush1.msra.mxu0 0.0
    %5373 = vmatprep.subr.mxu0 0.0
    %5374 = vmatpush1.msra.mxu0 0.0
    %5375 = vmatprep.mubr.f32.mxu0 0.0
    %5376 = vmatmul.mubr.f32.gmra.mrb[0].mxu0 %v5120
    %v5377 = vpop.f32.mrb[0].mxu0
    %v5378 = vadd.f32 0.0, %v5377
    %v5379 = vpop.f32.mrb[0].mxu0
    %5380 = vmatprep.mubr.f32.mxu0 0.0
    %5381 = vmatmul.mubr.f32.gmra.mrb[0].mxu0 %v5123
    %v5382 = vpop.f32.mrb[0].mxu0
    %v5383 = vadd.f32 0.0, %v5382
    %v5384 = vpop.f32.mrb[0].mxu0
    %5385 = vmatprep.mubr.f32.mxu0 0.0
    %5386 = vmatmul.mubr.f32.gmra.mrb[0].mxu0 %v5126
    %v5387 = vpop.f32.mrb[0].mxu0
    %v5388 = vadd.f32 0.0, %v5387
    %v5389 = vpop.f32.mrb[0].mxu0
    %5390 = vmatprep.mubr.f32.mxu0 0.0
    %5391 = vmatmul.mubr.f32.gmra.mrb[0].mxu0 %v5129
    %v5392 = vpop.f32.mrb[0].mxu0
    %v5393 = vadd.f32 0.0, %v5392
    %v5394 = vpop.f32.mrb[0].mxu0
    %5395 = vmatprep.mubr.f32.mxu0 0.0
    %5396 = vmatmul.mubr.f32.gmra.mrb[0].mxu0 %v5132
    %v5397 = vpop.f32.mrb[0].mxu0
    %v5398 = vadd.f32 0.0, %v5397
    %v5399 = vpop.f32.mrb[0].mxu0
    %5400 = vmatprep.mubr.f32.mxu0 0.0
    %5401 = vmatmul.mubr.f32.gmra.mrb[0].mxu0 %v5135
    %v5402 = vpop.f32.mrb[0].mxu0
    %v5403 = vadd.f32 0.0, %v5402
    %v5404 = vpop.f32.mrb[0].mxu0
    %5405 = vmatprep.mubr.f32.mxu0 0.0
    %5406 = vmatmul.mubr.f32.gmra.mrb[0].mxu0 %v5138
    %v5407 = vpop.f32.mrb[0].mxu0
    %v5408 = vadd.f32 0.0, %v5407
    %v5409 = vpop.f32.mrb[0].mxu0
    %5410 = vmatprep.mubr.f32.mxu0 0.0
    %5411 = vmatmul.mubr.f32.gmra.mrb[0].mxu0 %v5141
    %v5412 = vpop.f32.mrb[0].mxu0
    %v5413 = vadd.f32 0.0, %v5412
    %v5414 = vpop.f32.mrb[0].mxu0
    %5415 = vmatprep.mubr.f32.mxu0 0.0
    %5416 = vmatmul.mubr.f32.gmra.mrb[0].mxu0 %v5144
    %v5417 = vpop.f32.mrb[0].mxu0
    %v5418 = vadd.f32 0.0, %v5417
    %v5419 = vpop.f32.mrb[0].mxu0
    %5420 = vmatprep.mubr.f32.mxu0 0.0
    %5421 = vmatmul.mubr.f32.gmra.mrb[0].mxu0 %v5147
    %v5422 = vpop.f32.mrb[0].mxu0
    %v5423 = vadd.f32 0.0, %v5422
    %v5424 = vpop.f32.mrb[0].mxu0
    %5425 = vmatprep.mubr.f32.mxu0 0.0
    %5426 = vmatmul.mubr.f32.gmra.mrb[0].mxu0 %v5150
    %v5427 = vpop.f32.mrb[0].mxu0
    %v5428 = vadd.f32 0.0, %v5427
    %v5429 = vpop.f32.mrb[0].mxu0
    %5430 = vmatprep.mubr.f32.mxu0 0.0
    %5431 = vmatmul.mubr.f32.gmra.mrb[0].mxu0 %v5153
    %v5432 = vpop.f32.mrb[0].mxu0
    %v5433 = vadd.f32 0.0, %v5432
    %v5434 = vpop.f32.mrb[0].mxu0
    %5435 = vmatprep.mubr.f32.mxu0 0.0
    %5436 = vmatmul.mubr.f32.gmra.mrb[0].mxu0 %v5156
    %v5437 = vpop.f32.mrb[0].mxu0
    %v5438 = vadd.f32 0.0, %v5437
    %v5439 = vpop.f32.mrb[0].mxu0
    %5440 = vmatprep.mubr.f32.mxu0 0.0
    %5441 = vmatmul.mubr.f32.gmra.mrb[0].mxu0 %v5159
    %v5442 = vpop.f32.mrb[0].mxu0
    %v5443 = vadd.f32 0.0, %v5442
    %v5444 = vpop.f32.mrb[0].mxu0
    %5445 = vmatprep.mubr.f32.mxu0 0.0
    %5446 = vmatmul.mubr.f32.gmra.mrb[0].mxu0 %v5162
    %v5447 = vpop.f32.mrb[0].mxu0
    %v5448 = vadd.f32 0.0, %v5447
    %v5449 = vpop.f32.mrb[0].mxu0
    %5450 = vmatprep.mubr.f32.mxu0 0.0
    %5451 = vmatmul.mubr.f32.gmra.mrb[0].mxu0 %v5165
    %v5452 = vpop.f32.mrb[0].mxu0
    %v5453 = vadd.f32 0.0, %v5452
    %v5454 = vpop.f32.mrb[0].mxu0
    %5455 = vmatprep.mubr.f32.mxu0 0.0
    %5456 = vmatmul.mubr.f32.gmra.mrb[0].mxu0 %v5168
    %v5457 = vpop.f32.mrb[0].mxu0
    %v5458 = vadd.f32 0.0, %v5457
    %v5459 = vpop.f32.mrb[0].mxu0
    %5460 = vmatprep.mubr.f32.mxu0 0.0
    %5461 = vmatmul.mubr.f32.gmra.mrb[0].mxu0 %v5171
    %v5462 = vpop.f32.mrb[0].mxu0
    %v5463 = vadd.f32 0.0, %v5462
    %v5464 = vpop.f32.mrb[0].mxu0
    %5465 = vmatprep.mubr.f32.mxu0 0.0
    %5466 = vmatmul.mubr.f32.gmra.mrb[0].mxu0 %v5174
    %v5467 = vpop.f32.mrb[0].mxu0
    %v5468 = vadd.f32 0.0, %v5467
    %v5469 = vpop.f32.mrb[0].mxu0
    %5470 = vmatprep.mubr.f32.mxu0 0.0
    %5471 = vmatmul.mubr.f32.gmra.mrb[0].mxu0 %v5177
    %v5472 = vpop.f32.mrb[0].mxu0
    %v5473 = vadd.f32 0.0, %v5472
    %v5474 = vpop.f32.mrb[0].mxu0
    %5475 = vmatprep.mubr.f32.mxu0 0.0
    %5476 = vmatmul.mubr.f32.gmra.mrb[0].mxu0 %v5180
    %v5477 = vpop.f32.mrb[0].mxu0
    %v5478 = vadd.f32 0.0, %v5477
    %v5479 = vpop.f32.mrb[0].mxu0
    %5480 = vmatprep.mubr.f32.mxu0 0.0
    %5481 = vmatmul.mubr.f32.gmra.mrb[0].mxu0 %v5183
    %v5482 = vpop.f32.mrb[0].mxu0
    %v5483 = vadd.f32 0.0, %v5482
    %v5484 = vpop.f32.mrb[0].mxu0
    %5485 = vmatprep.mubr.f32.mxu0 0.0
    %5486 = vmatmul.mubr.f32.gmra.mrb[0].mxu0 %v5186
    %v5487 = vpop.f32.mrb[0].mxu0
    %v5488 = vadd.f32 0.0, %v5487
    %v5489 = vpop.f32.mrb[0].mxu0
    %5490 = vmatprep.mubr.f32.mxu0 0.0
    %5491 = vmatmul.mubr.f32.gmra.mrb[0].mxu0 %v5189
    %v5492 = vpop.f32.mrb[0].mxu0
    %v5493 = vadd.f32 0.0, %v5492
    %v5494 = vpop.f32.mrb[0].mxu0
    %5495 = vmatprep.mubr.f32.mxu0 0.0
    %5496 = vmatmul.mubr.f32.gmra.mrb[0].mxu0 %v5192
    %v5497 = vpop.f32.mrb[0].mxu0
    %v5498 = vadd.f32 0.0, %v5497
    %v5499 = vpop.f32.mrb[0].mxu0
    %5500 = vmatprep.mubr.f32.mxu0 0.0
    %5501 = vmatmul.mubr.f32.gmra.mrb[0].mxu0 %v5195
    %v5502 = vpop.f32.mrb[0].mxu0
    %v5503 = vadd.f32 0.0, %v5502
    %v5504 = vpop.f32.mrb[0].mxu0
    %5505 = vmatprep.mubr.f32.mxu0 0.0
    %5506 = vmatmul.mubr.f32.gmra.mrb[0].mxu0 %v5198
    %v5507 = vpop.f32.mrb[0].mxu0
    %v5508 = vadd.f32 0.0, %v5507
    %v5509 = vpop.f32.mrb[0].mxu0
    %5510 = vmatprep.mubr.f32.mxu0 0.0
    %5511 = vmatmul.mubr.f32.gmra.mrb[0].mxu0 %v5201
    %v5512 = vpop.f32.mrb[0].mxu0
    %v5513 = vadd.f32 0.0, %v5512
    %v5514 = vpop.f32.mrb[0].mxu0
    %5515 = vmatprep.mubr.f32.mxu0 0.0
    %5516 = vmatmul.mubr.f32.gmra.mrb[0].mxu0 %v5204
    %v5517 = vpop.f32.mrb[0].mxu0
    %v5518 = vadd.f32 0.0, %v5517
    %v5519 = vpop.f32.mrb[0].mxu0
    %5520 = vmatprep.mubr.f32.mxu0 0.0
    %5521 = vmatmul.mubr.f32.gmra.mrb[0].mxu0 %v5207
    %v5522 = vpop.f32.mrb[0].mxu0
    %v5523 = vadd.f32 0.0, %v5522
    %v5524 = vpop.f32.mrb[0].mxu0
    %5525 = vmatprep.mubr.f32.mxu0 0.0
    %5526 = vmatmul.mubr.f32.gmra.mrb[0].mxu0 %v5210
    %v5527 = vpop.f32.mrb[0].mxu0
    %v5528 = vadd.f32 0.0, %v5527
    %v5529 = vpop.f32.mrb[0].mxu0
    %5530 = vmatprep.mubr.f32.mxu0 0.0
    %5531 = vmatmul.mubr.f32.gmra.mrb[0].mxu0 %v5213
    %v5532 = vpop.f32.mrb[0].mxu0
    %v5533 = vadd.f32 0.0, %v5532
    %v5534 = vpop.f32.mrb[0].mxu0
    %5535 = vmatprep.mubr.f32.mxu0 0.0
    %5536 = vmatmul.mubr.f32.gmra.mrb[0].mxu0 %v5216
    %v5537 = vpop.f32.mrb[0].mxu0
    %v5538 = vadd.f32 0.0, %v5537
    %v5539 = vpop.f32.mrb[0].mxu0
    %5540 = vmatprep.mubr.f32.mxu0 0.0
    %5541 = vmatmul.mubr.f32.gmra.mrb[0].mxu0 %v5219
    %v5542 = vpop.f32.mrb[0].mxu0
    %v5543 = vadd.f32 0.0, %v5542
    %v5544 = vpop.f32.mrb[0].mxu0
    %5545 = vmatprep.mubr.f32.mxu0 0.0
    %5546 = vmatmul.mubr.f32.gmra.mrb[0].mxu0 %v5222
    %v5547 = vpop.f32.mrb[0].mxu0
    %v5548 = vadd.f32 0.0, %v5547
    %v5549 = vpop.f32.mrb[0].mxu0
    %5550 = vmatprep.mubr.f32.mxu0 0.0
    %5551 = vmatmul.mubr.f32.gmra.mrb[0].mxu0 %v5225
    %v5552 = vpop.f32.mrb[0].mxu0
    %v5553 = vadd.f32 0.0, %v5552
    %v5554 = vpop.f32.mrb[0].mxu0
    %5555 = vmatprep.mubr.f32.mxu0 0.0
    %5556 = vmatmul.mubr.f32.gmra.mrb[0].mxu0 %v5228
    %v5557 = vpop.f32.mrb[0].mxu0
    %v5558 = vadd.f32 0.0, %v5557
    %v5559 = vpop.f32.mrb[0].mxu0
    %5560 = vmatprep.mubr.f32.mxu0 0.0
    %5561 = vmatmul.mubr.f32.gmra.mrb[0].mxu0 %v5231
    %v5562 = vpop.f32.mrb[0].mxu0
    %v5563 = vadd.f32 0.0, %v5562
    %v5564 = vpop.f32.mrb[0].mxu0
    %5565 = vmatprep.mubr.f32.mxu0 0.0
    %5566 = vmatmul.mubr.f32.gmra.mrb[0].mxu0 %v5234
    %v5567 = vpop.f32.mrb[0].mxu0
    %v5568 = vadd.f32 0.0, %v5567
    %v5569 = vpop.f32.mrb[0].mxu0
    %5570 = vmatprep.mubr.f32.mxu0 0.0
    %5571 = vmatmul.mubr.f32.gmra.mrb[0].mxu0 %v5237
    %v5572 = vpop.f32.mrb[0].mxu0
    %v5573 = vadd.f32 0.0, %v5572
    %v5574 = vpop.f32.mrb[0].mxu0
    %5575 = vmatprep.mubr.f32.mxu0 0.0
    %5576 = vmatmul.mubr.f32.gmra.mrb[0].mxu0 %v5240
    %v5577 = vpop.f32.mrb[0].mxu0
    %v5578 = vadd.f32 0.0, %v5577
    %v5579 = vpop.f32.mrb[0].mxu0
    %5580 = vmatprep.mubr.f32.mxu0 0.0
    %5581 = vmatmul.mubr.f32.gmra.mrb[0].mxu0 %v5243
    %v5582 = vpop.f32.mrb[0].mxu0
    %v5583 = vadd.f32 0.0, %v5582
    %v5584 = vpop.f32.mrb[0].mxu0
    %5585 = vmatprep.mubr.f32.mxu0 0.0
    %5586 = vmatmul.mubr.f32.gmra.mrb[0].mxu0 %v5246
    %v5587 = vpop.f32.mrb[0].mxu0
    %v5588 = vadd.f32 0.0, %v5587
    %v5589 = vpop.f32.mrb[0].mxu0
    %5590 = vmatprep.mubr.f32.mxu0 0.0
    %5591 = vmatmul.mubr.f32.gmra.mrb[0].mxu0 %v5249
    %v5592 = vpop.f32.mrb[0].mxu0
    %v5593 = vadd.f32 0.0, %v5592
    %v5594 = vpop.f32.mrb[0].mxu0
    %5595 = vmatprep.mubr.f32.mxu0 0.0
    %5596 = vmatmul.mubr.f32.gmra.mrb[0].mxu0 %v5252
    %v5597 = vpop.f32.mrb[0].mxu0
    %v5598 = vadd.f32 0.0, %v5597
    %v5599 = vpop.f32.mrb[0].mxu0
    %5600 = vmatprep.mubr.f32.mxu0 0.0
    %5601 = vmatmul.mubr.f32.gmra.mrb[0].mxu0 %v5255
    %v5602 = vpop.f32.mrb[0].mxu0
    %v5603 = vadd.f32 0.0, %v5602
    %v5604 = vpop.f32.mrb[0].mxu0
    %5605 = vmatprep.mubr.f32.mxu0 0.0
    %5606 = vmatmul.mubr.f32.gmra.mrb[0].mxu0 %v5258
    %v5607 = vpop.f32.mrb[0].mxu0
    %v5608 = vadd.f32 0.0, %v5607
    %v5609 = vpop.f32.mrb[0].mxu0
    %5610 = vmatprep.mubr.f32.mxu0 0.0
    %5611 = vmatmul.mubr.f32.gmra.mrb[0].mxu0 %v5261
    %v5612 = vpop.f32.mrb[0].mxu0
    %v5613 = vadd.f32 0.0, %v5612
    %v5614 = vpop.f32.mrb[0].mxu0
    %5615 = vmatprep.mubr.f32.mxu0 0.0
    %5616 = vmatmul.mubr.f32.gmra.mrb[0].mxu0 %v5264
    %v5617 = vpop.f32.mrb[0].mxu0
    %v5618 = vadd.f32 0.0, %v5617
    %v5619 = vpop.f32.mrb[0].mxu0
    %5620 = vmatprep.mubr.f32.mxu0 0.0
    %5621 = vmatmul.mubr.f32.gmra.mrb[0].mxu0 %v5267
    %v5622 = vpop.f32.mrb[0].mxu0
    %v5623 = vadd.f32 0.0, %v5622
    %v5624 = vpop.f32.mrb[0].mxu0
    %5625 = vmatprep.mubr.f32.mxu0 0.0
    %5626 = vmatmul.mubr.f32.gmra.mrb[0].mxu0 %v5270
    %v5627 = vpop.f32.mrb[0].mxu0
    %v5628 = vadd.f32 0.0, %v5627
    %v5629 = vpop.f32.mrb[0].mxu0
    %5630 = vmatprep.mubr.f32.mxu0 0.0
    %5631 = vmatmul.mubr.f32.gmra.mrb[0].mxu0 %v5273
    %v5632 = vpop.f32.mrb[0].mxu0
    %v5633 = vadd.f32 0.0, %v5632
    %v5634 = vpop.f32.mrb[0].mxu0
    %5635 = vmatprep.mubr.f32.mxu0 0.0
    %5636 = vmatmul.mubr.f32.gmra.mrb[0].mxu0 %v5276
    %v5637 = vpop.f32.mrb[0].mxu0
    %v5638 = vadd.f32 0.0, %v5637
    %v5639 = vpop.f32.mrb[0].mxu0
    %5640 = vmatprep.mubr.f32.mxu0 0.0
    %5641 = vmatmul.mubr.f32.gmra.mrb[0].mxu0 %v5279
    %v5642 = vpop.f32.mrb[0].mxu0
    %v5643 = vadd.f32 0.0, %v5642
    %v5644 = vpop.f32.mrb[0].mxu0
    %5645 = vmatprep.mubr.f32.mxu0 0.0
    %5646 = vmatmul.mubr.f32.gmra.mrb[0].mxu0 %v5282
    %v5647 = vpop.f32.mrb[0].mxu0
    %v5648 = vadd.f32 0.0, %v5647
    %v5649 = vpop.f32.mrb[0].mxu0
    %5650 = vmatprep.mubr.f32.mxu0 0.0
    %5651 = vmatmul.mubr.f32.gmra.mrb[0].mxu0 %v5285
    %v5652 = vpop.f32.mrb[0].mxu0
    %v5653 = vadd.f32 0.0, %v5652
    %v5654 = vpop.f32.mrb[0].mxu0
    %5655 = vmatprep.mubr.f32.mxu0 0.0
    %5656 = vmatmul.mubr.f32.gmra.mrb[0].mxu0 %v5288
    %v5657 = vpop.f32.mrb[0].mxu0
    %v5658 = vadd.f32 0.0, %v5657
    %v5659 = vpop.f32.mrb[0].mxu0
    %5660 = vmatprep.mubr.f32.mxu0 0.0
    %5661 = vmatmul.mubr.f32.gmra.mrb[0].mxu0 %v5291
    %v5662 = vpop.f32.mrb[0].mxu0
    %v5663 = vadd.f32 0.0, %v5662
    %v5664 = vpop.f32.mrb[0].mxu0
    %5665 = vmatprep.mubr.f32.mxu0 0.0
    %5666 = vmatmul.mubr.f32.gmra.mrb[0].mxu0 %v5294
    %v5667 = vpop.f32.mrb[0].mxu0
    %v5668 = vadd.f32 0.0, %v5667
    %v5669 = vpop.f32.mrb[0].mxu0
    %5670 = vmatprep.mubr.f32.mxu0 0.0
    %5671 = vmatmul.mubr.f32.gmra.mrb[0].mxu0 %v5297
    %v5672 = vpop.f32.mrb[0].mxu0
    %v5673 = vadd.f32 0.0, %v5672
    %v5674 = vpop.f32.mrb[0].mxu0
    %5675 = vmatprep.mubr.f32.mxu0 0.0
    %5676 = vmatmul.mubr.f32.gmra.mrb[0].mxu0 %v5300
    %v5677 = vpop.f32.mrb[0].mxu0
    %v5678 = vadd.f32 0.0, %v5677
    %v5679 = vpop.f32.mrb[0].mxu0
    %5680 = vmatprep.mubr.f32.mxu0 0.0
    %5681 = vmatmul.mubr.f32.gmra.mrb[0].mxu0 %v5303
    %v5682 = vpop.f32.mrb[0].mxu0
    %v5683 = vadd.f32 0.0, %v5682
    %v5684 = vpop.f32.mrb[0].mxu0
    %5685 = vmatprep.mubr.f32.mxu0 0.0
    %5686 = vmatmul.mubr.f32.gmra.mrb[0].mxu0 %v5306
    %v5687 = vpop.f32.mrb[0].mxu0
    %v5688 = vadd.f32 0.0, %v5687
    %v5689 = vpop.f32.mrb[0].mxu0
    %5690 = vmatprep.mubr.f32.mxu0 0.0
    %5691 = vmatmul.mubr.f32.gmra.mrb[0].mxu0 %v5309
    %v5692 = vpop.f32.mrb[0].mxu0
    %v5693 = vadd.f32 0.0, %v5692
    %v5694 = vpop.f32.mrb[0].mxu0
    %5695 = vdwg.mxu0
    %v5696 = vadd.f32 %v5378, 0.0
    %v5697 = vadd.f32 %v5383, 0.0
    %v5698 = vadd.f32 %v5388, 0.0
    %v5699 = vadd.f32 %v5393, 0.0
    %v5700 = vadd.f32 %v5398, 0.0
    %v5701 = vadd.f32 %v5403, 0.0
    %v5702 = vadd.f32 %v5408, 0.0
    %v5703 = vadd.f32 %v5413, 0.0
    %v5704 = vadd.f32 %v5418, 0.0
    %v5705 = vadd.f32 %v5423, 0.0
    %v5706 = vadd.f32 %v5428, 0.0
    %v5707 = vadd.f32 %v5433, 0.0
    %v5708 = vadd.f32 %v5438, 0.0
    %v5709 = vadd.f32 %v5443, 0.0
    %v5710 = vadd.f32 %v5448, 0.0
    %v5711 = vadd.f32 %v5453, 0.0
    %v5712 = vadd.f32 %v5696, %v5458
    %v5713 = vadd.f32 %v5697, %v5463
    %v5714 = vadd.f32 %v5698, %v5468
    %v5715 = vadd.f32 %v5699, %v5473
    %v5716 = vadd.f32 %v5700, %v5478
    %v5717 = vadd.f32 %v5701, %v5483
    %v5718 = vadd.f32 %v5702, %v5488
    %v5719 = vadd.f32 %v5703, %v5493
    %v5720 = vadd.f32 %v5704, %v5498
    %v5721 = vadd.f32 %v5705, %v5503
    %v5722 = vadd.f32 %v5706, %v5508
    %v5723 = vadd.f32 %v5707, %v5513
    %v5724 = vadd.f32 %v5708, %v5518
    %v5725 = vadd.f32 %v5709, %v5523
    %v5726 = vadd.f32 %v5710, %v5528
    %v5727 = vadd.f32 %v5711, %v5533
    %v5728 = vadd.f32 %v5712, %v5538
    %v5729 = vadd.f32 %v5713, %v5543
    %v5730 = vadd.f32 %v5714, %v5548
    %v5731 = vadd.f32 %v5715, %v5553
    %v5732 = vadd.f32 %v5716, %v5558
    %v5733 = vadd.f32 %v5717, %v5563
    %v5734 = vadd.f32 %v5718, %v5568
    %v5735 = vadd.f32 %v5719, %v5573
    %v5736 = vadd.f32 %v5720, %v5578
    %v5737 = vadd.f32 %v5721, %v5583
    %v5738 = vadd.f32 %v5722, %v5588
    %v5739 = vadd.f32 %v5723, %v5593
    %v5740 = vadd.f32 %v5724, %v5598
    %v5741 = vadd.f32 %v5725, %v5603
    %v5742 = vadd.f32 %v5726, %v5608
    %v5743 = vadd.f32 %v5727, %v5613
    %v5744 = vadd.f32 %v5728, %v5618
    %v5745 = vadd.f32 %v5729, %v5623
    %v5746 = vadd.f32 %v5730, %v5628
    %v5747 = vadd.f32 %v5731, %v5633
    %v5748 = vadd.f32 %v5732, %v5638
    %v5749 = vadd.f32 %v5733, %v5643
    %v5750 = vadd.f32 %v5734, %v5648
    %v5751 = vadd.f32 %v5735, %v5653
    %v5752 = vadd.f32 %v5736, %v5658
    %v5753 = vadd.f32 %v5737, %v5663
    %v5754 = vadd.f32 %v5738, %v5668
    %v5755 = vadd.f32 %v5739, %v5673
    %v5756 = vadd.f32 %v5740, %v5678
    %v5757 = vadd.f32 %v5741, %v5683
    %v5758 = vadd.f32 %v5742, %v5688
    %v5759 = vadd.f32 %v5743, %v5693
    %vm5760 = vcmp.eq.s32.totalorder %v88, 0
    %vm5761 = vcmp.eq.s32.totalorder %v89, 0
    %vm5762 = vcmp.eq.s32.totalorder %v90, 0
    %vm5763 = vcmp.eq.s32.totalorder %v91, 0
    %vm5764 = vcmp.eq.s32.totalorder %v92, 0
    %vm5765 = vcmp.eq.s32.totalorder %v93, 0
    %vm5766 = vcmp.eq.s32.totalorder %v94, 0
    %vm5767 = vcmp.eq.s32.totalorder %v95, 0
    %vm5768 = vcmp.eq.s32.totalorder %v96, 0
    %vm5769 = vcmp.eq.s32.totalorder %v97, 0
    %vm5770 = vcmp.eq.s32.totalorder %v98, 0
    %vm5771 = vcmp.eq.s32.totalorder %v99, 0
    %vm5772 = vcmp.eq.s32.totalorder %v100, 0
    %vm5773 = vcmp.eq.s32.totalorder %v101, 0
    %vm5774 = vcmp.eq.s32.totalorder %v102, 0
    %vm5775 = vcmp.eq.s32.totalorder %v103, 0
    %v5776 = vsel %vm5760, 1, 0
    %v5777 = vsel %vm5761, 1, 0
    %v5778 = vsel %vm5762, 1, 0
    %v5779 = vsel %vm5763, 1, 0
    %v5780 = vsel %vm5764, 1, 0
    %v5781 = vsel %vm5765, 1, 0
    %v5782 = vsel %vm5766, 1, 0
    %v5783 = vsel %vm5767, 1, 0
    %v5784 = vsel %vm5768, 1, 0
    %v5785 = vsel %vm5769, 1, 0
    %v5786 = vsel %vm5770, 1, 0
    %v5787 = vsel %vm5771, 1, 0
    %v5788 = vsel %vm5772, 1, 0
    %v5789 = vsel %vm5773, 1, 0
    %v5790 = vsel %vm5774, 1, 0
    %v5791 = vsel %vm5775, 1, 0
    %v5792 = vcvt.s32.f32 %v5776
    %v5793 = vcvt.s32.f32 %v5777
    %v5794 = vcvt.s32.f32 %v5778
    %v5795 = vcvt.s32.f32 %v5779
    %v5796 = vcvt.s32.f32 %v5780
    %v5797 = vcvt.s32.f32 %v5781
    %v5798 = vcvt.s32.f32 %v5782
    %v5799 = vcvt.s32.f32 %v5783
    %v5800 = vcvt.s32.f32 %v5784
    %v5801 = vcvt.s32.f32 %v5785
    %v5802 = vcvt.s32.f32 %v5786
    %v5803 = vcvt.s32.f32 %v5787
    %v5804 = vcvt.s32.f32 %v5788
    %v5805 = vcvt.s32.f32 %v5789
    %v5806 = vcvt.s32.f32 %v5790
    %v5807 = vcvt.s32.f32 %v5791
    %vm5808 = vcmp.eq.s32.totalorder %v88, 1
    %vm5809 = vcmp.eq.s32.totalorder %v89, 1
    %vm5810 = vcmp.eq.s32.totalorder %v90, 1
    %vm5811 = vcmp.eq.s32.totalorder %v91, 1
    %vm5812 = vcmp.eq.s32.totalorder %v92, 1
    %vm5813 = vcmp.eq.s32.totalorder %v93, 1
    %vm5814 = vcmp.eq.s32.totalorder %v94, 1
    %vm5815 = vcmp.eq.s32.totalorder %v95, 1
    %vm5816 = vcmp.eq.s32.totalorder %v96, 1
    %vm5817 = vcmp.eq.s32.totalorder %v97, 1
    %vm5818 = vcmp.eq.s32.totalorder %v98, 1
    %vm5819 = vcmp.eq.s32.totalorder %v99, 1
    %vm5820 = vcmp.eq.s32.totalorder %v100, 1
    %vm5821 = vcmp.eq.s32.totalorder %v101, 1
    %vm5822 = vcmp.eq.s32.totalorder %v102, 1
    %vm5823 = vcmp.eq.s32.totalorder %v103, 1
    %v5824 = vsel %vm5808, 1, 0
    %v5825 = vsel %vm5809, 1, 0
    %v5826 = vsel %vm5810, 1, 0
    %v5827 = vsel %vm5811, 1, 0
    %v5828 = vsel %vm5812, 1, 0
    %v5829 = vsel %vm5813, 1, 0
    %v5830 = vsel %vm5814, 1, 0
    %v5831 = vsel %vm5815, 1, 0
    %v5832 = vsel %vm5816, 1, 0
    %v5833 = vsel %vm5817, 1, 0
    %v5834 = vsel %vm5818, 1, 0
    %v5835 = vsel %vm5819, 1, 0
    %v5836 = vsel %vm5820, 1, 0
    %v5837 = vsel %vm5821, 1, 0
    %v5838 = vsel %vm5822, 1, 0
    %v5839 = vsel %vm5823, 1, 0
    %v5840 = vcvt.s32.f32 %v5824
    %v5841 = vcvt.s32.f32 %v5825
    %v5842 = vcvt.s32.f32 %v5826
    %v5843 = vcvt.s32.f32 %v5827
    %v5844 = vcvt.s32.f32 %v5828
    %v5845 = vcvt.s32.f32 %v5829
    %v5846 = vcvt.s32.f32 %v5830
    %v5847 = vcvt.s32.f32 %v5831
    %v5848 = vcvt.s32.f32 %v5832
    %v5849 = vcvt.s32.f32 %v5833
    %v5850 = vcvt.s32.f32 %v5834
    %v5851 = vcvt.s32.f32 %v5835
    %v5852 = vcvt.s32.f32 %v5836
    %v5853 = vcvt.s32.f32 %v5837
    %v5854 = vcvt.s32.f32 %v5838
    %v5855 = vcvt.s32.f32 %v5839
    %vm5856 = vcmp.eq.s32.totalorder %v88, 2
    %vm5857 = vcmp.eq.s32.totalorder %v89, 2
    %vm5858 = vcmp.eq.s32.totalorder %v90, 2
    %vm5859 = vcmp.eq.s32.totalorder %v91, 2
    %vm5860 = vcmp.eq.s32.totalorder %v92, 2
    %vm5861 = vcmp.eq.s32.totalorder %v93, 2
    %vm5862 = vcmp.eq.s32.totalorder %v94, 2
    %vm5863 = vcmp.eq.s32.totalorder %v95, 2
    %vm5864 = vcmp.eq.s32.totalorder %v96, 2
    %vm5865 = vcmp.eq.s32.totalorder %v97, 2
    %vm5866 = vcmp.eq.s32.totalorder %v98, 2
    %vm5867 = vcmp.eq.s32.totalorder %v99, 2
    %vm5868 = vcmp.eq.s32.totalorder %v100, 2
    %vm5869 = vcmp.eq.s32.totalorder %v101, 2
    %vm5870 = vcmp.eq.s32.totalorder %v102, 2
    %vm5871 = vcmp.eq.s32.totalorder %v103, 2
    %v5872 = vsel %vm5856, 1, 0
    %v5873 = vsel %vm5857, 1, 0
    %v5874 = vsel %vm5858, 1, 0
    %v5875 = vsel %vm5859, 1, 0
    %v5876 = vsel %vm5860, 1, 0
    %v5877 = vsel %vm5861, 1, 0
    %v5878 = vsel %vm5862, 1, 0
    %v5879 = vsel %vm5863, 1, 0
    %v5880 = vsel %vm5864, 1, 0
    %v5881 = vsel %vm5865, 1, 0
    %v5882 = vsel %vm5866, 1, 0
    %v5883 = vsel %vm5867, 1, 0
    %v5884 = vsel %vm5868, 1, 0
    %v5885 = vsel %vm5869, 1, 0
    %v5886 = vsel %vm5870, 1, 0
    %v5887 = vsel %vm5871, 1, 0
    %v5888 = vcvt.s32.f32 %v5872
    %v5889 = vcvt.s32.f32 %v5873
    %v5890 = vcvt.s32.f32 %v5874
    %v5891 = vcvt.s32.f32 %v5875
    %v5892 = vcvt.s32.f32 %v5876
    %v5893 = vcvt.s32.f32 %v5877
    %v5894 = vcvt.s32.f32 %v5878
    %v5895 = vcvt.s32.f32 %v5879
    %v5896 = vcvt.s32.f32 %v5880
    %v5897 = vcvt.s32.f32 %v5881
    %v5898 = vcvt.s32.f32 %v5882
    %v5899 = vcvt.s32.f32 %v5883
    %v5900 = vcvt.s32.f32 %v5884
    %v5901 = vcvt.s32.f32 %v5885
    %v5902 = vcvt.s32.f32 %v5886
    %v5903 = vcvt.s32.f32 %v5887
    %vm5904 = vcmp.eq.s32.totalorder %v88, 3
    %vm5905 = vcmp.eq.s32.totalorder %v89, 3
    %vm5906 = vcmp.eq.s32.totalorder %v90, 3
    %vm5907 = vcmp.eq.s32.totalorder %v91, 3
    %vm5908 = vcmp.eq.s32.totalorder %v92, 3
    %vm5909 = vcmp.eq.s32.totalorder %v93, 3
    %vm5910 = vcmp.eq.s32.totalorder %v94, 3
    %vm5911 = vcmp.eq.s32.totalorder %v95, 3
    %vm5912 = vcmp.eq.s32.totalorder %v96, 3
    %vm5913 = vcmp.eq.s32.totalorder %v97, 3
    %vm5914 = vcmp.eq.s32.totalorder %v98, 3
    %vm5915 = vcmp.eq.s32.totalorder %v99, 3
    %vm5916 = vcmp.eq.s32.totalorder %v100, 3
    %vm5917 = vcmp.eq.s32.totalorder %v101, 3
    %vm5918 = vcmp.eq.s32.totalorder %v102, 3
    %vm5919 = vcmp.eq.s32.totalorder %v103, 3
    %v5920 = vsel %vm5904, 1, 0
    %v5921 = vsel %vm5905, 1, 0
    %v5922 = vsel %vm5906, 1, 0
    %v5923 = vsel %vm5907, 1, 0
    %v5924 = vsel %vm5908, 1, 0
    %v5925 = vsel %vm5909, 1, 0
    %v5926 = vsel %vm5910, 1, 0
    %v5927 = vsel %vm5911, 1, 0
    %v5928 = vsel %vm5912, 1, 0
    %v5929 = vsel %vm5913, 1, 0
    %v5930 = vsel %vm5914, 1, 0
    %v5931 = vsel %vm5915, 1, 0
    %v5932 = vsel %vm5916, 1, 0
    %v5933 = vsel %vm5917, 1, 0
    %v5934 = vsel %vm5918, 1, 0
    %v5935 = vsel %vm5919, 1, 0
    %v5936 = vcvt.s32.f32 %v5920
    %v5937 = vcvt.s32.f32 %v5921
    %v5938 = vcvt.s32.f32 %v5922
    %v5939 = vcvt.s32.f32 %v5923
    %v5940 = vcvt.s32.f32 %v5924
    %v5941 = vcvt.s32.f32 %v5925
    %v5942 = vcvt.s32.f32 %v5926
    %v5943 = vcvt.s32.f32 %v5927
    %v5944 = vcvt.s32.f32 %v5928
    %v5945 = vcvt.s32.f32 %v5929
    %v5946 = vcvt.s32.f32 %v5930
    %v5947 = vcvt.s32.f32 %v5931
    %v5948 = vcvt.s32.f32 %v5932
    %v5949 = vcvt.s32.f32 %v5933
    %v5950 = vcvt.s32.f32 %v5934
    %v5951 = vcvt.s32.f32 %v5935
    %5953 = vset.pattern.permute.xlu0 0
    %5954 = vperm.xlu0 %5953, %v5792
    %v5955 = vpop.permute.xlu0 %5954
    %5958 = vset.pattern.permute.xlu0 0
    %5959 = vperm.xlu0 %5958, %v5793
    %v5960 = vpop.permute.xlu0 %5959
    %5963 = vset.pattern.permute.xlu0 0
    %5964 = vperm.xlu0 %5963, %v5794
    %v5965 = vpop.permute.xlu0 %5964
    %5968 = vset.pattern.permute.xlu0 0
    %5969 = vperm.xlu0 %5968, %v5795
    %v5970 = vpop.permute.xlu0 %5969
    %5973 = vset.pattern.permute.xlu0 0
    %5974 = vperm.xlu0 %5973, %v5796
    %v5975 = vpop.permute.xlu0 %5974
    %5978 = vset.pattern.permute.xlu0 0
    %5979 = vperm.xlu0 %5978, %v5797
    %v5980 = vpop.permute.xlu0 %5979
    %5983 = vset.pattern.permute.xlu0 0
    %5984 = vperm.xlu0 %5983, %v5798
    %v5985 = vpop.permute.xlu0 %5984
    %5988 = vset.pattern.permute.xlu0 0
    %5989 = vperm.xlu0 %5988, %v5799
    %v5990 = vpop.permute.xlu0 %5989
    %5993 = vset.pattern.permute.xlu0 0
    %5994 = vperm.xlu0 %5993, %v5800
    %v5995 = vpop.permute.xlu0 %5994
    %5998 = vset.pattern.permute.xlu0 0
    %5999 = vperm.xlu0 %5998, %v5801
    %v6000 = vpop.permute.xlu0 %5999
    %6003 = vset.pattern.permute.xlu0 0
    %6004 = vperm.xlu0 %6003, %v5802
    %v6005 = vpop.permute.xlu0 %6004
    %6008 = vset.pattern.permute.xlu0 0
    %6009 = vperm.xlu0 %6008, %v5803
    %v6010 = vpop.permute.xlu0 %6009
    %6013 = vset.pattern.permute.xlu0 0
    %6014 = vperm.xlu0 %6013, %v5804
    %v6015 = vpop.permute.xlu0 %6014
    %6018 = vset.pattern.permute.xlu0 0
    %6019 = vperm.xlu0 %6018, %v5805
    %v6020 = vpop.permute.xlu0 %6019
    %6023 = vset.pattern.permute.xlu0 0
    %6024 = vperm.xlu0 %6023, %v5806
    %v6025 = vpop.permute.xlu0 %6024
    %6028 = vset.pattern.permute.xlu0 0
    %6029 = vperm.xlu0 %6028, %v5807
    %v6030 = vpop.permute.xlu0 %6029
    %v6032 = vmul.f32 %v5955, %v5378
    %v6033 = vmul.f32 %v5960, %v5383
    %v6034 = vmul.f32 %v5965, %v5388
    %v6035 = vmul.f32 %v5970, %v5393
    %v6036 = vmul.f32 %v5975, %v5398
    %v6037 = vmul.f32 %v5980, %v5403
    %v6038 = vmul.f32 %v5985, %v5408
    %v6039 = vmul.f32 %v5990, %v5413
    %v6040 = vmul.f32 %v5995, %v5418
    %v6041 = vmul.f32 %v6000, %v5423
    %v6042 = vmul.f32 %v6005, %v5428
    %v6043 = vmul.f32 %v6010, %v5433
    %v6044 = vmul.f32 %v6015, %v5438
    %v6045 = vmul.f32 %v6020, %v5443
    %v6046 = vmul.f32 %v6025, %v5448
    %v6047 = vmul.f32 %v6030, %v5453
    %v6048 = vadd.f32 %v6032, 0.0
    %v6049 = vadd.f32 %v6033, 0.0
    %v6050 = vadd.f32 %v6034, 0.0
    %v6051 = vadd.f32 %v6035, 0.0
    %v6052 = vadd.f32 %v6036, 0.0
    %v6053 = vadd.f32 %v6037, 0.0
    %v6054 = vadd.f32 %v6038, 0.0
    %v6055 = vadd.f32 %v6039, 0.0
    %v6056 = vadd.f32 %v6040, 0.0
    %v6057 = vadd.f32 %v6041, 0.0
    %v6058 = vadd.f32 %v6042, 0.0
    %v6059 = vadd.f32 %v6043, 0.0
    %v6060 = vadd.f32 %v6044, 0.0
    %v6061 = vadd.f32 %v6045, 0.0
    %v6062 = vadd.f32 %v6046, 0.0
    %v6063 = vadd.f32 %v6047, 0.0
    %6065 = vset.pattern.permute.xlu0 0
    %6066 = vperm.xlu0 %6065, %v5840
    %v6067 = vpop.permute.xlu0 %6066
    %6070 = vset.pattern.permute.xlu0 0
    %6071 = vperm.xlu0 %6070, %v5841
    %v6072 = vpop.permute.xlu0 %6071
    %6075 = vset.pattern.permute.xlu0 0
    %6076 = vperm.xlu0 %6075, %v5842
    %v6077 = vpop.permute.xlu0 %6076
    %6080 = vset.pattern.permute.xlu0 0
    %6081 = vperm.xlu0 %6080, %v5843
    %v6082 = vpop.permute.xlu0 %6081
    %6085 = vset.pattern.permute.xlu0 0
    %6086 = vperm.xlu0 %6085, %v5844
    %v6087 = vpop.permute.xlu0 %6086
    %6090 = vset.pattern.permute.xlu0 0
    %6091 = vperm.xlu0 %6090, %v5845
    %v6092 = vpop.permute.xlu0 %6091
    %6095 = vset.pattern.permute.xlu0 0
    %6096 = vperm.xlu0 %6095, %v5846
    %v6097 = vpop.permute.xlu0 %6096
    %6100 = vset.pattern.permute.xlu0 0
    %6101 = vperm.xlu0 %6100, %v5847
    %v6102 = vpop.permute.xlu0 %6101
    %6105 = vset.pattern.permute.xlu0 0
    %6106 = vperm.xlu0 %6105, %v5848
    %v6107 = vpop.permute.xlu0 %6106
    %6110 = vset.pattern.permute.xlu0 0
    %6111 = vperm.xlu0 %6110, %v5849
    %v6112 = vpop.permute.xlu0 %6111
    %6115 = vset.pattern.permute.xlu0 0
    %6116 = vperm.xlu0 %6115, %v5850
    %v6117 = vpop.permute.xlu0 %6116
    %6120 = vset.pattern.permute.xlu0 0
    %6121 = vperm.xlu0 %6120, %v5851
    %v6122 = vpop.permute.xlu0 %6121
    %6125 = vset.pattern.permute.xlu0 0
    %6126 = vperm.xlu0 %6125, %v5852
    %v6127 = vpop.permute.xlu0 %6126
    %6130 = vset.pattern.permute.xlu0 0
    %6131 = vperm.xlu0 %6130, %v5853
    %v6132 = vpop.permute.xlu0 %6131
    %6135 = vset.pattern.permute.xlu0 0
    %6136 = vperm.xlu0 %6135, %v5854
    %v6137 = vpop.permute.xlu0 %6136
    %6140 = vset.pattern.permute.xlu0 0
    %6141 = vperm.xlu0 %6140, %v5855
    %v6142 = vpop.permute.xlu0 %6141
    %v6144 = vmul.f32 %v6067, %v5458
    %v6145 = vmul.f32 %v6072, %v5463
    %v6146 = vmul.f32 %v6077, %v5468
    %v6147 = vmul.f32 %v6082, %v5473
    %v6148 = vmul.f32 %v6087, %v5478
    %v6149 = vmul.f32 %v6092, %v5483
    %v6150 = vmul.f32 %v6097, %v5488
    %v6151 = vmul.f32 %v6102, %v5493
    %v6152 = vmul.f32 %v6107, %v5498
    %v6153 = vmul.f32 %v6112, %v5503
    %v6154 = vmul.f32 %v6117, %v5508
    %v6155 = vmul.f32 %v6122, %v5513
    %v6156 = vmul.f32 %v6127, %v5518
    %v6157 = vmul.f32 %v6132, %v5523
    %v6158 = vmul.f32 %v6137, %v5528
    %v6159 = vmul.f32 %v6142, %v5533
    %v6160 = vadd.f32 %v6048, %v6144
    %v6161 = vadd.f32 %v6049, %v6145
    %v6162 = vadd.f32 %v6050, %v6146
    %v6163 = vadd.f32 %v6051, %v6147
    %v6164 = vadd.f32 %v6052, %v6148
    %v6165 = vadd.f32 %v6053, %v6149
    %v6166 = vadd.f32 %v6054, %v6150
    %v6167 = vadd.f32 %v6055, %v6151
    %v6168 = vadd.f32 %v6056, %v6152
    %v6169 = vadd.f32 %v6057, %v6153
    %v6170 = vadd.f32 %v6058, %v6154
    %v6171 = vadd.f32 %v6059, %v6155
    %v6172 = vadd.f32 %v6060, %v6156
    %v6173 = vadd.f32 %v6061, %v6157
    %v6174 = vadd.f32 %v6062, %v6158
    %v6175 = vadd.f32 %v6063, %v6159
    %6177 = vset.pattern.permute.xlu0 0
    %6178 = vperm.xlu0 %6177, %v5888
    %v6179 = vpop.permute.xlu0 %6178
    %6182 = vset.pattern.permute.xlu0 0
    %6183 = vperm.xlu0 %6182, %v5889
    %v6184 = vpop.permute.xlu0 %6183
    %6187 = vset.pattern.permute.xlu0 0
    %6188 = vperm.xlu0 %6187, %v5890
    %v6189 = vpop.permute.xlu0 %6188
    %6192 = vset.pattern.permute.xlu0 0
    %6193 = vperm.xlu0 %6192, %v5891
    %v6194 = vpop.permute.xlu0 %6193
    %6197 = vset.pattern.permute.xlu0 0
    %6198 = vperm.xlu0 %6197, %v5892
    %v6199 = vpop.permute.xlu0 %6198
    %6202 = vset.pattern.permute.xlu0 0
    %6203 = vperm.xlu0 %6202, %v5893
    %v6204 = vpop.permute.xlu0 %6203
    %6207 = vset.pattern.permute.xlu0 0
    %6208 = vperm.xlu0 %6207, %v5894
    %v6209 = vpop.permute.xlu0 %6208
    %6212 = vset.pattern.permute.xlu0 0
    %6213 = vperm.xlu0 %6212, %v5895
    %v6214 = vpop.permute.xlu0 %6213
    %6217 = vset.pattern.permute.xlu0 0
    %6218 = vperm.xlu0 %6217, %v5896
    %v6219 = vpop.permute.xlu0 %6218
    %6222 = vset.pattern.permute.xlu0 0
    %6223 = vperm.xlu0 %6222, %v5897
    %v6224 = vpop.permute.xlu0 %6223
    %6227 = vset.pattern.permute.xlu0 0
    %6228 = vperm.xlu0 %6227, %v5898
    %v6229 = vpop.permute.xlu0 %6228
    %6232 = vset.pattern.permute.xlu0 0
    %6233 = vperm.xlu0 %6232, %v5899
    %v6234 = vpop.permute.xlu0 %6233
    %6237 = vset.pattern.permute.xlu0 0
    %6238 = vperm.xlu0 %6237, %v5900
    %v6239 = vpop.permute.xlu0 %6238
    %6242 = vset.pattern.permute.xlu0 0
    %6243 = vperm.xlu0 %6242, %v5901
    %v6244 = vpop.permute.xlu0 %6243
    %6247 = vset.pattern.permute.xlu0 0
    %6248 = vperm.xlu0 %6247, %v5902
    %v6249 = vpop.permute.xlu0 %6248
    %6252 = vset.pattern.permute.xlu0 0
    %6253 = vperm.xlu0 %6252, %v5903
    %v6254 = vpop.permute.xlu0 %6253
    %v6256 = vmul.f32 %v6179, %v5538
    %v6257 = vmul.f32 %v6184, %v5543
    %v6258 = vmul.f32 %v6189, %v5548
    %v6259 = vmul.f32 %v6194, %v5553
    %v6260 = vmul.f32 %v6199, %v5558
    %v6261 = vmul.f32 %v6204, %v5563
    %v6262 = vmul.f32 %v6209, %v5568
    %v6263 = vmul.f32 %v6214, %v5573
    %v6264 = vmul.f32 %v6219, %v5578
    %v6265 = vmul.f32 %v6224, %v5583
    %v6266 = vmul.f32 %v6229, %v5588
    %v6267 = vmul.f32 %v6234, %v5593
    %v6268 = vmul.f32 %v6239, %v5598
    %v6269 = vmul.f32 %v6244, %v5603
    %v6270 = vmul.f32 %v6249, %v5608
    %v6271 = vmul.f32 %v6254, %v5613
    %v6272 = vadd.f32 %v6160, %v6256
    %v6273 = vadd.f32 %v6161, %v6257
    %v6274 = vadd.f32 %v6162, %v6258
    %v6275 = vadd.f32 %v6163, %v6259
    %v6276 = vadd.f32 %v6164, %v6260
    %v6277 = vadd.f32 %v6165, %v6261
    %v6278 = vadd.f32 %v6166, %v6262
    %v6279 = vadd.f32 %v6167, %v6263
    %v6280 = vadd.f32 %v6168, %v6264
    %v6281 = vadd.f32 %v6169, %v6265
    %v6282 = vadd.f32 %v6170, %v6266
    %v6283 = vadd.f32 %v6171, %v6267
    %v6284 = vadd.f32 %v6172, %v6268
    %v6285 = vadd.f32 %v6173, %v6269
    %v6286 = vadd.f32 %v6174, %v6270
    %v6287 = vadd.f32 %v6175, %v6271
    %6289 = vset.pattern.permute.xlu0 0
    %6290 = vperm.xlu0 %6289, %v5936
    %v6291 = vpop.permute.xlu0 %6290
    %6294 = vset.pattern.permute.xlu0 0
    %6295 = vperm.xlu0 %6294, %v5937
    %v6296 = vpop.permute.xlu0 %6295
    %6299 = vset.pattern.permute.xlu0 0
    %6300 = vperm.xlu0 %6299, %v5938
    %v6301 = vpop.permute.xlu0 %6300
    %6304 = vset.pattern.permute.xlu0 0
    %6305 = vperm.xlu0 %6304, %v5939
    %v6306 = vpop.permute.xlu0 %6305
    %6309 = vset.pattern.permute.xlu0 0
    %6310 = vperm.xlu0 %6309, %v5940
    %v6311 = vpop.permute.xlu0 %6310
    %6314 = vset.pattern.permute.xlu0 0
    %6315 = vperm.xlu0 %6314, %v5941
    %v6316 = vpop.permute.xlu0 %6315
    %6319 = vset.pattern.permute.xlu0 0
    %6320 = vperm.xlu0 %6319, %v5942
    %v6321 = vpop.permute.xlu0 %6320
    %6324 = vset.pattern.permute.xlu0 0
    %6325 = vperm.xlu0 %6324, %v5943
    %v6326 = vpop.permute.xlu0 %6325
    %6329 = vset.pattern.permute.xlu0 0
    %6330 = vperm.xlu0 %6329, %v5944
    %v6331 = vpop.permute.xlu0 %6330
    %6334 = vset.pattern.permute.xlu0 0
    %6335 = vperm.xlu0 %6334, %v5945
    %v6336 = vpop.permute.xlu0 %6335
    %6339 = vset.pattern.permute.xlu0 0
    %6340 = vperm.xlu0 %6339, %v5946
    %v6341 = vpop.permute.xlu0 %6340
    %6344 = vset.pattern.permute.xlu0 0
    %6345 = vperm.xlu0 %6344, %v5947
    %v6346 = vpop.permute.xlu0 %6345
    %6349 = vset.pattern.permute.xlu0 0
    %6350 = vperm.xlu0 %6349, %v5948
    %v6351 = vpop.permute.xlu0 %6350
    %6354 = vset.pattern.permute.xlu0 0
    %6355 = vperm.xlu0 %6354, %v5949
    %v6356 = vpop.permute.xlu0 %6355
    %6359 = vset.pattern.permute.xlu0 0
    %6360 = vperm.xlu0 %6359, %v5950
    %v6361 = vpop.permute.xlu0 %6360
    %6364 = vset.pattern.permute.xlu0 0
    %6365 = vperm.xlu0 %6364, %v5951
    %v6366 = vpop.permute.xlu0 %6365
    %v6368 = vmul.f32 %v6291, %v5618
    %v6369 = vmul.f32 %v6296, %v5623
    %v6370 = vmul.f32 %v6301, %v5628
    %v6371 = vmul.f32 %v6306, %v5633
    %v6372 = vmul.f32 %v6311, %v5638
    %v6373 = vmul.f32 %v6316, %v5643
    %v6374 = vmul.f32 %v6321, %v5648
    %v6375 = vmul.f32 %v6326, %v5653
    %v6376 = vmul.f32 %v6331, %v5658
    %v6377 = vmul.f32 %v6336, %v5663
    %v6378 = vmul.f32 %v6341, %v5668
    %v6379 = vmul.f32 %v6346, %v5673
    %v6380 = vmul.f32 %v6351, %v5678
    %v6381 = vmul.f32 %v6356, %v5683
    %v6382 = vmul.f32 %v6361, %v5688
    %v6383 = vmul.f32 %v6366, %v5693
    %v6384 = vadd.f32 %v6272, %v6368
    %v6385 = vadd.f32 %v6273, %v6369
    %v6386 = vadd.f32 %v6274, %v6370
    %v6387 = vadd.f32 %v6275, %v6371
    %v6388 = vadd.f32 %v6276, %v6372
    %v6389 = vadd.f32 %v6277, %v6373
    %v6390 = vadd.f32 %v6278, %v6374
    %v6391 = vadd.f32 %v6279, %v6375
    %v6392 = vadd.f32 %v6280, %v6376
    %v6393 = vadd.f32 %v6281, %v6377
    %v6394 = vadd.f32 %v6282, %v6378
    %v6395 = vadd.f32 %v6283, %v6379
    %v6396 = vadd.f32 %v6284, %v6380
    %v6397 = vadd.f32 %v6285, %v6381
    %v6398 = vadd.f32 %v6286, %v6382
    %v6399 = vadd.f32 %v6287, %v6383
    %6400 = vset.pattern.permute.xlu0 1
    %6401 = vperm.xlu0 %6400, %v5792
    %v6402 = vpop.permute.xlu0 %6401
    %6404 = vset.pattern.permute.xlu0 1
    %6405 = vperm.xlu0 %6404, %v5793
    %v6406 = vpop.permute.xlu0 %6405
    %6408 = vset.pattern.permute.xlu0 1
    %6409 = vperm.xlu0 %6408, %v5794
    %v6410 = vpop.permute.xlu0 %6409
    %6412 = vset.pattern.permute.xlu0 1
    %6413 = vperm.xlu0 %6412, %v5795
    %v6414 = vpop.permute.xlu0 %6413
    %6416 = vset.pattern.permute.xlu0 1
    %6417 = vperm.xlu0 %6416, %v5796
    %v6418 = vpop.permute.xlu0 %6417
    %6420 = vset.pattern.permute.xlu0 1
    %6421 = vperm.xlu0 %6420, %v5797
    %v6422 = vpop.permute.xlu0 %6421
    %6424 = vset.pattern.permute.xlu0 1
    %6425 = vperm.xlu0 %6424, %v5798
    %v6426 = vpop.permute.xlu0 %6425
    %6428 = vset.pattern.permute.xlu0 1
    %6429 = vperm.xlu0 %6428, %v5799
    %v6430 = vpop.permute.xlu0 %6429
    %6432 = vset.pattern.permute.xlu0 1
    %6433 = vperm.xlu0 %6432, %v5800
    %v6434 = vpop.permute.xlu0 %6433
    %6436 = vset.pattern.permute.xlu0 1
    %6437 = vperm.xlu0 %6436, %v5801
    %v6438 = vpop.permute.xlu0 %6437
    %6440 = vset.pattern.permute.xlu0 1
    %6441 = vperm.xlu0 %6440, %v5802
    %v6442 = vpop.permute.xlu0 %6441
    %6444 = vset.pattern.permute.xlu0 1
    %6445 = vperm.xlu0 %6444, %v5803
    %v6446 = vpop.permute.xlu0 %6445
    %6448 = vset.pattern.permute.xlu0 1
    %6449 = vperm.xlu0 %6448, %v5804
    %v6450 = vpop.permute.xlu0 %6449
    %6452 = vset.pattern.permute.xlu0 1
    %6453 = vperm.xlu0 %6452, %v5805
    %v6454 = vpop.permute.xlu0 %6453
    %6456 = vset.pattern.permute.xlu0 1
    %6457 = vperm.xlu0 %6456, %v5806
    %v6458 = vpop.permute.xlu0 %6457
    %6460 = vset.pattern.permute.xlu0 1
    %6461 = vperm.xlu0 %6460, %v5807
    %v6462 = vpop.permute.xlu0 %6461
    %v6464 = vmul.f32 %v6402, %v5378
    %v6465 = vmul.f32 %v6406, %v5383
    %v6466 = vmul.f32 %v6410, %v5388
    %v6467 = vmul.f32 %v6414, %v5393
    %v6468 = vmul.f32 %v6418, %v5398
    %v6469 = vmul.f32 %v6422, %v5403
    %v6470 = vmul.f32 %v6426, %v5408
    %v6471 = vmul.f32 %v6430, %v5413
    %v6472 = vmul.f32 %v6434, %v5418
    %v6473 = vmul.f32 %v6438, %v5423
    %v6474 = vmul.f32 %v6442, %v5428
    %v6475 = vmul.f32 %v6446, %v5433
    %v6476 = vmul.f32 %v6450, %v5438
    %v6477 = vmul.f32 %v6454, %v5443
    %v6478 = vmul.f32 %v6458, %v5448
    %v6479 = vmul.f32 %v6462, %v5453
    %v6480 = vadd.f32 %v6464, 0.0
    %v6481 = vadd.f32 %v6465, 0.0
    %v6482 = vadd.f32 %v6466, 0.0
    %v6483 = vadd.f32 %v6467, 0.0
    %v6484 = vadd.f32 %v6468, 0.0
    %v6485 = vadd.f32 %v6469, 0.0
    %v6486 = vadd.f32 %v6470, 0.0
    %v6487 = vadd.f32 %v6471, 0.0
    %v6488 = vadd.f32 %v6472, 0.0
    %v6489 = vadd.f32 %v6473, 0.0
    %v6490 = vadd.f32 %v6474, 0.0
    %v6491 = vadd.f32 %v6475, 0.0
    %v6492 = vadd.f32 %v6476, 0.0
    %v6493 = vadd.f32 %v6477, 0.0
    %v6494 = vadd.f32 %v6478, 0.0
    %v6495 = vadd.f32 %v6479, 0.0
    %6496 = vset.pattern.permute.xlu0 1
    %6497 = vperm.xlu0 %6496, %v5840
    %v6498 = vpop.permute.xlu0 %6497
    %6500 = vset.pattern.permute.xlu0 1
    %6501 = vperm.xlu0 %6500, %v5841
    %v6502 = vpop.permute.xlu0 %6501
    %6504 = vset.pattern.permute.xlu0 1
    %6505 = vperm.xlu0 %6504, %v5842
    %v6506 = vpop.permute.xlu0 %6505
    %6508 = vset.pattern.permute.xlu0 1
    %6509 = vperm.xlu0 %6508, %v5843
    %v6510 = vpop.permute.xlu0 %6509
    %6512 = vset.pattern.permute.xlu0 1
    %6513 = vperm.xlu0 %6512, %v5844
    %v6514 = vpop.permute.xlu0 %6513
    %6516 = vset.pattern.permute.xlu0 1
    %6517 = vperm.xlu0 %6516, %v5845
    %v6518 = vpop.permute.xlu0 %6517
    %6520 = vset.pattern.permute.xlu0 1
    %6521 = vperm.xlu0 %6520, %v5846
    %v6522 = vpop.permute.xlu0 %6521
    %6524 = vset.pattern.permute.xlu0 1
    %6525 = vperm.xlu0 %6524, %v5847
    %v6526 = vpop.permute.xlu0 %6525
    %6528 = vset.pattern.permute.xlu0 1
    %6529 = vperm.xlu0 %6528, %v5848
    %v6530 = vpop.permute.xlu0 %6529
    %6532 = vset.pattern.permute.xlu0 1
    %6533 = vperm.xlu0 %6532, %v5849
    %v6534 = vpop.permute.xlu0 %6533
    %6536 = vset.pattern.permute.xlu0 1
    %6537 = vperm.xlu0 %6536, %v5850
    %v6538 = vpop.permute.xlu0 %6537
    %6540 = vset.pattern.permute.xlu0 1
    %6541 = vperm.xlu0 %6540, %v5851
    %v6542 = vpop.permute.xlu0 %6541
    %6544 = vset.pattern.permute.xlu0 1
    %6545 = vperm.xlu0 %6544, %v5852
    %v6546 = vpop.permute.xlu0 %6545
    %6548 = vset.pattern.permute.xlu0 1
    %6549 = vperm.xlu0 %6548, %v5853
    %v6550 = vpop.permute.xlu0 %6549
    %6552 = vset.pattern.permute.xlu0 1
    %6553 = vperm.xlu0 %6552, %v5854
    %v6554 = vpop.permute.xlu0 %6553
    %6556 = vset.pattern.permute.xlu0 1
    %6557 = vperm.xlu0 %6556, %v5855
    %v6558 = vpop.permute.xlu0 %6557
    %v6560 = vmul.f32 %v6498, %v5458
    %v6561 = vmul.f32 %v6502, %v5463
    %v6562 = vmul.f32 %v6506, %v5468
    %v6563 = vmul.f32 %v6510, %v5473
    %v6564 = vmul.f32 %v6514, %v5478
    %v6565 = vmul.f32 %v6518, %v5483
    %v6566 = vmul.f32 %v6522, %v5488
    %v6567 = vmul.f32 %v6526, %v5493
    %v6568 = vmul.f32 %v6530, %v5498
    %v6569 = vmul.f32 %v6534, %v5503
    %v6570 = vmul.f32 %v6538, %v5508
    %v6571 = vmul.f32 %v6542, %v5513
    %v6572 = vmul.f32 %v6546, %v5518
    %v6573 = vmul.f32 %v6550, %v5523
    %v6574 = vmul.f32 %v6554, %v5528
    %v6575 = vmul.f32 %v6558, %v5533
    %v6576 = vadd.f32 %v6480, %v6560
    %v6577 = vadd.f32 %v6481, %v6561
    %v6578 = vadd.f32 %v6482, %v6562
    %v6579 = vadd.f32 %v6483, %v6563
    %v6580 = vadd.f32 %v6484, %v6564
    %v6581 = vadd.f32 %v6485, %v6565
    %v6582 = vadd.f32 %v6486, %v6566
    %v6583 = vadd.f32 %v6487, %v6567
    %v6584 = vadd.f32 %v6488, %v6568
    %v6585 = vadd.f32 %v6489, %v6569
    %v6586 = vadd.f32 %v6490, %v6570
    %v6587 = vadd.f32 %v6491, %v6571
    %v6588 = vadd.f32 %v6492, %v6572
    %v6589 = vadd.f32 %v6493, %v6573
    %v6590 = vadd.f32 %v6494, %v6574
    %v6591 = vadd.f32 %v6495, %v6575
    %6592 = vset.pattern.permute.xlu0 1
    %6593 = vperm.xlu0 %6592, %v5888
    %v6594 = vpop.permute.xlu0 %6593
    %6596 = vset.pattern.permute.xlu0 1
    %6597 = vperm.xlu0 %6596, %v5889
    %v6598 = vpop.permute.xlu0 %6597
    %6600 = vset.pattern.permute.xlu0 1
    %6601 = vperm.xlu0 %6600, %v5890
    %v6602 = vpop.permute.xlu0 %6601
    %6604 = vset.pattern.permute.xlu0 1
    %6605 = vperm.xlu0 %6604, %v5891
    %v6606 = vpop.permute.xlu0 %6605
    %6608 = vset.pattern.permute.xlu0 1
    %6609 = vperm.xlu0 %6608, %v5892
    %v6610 = vpop.permute.xlu0 %6609
    %6612 = vset.pattern.permute.xlu0 1
    %6613 = vperm.xlu0 %6612, %v5893
    %v6614 = vpop.permute.xlu0 %6613
    %6616 = vset.pattern.permute.xlu0 1
    %6617 = vperm.xlu0 %6616, %v5894
    %v6618 = vpop.permute.xlu0 %6617
    %6620 = vset.pattern.permute.xlu0 1
    %6621 = vperm.xlu0 %6620, %v5895
    %v6622 = vpop.permute.xlu0 %6621
    %6624 = vset.pattern.permute.xlu0 1
    %6625 = vperm.xlu0 %6624, %v5896
    %v6626 = vpop.permute.xlu0 %6625
    %6628 = vset.pattern.permute.xlu0 1
    %6629 = vperm.xlu0 %6628, %v5897
    %v6630 = vpop.permute.xlu0 %6629
    %6632 = vset.pattern.permute.xlu0 1
    %6633 = vperm.xlu0 %6632, %v5898
    %v6634 = vpop.permute.xlu0 %6633
    %6636 = vset.pattern.permute.xlu0 1
    %6637 = vperm.xlu0 %6636, %v5899
    %v6638 = vpop.permute.xlu0 %6637
    %6640 = vset.pattern.permute.xlu0 1
    %6641 = vperm.xlu0 %6640, %v5900
    %v6642 = vpop.permute.xlu0 %6641
    %6644 = vset.pattern.permute.xlu0 1
    %6645 = vperm.xlu0 %6644, %v5901
    %v6646 = vpop.permute.xlu0 %6645
    %6648 = vset.pattern.permute.xlu0 1
    %6649 = vperm.xlu0 %6648, %v5902
    %v6650 = vpop.permute.xlu0 %6649
    %6652 = vset.pattern.permute.xlu0 1
    %6653 = vperm.xlu0 %6652, %v5903
    %v6654 = vpop.permute.xlu0 %6653
    %v6656 = vmul.f32 %v6594, %v5538
    %v6657 = vmul.f32 %v6598, %v5543
    %v6658 = vmul.f32 %v6602, %v5548
    %v6659 = vmul.f32 %v6606, %v5553
    %v6660 = vmul.f32 %v6610, %v5558
    %v6661 = vmul.f32 %v6614, %v5563
    %v6662 = vmul.f32 %v6618, %v5568
    %v6663 = vmul.f32 %v6622, %v5573
    %v6664 = vmul.f32 %v6626, %v5578
    %v6665 = vmul.f32 %v6630, %v5583
    %v6666 = vmul.f32 %v6634, %v5588
    %v6667 = vmul.f32 %v6638, %v5593
    %v6668 = vmul.f32 %v6642, %v5598
    %v6669 = vmul.f32 %v6646, %v5603
    %v6670 = vmul.f32 %v6650, %v5608
    %v6671 = vmul.f32 %v6654, %v5613
    %v6672 = vadd.f32 %v6576, %v6656
    %v6673 = vadd.f32 %v6577, %v6657
    %v6674 = vadd.f32 %v6578, %v6658
    %v6675 = vadd.f32 %v6579, %v6659
    %v6676 = vadd.f32 %v6580, %v6660
    %v6677 = vadd.f32 %v6581, %v6661
    %v6678 = vadd.f32 %v6582, %v6662
    %v6679 = vadd.f32 %v6583, %v6663
    %v6680 = vadd.f32 %v6584, %v6664
    %v6681 = vadd.f32 %v6585, %v6665
    %v6682 = vadd.f32 %v6586, %v6666
    %v6683 = vadd.f32 %v6587, %v6667
    %v6684 = vadd.f32 %v6588, %v6668
    %v6685 = vadd.f32 %v6589, %v6669
    %v6686 = vadd.f32 %v6590, %v6670
    %v6687 = vadd.f32 %v6591, %v6671
    %6688 = vset.pattern.permute.xlu0 1
    %6689 = vperm.xlu0 %6688, %v5936
    %v6690 = vpop.permute.xlu0 %6689
    %6692 = vset.pattern.permute.xlu0 1
    %6693 = vperm.xlu0 %6692, %v5937
    %v6694 = vpop.permute.xlu0 %6693
    %6696 = vset.pattern.permute.xlu0 1
    %6697 = vperm.xlu0 %6696, %v5938
    %v6698 = vpop.permute.xlu0 %6697
    %6700 = vset.pattern.permute.xlu0 1
    %6701 = vperm.xlu0 %6700, %v5939
    %v6702 = vpop.permute.xlu0 %6701
    %6704 = vset.pattern.permute.xlu0 1
    %6705 = vperm.xlu0 %6704, %v5940
    %v6706 = vpop.permute.xlu0 %6705
    %6708 = vset.pattern.permute.xlu0 1
    %6709 = vperm.xlu0 %6708, %v5941
    %v6710 = vpop.permute.xlu0 %6709
    %6712 = vset.pattern.permute.xlu0 1
    %6713 = vperm.xlu0 %6712, %v5942
    %v6714 = vpop.permute.xlu0 %6713
    %6716 = vset.pattern.permute.xlu0 1
    %6717 = vperm.xlu0 %6716, %v5943
    %v6718 = vpop.permute.xlu0 %6717
    %6720 = vset.pattern.permute.xlu0 1
    %6721 = vperm.xlu0 %6720, %v5944
    %v6722 = vpop.permute.xlu0 %6721
    %6724 = vset.pattern.permute.xlu0 1
    %6725 = vperm.xlu0 %6724, %v5945
    %v6726 = vpop.permute.xlu0 %6725
    %6728 = vset.pattern.permute.xlu0 1
    %6729 = vperm.xlu0 %6728, %v5946
    %v6730 = vpop.permute.xlu0 %6729
    %6732 = vset.pattern.permute.xlu0 1
    %6733 = vperm.xlu0 %6732, %v5947
    %v6734 = vpop.permute.xlu0 %6733
    %6736 = vset.pattern.permute.xlu0 1
    %6737 = vperm.xlu0 %6736, %v5948
    %v6738 = vpop.permute.xlu0 %6737
    %6740 = vset.pattern.permute.xlu0 1
    %6741 = vperm.xlu0 %6740, %v5949
    %v6742 = vpop.permute.xlu0 %6741
    %6744 = vset.pattern.permute.xlu0 1
    %6745 = vperm.xlu0 %6744, %v5950
    %v6746 = vpop.permute.xlu0 %6745
    %6748 = vset.pattern.permute.xlu0 1
    %6749 = vperm.xlu0 %6748, %v5951
    %v6750 = vpop.permute.xlu0 %6749
    %v6752 = vmul.f32 %v6690, %v5618
    %v6753 = vmul.f32 %v6694, %v5623
    %v6754 = vmul.f32 %v6698, %v5628
    %v6755 = vmul.f32 %v6702, %v5633
    %v6756 = vmul.f32 %v6706, %v5638
    %v6757 = vmul.f32 %v6710, %v5643
    %v6758 = vmul.f32 %v6714, %v5648
    %v6759 = vmul.f32 %v6718, %v5653
    %v6760 = vmul.f32 %v6722, %v5658
    %v6761 = vmul.f32 %v6726, %v5663
    %v6762 = vmul.f32 %v6730, %v5668
    %v6763 = vmul.f32 %v6734, %v5673
    %v6764 = vmul.f32 %v6738, %v5678
    %v6765 = vmul.f32 %v6742, %v5683
    %v6766 = vmul.f32 %v6746, %v5688
    %v6767 = vmul.f32 %v6750, %v5693
    %v6768 = vadd.f32 %v6672, %v6752
    %v6769 = vadd.f32 %v6673, %v6753
    %v6770 = vadd.f32 %v6674, %v6754
    %v6771 = vadd.f32 %v6675, %v6755
    %v6772 = vadd.f32 %v6676, %v6756
    %v6773 = vadd.f32 %v6677, %v6757
    %v6774 = vadd.f32 %v6678, %v6758
    %v6775 = vadd.f32 %v6679, %v6759
    %v6776 = vadd.f32 %v6680, %v6760
    %v6777 = vadd.f32 %v6681, %v6761
    %v6778 = vadd.f32 %v6682, %v6762
    %v6779 = vadd.f32 %v6683, %v6763
    %v6780 = vadd.f32 %v6684, %v6764
    %v6781 = vadd.f32 %v6685, %v6765
    %v6782 = vadd.f32 %v6686, %v6766
    %v6783 = vadd.f32 %v6687, %v6767
    %6784 = vset.pattern.permute.xlu0 2
    %6785 = vperm.xlu0 %6784, %v5792
    %v6786 = vpop.permute.xlu0 %6785
    %6788 = vset.pattern.permute.xlu0 2
    %6789 = vperm.xlu0 %6788, %v5793
    %v6790 = vpop.permute.xlu0 %6789
    %6792 = vset.pattern.permute.xlu0 2
    %6793 = vperm.xlu0 %6792, %v5794
    %v6794 = vpop.permute.xlu0 %6793
    %6796 = vset.pattern.permute.xlu0 2
    %6797 = vperm.xlu0 %6796, %v5795
    %v6798 = vpop.permute.xlu0 %6797
    %6800 = vset.pattern.permute.xlu0 2
    %6801 = vperm.xlu0 %6800, %v5796
    %v6802 = vpop.permute.xlu0 %6801
    %6804 = vset.pattern.permute.xlu0 2
    %6805 = vperm.xlu0 %6804, %v5797
    %v6806 = vpop.permute.xlu0 %6805
    %6808 = vset.pattern.permute.xlu0 2
    %6809 = vperm.xlu0 %6808, %v5798
    %v6810 = vpop.permute.xlu0 %6809
    %6812 = vset.pattern.permute.xlu0 2
    %6813 = vperm.xlu0 %6812, %v5799
    %v6814 = vpop.permute.xlu0 %6813
    %6816 = vset.pattern.permute.xlu0 2
    %6817 = vperm.xlu0 %6816, %v5800
    %v6818 = vpop.permute.xlu0 %6817
    %6820 = vset.pattern.permute.xlu0 2
    %6821 = vperm.xlu0 %6820, %v5801
    %v6822 = vpop.permute.xlu0 %6821
    %6824 = vset.pattern.permute.xlu0 2
    %6825 = vperm.xlu0 %6824, %v5802
    %v6826 = vpop.permute.xlu0 %6825
    %6828 = vset.pattern.permute.xlu0 2
    %6829 = vperm.xlu0 %6828, %v5803
    %v6830 = vpop.permute.xlu0 %6829
    %6832 = vset.pattern.permute.xlu0 2
    %6833 = vperm.xlu0 %6832, %v5804
    %v6834 = vpop.permute.xlu0 %6833
    %6836 = vset.pattern.permute.xlu0 2
    %6837 = vperm.xlu0 %6836, %v5805
    %v6838 = vpop.permute.xlu0 %6837
    %6840 = vset.pattern.permute.xlu0 2
    %6841 = vperm.xlu0 %6840, %v5806
    %v6842 = vpop.permute.xlu0 %6841
    %6844 = vset.pattern.permute.xlu0 2
    %6845 = vperm.xlu0 %6844, %v5807
    %v6846 = vpop.permute.xlu0 %6845
    %v6848 = vmul.f32 %v6786, %v5378
    %v6849 = vmul.f32 %v6790, %v5383
    %v6850 = vmul.f32 %v6794, %v5388
    %v6851 = vmul.f32 %v6798, %v5393
    %v6852 = vmul.f32 %v6802, %v5398
    %v6853 = vmul.f32 %v6806, %v5403
    %v6854 = vmul.f32 %v6810, %v5408
    %v6855 = vmul.f32 %v6814, %v5413
    %v6856 = vmul.f32 %v6818, %v5418
    %v6857 = vmul.f32 %v6822, %v5423
    %v6858 = vmul.f32 %v6826, %v5428
    %v6859 = vmul.f32 %v6830, %v5433
    %v6860 = vmul.f32 %v6834, %v5438
    %v6861 = vmul.f32 %v6838, %v5443
    %v6862 = vmul.f32 %v6842, %v5448
    %v6863 = vmul.f32 %v6846, %v5453
    %v6864 = vadd.f32 %v6848, 0.0
    %v6865 = vadd.f32 %v6849, 0.0
    %v6866 = vadd.f32 %v6850, 0.0
    %v6867 = vadd.f32 %v6851, 0.0
    %v6868 = vadd.f32 %v6852, 0.0
    %v6869 = vadd.f32 %v6853, 0.0
    %v6870 = vadd.f32 %v6854, 0.0
    %v6871 = vadd.f32 %v6855, 0.0
    %v6872 = vadd.f32 %v6856, 0.0
    %v6873 = vadd.f32 %v6857, 0.0
    %v6874 = vadd.f32 %v6858, 0.0
    %v6875 = vadd.f32 %v6859, 0.0
    %v6876 = vadd.f32 %v6860, 0.0
    %v6877 = vadd.f32 %v6861, 0.0
    %v6878 = vadd.f32 %v6862, 0.0
    %v6879 = vadd.f32 %v6863, 0.0
    %6880 = vset.pattern.permute.xlu0 2
    %6881 = vperm.xlu0 %6880, %v5840
    %v6882 = vpop.permute.xlu0 %6881
    %6884 = vset.pattern.permute.xlu0 2
    %6885 = vperm.xlu0 %6884, %v5841
    %v6886 = vpop.permute.xlu0 %6885
    %6888 = vset.pattern.permute.xlu0 2
    %6889 = vperm.xlu0 %6888, %v5842
    %v6890 = vpop.permute.xlu0 %6889
    %6892 = vset.pattern.permute.xlu0 2
    %6893 = vperm.xlu0 %6892, %v5843
    %v6894 = vpop.permute.xlu0 %6893
    %6896 = vset.pattern.permute.xlu0 2
    %6897 = vperm.xlu0 %6896, %v5844
    %v6898 = vpop.permute.xlu0 %6897
    %6900 = vset.pattern.permute.xlu0 2
    %6901 = vperm.xlu0 %6900, %v5845
    %v6902 = vpop.permute.xlu0 %6901
    %6904 = vset.pattern.permute.xlu0 2
    %6905 = vperm.xlu0 %6904, %v5846
    %v6906 = vpop.permute.xlu0 %6905
    %6908 = vset.pattern.permute.xlu0 2
    %6909 = vperm.xlu0 %6908, %v5847
    %v6910 = vpop.permute.xlu0 %6909
    %6912 = vset.pattern.permute.xlu0 2
    %6913 = vperm.xlu0 %6912, %v5848
    %v6914 = vpop.permute.xlu0 %6913
    %6916 = vset.pattern.permute.xlu0 2
    %6917 = vperm.xlu0 %6916, %v5849
    %v6918 = vpop.permute.xlu0 %6917
    %6920 = vset.pattern.permute.xlu0 2
    %6921 = vperm.xlu0 %6920, %v5850
    %v6922 = vpop.permute.xlu0 %6921
    %6924 = vset.pattern.permute.xlu0 2
    %6925 = vperm.xlu0 %6924, %v5851
    %v6926 = vpop.permute.xlu0 %6925
    %6928 = vset.pattern.permute.xlu0 2
    %6929 = vperm.xlu0 %6928, %v5852
    %v6930 = vpop.permute.xlu0 %6929
    %6932 = vset.pattern.permute.xlu0 2
    %6933 = vperm.xlu0 %6932, %v5853
    %v6934 = vpop.permute.xlu0 %6933
    %6936 = vset.pattern.permute.xlu0 2
    %6937 = vperm.xlu0 %6936, %v5854
    %v6938 = vpop.permute.xlu0 %6937
    %6940 = vset.pattern.permute.xlu0 2
    %6941 = vperm.xlu0 %6940, %v5855
    %v6942 = vpop.permute.xlu0 %6941
    %v6944 = vmul.f32 %v6882, %v5458
    %v6945 = vmul.f32 %v6886, %v5463
    %v6946 = vmul.f32 %v6890, %v5468
    %v6947 = vmul.f32 %v6894, %v5473
    %v6948 = vmul.f32 %v6898, %v5478
    %v6949 = vmul.f32 %v6902, %v5483
    %v6950 = vmul.f32 %v6906, %v5488
    %v6951 = vmul.f32 %v6910, %v5493
    %v6952 = vmul.f32 %v6914, %v5498
    %v6953 = vmul.f32 %v6918, %v5503
    %v6954 = vmul.f32 %v6922, %v5508
    %v6955 = vmul.f32 %v6926, %v5513
    %v6956 = vmul.f32 %v6930, %v5518
    %v6957 = vmul.f32 %v6934, %v5523
    %v6958 = vmul.f32 %v6938, %v5528
    %v6959 = vmul.f32 %v6942, %v5533
    %v6960 = vadd.f32 %v6864, %v6944
    %v6961 = vadd.f32 %v6865, %v6945
    %v6962 = vadd.f32 %v6866, %v6946
    %v6963 = vadd.f32 %v6867, %v6947
    %v6964 = vadd.f32 %v6868, %v6948
    %v6965 = vadd.f32 %v6869, %v6949
    %v6966 = vadd.f32 %v6870, %v6950
    %v6967 = vadd.f32 %v6871, %v6951
    %v6968 = vadd.f32 %v6872, %v6952
    %v6969 = vadd.f32 %v6873, %v6953
    %v6970 = vadd.f32 %v6874, %v6954
    %v6971 = vadd.f32 %v6875, %v6955
    %v6972 = vadd.f32 %v6876, %v6956
    %v6973 = vadd.f32 %v6877, %v6957
    %v6974 = vadd.f32 %v6878, %v6958
    %v6975 = vadd.f32 %v6879, %v6959
    %6976 = vset.pattern.permute.xlu0 2
    %6977 = vperm.xlu0 %6976, %v5888
    %v6978 = vpop.permute.xlu0 %6977
    %6980 = vset.pattern.permute.xlu0 2
    %6981 = vperm.xlu0 %6980, %v5889
    %v6982 = vpop.permute.xlu0 %6981
    %6984 = vset.pattern.permute.xlu0 2
    %6985 = vperm.xlu0 %6984, %v5890
    %v6986 = vpop.permute.xlu0 %6985
    %6988 = vset.pattern.permute.xlu0 2
    %6989 = vperm.xlu0 %6988, %v5891
    %v6990 = vpop.permute.xlu0 %6989
    %6992 = vset.pattern.permute.xlu0 2
    %6993 = vperm.xlu0 %6992, %v5892
    %v6994 = vpop.permute.xlu0 %6993
    %6996 = vset.pattern.permute.xlu0 2
    %6997 = vperm.xlu0 %6996, %v5893
    %v6998 = vpop.permute.xlu0 %6997
    %7000 = vset.pattern.permute.xlu0 2
    %7001 = vperm.xlu0 %7000, %v5894
    %v7002 = vpop.permute.xlu0 %7001
    %7004 = vset.pattern.permute.xlu0 2
    %7005 = vperm.xlu0 %7004, %v5895
    %v7006 = vpop.permute.xlu0 %7005
    %7008 = vset.pattern.permute.xlu0 2
    %7009 = vperm.xlu0 %7008, %v5896
    %v7010 = vpop.permute.xlu0 %7009
    %7012 = vset.pattern.permute.xlu0 2
    %7013 = vperm.xlu0 %7012, %v5897
    %v7014 = vpop.permute.xlu0 %7013
    %7016 = vset.pattern.permute.xlu0 2
    %7017 = vperm.xlu0 %7016, %v5898
    %v7018 = vpop.permute.xlu0 %7017
    %7020 = vset.pattern.permute.xlu0 2
    %7021 = vperm.xlu0 %7020, %v5899
    %v7022 = vpop.permute.xlu0 %7021
    %7024 = vset.pattern.permute.xlu0 2
    %7025 = vperm.xlu0 %7024, %v5900
    %v7026 = vpop.permute.xlu0 %7025
    %7028 = vset.pattern.permute.xlu0 2
    %7029 = vperm.xlu0 %7028, %v5901
    %v7030 = vpop.permute.xlu0 %7029
    %7032 = vset.pattern.permute.xlu0 2
    %7033 = vperm.xlu0 %7032, %v5902
    %v7034 = vpop.permute.xlu0 %7033
    %7036 = vset.pattern.permute.xlu0 2
    %7037 = vperm.xlu0 %7036, %v5903
    %v7038 = vpop.permute.xlu0 %7037
    %v7040 = vmul.f32 %v6978, %v5538
    %v7041 = vmul.f32 %v6982, %v5543
    %v7042 = vmul.f32 %v6986, %v5548
    %v7043 = vmul.f32 %v6990, %v5553
    %v7044 = vmul.f32 %v6994, %v5558
    %v7045 = vmul.f32 %v6998, %v5563
    %v7046 = vmul.f32 %v7002, %v5568
    %v7047 = vmul.f32 %v7006, %v5573
    %v7048 = vmul.f32 %v7010, %v5578
    %v7049 = vmul.f32 %v7014, %v5583
    %v7050 = vmul.f32 %v7018, %v5588
    %v7051 = vmul.f32 %v7022, %v5593
    %v7052 = vmul.f32 %v7026, %v5598
    %v7053 = vmul.f32 %v7030, %v5603
    %v7054 = vmul.f32 %v7034, %v5608
    %v7055 = vmul.f32 %v7038, %v5613
    %v7056 = vadd.f32 %v6960, %v7040
    %v7057 = vadd.f32 %v6961, %v7041
    %v7058 = vadd.f32 %v6962, %v7042
    %v7059 = vadd.f32 %v6963, %v7043
    %v7060 = vadd.f32 %v6964, %v7044
    %v7061 = vadd.f32 %v6965, %v7045
    %v7062 = vadd.f32 %v6966, %v7046
    %v7063 = vadd.f32 %v6967, %v7047
    %v7064 = vadd.f32 %v6968, %v7048
    %v7065 = vadd.f32 %v6969, %v7049
    %v7066 = vadd.f32 %v6970, %v7050
    %v7067 = vadd.f32 %v6971, %v7051
    %v7068 = vadd.f32 %v6972, %v7052
    %v7069 = vadd.f32 %v6973, %v7053
    %v7070 = vadd.f32 %v6974, %v7054
    %v7071 = vadd.f32 %v6975, %v7055
    %7072 = vset.pattern.permute.xlu0 2
    %7073 = vperm.xlu0 %7072, %v5936
    %v7074 = vpop.permute.xlu0 %7073
    %7076 = vset.pattern.permute.xlu0 2
    %7077 = vperm.xlu0 %7076, %v5937
    %v7078 = vpop.permute.xlu0 %7077
    %7080 = vset.pattern.permute.xlu0 2
    %7081 = vperm.xlu0 %7080, %v5938
    %v7082 = vpop.permute.xlu0 %7081
    %7084 = vset.pattern.permute.xlu0 2
    %7085 = vperm.xlu0 %7084, %v5939
    %v7086 = vpop.permute.xlu0 %7085
    %7088 = vset.pattern.permute.xlu0 2
    %7089 = vperm.xlu0 %7088, %v5940
    %v7090 = vpop.permute.xlu0 %7089
    %7092 = vset.pattern.permute.xlu0 2
    %7093 = vperm.xlu0 %7092, %v5941
    %v7094 = vpop.permute.xlu0 %7093
    %7096 = vset.pattern.permute.xlu0 2
    %7097 = vperm.xlu0 %7096, %v5942
    %v7098 = vpop.permute.xlu0 %7097
    %7100 = vset.pattern.permute.xlu0 2
    %7101 = vperm.xlu0 %7100, %v5943
    %v7102 = vpop.permute.xlu0 %7101
    %7104 = vset.pattern.permute.xlu0 2
    %7105 = vperm.xlu0 %7104, %v5944
    %v7106 = vpop.permute.xlu0 %7105
    %7108 = vset.pattern.permute.xlu0 2
    %7109 = vperm.xlu0 %7108, %v5945
    %v7110 = vpop.permute.xlu0 %7109
    %7112 = vset.pattern.permute.xlu0 2
    %7113 = vperm.xlu0 %7112, %v5946
    %v7114 = vpop.permute.xlu0 %7113
    %7116 = vset.pattern.permute.xlu0 2
    %7117 = vperm.xlu0 %7116, %v5947
    %v7118 = vpop.permute.xlu0 %7117
    %7120 = vset.pattern.permute.xlu0 2
    %7121 = vperm.xlu0 %7120, %v5948
    %v7122 = vpop.permute.xlu0 %7121
    %7124 = vset.pattern.permute.xlu0 2
    %7125 = vperm.xlu0 %7124, %v5949
    %v7126 = vpop.permute.xlu0 %7125
    %7128 = vset.pattern.permute.xlu0 2
    %7129 = vperm.xlu0 %7128, %v5950
    %v7130 = vpop.permute.xlu0 %7129
    %7132 = vset.pattern.permute.xlu0 2
    %7133 = vperm.xlu0 %7132, %v5951
    %v7134 = vpop.permute.xlu0 %7133
    %v7136 = vmul.f32 %v7074, %v5618
    %v7137 = vmul.f32 %v7078, %v5623
    %v7138 = vmul.f32 %v7082, %v5628
    %v7139 = vmul.f32 %v7086, %v5633
    %v7140 = vmul.f32 %v7090, %v5638
    %v7141 = vmul.f32 %v7094, %v5643
    %v7142 = vmul.f32 %v7098, %v5648
    %v7143 = vmul.f32 %v7102, %v5653
    %v7144 = vmul.f32 %v7106, %v5658
    %v7145 = vmul.f32 %v7110, %v5663
    %v7146 = vmul.f32 %v7114, %v5668
    %v7147 = vmul.f32 %v7118, %v5673
    %v7148 = vmul.f32 %v7122, %v5678
    %v7149 = vmul.f32 %v7126, %v5683
    %v7150 = vmul.f32 %v7130, %v5688
    %v7151 = vmul.f32 %v7134, %v5693
    %v7152 = vadd.f32 %v7056, %v7136
    %v7153 = vadd.f32 %v7057, %v7137
    %v7154 = vadd.f32 %v7058, %v7138
    %v7155 = vadd.f32 %v7059, %v7139
    %v7156 = vadd.f32 %v7060, %v7140
    %v7157 = vadd.f32 %v7061, %v7141
    %v7158 = vadd.f32 %v7062, %v7142
    %v7159 = vadd.f32 %v7063, %v7143
    %v7160 = vadd.f32 %v7064, %v7144
    %v7161 = vadd.f32 %v7065, %v7145
    %v7162 = vadd.f32 %v7066, %v7146
    %v7163 = vadd.f32 %v7067, %v7147
    %v7164 = vadd.f32 %v7068, %v7148
    %v7165 = vadd.f32 %v7069, %v7149
    %v7166 = vadd.f32 %v7070, %v7150
    %v7167 = vadd.f32 %v7071, %v7151
    %7168 = vset.pattern.permute.xlu0 3
    %7169 = vperm.xlu0 %7168, %v5792
    %v7170 = vpop.permute.xlu0 %7169
    %7172 = vset.pattern.permute.xlu0 3
    %7173 = vperm.xlu0 %7172, %v5793
    %v7174 = vpop.permute.xlu0 %7173
    %7176 = vset.pattern.permute.xlu0 3
    %7177 = vperm.xlu0 %7176, %v5794
    %v7178 = vpop.permute.xlu0 %7177
    %7180 = vset.pattern.permute.xlu0 3
    %7181 = vperm.xlu0 %7180, %v5795
    %v7182 = vpop.permute.xlu0 %7181
    %7184 = vset.pattern.permute.xlu0 3
    %7185 = vperm.xlu0 %7184, %v5796
    %v7186 = vpop.permute.xlu0 %7185
    %7188 = vset.pattern.permute.xlu0 3
    %7189 = vperm.xlu0 %7188, %v5797
    %v7190 = vpop.permute.xlu0 %7189
    %7192 = vset.pattern.permute.xlu0 3
    %7193 = vperm.xlu0 %7192, %v5798
    %v7194 = vpop.permute.xlu0 %7193
    %7196 = vset.pattern.permute.xlu0 3
    %7197 = vperm.xlu0 %7196, %v5799
    %v7198 = vpop.permute.xlu0 %7197
    %7200 = vset.pattern.permute.xlu0 3
    %7201 = vperm.xlu0 %7200, %v5800
    %v7202 = vpop.permute.xlu0 %7201
    %7204 = vset.pattern.permute.xlu0 3
    %7205 = vperm.xlu0 %7204, %v5801
    %v7206 = vpop.permute.xlu0 %7205
    %7208 = vset.pattern.permute.xlu0 3
    %7209 = vperm.xlu0 %7208, %v5802
    %v7210 = vpop.permute.xlu0 %7209
    %7212 = vset.pattern.permute.xlu0 3
    %7213 = vperm.xlu0 %7212, %v5803
    %v7214 = vpop.permute.xlu0 %7213
    %7216 = vset.pattern.permute.xlu0 3
    %7217 = vperm.xlu0 %7216, %v5804
    %v7218 = vpop.permute.xlu0 %7217
    %7220 = vset.pattern.permute.xlu0 3
    %7221 = vperm.xlu0 %7220, %v5805
    %v7222 = vpop.permute.xlu0 %7221
    %7224 = vset.pattern.permute.xlu0 3
    %7225 = vperm.xlu0 %7224, %v5806
    %v7226 = vpop.permute.xlu0 %7225
    %7228 = vset.pattern.permute.xlu0 3
    %7229 = vperm.xlu0 %7228, %v5807
    %v7230 = vpop.permute.xlu0 %7229
    %v7232 = vmul.f32 %v7170, %v5378
    %v7233 = vmul.f32 %v7174, %v5383
    %v7234 = vmul.f32 %v7178, %v5388
    %v7235 = vmul.f32 %v7182, %v5393
    %v7236 = vmul.f32 %v7186, %v5398
    %v7237 = vmul.f32 %v7190, %v5403
    %v7238 = vmul.f32 %v7194, %v5408
    %v7239 = vmul.f32 %v7198, %v5413
    %v7240 = vmul.f32 %v7202, %v5418
    %v7241 = vmul.f32 %v7206, %v5423
    %v7242 = vmul.f32 %v7210, %v5428
    %v7243 = vmul.f32 %v7214, %v5433
    %v7244 = vmul.f32 %v7218, %v5438
    %v7245 = vmul.f32 %v7222, %v5443
    %v7246 = vmul.f32 %v7226, %v5448
    %v7247 = vmul.f32 %v7230, %v5453
    %v7248 = vadd.f32 %v7232, 0.0
    %v7249 = vadd.f32 %v7233, 0.0
    %v7250 = vadd.f32 %v7234, 0.0
    %v7251 = vadd.f32 %v7235, 0.0
    %v7252 = vadd.f32 %v7236, 0.0
    %v7253 = vadd.f32 %v7237, 0.0
    %v7254 = vadd.f32 %v7238, 0.0
    %v7255 = vadd.f32 %v7239, 0.0
    %v7256 = vadd.f32 %v7240, 0.0
    %v7257 = vadd.f32 %v7241, 0.0
    %v7258 = vadd.f32 %v7242, 0.0
    %v7259 = vadd.f32 %v7243, 0.0
    %v7260 = vadd.f32 %v7244, 0.0
    %v7261 = vadd.f32 %v7245, 0.0
    %v7262 = vadd.f32 %v7246, 0.0
    %v7263 = vadd.f32 %v7247, 0.0
    %7264 = vset.pattern.permute.xlu0 3
    %7265 = vperm.xlu0 %7264, %v5840
    %v7266 = vpop.permute.xlu0 %7265
    %7268 = vset.pattern.permute.xlu0 3
    %7269 = vperm.xlu0 %7268, %v5841
    %v7270 = vpop.permute.xlu0 %7269
    %7272 = vset.pattern.permute.xlu0 3
    %7273 = vperm.xlu0 %7272, %v5842
    %v7274 = vpop.permute.xlu0 %7273
    %7276 = vset.pattern.permute.xlu0 3
    %7277 = vperm.xlu0 %7276, %v5843
    %v7278 = vpop.permute.xlu0 %7277
    %7280 = vset.pattern.permute.xlu0 3
    %7281 = vperm.xlu0 %7280, %v5844
    %v7282 = vpop.permute.xlu0 %7281
    %7284 = vset.pattern.permute.xlu0 3
    %7285 = vperm.xlu0 %7284, %v5845
    %v7286 = vpop.permute.xlu0 %7285
    %7288 = vset.pattern.permute.xlu0 3
    %7289 = vperm.xlu0 %7288, %v5846
    %v7290 = vpop.permute.xlu0 %7289
    %7292 = vset.pattern.permute.xlu0 3
    %7293 = vperm.xlu0 %7292, %v5847
    %v7294 = vpop.permute.xlu0 %7293
    %7296 = vset.pattern.permute.xlu0 3
    %7297 = vperm.xlu0 %7296, %v5848
    %v7298 = vpop.permute.xlu0 %7297
    %7300 = vset.pattern.permute.xlu0 3
    %7301 = vperm.xlu0 %7300, %v5849
    %v7302 = vpop.permute.xlu0 %7301
    %7304 = vset.pattern.permute.xlu0 3
    %7305 = vperm.xlu0 %7304, %v5850
    %v7306 = vpop.permute.xlu0 %7305
    %7308 = vset.pattern.permute.xlu0 3
    %7309 = vperm.xlu0 %7308, %v5851
    %v7310 = vpop.permute.xlu0 %7309
    %7312 = vset.pattern.permute.xlu0 3
    %7313 = vperm.xlu0 %7312, %v5852
    %v7314 = vpop.permute.xlu0 %7313
    %7316 = vset.pattern.permute.xlu0 3
    %7317 = vperm.xlu0 %7316, %v5853
    %v7318 = vpop.permute.xlu0 %7317
    %7320 = vset.pattern.permute.xlu0 3
    %7321 = vperm.xlu0 %7320, %v5854
    %v7322 = vpop.permute.xlu0 %7321
    %7324 = vset.pattern.permute.xlu0 3
    %7325 = vperm.xlu0 %7324, %v5855
    %v7326 = vpop.permute.xlu0 %7325
    %v7328 = vmul.f32 %v7266, %v5458
    %v7329 = vmul.f32 %v7270, %v5463
    %v7330 = vmul.f32 %v7274, %v5468
    %v7331 = vmul.f32 %v7278, %v5473
    %v7332 = vmul.f32 %v7282, %v5478
    %v7333 = vmul.f32 %v7286, %v5483
    %v7334 = vmul.f32 %v7290, %v5488
    %v7335 = vmul.f32 %v7294, %v5493
    %v7336 = vmul.f32 %v7298, %v5498
    %v7337 = vmul.f32 %v7302, %v5503
    %v7338 = vmul.f32 %v7306, %v5508
    %v7339 = vmul.f32 %v7310, %v5513
    %v7340 = vmul.f32 %v7314, %v5518
    %v7341 = vmul.f32 %v7318, %v5523
    %v7342 = vmul.f32 %v7322, %v5528
    %v7343 = vmul.f32 %v7326, %v5533
    %v7344 = vadd.f32 %v7248, %v7328
    %v7345 = vadd.f32 %v7249, %v7329
    %v7346 = vadd.f32 %v7250, %v7330
    %v7347 = vadd.f32 %v7251, %v7331
    %v7348 = vadd.f32 %v7252, %v7332
    %v7349 = vadd.f32 %v7253, %v7333
    %v7350 = vadd.f32 %v7254, %v7334
    %v7351 = vadd.f32 %v7255, %v7335
    %v7352 = vadd.f32 %v7256, %v7336
    %v7353 = vadd.f32 %v7257, %v7337
    %v7354 = vadd.f32 %v7258, %v7338
    %v7355 = vadd.f32 %v7259, %v7339
    %v7356 = vadd.f32 %v7260, %v7340
    %v7357 = vadd.f32 %v7261, %v7341
    %v7358 = vadd.f32 %v7262, %v7342
    %v7359 = vadd.f32 %v7263, %v7343
    %7360 = vset.pattern.permute.xlu0 3
    %7361 = vperm.xlu0 %7360, %v5888
    %v7362 = vpop.permute.xlu0 %7361
    %7364 = vset.pattern.permute.xlu0 3
    %7365 = vperm.xlu0 %7364, %v5889
    %v7366 = vpop.permute.xlu0 %7365
    %7368 = vset.pattern.permute.xlu0 3
    %7369 = vperm.xlu0 %7368, %v5890
    %v7370 = vpop.permute.xlu0 %7369
    %7372 = vset.pattern.permute.xlu0 3
    %7373 = vperm.xlu0 %7372, %v5891
    %v7374 = vpop.permute.xlu0 %7373
    %7376 = vset.pattern.permute.xlu0 3
    %7377 = vperm.xlu0 %7376, %v5892
    %v7378 = vpop.permute.xlu0 %7377
    %7380 = vset.pattern.permute.xlu0 3
    %7381 = vperm.xlu0 %7380, %v5893
    %v7382 = vpop.permute.xlu0 %7381
    %7384 = vset.pattern.permute.xlu0 3
    %7385 = vperm.xlu0 %7384, %v5894
    %v7386 = vpop.permute.xlu0 %7385
    %7388 = vset.pattern.permute.xlu0 3
    %7389 = vperm.xlu0 %7388, %v5895
    %v7390 = vpop.permute.xlu0 %7389
    %7392 = vset.pattern.permute.xlu0 3
    %7393 = vperm.xlu0 %7392, %v5896
    %v7394 = vpop.permute.xlu0 %7393
    %7396 = vset.pattern.permute.xlu0 3
    %7397 = vperm.xlu0 %7396, %v5897
    %v7398 = vpop.permute.xlu0 %7397
    %7400 = vset.pattern.permute.xlu0 3
    %7401 = vperm.xlu0 %7400, %v5898
    %v7402 = vpop.permute.xlu0 %7401
    %7404 = vset.pattern.permute.xlu0 3
    %7405 = vperm.xlu0 %7404, %v5899
    %v7406 = vpop.permute.xlu0 %7405
    %7408 = vset.pattern.permute.xlu0 3
    %7409 = vperm.xlu0 %7408, %v5900
    %v7410 = vpop.permute.xlu0 %7409
    %7412 = vset.pattern.permute.xlu0 3
    %7413 = vperm.xlu0 %7412, %v5901
    %v7414 = vpop.permute.xlu0 %7413
    %7416 = vset.pattern.permute.xlu0 3
    %7417 = vperm.xlu0 %7416, %v5902
    %v7418 = vpop.permute.xlu0 %7417
    %7420 = vset.pattern.permute.xlu0 3
    %7421 = vperm.xlu0 %7420, %v5903
    %v7422 = vpop.permute.xlu0 %7421
    %v7424 = vmul.f32 %v7362, %v5538
    %v7425 = vmul.f32 %v7366, %v5543
    %v7426 = vmul.f32 %v7370, %v5548
    %v7427 = vmul.f32 %v7374, %v5553
    %v7428 = vmul.f32 %v7378, %v5558
    %v7429 = vmul.f32 %v7382, %v5563
    %v7430 = vmul.f32 %v7386, %v5568
    %v7431 = vmul.f32 %v7390, %v5573
    %v7432 = vmul.f32 %v7394, %v5578
    %v7433 = vmul.f32 %v7398, %v5583
    %v7434 = vmul.f32 %v7402, %v5588
    %v7435 = vmul.f32 %v7406, %v5593
    %v7436 = vmul.f32 %v7410, %v5598
    %v7437 = vmul.f32 %v7414, %v5603
    %v7438 = vmul.f32 %v7418, %v5608
    %v7439 = vmul.f32 %v7422, %v5613
    %v7440 = vadd.f32 %v7344, %v7424
    %v7441 = vadd.f32 %v7345, %v7425
    %v7442 = vadd.f32 %v7346, %v7426
    %v7443 = vadd.f32 %v7347, %v7427
    %v7444 = vadd.f32 %v7348, %v7428
    %v7445 = vadd.f32 %v7349, %v7429
    %v7446 = vadd.f32 %v7350, %v7430
    %v7447 = vadd.f32 %v7351, %v7431
    %v7448 = vadd.f32 %v7352, %v7432
    %v7449 = vadd.f32 %v7353, %v7433
    %v7450 = vadd.f32 %v7354, %v7434
    %v7451 = vadd.f32 %v7355, %v7435
    %v7452 = vadd.f32 %v7356, %v7436
    %v7453 = vadd.f32 %v7357, %v7437
    %v7454 = vadd.f32 %v7358, %v7438
    %v7455 = vadd.f32 %v7359, %v7439
    %7456 = vset.pattern.permute.xlu0 3
    %7457 = vperm.xlu0 %7456, %v5936
    %v7458 = vpop.permute.xlu0 %7457
    %7460 = vset.pattern.permute.xlu0 3
    %7461 = vperm.xlu0 %7460, %v5937
    %v7462 = vpop.permute.xlu0 %7461
    %7464 = vset.pattern.permute.xlu0 3
    %7465 = vperm.xlu0 %7464, %v5938
    %v7466 = vpop.permute.xlu0 %7465
    %7468 = vset.pattern.permute.xlu0 3
    %7469 = vperm.xlu0 %7468, %v5939
    %v7470 = vpop.permute.xlu0 %7469
    %7472 = vset.pattern.permute.xlu0 3
    %7473 = vperm.xlu0 %7472, %v5940
    %v7474 = vpop.permute.xlu0 %7473
    %7476 = vset.pattern.permute.xlu0 3
    %7477 = vperm.xlu0 %7476, %v5941
    %v7478 = vpop.permute.xlu0 %7477
    %7480 = vset.pattern.permute.xlu0 3
    %7481 = vperm.xlu0 %7480, %v5942
    %v7482 = vpop.permute.xlu0 %7481
    %7484 = vset.pattern.permute.xlu0 3
    %7485 = vperm.xlu0 %7484, %v5943
    %v7486 = vpop.permute.xlu0 %7485
    %7488 = vset.pattern.permute.xlu0 3
    %7489 = vperm.xlu0 %7488, %v5944
    %v7490 = vpop.permute.xlu0 %7489
    %7492 = vset.pattern.permute.xlu0 3
    %7493 = vperm.xlu0 %7492, %v5945
    %v7494 = vpop.permute.xlu0 %7493
    %7496 = vset.pattern.permute.xlu0 3
    %7497 = vperm.xlu0 %7496, %v5946
    %v7498 = vpop.permute.xlu0 %7497
    %7500 = vset.pattern.permute.xlu0 3
    %7501 = vperm.xlu0 %7500, %v5947
    %v7502 = vpop.permute.xlu0 %7501
    %7504 = vset.pattern.permute.xlu0 3
    %7505 = vperm.xlu0 %7504, %v5948
    %v7506 = vpop.permute.xlu0 %7505
    %7508 = vset.pattern.permute.xlu0 3
    %7509 = vperm.xlu0 %7508, %v5949
    %v7510 = vpop.permute.xlu0 %7509
    %7512 = vset.pattern.permute.xlu0 3
    %7513 = vperm.xlu0 %7512, %v5950
    %v7514 = vpop.permute.xlu0 %7513
    %7516 = vset.pattern.permute.xlu0 3
    %7517 = vperm.xlu0 %7516, %v5951
    %v7518 = vpop.permute.xlu0 %7517
    %v7520 = vmul.f32 %v7458, %v5618
    %v7521 = vmul.f32 %v7462, %v5623
    %v7522 = vmul.f32 %v7466, %v5628
    %v7523 = vmul.f32 %v7470, %v5633
    %v7524 = vmul.f32 %v7474, %v5638
    %v7525 = vmul.f32 %v7478, %v5643
    %v7526 = vmul.f32 %v7482, %v5648
    %v7527 = vmul.f32 %v7486, %v5653
    %v7528 = vmul.f32 %v7490, %v5658
    %v7529 = vmul.f32 %v7494, %v5663
    %v7530 = vmul.f32 %v7498, %v5668
    %v7531 = vmul.f32 %v7502, %v5673
    %v7532 = vmul.f32 %v7506, %v5678
    %v7533 = vmul.f32 %v7510, %v5683
    %v7534 = vmul.f32 %v7514, %v5688
    %v7535 = vmul.f32 %v7518, %v5693
    %v7536 = vadd.f32 %v7440, %v7520
    %v7537 = vadd.f32 %v7441, %v7521
    %v7538 = vadd.f32 %v7442, %v7522
    %v7539 = vadd.f32 %v7443, %v7523
    %v7540 = vadd.f32 %v7444, %v7524
    %v7541 = vadd.f32 %v7445, %v7525
    %v7542 = vadd.f32 %v7446, %v7526
    %v7543 = vadd.f32 %v7447, %v7527
    %v7544 = vadd.f32 %v7448, %v7528
    %v7545 = vadd.f32 %v7449, %v7529
    %v7546 = vadd.f32 %v7450, %v7530
    %v7547 = vadd.f32 %v7451, %v7531
    %v7548 = vadd.f32 %v7452, %v7532
    %v7549 = vadd.f32 %v7453, %v7533
    %v7550 = vadd.f32 %v7454, %v7534
    %v7551 = vadd.f32 %v7455, %v7535
    %v7552 = vmul.f32 %v5955, %v6768
    %v7553 = vmul.f32 %v5960, %v6769
    %v7554 = vmul.f32 %v5965, %v6770
    %v7555 = vmul.f32 %v5970, %v6771
    %v7556 = vmul.f32 %v5975, %v6772
    %v7557 = vmul.f32 %v5980, %v6773
    %v7558 = vmul.f32 %v5985, %v6774
    %v7559 = vmul.f32 %v5990, %v6775
    %v7560 = vmul.f32 %v5995, %v6776
    %v7561 = vmul.f32 %v6000, %v6777
    %v7562 = vmul.f32 %v6005, %v6778
    %v7563 = vmul.f32 %v6010, %v6779
    %v7564 = vmul.f32 %v6015, %v6780
    %v7565 = vmul.f32 %v6020, %v6781
    %v7566 = vmul.f32 %v6025, %v6782
    %v7567 = vmul.f32 %v6030, %v6783
    %v7568 = vadd.f32 %v7552, 0.0
    %v7569 = vadd.f32 %v7553, 0.0
    %v7570 = vadd.f32 %v7554, 0.0
    %v7571 = vadd.f32 %v7555, 0.0
    %v7572 = vadd.f32 %v7556, 0.0
    %v7573 = vadd.f32 %v7557, 0.0
    %v7574 = vadd.f32 %v7558, 0.0
    %v7575 = vadd.f32 %v7559, 0.0
    %v7576 = vadd.f32 %v7560, 0.0
    %v7577 = vadd.f32 %v7561, 0.0
    %v7578 = vadd.f32 %v7562, 0.0
    %v7579 = vadd.f32 %v7563, 0.0
    %v7580 = vadd.f32 %v7564, 0.0
    %v7581 = vadd.f32 %v7565, 0.0
    %v7582 = vadd.f32 %v7566, 0.0
    %v7583 = vadd.f32 %v7567, 0.0
    %v7584 = vmul.f32 %v6402, %v6384
    %v7585 = vmul.f32 %v6406, %v6385
    %v7586 = vmul.f32 %v6410, %v6386
    %v7587 = vmul.f32 %v6414, %v6387
    %v7588 = vmul.f32 %v6418, %v6388
    %v7589 = vmul.f32 %v6422, %v6389
    %v7590 = vmul.f32 %v6426, %v6390
    %v7591 = vmul.f32 %v6430, %v6391
    %v7592 = vmul.f32 %v6434, %v6392
    %v7593 = vmul.f32 %v6438, %v6393
    %v7594 = vmul.f32 %v6442, %v6394
    %v7595 = vmul.f32 %v6446, %v6395
    %v7596 = vmul.f32 %v6450, %v6396
    %v7597 = vmul.f32 %v6454, %v6397
    %v7598 = vmul.f32 %v6458, %v6398
    %v7599 = vmul.f32 %v6462, %v6399
    %v7600 = vadd.f32 %v7584, 0.0
    %v7601 = vadd.f32 %v7585, 0.0
    %v7602 = vadd.f32 %v7586, 0.0
    %v7603 = vadd.f32 %v7587, 0.0
    %v7604 = vadd.f32 %v7588, 0.0
    %v7605 = vadd.f32 %v7589, 0.0
    %v7606 = vadd.f32 %v7590, 0.0
    %v7607 = vadd.f32 %v7591, 0.0
    %v7608 = vadd.f32 %v7592, 0.0
    %v7609 = vadd.f32 %v7593, 0.0
    %v7610 = vadd.f32 %v7594, 0.0
    %v7611 = vadd.f32 %v7595, 0.0
    %v7612 = vadd.f32 %v7596, 0.0
    %v7613 = vadd.f32 %v7597, 0.0
    %v7614 = vadd.f32 %v7598, 0.0
    %v7615 = vadd.f32 %v7599, 0.0
    %v7616 = vmul.f32 %v6067, %v6768
    %v7617 = vmul.f32 %v6072, %v6769
    %v7618 = vmul.f32 %v6077, %v6770
    %v7619 = vmul.f32 %v6082, %v6771
    %v7620 = vmul.f32 %v6087, %v6772
    %v7621 = vmul.f32 %v6092, %v6773
    %v7622 = vmul.f32 %v6097, %v6774
    %v7623 = vmul.f32 %v6102, %v6775
    %v7624 = vmul.f32 %v6107, %v6776
    %v7625 = vmul.f32 %v6112, %v6777
    %v7626 = vmul.f32 %v6117, %v6778
    %v7627 = vmul.f32 %v6122, %v6779
    %v7628 = vmul.f32 %v6127, %v6780
    %v7629 = vmul.f32 %v6132, %v6781
    %v7630 = vmul.f32 %v6137, %v6782
    %v7631 = vmul.f32 %v6142, %v6783
    %7648 = vrot.lane.b32.xlu0 %v7616, 124
    %v7649 = vpop.permute.xlu0 %7648
    %7650 = vrot.lane.b32.xlu0 %v7617, 124
    %v7651 = vpop.permute.xlu0 %7650
    %7652 = vrot.lane.b32.xlu0 %v7618, 124
    %v7653 = vpop.permute.xlu0 %7652
    %7654 = vrot.lane.b32.xlu0 %v7619, 124
    %v7655 = vpop.permute.xlu0 %7654
    %7656 = vrot.lane.b32.xlu0 %v7620, 124
    %v7657 = vpop.permute.xlu0 %7656
    %7658 = vrot.lane.b32.xlu0 %v7621, 124
    %v7659 = vpop.permute.xlu0 %7658
    %7660 = vrot.lane.b32.xlu0 %v7622, 124
    %v7661 = vpop.permute.xlu0 %7660
    %7662 = vrot.lane.b32.xlu0 %v7623, 124
    %v7663 = vpop.permute.xlu0 %7662
    %7664 = vrot.lane.b32.xlu0 %v7624, 124
    %v7665 = vpop.permute.xlu0 %7664
    %7666 = vrot.lane.b32.xlu0 %v7625, 124
    %v7667 = vpop.permute.xlu0 %7666
    %7668 = vrot.lane.b32.xlu0 %v7626, 124
    %v7669 = vpop.permute.xlu0 %7668
    %7670 = vrot.lane.b32.xlu0 %v7627, 124
    %v7671 = vpop.permute.xlu0 %7670
    %7672 = vrot.lane.b32.xlu0 %v7628, 124
    %v7673 = vpop.permute.xlu0 %7672
    %7674 = vrot.lane.b32.xlu0 %v7629, 124
    %v7675 = vpop.permute.xlu0 %7674
    %7676 = vrot.lane.b32.xlu0 %v7630, 124
    %v7677 = vpop.permute.xlu0 %7676
    %7678 = vrot.lane.b32.xlu0 %v7631, 124
    %v7679 = vpop.permute.xlu0 %7678
    %v7696 = vadd.f32 %v7568, %v7649
    %v7697 = vadd.f32 %v7569, %v7651
    %v7698 = vadd.f32 %v7570, %v7653
    %v7699 = vadd.f32 %v7571, %v7655
    %v7700 = vadd.f32 %v7572, %v7657
    %v7701 = vadd.f32 %v7573, %v7659
    %v7702 = vadd.f32 %v7574, %v7661
    %v7703 = vadd.f32 %v7575, %v7663
    %v7704 = vadd.f32 %v7576, %v7665
    %v7705 = vadd.f32 %v7577, %v7667
    %v7706 = vadd.f32 %v7578, %v7669
    %v7707 = vadd.f32 %v7579, %v7671
    %v7708 = vadd.f32 %v7580, %v7673
    %v7709 = vadd.f32 %v7581, %v7675
    %v7710 = vadd.f32 %v7582, %v7677
    %v7711 = vadd.f32 %v7583, %v7679
    %v7712 = vmul.f32 %v6498, %v6384
    %v7713 = vmul.f32 %v6502, %v6385
    %v7714 = vmul.f32 %v6506, %v6386
    %v7715 = vmul.f32 %v6510, %v6387
    %v7716 = vmul.f32 %v6514, %v6388
    %v7717 = vmul.f32 %v6518, %v6389
    %v7718 = vmul.f32 %v6522, %v6390
    %v7719 = vmul.f32 %v6526, %v6391
    %v7720 = vmul.f32 %v6530, %v6392
    %v7721 = vmul.f32 %v6534, %v6393
    %v7722 = vmul.f32 %v6538, %v6394
    %v7723 = vmul.f32 %v6542, %v6395
    %v7724 = vmul.f32 %v6546, %v6396
    %v7725 = vmul.f32 %v6550, %v6397
    %v7726 = vmul.f32 %v6554, %v6398
    %v7727 = vmul.f32 %v6558, %v6399
    %7744 = vrot.lane.b32.xlu0 %v7712, 124
    %v7745 = vpop.permute.xlu0 %7744
    %7746 = vrot.lane.b32.xlu0 %v7713, 124
    %v7747 = vpop.permute.xlu0 %7746
    %7748 = vrot.lane.b32.xlu0 %v7714, 124
    %v7749 = vpop.permute.xlu0 %7748
    %7750 = vrot.lane.b32.xlu0 %v7715, 124
    %v7751 = vpop.permute.xlu0 %7750
    %7752 = vrot.lane.b32.xlu0 %v7716, 124
    %v7753 = vpop.permute.xlu0 %7752
    %7754 = vrot.lane.b32.xlu0 %v7717, 124
    %v7755 = vpop.permute.xlu0 %7754
    %7756 = vrot.lane.b32.xlu0 %v7718, 124
    %v7757 = vpop.permute.xlu0 %7756
    %7758 = vrot.lane.b32.xlu0 %v7719, 124
    %v7759 = vpop.permute.xlu0 %7758
    %7760 = vrot.lane.b32.xlu0 %v7720, 124
    %v7761 = vpop.permute.xlu0 %7760
    %7762 = vrot.lane.b32.xlu0 %v7721, 124
    %v7763 = vpop.permute.xlu0 %7762
    %7764 = vrot.lane.b32.xlu0 %v7722, 124
    %v7765 = vpop.permute.xlu0 %7764
    %7766 = vrot.lane.b32.xlu0 %v7723, 124
    %v7767 = vpop.permute.xlu0 %7766
    %7768 = vrot.lane.b32.xlu0 %v7724, 124
    %v7769 = vpop.permute.xlu0 %7768
    %7770 = vrot.lane.b32.xlu0 %v7725, 124
    %v7771 = vpop.permute.xlu0 %7770
    %7772 = vrot.lane.b32.xlu0 %v7726, 124
    %v7773 = vpop.permute.xlu0 %7772
    %7774 = vrot.lane.b32.xlu0 %v7727, 124
    %v7775 = vpop.permute.xlu0 %7774
    %v7792 = vadd.f32 %v7600, %v7745
    %v7793 = vadd.f32 %v7601, %v7747
    %v7794 = vadd.f32 %v7602, %v7749
    %v7795 = vadd.f32 %v7603, %v7751
    %v7796 = vadd.f32 %v7604, %v7753
    %v7797 = vadd.f32 %v7605, %v7755
    %v7798 = vadd.f32 %v7606, %v7757
    %v7799 = vadd.f32 %v7607, %v7759
    %v7800 = vadd.f32 %v7608, %v7761
    %v7801 = vadd.f32 %v7609, %v7763
    %v7802 = vadd.f32 %v7610, %v7765
    %v7803 = vadd.f32 %v7611, %v7767
    %v7804 = vadd.f32 %v7612, %v7769
    %v7805 = vadd.f32 %v7613, %v7771
    %v7806 = vadd.f32 %v7614, %v7773
    %v7807 = vadd.f32 %v7615, %v7775
    %v7808 = vmul.f32 %v6179, %v6768
    %v7809 = vmul.f32 %v6184, %v6769
    %v7810 = vmul.f32 %v6189, %v6770
    %v7811 = vmul.f32 %v6194, %v6771
    %v7812 = vmul.f32 %v6199, %v6772
    %v7813 = vmul.f32 %v6204, %v6773
    %v7814 = vmul.f32 %v6209, %v6774
    %v7815 = vmul.f32 %v6214, %v6775
    %v7816 = vmul.f32 %v6219, %v6776
    %v7817 = vmul.f32 %v6224, %v6777
    %v7818 = vmul.f32 %v6229, %v6778
    %v7819 = vmul.f32 %v6234, %v6779
    %v7820 = vmul.f32 %v6239, %v6780
    %v7821 = vmul.f32 %v6244, %v6781
    %v7822 = vmul.f32 %v6249, %v6782
    %v7823 = vmul.f32 %v6254, %v6783
    %7840 = vrot.lane.b32.xlu0 %v7808, 120
    %v7841 = vpop.permute.xlu0 %7840
    %7842 = vrot.lane.b32.xlu0 %v7809, 120
    %v7843 = vpop.permute.xlu0 %7842
    %7844 = vrot.lane.b32.xlu0 %v7810, 120
    %v7845 = vpop.permute.xlu0 %7844
    %7846 = vrot.lane.b32.xlu0 %v7811, 120
    %v7847 = vpop.permute.xlu0 %7846
    %7848 = vrot.lane.b32.xlu0 %v7812, 120
    %v7849 = vpop.permute.xlu0 %7848
    %7850 = vrot.lane.b32.xlu0 %v7813, 120
    %v7851 = vpop.permute.xlu0 %7850
    %7852 = vrot.lane.b32.xlu0 %v7814, 120
    %v7853 = vpop.permute.xlu0 %7852
    %7854 = vrot.lane.b32.xlu0 %v7815, 120
    %v7855 = vpop.permute.xlu0 %7854
    %7856 = vrot.lane.b32.xlu0 %v7816, 120
    %v7857 = vpop.permute.xlu0 %7856
    %7858 = vrot.lane.b32.xlu0 %v7817, 120
    %v7859 = vpop.permute.xlu0 %7858
    %7860 = vrot.lane.b32.xlu0 %v7818, 120
    %v7861 = vpop.permute.xlu0 %7860
    %7862 = vrot.lane.b32.xlu0 %v7819, 120
    %v7863 = vpop.permute.xlu0 %7862
    %7864 = vrot.lane.b32.xlu0 %v7820, 120
    %v7865 = vpop.permute.xlu0 %7864
    %7866 = vrot.lane.b32.xlu0 %v7821, 120
    %v7867 = vpop.permute.xlu0 %7866
    %7868 = vrot.lane.b32.xlu0 %v7822, 120
    %v7869 = vpop.permute.xlu0 %7868
    %7870 = vrot.lane.b32.xlu0 %v7823, 120
    %v7871 = vpop.permute.xlu0 %7870
    %v7888 = vadd.f32 %v7696, %v7841
    %v7889 = vadd.f32 %v7697, %v7843
    %v7890 = vadd.f32 %v7698, %v7845
    %v7891 = vadd.f32 %v7699, %v7847
    %v7892 = vadd.f32 %v7700, %v7849
    %v7893 = vadd.f32 %v7701, %v7851
    %v7894 = vadd.f32 %v7702, %v7853
    %v7895 = vadd.f32 %v7703, %v7855
    %v7896 = vadd.f32 %v7704, %v7857
    %v7897 = vadd.f32 %v7705, %v7859
    %v7898 = vadd.f32 %v7706, %v7861
    %v7899 = vadd.f32 %v7707, %v7863
    %v7900 = vadd.f32 %v7708, %v7865
    %v7901 = vadd.f32 %v7709, %v7867
    %v7902 = vadd.f32 %v7710, %v7869
    %v7903 = vadd.f32 %v7711, %v7871
    %v7904 = vmul.f32 %v6594, %v6384
    %v7905 = vmul.f32 %v6598, %v6385
    %v7906 = vmul.f32 %v6602, %v6386
    %v7907 = vmul.f32 %v6606, %v6387
    %v7908 = vmul.f32 %v6610, %v6388
    %v7909 = vmul.f32 %v6614, %v6389
    %v7910 = vmul.f32 %v6618, %v6390
    %v7911 = vmul.f32 %v6622, %v6391
    %v7912 = vmul.f32 %v6626, %v6392
    %v7913 = vmul.f32 %v6630, %v6393
    %v7914 = vmul.f32 %v6634, %v6394
    %v7915 = vmul.f32 %v6638, %v6395
    %v7916 = vmul.f32 %v6642, %v6396
    %v7917 = vmul.f32 %v6646, %v6397
    %v7918 = vmul.f32 %v6650, %v6398
    %v7919 = vmul.f32 %v6654, %v6399
    %7936 = vrot.lane.b32.xlu0 %v7904, 120
    %v7937 = vpop.permute.xlu0 %7936
    %7938 = vrot.lane.b32.xlu0 %v7905, 120
    %v7939 = vpop.permute.xlu0 %7938
    %7940 = vrot.lane.b32.xlu0 %v7906, 120
    %v7941 = vpop.permute.xlu0 %7940
    %7942 = vrot.lane.b32.xlu0 %v7907, 120
    %v7943 = vpop.permute.xlu0 %7942
    %7944 = vrot.lane.b32.xlu0 %v7908, 120
    %v7945 = vpop.permute.xlu0 %7944
    %7946 = vrot.lane.b32.xlu0 %v7909, 120
    %v7947 = vpop.permute.xlu0 %7946
    %7948 = vrot.lane.b32.xlu0 %v7910, 120
    %v7949 = vpop.permute.xlu0 %7948
    %7950 = vrot.lane.b32.xlu0 %v7911, 120
    %v7951 = vpop.permute.xlu0 %7950
    %7952 = vrot.lane.b32.xlu0 %v7912, 120
    %v7953 = vpop.permute.xlu0 %7952
    %7954 = vrot.lane.b32.xlu0 %v7913, 120
    %v7955 = vpop.permute.xlu0 %7954
    %7956 = vrot.lane.b32.xlu0 %v7914, 120
    %v7957 = vpop.permute.xlu0 %7956
    %7958 = vrot.lane.b32.xlu0 %v7915, 120
    %v7959 = vpop.permute.xlu0 %7958
    %7960 = vrot.lane.b32.xlu0 %v7916, 120
    %v7961 = vpop.permute.xlu0 %7960
    %7962 = vrot.lane.b32.xlu0 %v7917, 120
    %v7963 = vpop.permute.xlu0 %7962
    %7964 = vrot.lane.b32.xlu0 %v7918, 120
    %v7965 = vpop.permute.xlu0 %7964
    %7966 = vrot.lane.b32.xlu0 %v7919, 120
    %v7967 = vpop.permute.xlu0 %7966
    %v7984 = vadd.f32 %v7792, %v7937
    %v7985 = vadd.f32 %v7793, %v7939
    %v7986 = vadd.f32 %v7794, %v7941
    %v7987 = vadd.f32 %v7795, %v7943
    %v7988 = vadd.f32 %v7796, %v7945
    %v7989 = vadd.f32 %v7797, %v7947
    %v7990 = vadd.f32 %v7798, %v7949
    %v7991 = vadd.f32 %v7799, %v7951
    %v7992 = vadd.f32 %v7800, %v7953
    %v7993 = vadd.f32 %v7801, %v7955
    %v7994 = vadd.f32 %v7802, %v7957
    %v7995 = vadd.f32 %v7803, %v7959
    %v7996 = vadd.f32 %v7804, %v7961
    %v7997 = vadd.f32 %v7805, %v7963
    %v7998 = vadd.f32 %v7806, %v7965
    %v7999 = vadd.f32 %v7807, %v7967
    %v8000 = vmul.f32 %v6291, %v6768
    %v8001 = vmul.f32 %v6296, %v6769
    %v8002 = vmul.f32 %v6301, %v6770
    %v8003 = vmul.f32 %v6306, %v6771
    %v8004 = vmul.f32 %v6311, %v6772
    %v8005 = vmul.f32 %v6316, %v6773
    %v8006 = vmul.f32 %v6321, %v6774
    %v8007 = vmul.f32 %v6326, %v6775
    %v8008 = vmul.f32 %v6331, %v6776
    %v8009 = vmul.f32 %v6336, %v6777
    %v8010 = vmul.f32 %v6341, %v6778
    %v8011 = vmul.f32 %v6346, %v6779
    %v8012 = vmul.f32 %v6351, %v6780
    %v8013 = vmul.f32 %v6356, %v6781
    %v8014 = vmul.f32 %v6361, %v6782
    %v8015 = vmul.f32 %v6366, %v6783
    %8032 = vrot.lane.b32.xlu0 %v8000, 116
    %v8033 = vpop.permute.xlu0 %8032
    %8034 = vrot.lane.b32.xlu0 %v8001, 116
    %v8035 = vpop.permute.xlu0 %8034
    %8036 = vrot.lane.b32.xlu0 %v8002, 116
    %v8037 = vpop.permute.xlu0 %8036
    %8038 = vrot.lane.b32.xlu0 %v8003, 116
    %v8039 = vpop.permute.xlu0 %8038
    %8040 = vrot.lane.b32.xlu0 %v8004, 116
    %v8041 = vpop.permute.xlu0 %8040
    %8042 = vrot.lane.b32.xlu0 %v8005, 116
    %v8043 = vpop.permute.xlu0 %8042
    %8044 = vrot.lane.b32.xlu0 %v8006, 116
    %v8045 = vpop.permute.xlu0 %8044
    %8046 = vrot.lane.b32.xlu0 %v8007, 116
    %v8047 = vpop.permute.xlu0 %8046
    %8048 = vrot.lane.b32.xlu0 %v8008, 116
    %v8049 = vpop.permute.xlu0 %8048
    %8050 = vrot.lane.b32.xlu0 %v8009, 116
    %v8051 = vpop.permute.xlu0 %8050
    %8052 = vrot.lane.b32.xlu0 %v8010, 116
    %v8053 = vpop.permute.xlu0 %8052
    %8054 = vrot.lane.b32.xlu0 %v8011, 116
    %v8055 = vpop.permute.xlu0 %8054
    %8056 = vrot.lane.b32.xlu0 %v8012, 116
    %v8057 = vpop.permute.xlu0 %8056
    %8058 = vrot.lane.b32.xlu0 %v8013, 116
    %v8059 = vpop.permute.xlu0 %8058
    %8060 = vrot.lane.b32.xlu0 %v8014, 116
    %v8061 = vpop.permute.xlu0 %8060
    %8062 = vrot.lane.b32.xlu0 %v8015, 116
    %v8063 = vpop.permute.xlu0 %8062
    %v8080 = vadd.f32 %v7888, %v8033
    %v8081 = vadd.f32 %v7889, %v8035
    %v8082 = vadd.f32 %v7890, %v8037
    %v8083 = vadd.f32 %v7891, %v8039
    %v8084 = vadd.f32 %v7892, %v8041
    %v8085 = vadd.f32 %v7893, %v8043
    %v8086 = vadd.f32 %v7894, %v8045
    %v8087 = vadd.f32 %v7895, %v8047
    %v8088 = vadd.f32 %v7896, %v8049
    %v8089 = vadd.f32 %v7897, %v8051
    %v8090 = vadd.f32 %v7898, %v8053
    %v8091 = vadd.f32 %v7899, %v8055
    %v8092 = vadd.f32 %v7900, %v8057
    %v8093 = vadd.f32 %v7901, %v8059
    %v8094 = vadd.f32 %v7902, %v8061
    %v8095 = vadd.f32 %v7903, %v8063
    %v8096 = vmul.f32 %v6690, %v6384
    %v8097 = vmul.f32 %v6694, %v6385
    %v8098 = vmul.f32 %v6698, %v6386
    %v8099 = vmul.f32 %v6702, %v6387
    %v8100 = vmul.f32 %v6706, %v6388
    %v8101 = vmul.f32 %v6710, %v6389
    %v8102 = vmul.f32 %v6714, %v6390
    %v8103 = vmul.f32 %v6718, %v6391
    %v8104 = vmul.f32 %v6722, %v6392
    %v8105 = vmul.f32 %v6726, %v6393
    %v8106 = vmul.f32 %v6730, %v6394
    %v8107 = vmul.f32 %v6734, %v6395
    %v8108 = vmul.f32 %v6738, %v6396
    %v8109 = vmul.f32 %v6742, %v6397
    %v8110 = vmul.f32 %v6746, %v6398
    %v8111 = vmul.f32 %v6750, %v6399
    %8128 = vrot.lane.b32.xlu0 %v8096, 116
    %v8129 = vpop.permute.xlu0 %8128
    %8130 = vrot.lane.b32.xlu0 %v8097, 116
    %v8131 = vpop.permute.xlu0 %8130
    %8132 = vrot.lane.b32.xlu0 %v8098, 116
    %v8133 = vpop.permute.xlu0 %8132
    %8134 = vrot.lane.b32.xlu0 %v8099, 116
    %v8135 = vpop.permute.xlu0 %8134
    %8136 = vrot.lane.b32.xlu0 %v8100, 116
    %v8137 = vpop.permute.xlu0 %8136
    %8138 = vrot.lane.b32.xlu0 %v8101, 116
    %v8139 = vpop.permute.xlu0 %8138
    %8140 = vrot.lane.b32.xlu0 %v8102, 116
    %v8141 = vpop.permute.xlu0 %8140
    %8142 = vrot.lane.b32.xlu0 %v8103, 116
    %v8143 = vpop.permute.xlu0 %8142
    %8144 = vrot.lane.b32.xlu0 %v8104, 116
    %v8145 = vpop.permute.xlu0 %8144
    %8146 = vrot.lane.b32.xlu0 %v8105, 116
    %v8147 = vpop.permute.xlu0 %8146
    %8148 = vrot.lane.b32.xlu0 %v8106, 116
    %v8149 = vpop.permute.xlu0 %8148
    %8150 = vrot.lane.b32.xlu0 %v8107, 116
    %v8151 = vpop.permute.xlu0 %8150
    %8152 = vrot.lane.b32.xlu0 %v8108, 116
    %v8153 = vpop.permute.xlu0 %8152
    %8154 = vrot.lane.b32.xlu0 %v8109, 116
    %v8155 = vpop.permute.xlu0 %8154
    %8156 = vrot.lane.b32.xlu0 %v8110, 116
    %v8157 = vpop.permute.xlu0 %8156
    %8158 = vrot.lane.b32.xlu0 %v8111, 116
    %v8159 = vpop.permute.xlu0 %8158
    %v8176 = vadd.f32 %v7984, %v8129
    %v8177 = vadd.f32 %v7985, %v8131
    %v8178 = vadd.f32 %v7986, %v8133
    %v8179 = vadd.f32 %v7987, %v8135
    %v8180 = vadd.f32 %v7988, %v8137
    %v8181 = vadd.f32 %v7989, %v8139
    %v8182 = vadd.f32 %v7990, %v8141
    %v8183 = vadd.f32 %v7991, %v8143
    %v8184 = vadd.f32 %v7992, %v8145
    %v8185 = vadd.f32 %v7993, %v8147
    %v8186 = vadd.f32 %v7994, %v8149
    %v8187 = vadd.f32 %v7995, %v8151
    %v8188 = vadd.f32 %v7996, %v8153
    %v8189 = vadd.f32 %v7997, %v8155
    %v8190 = vadd.f32 %v7998, %v8157
    %v8191 = vadd.f32 %v7999, %v8159
    %v8192 = vmul.f32 %v8080, %v8176
    %v8193 = vmul.f32 %v8081, %v8177
    %v8194 = vmul.f32 %v8082, %v8178
    %v8195 = vmul.f32 %v8083, %v8179
    %v8196 = vmul.f32 %v8084, %v8180
    %v8197 = vmul.f32 %v8085, %v8181
    %v8198 = vmul.f32 %v8086, %v8182
    %v8199 = vmul.f32 %v8087, %v8183
    %v8200 = vmul.f32 %v8088, %v8184
    %v8201 = vmul.f32 %v8089, %v8185
    %v8202 = vmul.f32 %v8090, %v8186
    %v8203 = vmul.f32 %v8091, %v8187
    %v8204 = vmul.f32 %v8092, %v8188
    %v8205 = vmul.f32 %v8093, %v8189
    %v8206 = vmul.f32 %v8094, %v8190
    %v8207 = vmul.f32 %v8095, %v8191
    %vm8208 = vcmask 31744
    %v8209 = vsel %vm8208, %v8192, 0.0
    %8210 = vadd.xlane.f32.xlu0 %v8209
    %v8211 = vpop.xlane.xlu0 %8210
    %v8212 = vsel %vm8208, %v8193, 0.0
    %8213 = vadd.xlane.f32.xlu0 %v8212
    %v8214 = vpop.xlane.xlu0 %8213
    %v8215 = vsel %vm8208, %v8194, 0.0
    %8216 = vadd.xlane.f32.xlu0 %v8215
    %v8217 = vpop.xlane.xlu0 %8216
    %v8218 = vsel %vm8208, %v8195, 0.0
    %8219 = vadd.xlane.f32.xlu0 %v8218
    %v8220 = vpop.xlane.xlu0 %8219
    %v8221 = vsel %vm8208, %v8196, 0.0
    %8222 = vadd.xlane.f32.xlu0 %v8221
    %v8223 = vpop.xlane.xlu0 %8222
    %v8224 = vsel %vm8208, %v8197, 0.0
    %8225 = vadd.xlane.f32.xlu0 %v8224
    %v8226 = vpop.xlane.xlu0 %8225
    %v8227 = vsel %vm8208, %v8198, 0.0
    %8228 = vadd.xlane.f32.xlu0 %v8227
    %v8229 = vpop.xlane.xlu0 %8228
    %v8230 = vsel %vm8208, %v8199, 0.0
    %8231 = vadd.xlane.f32.xlu0 %v8230
    %v8232 = vpop.xlane.xlu0 %8231
    %v8233 = vsel %vm8208, %v8200, 0.0
    %8234 = vadd.xlane.f32.xlu0 %v8233
    %v8235 = vpop.xlane.xlu0 %8234
    %v8236 = vsel %vm8208, %v8201, 0.0
    %8237 = vadd.xlane.f32.xlu0 %v8236
    %v8238 = vpop.xlane.xlu0 %8237
    %v8239 = vsel %vm8208, %v8202, 0.0
    %8240 = vadd.xlane.f32.xlu0 %v8239
    %v8241 = vpop.xlane.xlu0 %8240
    %v8242 = vsel %vm8208, %v8203, 0.0
    %8243 = vadd.xlane.f32.xlu0 %v8242
    %v8244 = vpop.xlane.xlu0 %8243
    %v8245 = vsel %vm8208, %v8204, 0.0
    %8246 = vadd.xlane.f32.xlu0 %v8245
    %v8247 = vpop.xlane.xlu0 %8246
    %v8248 = vsel %vm8208, %v8205, 0.0
    %8249 = vadd.xlane.f32.xlu0 %v8248
    %v8250 = vpop.xlane.xlu0 %8249
    %v8251 = vsel %vm8208, %v8206, 0.0
    %8252 = vadd.xlane.f32.xlu0 %v8251
    %v8253 = vpop.xlane.xlu0 %8252
    %v8254 = vsel %vm8208, %v8207, 0.0
    %8255 = vadd.xlane.f32.xlu0 %v8254
    %v8256 = vpop.xlane.xlu0 %8255
    %v8257 = vadd.f32 %v8211, 0.0
    %v8258 = vadd.f32 %v8214, 0.0
    %v8259 = vadd.f32 %v8217, 0.0
    %v8260 = vadd.f32 %v8220, 0.0
    %v8261 = vadd.f32 %v8223, 0.0
    %v8262 = vadd.f32 %v8226, 0.0
    %v8263 = vadd.f32 %v8229, 0.0
    %v8264 = vadd.f32 %v8232, 0.0
    %v8265 = vadd.f32 %v8235, 0.0
    %v8266 = vadd.f32 %v8238, 0.0
    %v8267 = vadd.f32 %v8241, 0.0
    %v8268 = vadd.f32 %v8244, 0.0
    %v8269 = vadd.f32 %v8247, 0.0
    %v8270 = vadd.f32 %v8250, 0.0
    %v8271 = vadd.f32 %v8253, 0.0
    %v8272 = vadd.f32 %v8256, 0.0
    %v8273 = vmul.f32 %v5955, %v7152
    %v8274 = vmul.f32 %v5960, %v7153
    %v8275 = vmul.f32 %v5965, %v7154
    %v8276 = vmul.f32 %v5970, %v7155
    %v8277 = vmul.f32 %v5975, %v7156
    %v8278 = vmul.f32 %v5980, %v7157
    %v8279 = vmul.f32 %v5985, %v7158
    %v8280 = vmul.f32 %v5990, %v7159
    %v8281 = vmul.f32 %v5995, %v7160
    %v8282 = vmul.f32 %v6000, %v7161
    %v8283 = vmul.f32 %v6005, %v7162
    %v8284 = vmul.f32 %v6010, %v7163
    %v8285 = vmul.f32 %v6015, %v7164
    %v8286 = vmul.f32 %v6020, %v7165
    %v8287 = vmul.f32 %v6025, %v7166
    %v8288 = vmul.f32 %v6030, %v7167
    %v8289 = vadd.f32 %v8273, 0.0
    %v8290 = vadd.f32 %v8274, 0.0
    %v8291 = vadd.f32 %v8275, 0.0
    %v8292 = vadd.f32 %v8276, 0.0
    %v8293 = vadd.f32 %v8277, 0.0
    %v8294 = vadd.f32 %v8278, 0.0
    %v8295 = vadd.f32 %v8279, 0.0
    %v8296 = vadd.f32 %v8280, 0.0
    %v8297 = vadd.f32 %v8281, 0.0
    %v8298 = vadd.f32 %v8282, 0.0
    %v8299 = vadd.f32 %v8283, 0.0
    %v8300 = vadd.f32 %v8284, 0.0
    %v8301 = vadd.f32 %v8285, 0.0
    %v8302 = vadd.f32 %v8286, 0.0
    %v8303 = vadd.f32 %v8287, 0.0
    %v8304 = vadd.f32 %v8288, 0.0
    %v8305 = vmul.f32 %v6786, %v6384
    %v8306 = vmul.f32 %v6790, %v6385
    %v8307 = vmul.f32 %v6794, %v6386
    %v8308 = vmul.f32 %v6798, %v6387
    %v8309 = vmul.f32 %v6802, %v6388
    %v8310 = vmul.f32 %v6806, %v6389
    %v8311 = vmul.f32 %v6810, %v6390
    %v8312 = vmul.f32 %v6814, %v6391
    %v8313 = vmul.f32 %v6818, %v6392
    %v8314 = vmul.f32 %v6822, %v6393
    %v8315 = vmul.f32 %v6826, %v6394
    %v8316 = vmul.f32 %v6830, %v6395
    %v8317 = vmul.f32 %v6834, %v6396
    %v8318 = vmul.f32 %v6838, %v6397
    %v8319 = vmul.f32 %v6842, %v6398
    %v8320 = vmul.f32 %v6846, %v6399
    %v8321 = vadd.f32 %v8305, 0.0
    %v8322 = vadd.f32 %v8306, 0.0
    %v8323 = vadd.f32 %v8307, 0.0
    %v8324 = vadd.f32 %v8308, 0.0
    %v8325 = vadd.f32 %v8309, 0.0
    %v8326 = vadd.f32 %v8310, 0.0
    %v8327 = vadd.f32 %v8311, 0.0
    %v8328 = vadd.f32 %v8312, 0.0
    %v8329 = vadd.f32 %v8313, 0.0
    %v8330 = vadd.f32 %v8314, 0.0
    %v8331 = vadd.f32 %v8315, 0.0
    %v8332 = vadd.f32 %v8316, 0.0
    %v8333 = vadd.f32 %v8317, 0.0
    %v8334 = vadd.f32 %v8318, 0.0
    %v8335 = vadd.f32 %v8319, 0.0
    %v8336 = vadd.f32 %v8320, 0.0
    %v8337 = vmul.f32 %v6067, %v7152
    %v8338 = vmul.f32 %v6072, %v7153
    %v8339 = vmul.f32 %v6077, %v7154
    %v8340 = vmul.f32 %v6082, %v7155
    %v8341 = vmul.f32 %v6087, %v7156
    %v8342 = vmul.f32 %v6092, %v7157
    %v8343 = vmul.f32 %v6097, %v7158
    %v8344 = vmul.f32 %v6102, %v7159
    %v8345 = vmul.f32 %v6107, %v7160
    %v8346 = vmul.f32 %v6112, %v7161
    %v8347 = vmul.f32 %v6117, %v7162
    %v8348 = vmul.f32 %v6122, %v7163
    %v8349 = vmul.f32 %v6127, %v7164
    %v8350 = vmul.f32 %v6132, %v7165
    %v8351 = vmul.f32 %v6137, %v7166
    %v8352 = vmul.f32 %v6142, %v7167
    %8369 = vrot.lane.b32.xlu0 %v8337, 124
    %v8370 = vpop.permute.xlu0 %8369
    %8371 = vrot.lane.b32.xlu0 %v8338, 124
    %v8372 = vpop.permute.xlu0 %8371
    %8373 = vrot.lane.b32.xlu0 %v8339, 124
    %v8374 = vpop.permute.xlu0 %8373
    %8375 = vrot.lane.b32.xlu0 %v8340, 124
    %v8376 = vpop.permute.xlu0 %8375
    %8377 = vrot.lane.b32.xlu0 %v8341, 124
    %v8378 = vpop.permute.xlu0 %8377
    %8379 = vrot.lane.b32.xlu0 %v8342, 124
    %v8380 = vpop.permute.xlu0 %8379
    %8381 = vrot.lane.b32.xlu0 %v8343, 124
    %v8382 = vpop.permute.xlu0 %8381
    %8383 = vrot.lane.b32.xlu0 %v8344, 124
    %v8384 = vpop.permute.xlu0 %8383
    %8385 = vrot.lane.b32.xlu0 %v8345, 124
    %v8386 = vpop.permute.xlu0 %8385
    %8387 = vrot.lane.b32.xlu0 %v8346, 124
    %v8388 = vpop.permute.xlu0 %8387
    %8389 = vrot.lane.b32.xlu0 %v8347, 124
    %v8390 = vpop.permute.xlu0 %8389
    %8391 = vrot.lane.b32.xlu0 %v8348, 124
    %v8392 = vpop.permute.xlu0 %8391
    %8393 = vrot.lane.b32.xlu0 %v8349, 124
    %v8394 = vpop.permute.xlu0 %8393
    %8395 = vrot.lane.b32.xlu0 %v8350, 124
    %v8396 = vpop.permute.xlu0 %8395
    %8397 = vrot.lane.b32.xlu0 %v8351, 124
    %v8398 = vpop.permute.xlu0 %8397
    %8399 = vrot.lane.b32.xlu0 %v8352, 124
    %v8400 = vpop.permute.xlu0 %8399
    %v8417 = vadd.f32 %v8289, %v8370
    %v8418 = vadd.f32 %v8290, %v8372
    %v8419 = vadd.f32 %v8291, %v8374
    %v8420 = vadd.f32 %v8292, %v8376
    %v8421 = vadd.f32 %v8293, %v8378
    %v8422 = vadd.f32 %v8294, %v8380
    %v8423 = vadd.f32 %v8295, %v8382
    %v8424 = vadd.f32 %v8296, %v8384
    %v8425 = vadd.f32 %v8297, %v8386
    %v8426 = vadd.f32 %v8298, %v8388
    %v8427 = vadd.f32 %v8299, %v8390
    %v8428 = vadd.f32 %v8300, %v8392
    %v8429 = vadd.f32 %v8301, %v8394
    %v8430 = vadd.f32 %v8302, %v8396
    %v8431 = vadd.f32 %v8303, %v8398
    %v8432 = vadd.f32 %v8304, %v8400
    %v8433 = vmul.f32 %v6882, %v6384
    %v8434 = vmul.f32 %v6886, %v6385
    %v8435 = vmul.f32 %v6890, %v6386
    %v8436 = vmul.f32 %v6894, %v6387
    %v8437 = vmul.f32 %v6898, %v6388
    %v8438 = vmul.f32 %v6902, %v6389
    %v8439 = vmul.f32 %v6906, %v6390
    %v8440 = vmul.f32 %v6910, %v6391
    %v8441 = vmul.f32 %v6914, %v6392
    %v8442 = vmul.f32 %v6918, %v6393
    %v8443 = vmul.f32 %v6922, %v6394
    %v8444 = vmul.f32 %v6926, %v6395
    %v8445 = vmul.f32 %v6930, %v6396
    %v8446 = vmul.f32 %v6934, %v6397
    %v8447 = vmul.f32 %v6938, %v6398
    %v8448 = vmul.f32 %v6942, %v6399
    %8465 = vrot.lane.b32.xlu0 %v8433, 124
    %v8466 = vpop.permute.xlu0 %8465
    %8467 = vrot.lane.b32.xlu0 %v8434, 124
    %v8468 = vpop.permute.xlu0 %8467
    %8469 = vrot.lane.b32.xlu0 %v8435, 124
    %v8470 = vpop.permute.xlu0 %8469
    %8471 = vrot.lane.b32.xlu0 %v8436, 124
    %v8472 = vpop.permute.xlu0 %8471
    %8473 = vrot.lane.b32.xlu0 %v8437, 124
    %v8474 = vpop.permute.xlu0 %8473
    %8475 = vrot.lane.b32.xlu0 %v8438, 124
    %v8476 = vpop.permute.xlu0 %8475
    %8477 = vrot.lane.b32.xlu0 %v8439, 124
    %v8478 = vpop.permute.xlu0 %8477
    %8479 = vrot.lane.b32.xlu0 %v8440, 124
    %v8480 = vpop.permute.xlu0 %8479
    %8481 = vrot.lane.b32.xlu0 %v8441, 124
    %v8482 = vpop.permute.xlu0 %8481
    %8483 = vrot.lane.b32.xlu0 %v8442, 124
    %v8484 = vpop.permute.xlu0 %8483
    %8485 = vrot.lane.b32.xlu0 %v8443, 124
    %v8486 = vpop.permute.xlu0 %8485
    %8487 = vrot.lane.b32.xlu0 %v8444, 124
    %v8488 = vpop.permute.xlu0 %8487
    %8489 = vrot.lane.b32.xlu0 %v8445, 124
    %v8490 = vpop.permute.xlu0 %8489
    %8491 = vrot.lane.b32.xlu0 %v8446, 124
    %v8492 = vpop.permute.xlu0 %8491
    %8493 = vrot.lane.b32.xlu0 %v8447, 124
    %v8494 = vpop.permute.xlu0 %8493
    %8495 = vrot.lane.b32.xlu0 %v8448, 124
    %v8496 = vpop.permute.xlu0 %8495
    %v8513 = vadd.f32 %v8321, %v8466
    %v8514 = vadd.f32 %v8322, %v8468
    %v8515 = vadd.f32 %v8323, %v8470
    %v8516 = vadd.f32 %v8324, %v8472
    %v8517 = vadd.f32 %v8325, %v8474
    %v8518 = vadd.f32 %v8326, %v8476
    %v8519 = vadd.f32 %v8327, %v8478
    %v8520 = vadd.f32 %v8328, %v8480
    %v8521 = vadd.f32 %v8329, %v8482
    %v8522 = vadd.f32 %v8330, %v8484
    %v8523 = vadd.f32 %v8331, %v8486
    %v8524 = vadd.f32 %v8332, %v8488
    %v8525 = vadd.f32 %v8333, %v8490
    %v8526 = vadd.f32 %v8334, %v8492
    %v8527 = vadd.f32 %v8335, %v8494
    %v8528 = vadd.f32 %v8336, %v8496
    %v8529 = vmul.f32 %v6179, %v7152
    %v8530 = vmul.f32 %v6184, %v7153
    %v8531 = vmul.f32 %v6189, %v7154
    %v8532 = vmul.f32 %v6194, %v7155
    %v8533 = vmul.f32 %v6199, %v7156
    %v8534 = vmul.f32 %v6204, %v7157
    %v8535 = vmul.f32 %v6209, %v7158
    %v8536 = vmul.f32 %v6214, %v7159
    %v8537 = vmul.f32 %v6219, %v7160
    %v8538 = vmul.f32 %v6224, %v7161
    %v8539 = vmul.f32 %v6229, %v7162
    %v8540 = vmul.f32 %v6234, %v7163
    %v8541 = vmul.f32 %v6239, %v7164
    %v8542 = vmul.f32 %v6244, %v7165
    %v8543 = vmul.f32 %v6249, %v7166
    %v8544 = vmul.f32 %v6254, %v7167
    %8561 = vrot.lane.b32.xlu0 %v8529, 120
    %v8562 = vpop.permute.xlu0 %8561
    %8563 = vrot.lane.b32.xlu0 %v8530, 120
    %v8564 = vpop.permute.xlu0 %8563
    %8565 = vrot.lane.b32.xlu0 %v8531, 120
    %v8566 = vpop.permute.xlu0 %8565
    %8567 = vrot.lane.b32.xlu0 %v8532, 120
    %v8568 = vpop.permute.xlu0 %8567
    %8569 = vrot.lane.b32.xlu0 %v8533, 120
    %v8570 = vpop.permute.xlu0 %8569
    %8571 = vrot.lane.b32.xlu0 %v8534, 120
    %v8572 = vpop.permute.xlu0 %8571
    %8573 = vrot.lane.b32.xlu0 %v8535, 120
    %v8574 = vpop.permute.xlu0 %8573
    %8575 = vrot.lane.b32.xlu0 %v8536, 120
    %v8576 = vpop.permute.xlu0 %8575
    %8577 = vrot.lane.b32.xlu0 %v8537, 120
    %v8578 = vpop.permute.xlu0 %8577
    %8579 = vrot.lane.b32.xlu0 %v8538, 120
    %v8580 = vpop.permute.xlu0 %8579
    %8581 = vrot.lane.b32.xlu0 %v8539, 120
    %v8582 = vpop.permute.xlu0 %8581
    %8583 = vrot.lane.b32.xlu0 %v8540, 120
    %v8584 = vpop.permute.xlu0 %8583
    %8585 = vrot.lane.b32.xlu0 %v8541, 120
    %v8586 = vpop.permute.xlu0 %8585
    %8587 = vrot.lane.b32.xlu0 %v8542, 120
    %v8588 = vpop.permute.xlu0 %8587
    %8589 = vrot.lane.b32.xlu0 %v8543, 120
    %v8590 = vpop.permute.xlu0 %8589
    %8591 = vrot.lane.b32.xlu0 %v8544, 120
    %v8592 = vpop.permute.xlu0 %8591
    %v8609 = vadd.f32 %v8417, %v8562
    %v8610 = vadd.f32 %v8418, %v8564
    %v8611 = vadd.f32 %v8419, %v8566
    %v8612 = vadd.f32 %v8420, %v8568
    %v8613 = vadd.f32 %v8421, %v8570
    %v8614 = vadd.f32 %v8422, %v8572
    %v8615 = vadd.f32 %v8423, %v8574
    %v8616 = vadd.f32 %v8424, %v8576
    %v8617 = vadd.f32 %v8425, %v8578
    %v8618 = vadd.f32 %v8426, %v8580
    %v8619 = vadd.f32 %v8427, %v8582
    %v8620 = vadd.f32 %v8428, %v8584
    %v8621 = vadd.f32 %v8429, %v8586
    %v8622 = vadd.f32 %v8430, %v8588
    %v8623 = vadd.f32 %v8431, %v8590
    %v8624 = vadd.f32 %v8432, %v8592
    %v8625 = vmul.f32 %v6978, %v6384
    %v8626 = vmul.f32 %v6982, %v6385
    %v8627 = vmul.f32 %v6986, %v6386
    %v8628 = vmul.f32 %v6990, %v6387
    %v8629 = vmul.f32 %v6994, %v6388
    %v8630 = vmul.f32 %v6998, %v6389
    %v8631 = vmul.f32 %v7002, %v6390
    %v8632 = vmul.f32 %v7006, %v6391
    %v8633 = vmul.f32 %v7010, %v6392
    %v8634 = vmul.f32 %v7014, %v6393
    %v8635 = vmul.f32 %v7018, %v6394
    %v8636 = vmul.f32 %v7022, %v6395
    %v8637 = vmul.f32 %v7026, %v6396
    %v8638 = vmul.f32 %v7030, %v6397
    %v8639 = vmul.f32 %v7034, %v6398
    %v8640 = vmul.f32 %v7038, %v6399
    %8657 = vrot.lane.b32.xlu0 %v8625, 120
    %v8658 = vpop.permute.xlu0 %8657
    %8659 = vrot.lane.b32.xlu0 %v8626, 120
    %v8660 = vpop.permute.xlu0 %8659
    %8661 = vrot.lane.b32.xlu0 %v8627, 120
    %v8662 = vpop.permute.xlu0 %8661
    %8663 = vrot.lane.b32.xlu0 %v8628, 120
    %v8664 = vpop.permute.xlu0 %8663
    %8665 = vrot.lane.b32.xlu0 %v8629, 120
    %v8666 = vpop.permute.xlu0 %8665
    %8667 = vrot.lane.b32.xlu0 %v8630, 120
    %v8668 = vpop.permute.xlu0 %8667
    %8669 = vrot.lane.b32.xlu0 %v8631, 120
    %v8670 = vpop.permute.xlu0 %8669
    %8671 = vrot.lane.b32.xlu0 %v8632, 120
    %v8672 = vpop.permute.xlu0 %8671
    %8673 = vrot.lane.b32.xlu0 %v8633, 120
    %v8674 = vpop.permute.xlu0 %8673
    %8675 = vrot.lane.b32.xlu0 %v8634, 120
    %v8676 = vpop.permute.xlu0 %8675
    %8677 = vrot.lane.b32.xlu0 %v8635, 120
    %v8678 = vpop.permute.xlu0 %8677
    %8679 = vrot.lane.b32.xlu0 %v8636, 120
    %v8680 = vpop.permute.xlu0 %8679
    %8681 = vrot.lane.b32.xlu0 %v8637, 120
    %v8682 = vpop.permute.xlu0 %8681
    %8683 = vrot.lane.b32.xlu0 %v8638, 120
    %v8684 = vpop.permute.xlu0 %8683
    %8685 = vrot.lane.b32.xlu0 %v8639, 120
    %v8686 = vpop.permute.xlu0 %8685
    %8687 = vrot.lane.b32.xlu0 %v8640, 120
    %v8688 = vpop.permute.xlu0 %8687
    %v8705 = vadd.f32 %v8513, %v8658
    %v8706 = vadd.f32 %v8514, %v8660
    %v8707 = vadd.f32 %v8515, %v8662
    %v8708 = vadd.f32 %v8516, %v8664
    %v8709 = vadd.f32 %v8517, %v8666
    %v8710 = vadd.f32 %v8518, %v8668
    %v8711 = vadd.f32 %v8519, %v8670
    %v8712 = vadd.f32 %v8520, %v8672
    %v8713 = vadd.f32 %v8521, %v8674
    %v8714 = vadd.f32 %v8522, %v8676
    %v8715 = vadd.f32 %v8523, %v8678
    %v8716 = vadd.f32 %v8524, %v8680
    %v8717 = vadd.f32 %v8525, %v8682
    %v8718 = vadd.f32 %v8526, %v8684
    %v8719 = vadd.f32 %v8527, %v8686
    %v8720 = vadd.f32 %v8528, %v8688
    %v8721 = vmul.f32 %v6291, %v7152
    %v8722 = vmul.f32 %v6296, %v7153
    %v8723 = vmul.f32 %v6301, %v7154
    %v8724 = vmul.f32 %v6306, %v7155
    %v8725 = vmul.f32 %v6311, %v7156
    %v8726 = vmul.f32 %v6316, %v7157
    %v8727 = vmul.f32 %v6321, %v7158
    %v8728 = vmul.f32 %v6326, %v7159
    %v8729 = vmul.f32 %v6331, %v7160
    %v8730 = vmul.f32 %v6336, %v7161
    %v8731 = vmul.f32 %v6341, %v7162
    %v8732 = vmul.f32 %v6346, %v7163
    %v8733 = vmul.f32 %v6351, %v7164
    %v8734 = vmul.f32 %v6356, %v7165
    %v8735 = vmul.f32 %v6361, %v7166
    %v8736 = vmul.f32 %v6366, %v7167
    %8753 = vrot.lane.b32.xlu0 %v8721, 116
    %v8754 = vpop.permute.xlu0 %8753
    %8755 = vrot.lane.b32.xlu0 %v8722, 116
    %v8756 = vpop.permute.xlu0 %8755
    %8757 = vrot.lane.b32.xlu0 %v8723, 116
    %v8758 = vpop.permute.xlu0 %8757
    %8759 = vrot.lane.b32.xlu0 %v8724, 116
    %v8760 = vpop.permute.xlu0 %8759
    %8761 = vrot.lane.b32.xlu0 %v8725, 116
    %v8762 = vpop.permute.xlu0 %8761
    %8763 = vrot.lane.b32.xlu0 %v8726, 116
    %v8764 = vpop.permute.xlu0 %8763
    %8765 = vrot.lane.b32.xlu0 %v8727, 116
    %v8766 = vpop.permute.xlu0 %8765
    %8767 = vrot.lane.b32.xlu0 %v8728, 116
    %v8768 = vpop.permute.xlu0 %8767
    %8769 = vrot.lane.b32.xlu0 %v8729, 116
    %v8770 = vpop.permute.xlu0 %8769
    %8771 = vrot.lane.b32.xlu0 %v8730, 116
    %v8772 = vpop.permute.xlu0 %8771
    %8773 = vrot.lane.b32.xlu0 %v8731, 116
    %v8774 = vpop.permute.xlu0 %8773
    %8775 = vrot.lane.b32.xlu0 %v8732, 116
    %v8776 = vpop.permute.xlu0 %8775
    %8777 = vrot.lane.b32.xlu0 %v8733, 116
    %v8778 = vpop.permute.xlu0 %8777
    %8779 = vrot.lane.b32.xlu0 %v8734, 116
    %v8780 = vpop.permute.xlu0 %8779
    %8781 = vrot.lane.b32.xlu0 %v8735, 116
    %v8782 = vpop.permute.xlu0 %8781
    %8783 = vrot.lane.b32.xlu0 %v8736, 116
    %v8784 = vpop.permute.xlu0 %8783
    %v8801 = vadd.f32 %v8609, %v8754
    %v8802 = vadd.f32 %v8610, %v8756
    %v8803 = vadd.f32 %v8611, %v8758
    %v8804 = vadd.f32 %v8612, %v8760
    %v8805 = vadd.f32 %v8613, %v8762
    %v8806 = vadd.f32 %v8614, %v8764
    %v8807 = vadd.f32 %v8615, %v8766
    %v8808 = vadd.f32 %v8616, %v8768
    %v8809 = vadd.f32 %v8617, %v8770
    %v8810 = vadd.f32 %v8618, %v8772
    %v8811 = vadd.f32 %v8619, %v8774
    %v8812 = vadd.f32 %v8620, %v8776
    %v8813 = vadd.f32 %v8621, %v8778
    %v8814 = vadd.f32 %v8622, %v8780
    %v8815 = vadd.f32 %v8623, %v8782
    %v8816 = vadd.f32 %v8624, %v8784
    %v8817 = vmul.f32 %v7074, %v6384
    %v8818 = vmul.f32 %v7078, %v6385
    %v8819 = vmul.f32 %v7082, %v6386
    %v8820 = vmul.f32 %v7086, %v6387
    %v8821 = vmul.f32 %v7090, %v6388
    %v8822 = vmul.f32 %v7094, %v6389
    %v8823 = vmul.f32 %v7098, %v6390
    %v8824 = vmul.f32 %v7102, %v6391
    %v8825 = vmul.f32 %v7106, %v6392
    %v8826 = vmul.f32 %v7110, %v6393
    %v8827 = vmul.f32 %v7114, %v6394
    %v8828 = vmul.f32 %v7118, %v6395
    %v8829 = vmul.f32 %v7122, %v6396
    %v8830 = vmul.f32 %v7126, %v6397
    %v8831 = vmul.f32 %v7130, %v6398
    %v8832 = vmul.f32 %v7134, %v6399
    %8849 = vrot.lane.b32.xlu0 %v8817, 116
    %v8850 = vpop.permute.xlu0 %8849
    %8851 = vrot.lane.b32.xlu0 %v8818, 116
    %v8852 = vpop.permute.xlu0 %8851
    %8853 = vrot.lane.b32.xlu0 %v8819, 116
    %v8854 = vpop.permute.xlu0 %8853
    %8855 = vrot.lane.b32.xlu0 %v8820, 116
    %v8856 = vpop.permute.xlu0 %8855
    %8857 = vrot.lane.b32.xlu0 %v8821, 116
    %v8858 = vpop.permute.xlu0 %8857
    %8859 = vrot.lane.b32.xlu0 %v8822, 116
    %v8860 = vpop.permute.xlu0 %8859
    %8861 = vrot.lane.b32.xlu0 %v8823, 116
    %v8862 = vpop.permute.xlu0 %8861
    %8863 = vrot.lane.b32.xlu0 %v8824, 116
    %v8864 = vpop.permute.xlu0 %8863
    %8865 = vrot.lane.b32.xlu0 %v8825, 116
    %v8866 = vpop.permute.xlu0 %8865
    %8867 = vrot.lane.b32.xlu0 %v8826, 116
    %v8868 = vpop.permute.xlu0 %8867
    %8869 = vrot.lane.b32.xlu0 %v8827, 116
    %v8870 = vpop.permute.xlu0 %8869
    %8871 = vrot.lane.b32.xlu0 %v8828, 116
    %v8872 = vpop.permute.xlu0 %8871
    %8873 = vrot.lane.b32.xlu0 %v8829, 116
    %v8874 = vpop.permute.xlu0 %8873
    %8875 = vrot.lane.b32.xlu0 %v8830, 116
    %v8876 = vpop.permute.xlu0 %8875
    %8877 = vrot.lane.b32.xlu0 %v8831, 116
    %v8878 = vpop.permute.xlu0 %8877
    %8879 = vrot.lane.b32.xlu0 %v8832, 116
    %v8880 = vpop.permute.xlu0 %8879
    %v8897 = vadd.f32 %v8705, %v8850
    %v8898 = vadd.f32 %v8706, %v8852
    %v8899 = vadd.f32 %v8707, %v8854
    %v8900 = vadd.f32 %v8708, %v8856
    %v8901 = vadd.f32 %v8709, %v8858
    %v8902 = vadd.f32 %v8710, %v8860
    %v8903 = vadd.f32 %v8711, %v8862
    %v8904 = vadd.f32 %v8712, %v8864
    %v8905 = vadd.f32 %v8713, %v8866
    %v8906 = vadd.f32 %v8714, %v8868
    %v8907 = vadd.f32 %v8715, %v8870
    %v8908 = vadd.f32 %v8716, %v8872
    %v8909 = vadd.f32 %v8717, %v8874
    %v8910 = vadd.f32 %v8718, %v8876
    %v8911 = vadd.f32 %v8719, %v8878
    %v8912 = vadd.f32 %v8720, %v8880
    %v8913 = vmul.f32 %v8801, %v8897
    %v8914 = vmul.f32 %v8802, %v8898
    %v8915 = vmul.f32 %v8803, %v8899
    %v8916 = vmul.f32 %v8804, %v8900
    %v8917 = vmul.f32 %v8805, %v8901
    %v8918 = vmul.f32 %v8806, %v8902
    %v8919 = vmul.f32 %v8807, %v8903
    %v8920 = vmul.f32 %v8808, %v8904
    %v8921 = vmul.f32 %v8809, %v8905
    %v8922 = vmul.f32 %v8810, %v8906
    %v8923 = vmul.f32 %v8811, %v8907
    %v8924 = vmul.f32 %v8812, %v8908
    %v8925 = vmul.f32 %v8813, %v8909
    %v8926 = vmul.f32 %v8814, %v8910
    %v8927 = vmul.f32 %v8815, %v8911
    %v8928 = vmul.f32 %v8816, %v8912
    %v8929 = vsel %vm8208, %v8913, 0.0
    %8930 = vadd.xlane.f32.xlu0 %v8929
    %v8931 = vpop.xlane.xlu0 %8930
    %v8932 = vsel %vm8208, %v8914, 0.0
    %8933 = vadd.xlane.f32.xlu0 %v8932
    %v8934 = vpop.xlane.xlu0 %8933
    %v8935 = vsel %vm8208, %v8915, 0.0
    %8936 = vadd.xlane.f32.xlu0 %v8935
    %v8937 = vpop.xlane.xlu0 %8936
    %v8938 = vsel %vm8208, %v8916, 0.0
    %8939 = vadd.xlane.f32.xlu0 %v8938
    %v8940 = vpop.xlane.xlu0 %8939
    %v8941 = vsel %vm8208, %v8917, 0.0
    %8942 = vadd.xlane.f32.xlu0 %v8941
    %v8943 = vpop.xlane.xlu0 %8942
    %v8944 = vsel %vm8208, %v8918, 0.0
    %8945 = vadd.xlane.f32.xlu0 %v8944
    %v8946 = vpop.xlane.xlu0 %8945
    %v8947 = vsel %vm8208, %v8919, 0.0
    %8948 = vadd.xlane.f32.xlu0 %v8947
    %v8949 = vpop.xlane.xlu0 %8948
    %v8950 = vsel %vm8208, %v8920, 0.0
    %8951 = vadd.xlane.f32.xlu0 %v8950
    %v8952 = vpop.xlane.xlu0 %8951
    %v8953 = vsel %vm8208, %v8921, 0.0
    %8954 = vadd.xlane.f32.xlu0 %v8953
    %v8955 = vpop.xlane.xlu0 %8954
    %v8956 = vsel %vm8208, %v8922, 0.0
    %8957 = vadd.xlane.f32.xlu0 %v8956
    %v8958 = vpop.xlane.xlu0 %8957
    %v8959 = vsel %vm8208, %v8923, 0.0
    %8960 = vadd.xlane.f32.xlu0 %v8959
    %v8961 = vpop.xlane.xlu0 %8960
    %v8962 = vsel %vm8208, %v8924, 0.0
    %8963 = vadd.xlane.f32.xlu0 %v8962
    %v8964 = vpop.xlane.xlu0 %8963
    %v8965 = vsel %vm8208, %v8925, 0.0
    %8966 = vadd.xlane.f32.xlu0 %v8965
    %v8967 = vpop.xlane.xlu0 %8966
    %v8968 = vsel %vm8208, %v8926, 0.0
    %8969 = vadd.xlane.f32.xlu0 %v8968
    %v8970 = vpop.xlane.xlu0 %8969
    %v8971 = vsel %vm8208, %v8927, 0.0
    %8972 = vadd.xlane.f32.xlu0 %v8971
    %v8973 = vpop.xlane.xlu0 %8972
    %v8974 = vsel %vm8208, %v8928, 0.0
    %8975 = vadd.xlane.f32.xlu0 %v8974
    %v8976 = vpop.xlane.xlu0 %8975
    %v8977 = vadd.f32 %v8257, %v8931
    %v8978 = vadd.f32 %v8258, %v8934
    %v8979 = vadd.f32 %v8259, %v8937
    %v8980 = vadd.f32 %v8260, %v8940
    %v8981 = vadd.f32 %v8261, %v8943
    %v8982 = vadd.f32 %v8262, %v8946
    %v8983 = vadd.f32 %v8263, %v8949
    %v8984 = vadd.f32 %v8264, %v8952
    %v8985 = vadd.f32 %v8265, %v8955
    %v8986 = vadd.f32 %v8266, %v8958
    %v8987 = vadd.f32 %v8267, %v8961
    %v8988 = vadd.f32 %v8268, %v8964
    %v8989 = vadd.f32 %v8269, %v8967
    %v8990 = vadd.f32 %v8270, %v8970
    %v8991 = vadd.f32 %v8271, %v8973
    %v8992 = vadd.f32 %v8272, %v8976
    %v8993 = vmul.f32 %v6402, %v7152
    %v8994 = vmul.f32 %v6406, %v7153
    %v8995 = vmul.f32 %v6410, %v7154
    %v8996 = vmul.f32 %v6414, %v7155
    %v8997 = vmul.f32 %v6418, %v7156
    %v8998 = vmul.f32 %v6422, %v7157
    %v8999 = vmul.f32 %v6426, %v7158
    %v9000 = vmul.f32 %v6430, %v7159
    %v9001 = vmul.f32 %v6434, %v7160
    %v9002 = vmul.f32 %v6438, %v7161
    %v9003 = vmul.f32 %v6442, %v7162
    %v9004 = vmul.f32 %v6446, %v7163
    %v9005 = vmul.f32 %v6450, %v7164
    %v9006 = vmul.f32 %v6454, %v7165
    %v9007 = vmul.f32 %v6458, %v7166
    %v9008 = vmul.f32 %v6462, %v7167
    %v9009 = vadd.f32 %v8993, 0.0
    %v9010 = vadd.f32 %v8994, 0.0
    %v9011 = vadd.f32 %v8995, 0.0
    %v9012 = vadd.f32 %v8996, 0.0
    %v9013 = vadd.f32 %v8997, 0.0
    %v9014 = vadd.f32 %v8998, 0.0
    %v9015 = vadd.f32 %v8999, 0.0
    %v9016 = vadd.f32 %v9000, 0.0
    %v9017 = vadd.f32 %v9001, 0.0
    %v9018 = vadd.f32 %v9002, 0.0
    %v9019 = vadd.f32 %v9003, 0.0
    %v9020 = vadd.f32 %v9004, 0.0
    %v9021 = vadd.f32 %v9005, 0.0
    %v9022 = vadd.f32 %v9006, 0.0
    %v9023 = vadd.f32 %v9007, 0.0
    %v9024 = vadd.f32 %v9008, 0.0
    %v9025 = vmul.f32 %v6786, %v6768
    %v9026 = vmul.f32 %v6790, %v6769
    %v9027 = vmul.f32 %v6794, %v6770
    %v9028 = vmul.f32 %v6798, %v6771
    %v9029 = vmul.f32 %v6802, %v6772
    %v9030 = vmul.f32 %v6806, %v6773
    %v9031 = vmul.f32 %v6810, %v6774
    %v9032 = vmul.f32 %v6814, %v6775
    %v9033 = vmul.f32 %v6818, %v6776
    %v9034 = vmul.f32 %v6822, %v6777
    %v9035 = vmul.f32 %v6826, %v6778
    %v9036 = vmul.f32 %v6830, %v6779
    %v9037 = vmul.f32 %v6834, %v6780
    %v9038 = vmul.f32 %v6838, %v6781
    %v9039 = vmul.f32 %v6842, %v6782
    %v9040 = vmul.f32 %v6846, %v6783
    %v9041 = vadd.f32 %v9025, 0.0
    %v9042 = vadd.f32 %v9026, 0.0
    %v9043 = vadd.f32 %v9027, 0.0
    %v9044 = vadd.f32 %v9028, 0.0
    %v9045 = vadd.f32 %v9029, 0.0
    %v9046 = vadd.f32 %v9030, 0.0
    %v9047 = vadd.f32 %v9031, 0.0
    %v9048 = vadd.f32 %v9032, 0.0
    %v9049 = vadd.f32 %v9033, 0.0
    %v9050 = vadd.f32 %v9034, 0.0
    %v9051 = vadd.f32 %v9035, 0.0
    %v9052 = vadd.f32 %v9036, 0.0
    %v9053 = vadd.f32 %v9037, 0.0
    %v9054 = vadd.f32 %v9038, 0.0
    %v9055 = vadd.f32 %v9039, 0.0
    %v9056 = vadd.f32 %v9040, 0.0
    %v9057 = vmul.f32 %v6498, %v7152
    %v9058 = vmul.f32 %v6502, %v7153
    %v9059 = vmul.f32 %v6506, %v7154
    %v9060 = vmul.f32 %v6510, %v7155
    %v9061 = vmul.f32 %v6514, %v7156
    %v9062 = vmul.f32 %v6518, %v7157
    %v9063 = vmul.f32 %v6522, %v7158
    %v9064 = vmul.f32 %v6526, %v7159
    %v9065 = vmul.f32 %v6530, %v7160
    %v9066 = vmul.f32 %v6534, %v7161
    %v9067 = vmul.f32 %v6538, %v7162
    %v9068 = vmul.f32 %v6542, %v7163
    %v9069 = vmul.f32 %v6546, %v7164
    %v9070 = vmul.f32 %v6550, %v7165
    %v9071 = vmul.f32 %v6554, %v7166
    %v9072 = vmul.f32 %v6558, %v7167
    %9089 = vrot.lane.b32.xlu0 %v9057, 124
    %v9090 = vpop.permute.xlu0 %9089
    %9091 = vrot.lane.b32.xlu0 %v9058, 124
    %v9092 = vpop.permute.xlu0 %9091
    %9093 = vrot.lane.b32.xlu0 %v9059, 124
    %v9094 = vpop.permute.xlu0 %9093
    %9095 = vrot.lane.b32.xlu0 %v9060, 124
    %v9096 = vpop.permute.xlu0 %9095
    %9097 = vrot.lane.b32.xlu0 %v9061, 124
    %v9098 = vpop.permute.xlu0 %9097
    %9099 = vrot.lane.b32.xlu0 %v9062, 124
    %v9100 = vpop.permute.xlu0 %9099
    %9101 = vrot.lane.b32.xlu0 %v9063, 124
    %v9102 = vpop.permute.xlu0 %9101
    %9103 = vrot.lane.b32.xlu0 %v9064, 124
    %v9104 = vpop.permute.xlu0 %9103
    %9105 = vrot.lane.b32.xlu0 %v9065, 124
    %v9106 = vpop.permute.xlu0 %9105
    %9107 = vrot.lane.b32.xlu0 %v9066, 124
    %v9108 = vpop.permute.xlu0 %9107
    %9109 = vrot.lane.b32.xlu0 %v9067, 124
    %v9110 = vpop.permute.xlu0 %9109
    %9111 = vrot.lane.b32.xlu0 %v9068, 124
    %v9112 = vpop.permute.xlu0 %9111
    %9113 = vrot.lane.b32.xlu0 %v9069, 124
    %v9114 = vpop.permute.xlu0 %9113
    %9115 = vrot.lane.b32.xlu0 %v9070, 124
    %v9116 = vpop.permute.xlu0 %9115
    %9117 = vrot.lane.b32.xlu0 %v9071, 124
    %v9118 = vpop.permute.xlu0 %9117
    %9119 = vrot.lane.b32.xlu0 %v9072, 124
    %v9120 = vpop.permute.xlu0 %9119
    %v9137 = vadd.f32 %v9009, %v9090
    %v9138 = vadd.f32 %v9010, %v9092
    %v9139 = vadd.f32 %v9011, %v9094
    %v9140 = vadd.f32 %v9012, %v9096
    %v9141 = vadd.f32 %v9013, %v9098
    %v9142 = vadd.f32 %v9014, %v9100
    %v9143 = vadd.f32 %v9015, %v9102
    %v9144 = vadd.f32 %v9016, %v9104
    %v9145 = vadd.f32 %v9017, %v9106
    %v9146 = vadd.f32 %v9018, %v9108
    %v9147 = vadd.f32 %v9019, %v9110
    %v9148 = vadd.f32 %v9020, %v9112
    %v9149 = vadd.f32 %v9021, %v9114
    %v9150 = vadd.f32 %v9022, %v9116
    %v9151 = vadd.f32 %v9023, %v9118
    %v9152 = vadd.f32 %v9024, %v9120
    %v9153 = vmul.f32 %v6882, %v6768
    %v9154 = vmul.f32 %v6886, %v6769
    %v9155 = vmul.f32 %v6890, %v6770
    %v9156 = vmul.f32 %v6894, %v6771
    %v9157 = vmul.f32 %v6898, %v6772
    %v9158 = vmul.f32 %v6902, %v6773
    %v9159 = vmul.f32 %v6906, %v6774
    %v9160 = vmul.f32 %v6910, %v6775
    %v9161 = vmul.f32 %v6914, %v6776
    %v9162 = vmul.f32 %v6918, %v6777
    %v9163 = vmul.f32 %v6922, %v6778
    %v9164 = vmul.f32 %v6926, %v6779
    %v9165 = vmul.f32 %v6930, %v6780
    %v9166 = vmul.f32 %v6934, %v6781
    %v9167 = vmul.f32 %v6938, %v6782
    %v9168 = vmul.f32 %v6942, %v6783
    %9185 = vrot.lane.b32.xlu0 %v9153, 124
    %v9186 = vpop.permute.xlu0 %9185
    %9187 = vrot.lane.b32.xlu0 %v9154, 124
    %v9188 = vpop.permute.xlu0 %9187
    %9189 = vrot.lane.b32.xlu0 %v9155, 124
    %v9190 = vpop.permute.xlu0 %9189
    %9191 = vrot.lane.b32.xlu0 %v9156, 124
    %v9192 = vpop.permute.xlu0 %9191
    %9193 = vrot.lane.b32.xlu0 %v9157, 124
    %v9194 = vpop.permute.xlu0 %9193
    %9195 = vrot.lane.b32.xlu0 %v9158, 124
    %v9196 = vpop.permute.xlu0 %9195
    %9197 = vrot.lane.b32.xlu0 %v9159, 124
    %v9198 = vpop.permute.xlu0 %9197
    %9199 = vrot.lane.b32.xlu0 %v9160, 124
    %v9200 = vpop.permute.xlu0 %9199
    %9201 = vrot.lane.b32.xlu0 %v9161, 124
    %v9202 = vpop.permute.xlu0 %9201
    %9203 = vrot.lane.b32.xlu0 %v9162, 124
    %v9204 = vpop.permute.xlu0 %9203
    %9205 = vrot.lane.b32.xlu0 %v9163, 124
    %v9206 = vpop.permute.xlu0 %9205
    %9207 = vrot.lane.b32.xlu0 %v9164, 124
    %v9208 = vpop.permute.xlu0 %9207
    %9209 = vrot.lane.b32.xlu0 %v9165, 124
    %v9210 = vpop.permute.xlu0 %9209
    %9211 = vrot.lane.b32.xlu0 %v9166, 124
    %v9212 = vpop.permute.xlu0 %9211
    %9213 = vrot.lane.b32.xlu0 %v9167, 124
    %v9214 = vpop.permute.xlu0 %9213
    %9215 = vrot.lane.b32.xlu0 %v9168, 124
    %v9216 = vpop.permute.xlu0 %9215
    %v9233 = vadd.f32 %v9041, %v9186
    %v9234 = vadd.f32 %v9042, %v9188
    %v9235 = vadd.f32 %v9043, %v9190
    %v9236 = vadd.f32 %v9044, %v9192
    %v9237 = vadd.f32 %v9045, %v9194
    %v9238 = vadd.f32 %v9046, %v9196
    %v9239 = vadd.f32 %v9047, %v9198
    %v9240 = vadd.f32 %v9048, %v9200
    %v9241 = vadd.f32 %v9049, %v9202
    %v9242 = vadd.f32 %v9050, %v9204
    %v9243 = vadd.f32 %v9051, %v9206
    %v9244 = vadd.f32 %v9052, %v9208
    %v9245 = vadd.f32 %v9053, %v9210
    %v9246 = vadd.f32 %v9054, %v9212
    %v9247 = vadd.f32 %v9055, %v9214
    %v9248 = vadd.f32 %v9056, %v9216
    %v9249 = vmul.f32 %v6594, %v7152
    %v9250 = vmul.f32 %v6598, %v7153
    %v9251 = vmul.f32 %v6602, %v7154
    %v9252 = vmul.f32 %v6606, %v7155
    %v9253 = vmul.f32 %v6610, %v7156
    %v9254 = vmul.f32 %v6614, %v7157
    %v9255 = vmul.f32 %v6618, %v7158
    %v9256 = vmul.f32 %v6622, %v7159
    %v9257 = vmul.f32 %v6626, %v7160
    %v9258 = vmul.f32 %v6630, %v7161
    %v9259 = vmul.f32 %v6634, %v7162
    %v9260 = vmul.f32 %v6638, %v7163
    %v9261 = vmul.f32 %v6642, %v7164
    %v9262 = vmul.f32 %v6646, %v7165
    %v9263 = vmul.f32 %v6650, %v7166
    %v9264 = vmul.f32 %v6654, %v7167
    %9281 = vrot.lane.b32.xlu0 %v9249, 120
    %v9282 = vpop.permute.xlu0 %9281
    %9283 = vrot.lane.b32.xlu0 %v9250, 120
    %v9284 = vpop.permute.xlu0 %9283
    %9285 = vrot.lane.b32.xlu0 %v9251, 120
    %v9286 = vpop.permute.xlu0 %9285
    %9287 = vrot.lane.b32.xlu0 %v9252, 120
    %v9288 = vpop.permute.xlu0 %9287
    %9289 = vrot.lane.b32.xlu0 %v9253, 120
    %v9290 = vpop.permute.xlu0 %9289
    %9291 = vrot.lane.b32.xlu0 %v9254, 120
    %v9292 = vpop.permute.xlu0 %9291
    %9293 = vrot.lane.b32.xlu0 %v9255, 120
    %v9294 = vpop.permute.xlu0 %9293
    %9295 = vrot.lane.b32.xlu0 %v9256, 120
    %v9296 = vpop.permute.xlu0 %9295
    %9297 = vrot.lane.b32.xlu0 %v9257, 120
    %v9298 = vpop.permute.xlu0 %9297
    %9299 = vrot.lane.b32.xlu0 %v9258, 120
    %v9300 = vpop.permute.xlu0 %9299
    %9301 = vrot.lane.b32.xlu0 %v9259, 120
    %v9302 = vpop.permute.xlu0 %9301
    %9303 = vrot.lane.b32.xlu0 %v9260, 120
    %v9304 = vpop.permute.xlu0 %9303
    %9305 = vrot.lane.b32.xlu0 %v9261, 120
    %v9306 = vpop.permute.xlu0 %9305
    %9307 = vrot.lane.b32.xlu0 %v9262, 120
    %v9308 = vpop.permute.xlu0 %9307
    %9309 = vrot.lane.b32.xlu0 %v9263, 120
    %v9310 = vpop.permute.xlu0 %9309
    %9311 = vrot.lane.b32.xlu0 %v9264, 120
    %v9312 = vpop.permute.xlu0 %9311
    %v9329 = vadd.f32 %v9137, %v9282
    %v9330 = vadd.f32 %v9138, %v9284
    %v9331 = vadd.f32 %v9139, %v9286
    %v9332 = vadd.f32 %v9140, %v9288
    %v9333 = vadd.f32 %v9141, %v9290
    %v9334 = vadd.f32 %v9142, %v9292
    %v9335 = vadd.f32 %v9143, %v9294
    %v9336 = vadd.f32 %v9144, %v9296
    %v9337 = vadd.f32 %v9145, %v9298
    %v9338 = vadd.f32 %v9146, %v9300
    %v9339 = vadd.f32 %v9147, %v9302
    %v9340 = vadd.f32 %v9148, %v9304
    %v9341 = vadd.f32 %v9149, %v9306
    %v9342 = vadd.f32 %v9150, %v9308
    %v9343 = vadd.f32 %v9151, %v9310
    %v9344 = vadd.f32 %v9152, %v9312
    %v9345 = vmul.f32 %v6978, %v6768
    %v9346 = vmul.f32 %v6982, %v6769
    %v9347 = vmul.f32 %v6986, %v6770
    %v9348 = vmul.f32 %v6990, %v6771
    %v9349 = vmul.f32 %v6994, %v6772
    %v9350 = vmul.f32 %v6998, %v6773
    %v9351 = vmul.f32 %v7002, %v6774
    %v9352 = vmul.f32 %v7006, %v6775
    %v9353 = vmul.f32 %v7010, %v6776
    %v9354 = vmul.f32 %v7014, %v6777
    %v9355 = vmul.f32 %v7018, %v6778
    %v9356 = vmul.f32 %v7022, %v6779
    %v9357 = vmul.f32 %v7026, %v6780
    %v9358 = vmul.f32 %v7030, %v6781
    %v9359 = vmul.f32 %v7034, %v6782
    %v9360 = vmul.f32 %v7038, %v6783
    %9377 = vrot.lane.b32.xlu0 %v9345, 120
    %v9378 = vpop.permute.xlu0 %9377
    %9379 = vrot.lane.b32.xlu0 %v9346, 120
    %v9380 = vpop.permute.xlu0 %9379
    %9381 = vrot.lane.b32.xlu0 %v9347, 120
    %v9382 = vpop.permute.xlu0 %9381
    %9383 = vrot.lane.b32.xlu0 %v9348, 120
    %v9384 = vpop.permute.xlu0 %9383
    %9385 = vrot.lane.b32.xlu0 %v9349, 120
    %v9386 = vpop.permute.xlu0 %9385
    %9387 = vrot.lane.b32.xlu0 %v9350, 120
    %v9388 = vpop.permute.xlu0 %9387
    %9389 = vrot.lane.b32.xlu0 %v9351, 120
    %v9390 = vpop.permute.xlu0 %9389
    %9391 = vrot.lane.b32.xlu0 %v9352, 120
    %v9392 = vpop.permute.xlu0 %9391
    %9393 = vrot.lane.b32.xlu0 %v9353, 120
    %v9394 = vpop.permute.xlu0 %9393
    %9395 = vrot.lane.b32.xlu0 %v9354, 120
    %v9396 = vpop.permute.xlu0 %9395
    %9397 = vrot.lane.b32.xlu0 %v9355, 120
    %v9398 = vpop.permute.xlu0 %9397
    %9399 = vrot.lane.b32.xlu0 %v9356, 120
    %v9400 = vpop.permute.xlu0 %9399
    %9401 = vrot.lane.b32.xlu0 %v9357, 120
    %v9402 = vpop.permute.xlu0 %9401
    %9403 = vrot.lane.b32.xlu0 %v9358, 120
    %v9404 = vpop.permute.xlu0 %9403
    %9405 = vrot.lane.b32.xlu0 %v9359, 120
    %v9406 = vpop.permute.xlu0 %9405
    %9407 = vrot.lane.b32.xlu0 %v9360, 120
    %v9408 = vpop.permute.xlu0 %9407
    %v9425 = vadd.f32 %v9233, %v9378
    %v9426 = vadd.f32 %v9234, %v9380
    %v9427 = vadd.f32 %v9235, %v9382
    %v9428 = vadd.f32 %v9236, %v9384
    %v9429 = vadd.f32 %v9237, %v9386
    %v9430 = vadd.f32 %v9238, %v9388
    %v9431 = vadd.f32 %v9239, %v9390
    %v9432 = vadd.f32 %v9240, %v9392
    %v9433 = vadd.f32 %v9241, %v9394
    %v9434 = vadd.f32 %v9242, %v9396
    %v9435 = vadd.f32 %v9243, %v9398
    %v9436 = vadd.f32 %v9244, %v9400
    %v9437 = vadd.f32 %v9245, %v9402
    %v9438 = vadd.f32 %v9246, %v9404
    %v9439 = vadd.f32 %v9247, %v9406
    %v9440 = vadd.f32 %v9248, %v9408
    %v9441 = vmul.f32 %v6690, %v7152
    %v9442 = vmul.f32 %v6694, %v7153
    %v9443 = vmul.f32 %v6698, %v7154
    %v9444 = vmul.f32 %v6702, %v7155
    %v9445 = vmul.f32 %v6706, %v7156
    %v9446 = vmul.f32 %v6710, %v7157
    %v9447 = vmul.f32 %v6714, %v7158
    %v9448 = vmul.f32 %v6718, %v7159
    %v9449 = vmul.f32 %v6722, %v7160
    %v9450 = vmul.f32 %v6726, %v7161
    %v9451 = vmul.f32 %v6730, %v7162
    %v9452 = vmul.f32 %v6734, %v7163
    %v9453 = vmul.f32 %v6738, %v7164
    %v9454 = vmul.f32 %v6742, %v7165
    %v9455 = vmul.f32 %v6746, %v7166
    %v9456 = vmul.f32 %v6750, %v7167
    %9473 = vrot.lane.b32.xlu0 %v9441, 116
    %v9474 = vpop.permute.xlu0 %9473
    %9475 = vrot.lane.b32.xlu0 %v9442, 116
    %v9476 = vpop.permute.xlu0 %9475
    %9477 = vrot.lane.b32.xlu0 %v9443, 116
    %v9478 = vpop.permute.xlu0 %9477
    %9479 = vrot.lane.b32.xlu0 %v9444, 116
    %v9480 = vpop.permute.xlu0 %9479
    %9481 = vrot.lane.b32.xlu0 %v9445, 116
    %v9482 = vpop.permute.xlu0 %9481
    %9483 = vrot.lane.b32.xlu0 %v9446, 116
    %v9484 = vpop.permute.xlu0 %9483
    %9485 = vrot.lane.b32.xlu0 %v9447, 116
    %v9486 = vpop.permute.xlu0 %9485
    %9487 = vrot.lane.b32.xlu0 %v9448, 116
    %v9488 = vpop.permute.xlu0 %9487
    %9489 = vrot.lane.b32.xlu0 %v9449, 116
    %v9490 = vpop.permute.xlu0 %9489
    %9491 = vrot.lane.b32.xlu0 %v9450, 116
    %v9492 = vpop.permute.xlu0 %9491
    %9493 = vrot.lane.b32.xlu0 %v9451, 116
    %v9494 = vpop.permute.xlu0 %9493
    %9495 = vrot.lane.b32.xlu0 %v9452, 116
    %v9496 = vpop.permute.xlu0 %9495
    %9497 = vrot.lane.b32.xlu0 %v9453, 116
    %v9498 = vpop.permute.xlu0 %9497
    %9499 = vrot.lane.b32.xlu0 %v9454, 116
    %v9500 = vpop.permute.xlu0 %9499
    %9501 = vrot.lane.b32.xlu0 %v9455, 116
    %v9502 = vpop.permute.xlu0 %9501
    %9503 = vrot.lane.b32.xlu0 %v9456, 116
    %v9504 = vpop.permute.xlu0 %9503
    %v9521 = vadd.f32 %v9329, %v9474
    %v9522 = vadd.f32 %v9330, %v9476
    %v9523 = vadd.f32 %v9331, %v9478
    %v9524 = vadd.f32 %v9332, %v9480
    %v9525 = vadd.f32 %v9333, %v9482
    %v9526 = vadd.f32 %v9334, %v9484
    %v9527 = vadd.f32 %v9335, %v9486
    %v9528 = vadd.f32 %v9336, %v9488
    %v9529 = vadd.f32 %v9337, %v9490
    %v9530 = vadd.f32 %v9338, %v9492
    %v9531 = vadd.f32 %v9339, %v9494
    %v9532 = vadd.f32 %v9340, %v9496
    %v9533 = vadd.f32 %v9341, %v9498
    %v9534 = vadd.f32 %v9342, %v9500
    %v9535 = vadd.f32 %v9343, %v9502
    %v9536 = vadd.f32 %v9344, %v9504
    %v9537 = vmul.f32 %v7074, %v6768
    %v9538 = vmul.f32 %v7078, %v6769
    %v9539 = vmul.f32 %v7082, %v6770
    %v9540 = vmul.f32 %v7086, %v6771
    %v9541 = vmul.f32 %v7090, %v6772
    %v9542 = vmul.f32 %v7094, %v6773
    %v9543 = vmul.f32 %v7098, %v6774
    %v9544 = vmul.f32 %v7102, %v6775
    %v9545 = vmul.f32 %v7106, %v6776
    %v9546 = vmul.f32 %v7110, %v6777
    %v9547 = vmul.f32 %v7114, %v6778
    %v9548 = vmul.f32 %v7118, %v6779
    %v9549 = vmul.f32 %v7122, %v6780
    %v9550 = vmul.f32 %v7126, %v6781
    %v9551 = vmul.f32 %v7130, %v6782
    %v9552 = vmul.f32 %v7134, %v6783
    %9569 = vrot.lane.b32.xlu0 %v9537, 116
    %v9570 = vpop.permute.xlu0 %9569
    %9571 = vrot.lane.b32.xlu0 %v9538, 116
    %v9572 = vpop.permute.xlu0 %9571
    %9573 = vrot.lane.b32.xlu0 %v9539, 116
    %v9574 = vpop.permute.xlu0 %9573
    %9575 = vrot.lane.b32.xlu0 %v9540, 116
    %v9576 = vpop.permute.xlu0 %9575
    %9577 = vrot.lane.b32.xlu0 %v9541, 116
    %v9578 = vpop.permute.xlu0 %9577
    %9579 = vrot.lane.b32.xlu0 %v9542, 116
    %v9580 = vpop.permute.xlu0 %9579
    %9581 = vrot.lane.b32.xlu0 %v9543, 116
    %v9582 = vpop.permute.xlu0 %9581
    %9583 = vrot.lane.b32.xlu0 %v9544, 116
    %v9584 = vpop.permute.xlu0 %9583
    %9585 = vrot.lane.b32.xlu0 %v9545, 116
    %v9586 = vpop.permute.xlu0 %9585
    %9587 = vrot.lane.b32.xlu0 %v9546, 116
    %v9588 = vpop.permute.xlu0 %9587
    %9589 = vrot.lane.b32.xlu0 %v9547, 116
    %v9590 = vpop.permute.xlu0 %9589
    %9591 = vrot.lane.b32.xlu0 %v9548, 116
    %v9592 = vpop.permute.xlu0 %9591
    %9593 = vrot.lane.b32.xlu0 %v9549, 116
    %v9594 = vpop.permute.xlu0 %9593
    %9595 = vrot.lane.b32.xlu0 %v9550, 116
    %v9596 = vpop.permute.xlu0 %9595
    %9597 = vrot.lane.b32.xlu0 %v9551, 116
    %v9598 = vpop.permute.xlu0 %9597
    %9599 = vrot.lane.b32.xlu0 %v9552, 116
    %v9600 = vpop.permute.xlu0 %9599
    %v9617 = vadd.f32 %v9425, %v9570
    %v9618 = vadd.f32 %v9426, %v9572
    %v9619 = vadd.f32 %v9427, %v9574
    %v9620 = vadd.f32 %v9428, %v9576
    %v9621 = vadd.f32 %v9429, %v9578
    %v9622 = vadd.f32 %v9430, %v9580
    %v9623 = vadd.f32 %v9431, %v9582
    %v9624 = vadd.f32 %v9432, %v9584
    %v9625 = vadd.f32 %v9433, %v9586
    %v9626 = vadd.f32 %v9434, %v9588
    %v9627 = vadd.f32 %v9435, %v9590
    %v9628 = vadd.f32 %v9436, %v9592
    %v9629 = vadd.f32 %v9437, %v9594
    %v9630 = vadd.f32 %v9438, %v9596
    %v9631 = vadd.f32 %v9439, %v9598
    %v9632 = vadd.f32 %v9440, %v9600
    %v9633 = vmul.f32 %v9521, %v9617
    %v9634 = vmul.f32 %v9522, %v9618
    %v9635 = vmul.f32 %v9523, %v9619
    %v9636 = vmul.f32 %v9524, %v9620
    %v9637 = vmul.f32 %v9525, %v9621
    %v9638 = vmul.f32 %v9526, %v9622
    %v9639 = vmul.f32 %v9527, %v9623
    %v9640 = vmul.f32 %v9528, %v9624
    %v9641 = vmul.f32 %v9529, %v9625
    %v9642 = vmul.f32 %v9530, %v9626
    %v9643 = vmul.f32 %v9531, %v9627
    %v9644 = vmul.f32 %v9532, %v9628
    %v9645 = vmul.f32 %v9533, %v9629
    %v9646 = vmul.f32 %v9534, %v9630
    %v9647 = vmul.f32 %v9535, %v9631
    %v9648 = vmul.f32 %v9536, %v9632
    %v9649 = vsel %vm8208, %v9633, 0.0
    %9650 = vadd.xlane.f32.xlu0 %v9649
    %v9651 = vpop.xlane.xlu0 %9650
    %v9652 = vsel %vm8208, %v9634, 0.0
    %9653 = vadd.xlane.f32.xlu0 %v9652
    %v9654 = vpop.xlane.xlu0 %9653
    %v9655 = vsel %vm8208, %v9635, 0.0
    %9656 = vadd.xlane.f32.xlu0 %v9655
    %v9657 = vpop.xlane.xlu0 %9656
    %v9658 = vsel %vm8208, %v9636, 0.0
    %9659 = vadd.xlane.f32.xlu0 %v9658
    %v9660 = vpop.xlane.xlu0 %9659
    %v9661 = vsel %vm8208, %v9637, 0.0
    %9662 = vadd.xlane.f32.xlu0 %v9661
    %v9663 = vpop.xlane.xlu0 %9662
    %v9664 = vsel %vm8208, %v9638, 0.0
    %9665 = vadd.xlane.f32.xlu0 %v9664
    %v9666 = vpop.xlane.xlu0 %9665
    %v9667 = vsel %vm8208, %v9639, 0.0
    %9668 = vadd.xlane.f32.xlu0 %v9667
    %v9669 = vpop.xlane.xlu0 %9668
    %v9670 = vsel %vm8208, %v9640, 0.0
    %9671 = vadd.xlane.f32.xlu0 %v9670
    %v9672 = vpop.xlane.xlu0 %9671
    %v9673 = vsel %vm8208, %v9641, 0.0
    %9674 = vadd.xlane.f32.xlu0 %v9673
    %v9675 = vpop.xlane.xlu0 %9674
    %v9676 = vsel %vm8208, %v9642, 0.0
    %9677 = vadd.xlane.f32.xlu0 %v9676
    %v9678 = vpop.xlane.xlu0 %9677
    %v9679 = vsel %vm8208, %v9643, 0.0
    %9680 = vadd.xlane.f32.xlu0 %v9679
    %v9681 = vpop.xlane.xlu0 %9680
    %v9682 = vsel %vm8208, %v9644, 0.0
    %9683 = vadd.xlane.f32.xlu0 %v9682
    %v9684 = vpop.xlane.xlu0 %9683
    %v9685 = vsel %vm8208, %v9645, 0.0
    %9686 = vadd.xlane.f32.xlu0 %v9685
    %v9687 = vpop.xlane.xlu0 %9686
    %v9688 = vsel %vm8208, %v9646, 0.0
    %9689 = vadd.xlane.f32.xlu0 %v9688
    %v9690 = vpop.xlane.xlu0 %9689
    %v9691 = vsel %vm8208, %v9647, 0.0
    %9692 = vadd.xlane.f32.xlu0 %v9691
    %v9693 = vpop.xlane.xlu0 %9692
    %v9694 = vsel %vm8208, %v9648, 0.0
    %9695 = vadd.xlane.f32.xlu0 %v9694
    %v9696 = vpop.xlane.xlu0 %9695
    %v9697 = vadd.f32 %v8977, %v9651
    %v9698 = vadd.f32 %v8978, %v9654
    %v9699 = vadd.f32 %v8979, %v9657
    %v9700 = vadd.f32 %v8980, %v9660
    %v9701 = vadd.f32 %v8981, %v9663
    %v9702 = vadd.f32 %v8982, %v9666
    %v9703 = vadd.f32 %v8983, %v9669
    %v9704 = vadd.f32 %v8984, %v9672
    %v9705 = vadd.f32 %v8985, %v9675
    %v9706 = vadd.f32 %v8986, %v9678
    %v9707 = vadd.f32 %v8987, %v9681
    %v9708 = vadd.f32 %v8988, %v9684
    %v9709 = vadd.f32 %v8989, %v9687
    %v9710 = vadd.f32 %v8990, %v9690
    %v9711 = vadd.f32 %v8991, %v9693
    %v9712 = vadd.f32 %v8992, %v9696
    %v9713 = vmul.f32 %v5955, %v7536
    %v9714 = vmul.f32 %v5960, %v7537
    %v9715 = vmul.f32 %v5965, %v7538
    %v9716 = vmul.f32 %v5970, %v7539
    %v9717 = vmul.f32 %v5975, %v7540
    %v9718 = vmul.f32 %v5980, %v7541
    %v9719 = vmul.f32 %v5985, %v7542
    %v9720 = vmul.f32 %v5990, %v7543
    %v9721 = vmul.f32 %v5995, %v7544
    %v9722 = vmul.f32 %v6000, %v7545
    %v9723 = vmul.f32 %v6005, %v7546
    %v9724 = vmul.f32 %v6010, %v7547
    %v9725 = vmul.f32 %v6015, %v7548
    %v9726 = vmul.f32 %v6020, %v7549
    %v9727 = vmul.f32 %v6025, %v7550
    %v9728 = vmul.f32 %v6030, %v7551
    %v9729 = vadd.f32 %v9713, 0.0
    %v9730 = vadd.f32 %v9714, 0.0
    %v9731 = vadd.f32 %v9715, 0.0
    %v9732 = vadd.f32 %v9716, 0.0
    %v9733 = vadd.f32 %v9717, 0.0
    %v9734 = vadd.f32 %v9718, 0.0
    %v9735 = vadd.f32 %v9719, 0.0
    %v9736 = vadd.f32 %v9720, 0.0
    %v9737 = vadd.f32 %v9721, 0.0
    %v9738 = vadd.f32 %v9722, 0.0
    %v9739 = vadd.f32 %v9723, 0.0
    %v9740 = vadd.f32 %v9724, 0.0
    %v9741 = vadd.f32 %v9725, 0.0
    %v9742 = vadd.f32 %v9726, 0.0
    %v9743 = vadd.f32 %v9727, 0.0
    %v9744 = vadd.f32 %v9728, 0.0
    %v9745 = vmul.f32 %v7170, %v6384
    %v9746 = vmul.f32 %v7174, %v6385
    %v9747 = vmul.f32 %v7178, %v6386
    %v9748 = vmul.f32 %v7182, %v6387
    %v9749 = vmul.f32 %v7186, %v6388
    %v9750 = vmul.f32 %v7190, %v6389
    %v9751 = vmul.f32 %v7194, %v6390
    %v9752 = vmul.f32 %v7198, %v6391
    %v9753 = vmul.f32 %v7202, %v6392
    %v9754 = vmul.f32 %v7206, %v6393
    %v9755 = vmul.f32 %v7210, %v6394
    %v9756 = vmul.f32 %v7214, %v6395
    %v9757 = vmul.f32 %v7218, %v6396
    %v9758 = vmul.f32 %v7222, %v6397
    %v9759 = vmul.f32 %v7226, %v6398
    %v9760 = vmul.f32 %v7230, %v6399
    %v9761 = vadd.f32 %v9745, 0.0
    %v9762 = vadd.f32 %v9746, 0.0
    %v9763 = vadd.f32 %v9747, 0.0
    %v9764 = vadd.f32 %v9748, 0.0
    %v9765 = vadd.f32 %v9749, 0.0
    %v9766 = vadd.f32 %v9750, 0.0
    %v9767 = vadd.f32 %v9751, 0.0
    %v9768 = vadd.f32 %v9752, 0.0
    %v9769 = vadd.f32 %v9753, 0.0
    %v9770 = vadd.f32 %v9754, 0.0
    %v9771 = vadd.f32 %v9755, 0.0
    %v9772 = vadd.f32 %v9756, 0.0
    %v9773 = vadd.f32 %v9757, 0.0
    %v9774 = vadd.f32 %v9758, 0.0
    %v9775 = vadd.f32 %v9759, 0.0
    %v9776 = vadd.f32 %v9760, 0.0
    %v9777 = vmul.f32 %v6067, %v7536
    %v9778 = vmul.f32 %v6072, %v7537
    %v9779 = vmul.f32 %v6077, %v7538
    %v9780 = vmul.f32 %v6082, %v7539
    %v9781 = vmul.f32 %v6087, %v7540
    %v9782 = vmul.f32 %v6092, %v7541
    %v9783 = vmul.f32 %v6097, %v7542
    %v9784 = vmul.f32 %v6102, %v7543
    %v9785 = vmul.f32 %v6107, %v7544
    %v9786 = vmul.f32 %v6112, %v7545
    %v9787 = vmul.f32 %v6117, %v7546
    %v9788 = vmul.f32 %v6122, %v7547
    %v9789 = vmul.f32 %v6127, %v7548
    %v9790 = vmul.f32 %v6132, %v7549
    %v9791 = vmul.f32 %v6137, %v7550
    %v9792 = vmul.f32 %v6142, %v7551
    %9809 = vrot.lane.b32.xlu0 %v9777, 124
    %v9810 = vpop.permute.xlu0 %9809
    %9811 = vrot.lane.b32.xlu0 %v9778, 124
    %v9812 = vpop.permute.xlu0 %9811
    %9813 = vrot.lane.b32.xlu0 %v9779, 124
    %v9814 = vpop.permute.xlu0 %9813
    %9815 = vrot.lane.b32.xlu0 %v9780, 124
    %v9816 = vpop.permute.xlu0 %9815
    %9817 = vrot.lane.b32.xlu0 %v9781, 124
    %v9818 = vpop.permute.xlu0 %9817
    %9819 = vrot.lane.b32.xlu0 %v9782, 124
    %v9820 = vpop.permute.xlu0 %9819
    %9821 = vrot.lane.b32.xlu0 %v9783, 124
    %v9822 = vpop.permute.xlu0 %9821
    %9823 = vrot.lane.b32.xlu0 %v9784, 124
    %v9824 = vpop.permute.xlu0 %9823
    %9825 = vrot.lane.b32.xlu0 %v9785, 124
    %v9826 = vpop.permute.xlu0 %9825
    %9827 = vrot.lane.b32.xlu0 %v9786, 124
    %v9828 = vpop.permute.xlu0 %9827
    %9829 = vrot.lane.b32.xlu0 %v9787, 124
    %v9830 = vpop.permute.xlu0 %9829
    %9831 = vrot.lane.b32.xlu0 %v9788, 124
    %v9832 = vpop.permute.xlu0 %9831
    %9833 = vrot.lane.b32.xlu0 %v9789, 124
    %v9834 = vpop.permute.xlu0 %9833
    %9835 = vrot.lane.b32.xlu0 %v9790, 124
    %v9836 = vpop.permute.xlu0 %9835
    %9837 = vrot.lane.b32.xlu0 %v9791, 124
    %v9838 = vpop.permute.xlu0 %9837
    %9839 = vrot.lane.b32.xlu0 %v9792, 124
    %v9840 = vpop.permute.xlu0 %9839
    %v9857 = vadd.f32 %v9729, %v9810
    %v9858 = vadd.f32 %v9730, %v9812
    %v9859 = vadd.f32 %v9731, %v9814
    %v9860 = vadd.f32 %v9732, %v9816
    %v9861 = vadd.f32 %v9733, %v9818
    %v9862 = vadd.f32 %v9734, %v9820
    %v9863 = vadd.f32 %v9735, %v9822
    %v9864 = vadd.f32 %v9736, %v9824
    %v9865 = vadd.f32 %v9737, %v9826
    %v9866 = vadd.f32 %v9738, %v9828
    %v9867 = vadd.f32 %v9739, %v9830
    %v9868 = vadd.f32 %v9740, %v9832
    %v9869 = vadd.f32 %v9741, %v9834
    %v9870 = vadd.f32 %v9742, %v9836
    %v9871 = vadd.f32 %v9743, %v9838
    %v9872 = vadd.f32 %v9744, %v9840
    %v9873 = vmul.f32 %v7266, %v6384
    %v9874 = vmul.f32 %v7270, %v6385
    %v9875 = vmul.f32 %v7274, %v6386
    %v9876 = vmul.f32 %v7278, %v6387
    %v9877 = vmul.f32 %v7282, %v6388
    %v9878 = vmul.f32 %v7286, %v6389
    %v9879 = vmul.f32 %v7290, %v6390
    %v9880 = vmul.f32 %v7294, %v6391
    %v9881 = vmul.f32 %v7298, %v6392
    %v9882 = vmul.f32 %v7302, %v6393
    %v9883 = vmul.f32 %v7306, %v6394
    %v9884 = vmul.f32 %v7310, %v6395
    %v9885 = vmul.f32 %v7314, %v6396
    %v9886 = vmul.f32 %v7318, %v6397
    %v9887 = vmul.f32 %v7322, %v6398
    %v9888 = vmul.f32 %v7326, %v6399
    %9905 = vrot.lane.b32.xlu0 %v9873, 124
    %v9906 = vpop.permute.xlu0 %9905
    %9907 = vrot.lane.b32.xlu0 %v9874, 124
    %v9908 = vpop.permute.xlu0 %9907
    %9909 = vrot.lane.b32.xlu0 %v9875, 124
    %v9910 = vpop.permute.xlu0 %9909
    %9911 = vrot.lane.b32.xlu0 %v9876, 124
    %v9912 = vpop.permute.xlu0 %9911
    %9913 = vrot.lane.b32.xlu0 %v9877, 124
    %v9914 = vpop.permute.xlu0 %9913
    %9915 = vrot.lane.b32.xlu0 %v9878, 124
    %v9916 = vpop.permute.xlu0 %9915
    %9917 = vrot.lane.b32.xlu0 %v9879, 124
    %v9918 = vpop.permute.xlu0 %9917
    %9919 = vrot.lane.b32.xlu0 %v9880, 124
    %v9920 = vpop.permute.xlu0 %9919
    %9921 = vrot.lane.b32.xlu0 %v9881, 124
    %v9922 = vpop.permute.xlu0 %9921
    %9923 = vrot.lane.b32.xlu0 %v9882, 124
    %v9924 = vpop.permute.xlu0 %9923
    %9925 = vrot.lane.b32.xlu0 %v9883, 124
    %v9926 = vpop.permute.xlu0 %9925
    %9927 = vrot.lane.b32.xlu0 %v9884, 124
    %v9928 = vpop.permute.xlu0 %9927
    %9929 = vrot.lane.b32.xlu0 %v9885, 124
    %v9930 = vpop.permute.xlu0 %9929
    %9931 = vrot.lane.b32.xlu0 %v9886, 124
    %v9932 = vpop.permute.xlu0 %9931
    %9933 = vrot.lane.b32.xlu0 %v9887, 124
    %v9934 = vpop.permute.xlu0 %9933
    %9935 = vrot.lane.b32.xlu0 %v9888, 124
    %v9936 = vpop.permute.xlu0 %9935
    %v9953 = vadd.f32 %v9761, %v9906
    %v9954 = vadd.f32 %v9762, %v9908
    %v9955 = vadd.f32 %v9763, %v9910
    %v9956 = vadd.f32 %v9764, %v9912
    %v9957 = vadd.f32 %v9765, %v9914
    %v9958 = vadd.f32 %v9766, %v9916
    %v9959 = vadd.f32 %v9767, %v9918
    %v9960 = vadd.f32 %v9768, %v9920
    %v9961 = vadd.f32 %v9769, %v9922
    %v9962 = vadd.f32 %v9770, %v9924
    %v9963 = vadd.f32 %v9771, %v9926
    %v9964 = vadd.f32 %v9772, %v9928
    %v9965 = vadd.f32 %v9773, %v9930
    %v9966 = vadd.f32 %v9774, %v9932
    %v9967 = vadd.f32 %v9775, %v9934
    %v9968 = vadd.f32 %v9776, %v9936
    %v9969 = vmul.f32 %v6179, %v7536
    %v9970 = vmul.f32 %v6184, %v7537
    %v9971 = vmul.f32 %v6189, %v7538
    %v9972 = vmul.f32 %v6194, %v7539
    %v9973 = vmul.f32 %v6199, %v7540
    %v9974 = vmul.f32 %v6204, %v7541
    %v9975 = vmul.f32 %v6209, %v7542
    %v9976 = vmul.f32 %v6214, %v7543
    %v9977 = vmul.f32 %v6219, %v7544
    %v9978 = vmul.f32 %v6224, %v7545
    %v9979 = vmul.f32 %v6229, %v7546
    %v9980 = vmul.f32 %v6234, %v7547
    %v9981 = vmul.f32 %v6239, %v7548
    %v9982 = vmul.f32 %v6244, %v7549
    %v9983 = vmul.f32 %v6249, %v7550
    %v9984 = vmul.f32 %v6254, %v7551
    %10001 = vrot.lane.b32.xlu0 %v9969, 120
    %v10002 = vpop.permute.xlu0 %10001
    %10003 = vrot.lane.b32.xlu0 %v9970, 120
    %v10004 = vpop.permute.xlu0 %10003
    %10005 = vrot.lane.b32.xlu0 %v9971, 120
    %v10006 = vpop.permute.xlu0 %10005
    %10007 = vrot.lane.b32.xlu0 %v9972, 120
    %v10008 = vpop.permute.xlu0 %10007
    %10009 = vrot.lane.b32.xlu0 %v9973, 120
    %v10010 = vpop.permute.xlu0 %10009
    %10011 = vrot.lane.b32.xlu0 %v9974, 120
    %v10012 = vpop.permute.xlu0 %10011
    %10013 = vrot.lane.b32.xlu0 %v9975, 120
    %v10014 = vpop.permute.xlu0 %10013
    %10015 = vrot.lane.b32.xlu0 %v9976, 120
    %v10016 = vpop.permute.xlu0 %10015
    %10017 = vrot.lane.b32.xlu0 %v9977, 120
    %v10018 = vpop.permute.xlu0 %10017
    %10019 = vrot.lane.b32.xlu0 %v9978, 120
    %v10020 = vpop.permute.xlu0 %10019
    %10021 = vrot.lane.b32.xlu0 %v9979, 120
    %v10022 = vpop.permute.xlu0 %10021
    %10023 = vrot.lane.b32.xlu0 %v9980, 120
    %v10024 = vpop.permute.xlu0 %10023
    %10025 = vrot.lane.b32.xlu0 %v9981, 120
    %v10026 = vpop.permute.xlu0 %10025
    %10027 = vrot.lane.b32.xlu0 %v9982, 120
    %v10028 = vpop.permute.xlu0 %10027
    %10029 = vrot.lane.b32.xlu0 %v9983, 120
    %v10030 = vpop.permute.xlu0 %10029
    %10031 = vrot.lane.b32.xlu0 %v9984, 120
    %v10032 = vpop.permute.xlu0 %10031
    %v10049 = vadd.f32 %v9857, %v10002
    %v10050 = vadd.f32 %v9858, %v10004
    %v10051 = vadd.f32 %v9859, %v10006
    %v10052 = vadd.f32 %v9860, %v10008
    %v10053 = vadd.f32 %v9861, %v10010
    %v10054 = vadd.f32 %v9862, %v10012
    %v10055 = vadd.f32 %v9863, %v10014
    %v10056 = vadd.f32 %v9864, %v10016
    %v10057 = vadd.f32 %v9865, %v10018
    %v10058 = vadd.f32 %v9866, %v10020
    %v10059 = vadd.f32 %v9867, %v10022
    %v10060 = vadd.f32 %v9868, %v10024
    %v10061 = vadd.f32 %v9869, %v10026
    %v10062 = vadd.f32 %v9870, %v10028
    %v10063 = vadd.f32 %v9871, %v10030
    %v10064 = vadd.f32 %v9872, %v10032
    %v10065 = vmul.f32 %v7362, %v6384
    %v10066 = vmul.f32 %v7366, %v6385
    %v10067 = vmul.f32 %v7370, %v6386
    %v10068 = vmul.f32 %v7374, %v6387
    %v10069 = vmul.f32 %v7378, %v6388
    %v10070 = vmul.f32 %v7382, %v6389
    %v10071 = vmul.f32 %v7386, %v6390
    %v10072 = vmul.f32 %v7390, %v6391
    %v10073 = vmul.f32 %v7394, %v6392
    %v10074 = vmul.f32 %v7398, %v6393
    %v10075 = vmul.f32 %v7402, %v6394
    %v10076 = vmul.f32 %v7406, %v6395
    %v10077 = vmul.f32 %v7410, %v6396
    %v10078 = vmul.f32 %v7414, %v6397
    %v10079 = vmul.f32 %v7418, %v6398
    %v10080 = vmul.f32 %v7422, %v6399
    %10097 = vrot.lane.b32.xlu0 %v10065, 120
    %v10098 = vpop.permute.xlu0 %10097
    %10099 = vrot.lane.b32.xlu0 %v10066, 120
    %v10100 = vpop.permute.xlu0 %10099
    %10101 = vrot.lane.b32.xlu0 %v10067, 120
    %v10102 = vpop.permute.xlu0 %10101
    %10103 = vrot.lane.b32.xlu0 %v10068, 120
    %v10104 = vpop.permute.xlu0 %10103
    %10105 = vrot.lane.b32.xlu0 %v10069, 120
    %v10106 = vpop.permute.xlu0 %10105
    %10107 = vrot.lane.b32.xlu0 %v10070, 120
    %v10108 = vpop.permute.xlu0 %10107
    %10109 = vrot.lane.b32.xlu0 %v10071, 120
    %v10110 = vpop.permute.xlu0 %10109
    %10111 = vrot.lane.b32.xlu0 %v10072, 120
    %v10112 = vpop.permute.xlu0 %10111
    %10113 = vrot.lane.b32.xlu0 %v10073, 120
    %v10114 = vpop.permute.xlu0 %10113
    %10115 = vrot.lane.b32.xlu0 %v10074, 120
    %v10116 = vpop.permute.xlu0 %10115
    %10117 = vrot.lane.b32.xlu0 %v10075, 120
    %v10118 = vpop.permute.xlu0 %10117
    %10119 = vrot.lane.b32.xlu0 %v10076, 120
    %v10120 = vpop.permute.xlu0 %10119
    %10121 = vrot.lane.b32.xlu0 %v10077, 120
    %v10122 = vpop.permute.xlu0 %10121
    %10123 = vrot.lane.b32.xlu0 %v10078, 120
    %v10124 = vpop.permute.xlu0 %10123
    %10125 = vrot.lane.b32.xlu0 %v10079, 120
    %v10126 = vpop.permute.xlu0 %10125
    %10127 = vrot.lane.b32.xlu0 %v10080, 120
    %v10128 = vpop.permute.xlu0 %10127
    %v10145 = vadd.f32 %v9953, %v10098
    %v10146 = vadd.f32 %v9954, %v10100
    %v10147 = vadd.f32 %v9955, %v10102
    %v10148 = vadd.f32 %v9956, %v10104
    %v10149 = vadd.f32 %v9957, %v10106
    %v10150 = vadd.f32 %v9958, %v10108
    %v10151 = vadd.f32 %v9959, %v10110
    %v10152 = vadd.f32 %v9960, %v10112
    %v10153 = vadd.f32 %v9961, %v10114
    %v10154 = vadd.f32 %v9962, %v10116
    %v10155 = vadd.f32 %v9963, %v10118
    %v10156 = vadd.f32 %v9964, %v10120
    %v10157 = vadd.f32 %v9965, %v10122
    %v10158 = vadd.f32 %v9966, %v10124
    %v10159 = vadd.f32 %v9967, %v10126
    %v10160 = vadd.f32 %v9968, %v10128
    %v10161 = vmul.f32 %v6291, %v7536
    %v10162 = vmul.f32 %v6296, %v7537
    %v10163 = vmul.f32 %v6301, %v7538
    %v10164 = vmul.f32 %v6306, %v7539
    %v10165 = vmul.f32 %v6311, %v7540
    %v10166 = vmul.f32 %v6316, %v7541
    %v10167 = vmul.f32 %v6321, %v7542
    %v10168 = vmul.f32 %v6326, %v7543
    %v10169 = vmul.f32 %v6331, %v7544
    %v10170 = vmul.f32 %v6336, %v7545
    %v10171 = vmul.f32 %v6341, %v7546
    %v10172 = vmul.f32 %v6346, %v7547
    %v10173 = vmul.f32 %v6351, %v7548
    %v10174 = vmul.f32 %v6356, %v7549
    %v10175 = vmul.f32 %v6361, %v7550
    %v10176 = vmul.f32 %v6366, %v7551
    %10193 = vrot.lane.b32.xlu0 %v10161, 116
    %v10194 = vpop.permute.xlu0 %10193
    %10195 = vrot.lane.b32.xlu0 %v10162, 116
    %v10196 = vpop.permute.xlu0 %10195
    %10197 = vrot.lane.b32.xlu0 %v10163, 116
    %v10198 = vpop.permute.xlu0 %10197
    %10199 = vrot.lane.b32.xlu0 %v10164, 116
    %v10200 = vpop.permute.xlu0 %10199
    %10201 = vrot.lane.b32.xlu0 %v10165, 116
    %v10202 = vpop.permute.xlu0 %10201
    %10203 = vrot.lane.b32.xlu0 %v10166, 116
    %v10204 = vpop.permute.xlu0 %10203
    %10205 = vrot.lane.b32.xlu0 %v10167, 116
    %v10206 = vpop.permute.xlu0 %10205
    %10207 = vrot.lane.b32.xlu0 %v10168, 116
    %v10208 = vpop.permute.xlu0 %10207
    %10209 = vrot.lane.b32.xlu0 %v10169, 116
    %v10210 = vpop.permute.xlu0 %10209
    %10211 = vrot.lane.b32.xlu0 %v10170, 116
    %v10212 = vpop.permute.xlu0 %10211
    %10213 = vrot.lane.b32.xlu0 %v10171, 116
    %v10214 = vpop.permute.xlu0 %10213
    %10215 = vrot.lane.b32.xlu0 %v10172, 116
    %v10216 = vpop.permute.xlu0 %10215
    %10217 = vrot.lane.b32.xlu0 %v10173, 116
    %v10218 = vpop.permute.xlu0 %10217
    %10219 = vrot.lane.b32.xlu0 %v10174, 116
    %v10220 = vpop.permute.xlu0 %10219
    %10221 = vrot.lane.b32.xlu0 %v10175, 116
    %v10222 = vpop.permute.xlu0 %10221
    %10223 = vrot.lane.b32.xlu0 %v10176, 116
    %v10224 = vpop.permute.xlu0 %10223
    %v10241 = vadd.f32 %v10049, %v10194
    %v10242 = vadd.f32 %v10050, %v10196
    %v10243 = vadd.f32 %v10051, %v10198
    %v10244 = vadd.f32 %v10052, %v10200
    %v10245 = vadd.f32 %v10053, %v10202
    %v10246 = vadd.f32 %v10054, %v10204
    %v10247 = vadd.f32 %v10055, %v10206
    %v10248 = vadd.f32 %v10056, %v10208
    %v10249 = vadd.f32 %v10057, %v10210
    %v10250 = vadd.f32 %v10058, %v10212
    %v10251 = vadd.f32 %v10059, %v10214
    %v10252 = vadd.f32 %v10060, %v10216
    %v10253 = vadd.f32 %v10061, %v10218
    %v10254 = vadd.f32 %v10062, %v10220
    %v10255 = vadd.f32 %v10063, %v10222
    %v10256 = vadd.f32 %v10064, %v10224
    %v10257 = vmul.f32 %v7458, %v6384
    %v10258 = vmul.f32 %v7462, %v6385
    %v10259 = vmul.f32 %v7466, %v6386
    %v10260 = vmul.f32 %v7470, %v6387
    %v10261 = vmul.f32 %v7474, %v6388
    %v10262 = vmul.f32 %v7478, %v6389
    %v10263 = vmul.f32 %v7482, %v6390
    %v10264 = vmul.f32 %v7486, %v6391
    %v10265 = vmul.f32 %v7490, %v6392
    %v10266 = vmul.f32 %v7494, %v6393
    %v10267 = vmul.f32 %v7498, %v6394
    %v10268 = vmul.f32 %v7502, %v6395
    %v10269 = vmul.f32 %v7506, %v6396
    %v10270 = vmul.f32 %v7510, %v6397
    %v10271 = vmul.f32 %v7514, %v6398
    %v10272 = vmul.f32 %v7518, %v6399
    %10289 = vrot.lane.b32.xlu0 %v10257, 116
    %v10290 = vpop.permute.xlu0 %10289
    %10291 = vrot.lane.b32.xlu0 %v10258, 116
    %v10292 = vpop.permute.xlu0 %10291
    %10293 = vrot.lane.b32.xlu0 %v10259, 116
    %v10294 = vpop.permute.xlu0 %10293
    %10295 = vrot.lane.b32.xlu0 %v10260, 116
    %v10296 = vpop.permute.xlu0 %10295
    %10297 = vrot.lane.b32.xlu0 %v10261, 116
    %v10298 = vpop.permute.xlu0 %10297
    %10299 = vrot.lane.b32.xlu0 %v10262, 116
    %v10300 = vpop.permute.xlu0 %10299
    %10301 = vrot.lane.b32.xlu0 %v10263, 116
    %v10302 = vpop.permute.xlu0 %10301
    %10303 = vrot.lane.b32.xlu0 %v10264, 116
    %v10304 = vpop.permute.xlu0 %10303
    %10305 = vrot.lane.b32.xlu0 %v10265, 116
    %v10306 = vpop.permute.xlu0 %10305
    %10307 = vrot.lane.b32.xlu0 %v10266, 116
    %v10308 = vpop.permute.xlu0 %10307
    %10309 = vrot.lane.b32.xlu0 %v10267, 116
    %v10310 = vpop.permute.xlu0 %10309
    %10311 = vrot.lane.b32.xlu0 %v10268, 116
    %v10312 = vpop.permute.xlu0 %10311
    %10313 = vrot.lane.b32.xlu0 %v10269, 116
    %v10314 = vpop.permute.xlu0 %10313
    %10315 = vrot.lane.b32.xlu0 %v10270, 116
    %v10316 = vpop.permute.xlu0 %10315
    %10317 = vrot.lane.b32.xlu0 %v10271, 116
    %v10318 = vpop.permute.xlu0 %10317
    %10319 = vrot.lane.b32.xlu0 %v10272, 116
    %v10320 = vpop.permute.xlu0 %10319
    %v10337 = vadd.f32 %v10145, %v10290
    %v10338 = vadd.f32 %v10146, %v10292
    %v10339 = vadd.f32 %v10147, %v10294
    %v10340 = vadd.f32 %v10148, %v10296
    %v10341 = vadd.f32 %v10149, %v10298
    %v10342 = vadd.f32 %v10150, %v10300
    %v10343 = vadd.f32 %v10151, %v10302
    %v10344 = vadd.f32 %v10152, %v10304
    %v10345 = vadd.f32 %v10153, %v10306
    %v10346 = vadd.f32 %v10154, %v10308
    %v10347 = vadd.f32 %v10155, %v10310
    %v10348 = vadd.f32 %v10156, %v10312
    %v10349 = vadd.f32 %v10157, %v10314
    %v10350 = vadd.f32 %v10158, %v10316
    %v10351 = vadd.f32 %v10159, %v10318
    %v10352 = vadd.f32 %v10160, %v10320
    %v10353 = vmul.f32 %v10241, %v10337
    %v10354 = vmul.f32 %v10242, %v10338
    %v10355 = vmul.f32 %v10243, %v10339
    %v10356 = vmul.f32 %v10244, %v10340
    %v10357 = vmul.f32 %v10245, %v10341
    %v10358 = vmul.f32 %v10246, %v10342
    %v10359 = vmul.f32 %v10247, %v10343
    %v10360 = vmul.f32 %v10248, %v10344
    %v10361 = vmul.f32 %v10249, %v10345
    %v10362 = vmul.f32 %v10250, %v10346
    %v10363 = vmul.f32 %v10251, %v10347
    %v10364 = vmul.f32 %v10252, %v10348
    %v10365 = vmul.f32 %v10253, %v10349
    %v10366 = vmul.f32 %v10254, %v10350
    %v10367 = vmul.f32 %v10255, %v10351
    %v10368 = vmul.f32 %v10256, %v10352
    %v10369 = vsel %vm8208, %v10353, 0.0
    %10370 = vadd.xlane.f32.xlu0 %v10369
    %v10371 = vpop.xlane.xlu0 %10370
    %v10372 = vsel %vm8208, %v10354, 0.0
    %10373 = vadd.xlane.f32.xlu0 %v10372
    %v10374 = vpop.xlane.xlu0 %10373
    %v10375 = vsel %vm8208, %v10355, 0.0
    %10376 = vadd.xlane.f32.xlu0 %v10375
    %v10377 = vpop.xlane.xlu0 %10376
    %v10378 = vsel %vm8208, %v10356, 0.0
    %10379 = vadd.xlane.f32.xlu0 %v10378
    %v10380 = vpop.xlane.xlu0 %10379
    %v10381 = vsel %vm8208, %v10357, 0.0
    %10382 = vadd.xlane.f32.xlu0 %v10381
    %v10383 = vpop.xlane.xlu0 %10382
    %v10384 = vsel %vm8208, %v10358, 0.0
    %10385 = vadd.xlane.f32.xlu0 %v10384
    %v10386 = vpop.xlane.xlu0 %10385
    %v10387 = vsel %vm8208, %v10359, 0.0
    %10388 = vadd.xlane.f32.xlu0 %v10387
    %v10389 = vpop.xlane.xlu0 %10388
    %v10390 = vsel %vm8208, %v10360, 0.0
    %10391 = vadd.xlane.f32.xlu0 %v10390
    %v10392 = vpop.xlane.xlu0 %10391
    %v10393 = vsel %vm8208, %v10361, 0.0
    %10394 = vadd.xlane.f32.xlu0 %v10393
    %v10395 = vpop.xlane.xlu0 %10394
    %v10396 = vsel %vm8208, %v10362, 0.0
    %10397 = vadd.xlane.f32.xlu0 %v10396
    %v10398 = vpop.xlane.xlu0 %10397
    %v10399 = vsel %vm8208, %v10363, 0.0
    %10400 = vadd.xlane.f32.xlu0 %v10399
    %v10401 = vpop.xlane.xlu0 %10400
    %v10402 = vsel %vm8208, %v10364, 0.0
    %10403 = vadd.xlane.f32.xlu0 %v10402
    %v10404 = vpop.xlane.xlu0 %10403
    %v10405 = vsel %vm8208, %v10365, 0.0
    %10406 = vadd.xlane.f32.xlu0 %v10405
    %v10407 = vpop.xlane.xlu0 %10406
    %v10408 = vsel %vm8208, %v10366, 0.0
    %10409 = vadd.xlane.f32.xlu0 %v10408
    %v10410 = vpop.xlane.xlu0 %10409
    %v10411 = vsel %vm8208, %v10367, 0.0
    %10412 = vadd.xlane.f32.xlu0 %v10411
    %v10413 = vpop.xlane.xlu0 %10412
    %v10414 = vsel %vm8208, %v10368, 0.0
    %10415 = vadd.xlane.f32.xlu0 %v10414
    %v10416 = vpop.xlane.xlu0 %10415
    %v10417 = vadd.f32 %v9697, %v10371
    %v10418 = vadd.f32 %v9698, %v10374
    %v10419 = vadd.f32 %v9699, %v10377
    %v10420 = vadd.f32 %v9700, %v10380
    %v10421 = vadd.f32 %v9701, %v10383
    %v10422 = vadd.f32 %v9702, %v10386
    %v10423 = vadd.f32 %v9703, %v10389
    %v10424 = vadd.f32 %v9704, %v10392
    %v10425 = vadd.f32 %v9705, %v10395
    %v10426 = vadd.f32 %v9706, %v10398
    %v10427 = vadd.f32 %v9707, %v10401
    %v10428 = vadd.f32 %v9708, %v10404
    %v10429 = vadd.f32 %v9709, %v10407
    %v10430 = vadd.f32 %v9710, %v10410
    %v10431 = vadd.f32 %v9711, %v10413
    %v10432 = vadd.f32 %v9712, %v10416
    %v10433 = vmul.f32 %v6402, %v7536
    %v10434 = vmul.f32 %v6406, %v7537
    %v10435 = vmul.f32 %v6410, %v7538
    %v10436 = vmul.f32 %v6414, %v7539
    %v10437 = vmul.f32 %v6418, %v7540
    %v10438 = vmul.f32 %v6422, %v7541
    %v10439 = vmul.f32 %v6426, %v7542
    %v10440 = vmul.f32 %v6430, %v7543
    %v10441 = vmul.f32 %v6434, %v7544
    %v10442 = vmul.f32 %v6438, %v7545
    %v10443 = vmul.f32 %v6442, %v7546
    %v10444 = vmul.f32 %v6446, %v7547
    %v10445 = vmul.f32 %v6450, %v7548
    %v10446 = vmul.f32 %v6454, %v7549
    %v10447 = vmul.f32 %v6458, %v7550
    %v10448 = vmul.f32 %v6462, %v7551
    %v10449 = vadd.f32 %v10433, 0.0
    %v10450 = vadd.f32 %v10434, 0.0
    %v10451 = vadd.f32 %v10435, 0.0
    %v10452 = vadd.f32 %v10436, 0.0
    %v10453 = vadd.f32 %v10437, 0.0
    %v10454 = vadd.f32 %v10438, 0.0
    %v10455 = vadd.f32 %v10439, 0.0
    %v10456 = vadd.f32 %v10440, 0.0
    %v10457 = vadd.f32 %v10441, 0.0
    %v10458 = vadd.f32 %v10442, 0.0
    %v10459 = vadd.f32 %v10443, 0.0
    %v10460 = vadd.f32 %v10444, 0.0
    %v10461 = vadd.f32 %v10445, 0.0
    %v10462 = vadd.f32 %v10446, 0.0
    %v10463 = vadd.f32 %v10447, 0.0
    %v10464 = vadd.f32 %v10448, 0.0
    %v10465 = vmul.f32 %v7170, %v6768
    %v10466 = vmul.f32 %v7174, %v6769
    %v10467 = vmul.f32 %v7178, %v6770
    %v10468 = vmul.f32 %v7182, %v6771
    %v10469 = vmul.f32 %v7186, %v6772
    %v10470 = vmul.f32 %v7190, %v6773
    %v10471 = vmul.f32 %v7194, %v6774
    %v10472 = vmul.f32 %v7198, %v6775
    %v10473 = vmul.f32 %v7202, %v6776
    %v10474 = vmul.f32 %v7206, %v6777
    %v10475 = vmul.f32 %v7210, %v6778
    %v10476 = vmul.f32 %v7214, %v6779
    %v10477 = vmul.f32 %v7218, %v6780
    %v10478 = vmul.f32 %v7222, %v6781
    %v10479 = vmul.f32 %v7226, %v6782
    %v10480 = vmul.f32 %v7230, %v6783
    %v10481 = vadd.f32 %v10465, 0.0
    %v10482 = vadd.f32 %v10466, 0.0
    %v10483 = vadd.f32 %v10467, 0.0
    %v10484 = vadd.f32 %v10468, 0.0
    %v10485 = vadd.f32 %v10469, 0.0
    %v10486 = vadd.f32 %v10470, 0.0
    %v10487 = vadd.f32 %v10471, 0.0
    %v10488 = vadd.f32 %v10472, 0.0
    %v10489 = vadd.f32 %v10473, 0.0
    %v10490 = vadd.f32 %v10474, 0.0
    %v10491 = vadd.f32 %v10475, 0.0
    %v10492 = vadd.f32 %v10476, 0.0
    %v10493 = vadd.f32 %v10477, 0.0
    %v10494 = vadd.f32 %v10478, 0.0
    %v10495 = vadd.f32 %v10479, 0.0
    %v10496 = vadd.f32 %v10480, 0.0
    %v10497 = vmul.f32 %v6498, %v7536
    %v10498 = vmul.f32 %v6502, %v7537
    %v10499 = vmul.f32 %v6506, %v7538
    %v10500 = vmul.f32 %v6510, %v7539
    %v10501 = vmul.f32 %v6514, %v7540
    %v10502 = vmul.f32 %v6518, %v7541
    %v10503 = vmul.f32 %v6522, %v7542
    %v10504 = vmul.f32 %v6526, %v7543
    %v10505 = vmul.f32 %v6530, %v7544
    %v10506 = vmul.f32 %v6534, %v7545
    %v10507 = vmul.f32 %v6538, %v7546
    %v10508 = vmul.f32 %v6542, %v7547
    %v10509 = vmul.f32 %v6546, %v7548
    %v10510 = vmul.f32 %v6550, %v7549
    %v10511 = vmul.f32 %v6554, %v7550
    %v10512 = vmul.f32 %v6558, %v7551
    %10529 = vrot.lane.b32.xlu0 %v10497, 124
    %v10530 = vpop.permute.xlu0 %10529
    %10531 = vrot.lane.b32.xlu0 %v10498, 124
    %v10532 = vpop.permute.xlu0 %10531
    %10533 = vrot.lane.b32.xlu0 %v10499, 124
    %v10534 = vpop.permute.xlu0 %10533
    %10535 = vrot.lane.b32.xlu0 %v10500, 124
    %v10536 = vpop.permute.xlu0 %10535
    %10537 = vrot.lane.b32.xlu0 %v10501, 124
    %v10538 = vpop.permute.xlu0 %10537
    %10539 = vrot.lane.b32.xlu0 %v10502, 124
    %v10540 = vpop.permute.xlu0 %10539
    %10541 = vrot.lane.b32.xlu0 %v10503, 124
    %v10542 = vpop.permute.xlu0 %10541
    %10543 = vrot.lane.b32.xlu0 %v10504, 124
    %v10544 = vpop.permute.xlu0 %10543
    %10545 = vrot.lane.b32.xlu0 %v10505, 124
    %v10546 = vpop.permute.xlu0 %10545
    %10547 = vrot.lane.b32.xlu0 %v10506, 124
    %v10548 = vpop.permute.xlu0 %10547
    %10549 = vrot.lane.b32.xlu0 %v10507, 124
    %v10550 = vpop.permute.xlu0 %10549
    %10551 = vrot.lane.b32.xlu0 %v10508, 124
    %v10552 = vpop.permute.xlu0 %10551
    %10553 = vrot.lane.b32.xlu0 %v10509, 124
    %v10554 = vpop.permute.xlu0 %10553
    %10555 = vrot.lane.b32.xlu0 %v10510, 124
    %v10556 = vpop.permute.xlu0 %10555
    %10557 = vrot.lane.b32.xlu0 %v10511, 124
    %v10558 = vpop.permute.xlu0 %10557
    %10559 = vrot.lane.b32.xlu0 %v10512, 124
    %v10560 = vpop.permute.xlu0 %10559
    %v10577 = vadd.f32 %v10449, %v10530
    %v10578 = vadd.f32 %v10450, %v10532
    %v10579 = vadd.f32 %v10451, %v10534
    %v10580 = vadd.f32 %v10452, %v10536
    %v10581 = vadd.f32 %v10453, %v10538
    %v10582 = vadd.f32 %v10454, %v10540
    %v10583 = vadd.f32 %v10455, %v10542
    %v10584 = vadd.f32 %v10456, %v10544
    %v10585 = vadd.f32 %v10457, %v10546
    %v10586 = vadd.f32 %v10458, %v10548
    %v10587 = vadd.f32 %v10459, %v10550
    %v10588 = vadd.f32 %v10460, %v10552
    %v10589 = vadd.f32 %v10461, %v10554
    %v10590 = vadd.f32 %v10462, %v10556
    %v10591 = vadd.f32 %v10463, %v10558
    %v10592 = vadd.f32 %v10464, %v10560
    %v10593 = vmul.f32 %v7266, %v6768
    %v10594 = vmul.f32 %v7270, %v6769
    %v10595 = vmul.f32 %v7274, %v6770
    %v10596 = vmul.f32 %v7278, %v6771
    %v10597 = vmul.f32 %v7282, %v6772
    %v10598 = vmul.f32 %v7286, %v6773
    %v10599 = vmul.f32 %v7290, %v6774
    %v10600 = vmul.f32 %v7294, %v6775
    %v10601 = vmul.f32 %v7298, %v6776
    %v10602 = vmul.f32 %v7302, %v6777
    %v10603 = vmul.f32 %v7306, %v6778
    %v10604 = vmul.f32 %v7310, %v6779
    %v10605 = vmul.f32 %v7314, %v6780
    %v10606 = vmul.f32 %v7318, %v6781
    %v10607 = vmul.f32 %v7322, %v6782
    %v10608 = vmul.f32 %v7326, %v6783
    %10625 = vrot.lane.b32.xlu0 %v10593, 124
    %v10626 = vpop.permute.xlu0 %10625
    %10627 = vrot.lane.b32.xlu0 %v10594, 124
    %v10628 = vpop.permute.xlu0 %10627
    %10629 = vrot.lane.b32.xlu0 %v10595, 124
    %v10630 = vpop.permute.xlu0 %10629
    %10631 = vrot.lane.b32.xlu0 %v10596, 124
    %v10632 = vpop.permute.xlu0 %10631
    %10633 = vrot.lane.b32.xlu0 %v10597, 124
    %v10634 = vpop.permute.xlu0 %10633
    %10635 = vrot.lane.b32.xlu0 %v10598, 124
    %v10636 = vpop.permute.xlu0 %10635
    %10637 = vrot.lane.b32.xlu0 %v10599, 124
    %v10638 = vpop.permute.xlu0 %10637
    %10639 = vrot.lane.b32.xlu0 %v10600, 124
    %v10640 = vpop.permute.xlu0 %10639
    %10641 = vrot.lane.b32.xlu0 %v10601, 124
    %v10642 = vpop.permute.xlu0 %10641
    %10643 = vrot.lane.b32.xlu0 %v10602, 124
    %v10644 = vpop.permute.xlu0 %10643
    %10645 = vrot.lane.b32.xlu0 %v10603, 124
    %v10646 = vpop.permute.xlu0 %10645
    %10647 = vrot.lane.b32.xlu0 %v10604, 124
    %v10648 = vpop.permute.xlu0 %10647
    %10649 = vrot.lane.b32.xlu0 %v10605, 124
    %v10650 = vpop.permute.xlu0 %10649
    %10651 = vrot.lane.b32.xlu0 %v10606, 124
    %v10652 = vpop.permute.xlu0 %10651
    %10653 = vrot.lane.b32.xlu0 %v10607, 124
    %v10654 = vpop.permute.xlu0 %10653
    %10655 = vrot.lane.b32.xlu0 %v10608, 124
    %v10656 = vpop.permute.xlu0 %10655
    %v10673 = vadd.f32 %v10481, %v10626
    %v10674 = vadd.f32 %v10482, %v10628
    %v10675 = vadd.f32 %v10483, %v10630
    %v10676 = vadd.f32 %v10484, %v10632
    %v10677 = vadd.f32 %v10485, %v10634
    %v10678 = vadd.f32 %v10486, %v10636
    %v10679 = vadd.f32 %v10487, %v10638
    %v10680 = vadd.f32 %v10488, %v10640
    %v10681 = vadd.f32 %v10489, %v10642
    %v10682 = vadd.f32 %v10490, %v10644
    %v10683 = vadd.f32 %v10491, %v10646
    %v10684 = vadd.f32 %v10492, %v10648
    %v10685 = vadd.f32 %v10493, %v10650
    %v10686 = vadd.f32 %v10494, %v10652
    %v10687 = vadd.f32 %v10495, %v10654
    %v10688 = vadd.f32 %v10496, %v10656
    %v10689 = vmul.f32 %v6594, %v7536
    %v10690 = vmul.f32 %v6598, %v7537
    %v10691 = vmul.f32 %v6602, %v7538
    %v10692 = vmul.f32 %v6606, %v7539
    %v10693 = vmul.f32 %v6610, %v7540
    %v10694 = vmul.f32 %v6614, %v7541
    %v10695 = vmul.f32 %v6618, %v7542
    %v10696 = vmul.f32 %v6622, %v7543
    %v10697 = vmul.f32 %v6626, %v7544
    %v10698 = vmul.f32 %v6630, %v7545
    %v10699 = vmul.f32 %v6634, %v7546
    %v10700 = vmul.f32 %v6638, %v7547
    %v10701 = vmul.f32 %v6642, %v7548
    %v10702 = vmul.f32 %v6646, %v7549
    %v10703 = vmul.f32 %v6650, %v7550
    %v10704 = vmul.f32 %v6654, %v7551
    %10721 = vrot.lane.b32.xlu0 %v10689, 120
    %v10722 = vpop.permute.xlu0 %10721
    %10723 = vrot.lane.b32.xlu0 %v10690, 120
    %v10724 = vpop.permute.xlu0 %10723
    %10725 = vrot.lane.b32.xlu0 %v10691, 120
    %v10726 = vpop.permute.xlu0 %10725
    %10727 = vrot.lane.b32.xlu0 %v10692, 120
    %v10728 = vpop.permute.xlu0 %10727
    %10729 = vrot.lane.b32.xlu0 %v10693, 120
    %v10730 = vpop.permute.xlu0 %10729
    %10731 = vrot.lane.b32.xlu0 %v10694, 120
    %v10732 = vpop.permute.xlu0 %10731
    %10733 = vrot.lane.b32.xlu0 %v10695, 120
    %v10734 = vpop.permute.xlu0 %10733
    %10735 = vrot.lane.b32.xlu0 %v10696, 120
    %v10736 = vpop.permute.xlu0 %10735
    %10737 = vrot.lane.b32.xlu0 %v10697, 120
    %v10738 = vpop.permute.xlu0 %10737
    %10739 = vrot.lane.b32.xlu0 %v10698, 120
    %v10740 = vpop.permute.xlu0 %10739
    %10741 = vrot.lane.b32.xlu0 %v10699, 120
    %v10742 = vpop.permute.xlu0 %10741
    %10743 = vrot.lane.b32.xlu0 %v10700, 120
    %v10744 = vpop.permute.xlu0 %10743
    %10745 = vrot.lane.b32.xlu0 %v10701, 120
    %v10746 = vpop.permute.xlu0 %10745
    %10747 = vrot.lane.b32.xlu0 %v10702, 120
    %v10748 = vpop.permute.xlu0 %10747
    %10749 = vrot.lane.b32.xlu0 %v10703, 120
    %v10750 = vpop.permute.xlu0 %10749
    %10751 = vrot.lane.b32.xlu0 %v10704, 120
    %v10752 = vpop.permute.xlu0 %10751
    %v10769 = vadd.f32 %v10577, %v10722
    %v10770 = vadd.f32 %v10578, %v10724
    %v10771 = vadd.f32 %v10579, %v10726
    %v10772 = vadd.f32 %v10580, %v10728
    %v10773 = vadd.f32 %v10581, %v10730
    %v10774 = vadd.f32 %v10582, %v10732
    %v10775 = vadd.f32 %v10583, %v10734
    %v10776 = vadd.f32 %v10584, %v10736
    %v10777 = vadd.f32 %v10585, %v10738
    %v10778 = vadd.f32 %v10586, %v10740
    %v10779 = vadd.f32 %v10587, %v10742
    %v10780 = vadd.f32 %v10588, %v10744
    %v10781 = vadd.f32 %v10589, %v10746
    %v10782 = vadd.f32 %v10590, %v10748
    %v10783 = vadd.f32 %v10591, %v10750
    %v10784 = vadd.f32 %v10592, %v10752
    %v10785 = vmul.f32 %v7362, %v6768
    %v10786 = vmul.f32 %v7366, %v6769
    %v10787 = vmul.f32 %v7370, %v6770
    %v10788 = vmul.f32 %v7374, %v6771
    %v10789 = vmul.f32 %v7378, %v6772
    %v10790 = vmul.f32 %v7382, %v6773
    %v10791 = vmul.f32 %v7386, %v6774
    %v10792 = vmul.f32 %v7390, %v6775
    %v10793 = vmul.f32 %v7394, %v6776
    %v10794 = vmul.f32 %v7398, %v6777
    %v10795 = vmul.f32 %v7402, %v6778
    %v10796 = vmul.f32 %v7406, %v6779
    %v10797 = vmul.f32 %v7410, %v6780
    %v10798 = vmul.f32 %v7414, %v6781
    %v10799 = vmul.f32 %v7418, %v6782
    %v10800 = vmul.f32 %v7422, %v6783
    %10817 = vrot.lane.b32.xlu0 %v10785, 120
    %v10818 = vpop.permute.xlu0 %10817
    %10819 = vrot.lane.b32.xlu0 %v10786, 120
    %v10820 = vpop.permute.xlu0 %10819
    %10821 = vrot.lane.b32.xlu0 %v10787, 120
    %v10822 = vpop.permute.xlu0 %10821
    %10823 = vrot.lane.b32.xlu0 %v10788, 120
    %v10824 = vpop.permute.xlu0 %10823
    %10825 = vrot.lane.b32.xlu0 %v10789, 120
    %v10826 = vpop.permute.xlu0 %10825
    %10827 = vrot.lane.b32.xlu0 %v10790, 120
    %v10828 = vpop.permute.xlu0 %10827
    %10829 = vrot.lane.b32.xlu0 %v10791, 120
    %v10830 = vpop.permute.xlu0 %10829
    %10831 = vrot.lane.b32.xlu0 %v10792, 120
    %v10832 = vpop.permute.xlu0 %10831
    %10833 = vrot.lane.b32.xlu0 %v10793, 120
    %v10834 = vpop.permute.xlu0 %10833
    %10835 = vrot.lane.b32.xlu0 %v10794, 120
    %v10836 = vpop.permute.xlu0 %10835
    %10837 = vrot.lane.b32.xlu0 %v10795, 120
    %v10838 = vpop.permute.xlu0 %10837
    %10839 = vrot.lane.b32.xlu0 %v10796, 120
    %v10840 = vpop.permute.xlu0 %10839
    %10841 = vrot.lane.b32.xlu0 %v10797, 120
    %v10842 = vpop.permute.xlu0 %10841
    %10843 = vrot.lane.b32.xlu0 %v10798, 120
    %v10844 = vpop.permute.xlu0 %10843
    %10845 = vrot.lane.b32.xlu0 %v10799, 120
    %v10846 = vpop.permute.xlu0 %10845
    %10847 = vrot.lane.b32.xlu0 %v10800, 120
    %v10848 = vpop.permute.xlu0 %10847
    %v10865 = vadd.f32 %v10673, %v10818
    %v10866 = vadd.f32 %v10674, %v10820
    %v10867 = vadd.f32 %v10675, %v10822
    %v10868 = vadd.f32 %v10676, %v10824
    %v10869 = vadd.f32 %v10677, %v10826
    %v10870 = vadd.f32 %v10678, %v10828
    %v10871 = vadd.f32 %v10679, %v10830
    %v10872 = vadd.f32 %v10680, %v10832
    %v10873 = vadd.f32 %v10681, %v10834
    %v10874 = vadd.f32 %v10682, %v10836
    %v10875 = vadd.f32 %v10683, %v10838
    %v10876 = vadd.f32 %v10684, %v10840
    %v10877 = vadd.f32 %v10685, %v10842
    %v10878 = vadd.f32 %v10686, %v10844
    %v10879 = vadd.f32 %v10687, %v10846
    %v10880 = vadd.f32 %v10688, %v10848
    %v10881 = vmul.f32 %v6690, %v7536
    %v10882 = vmul.f32 %v6694, %v7537
    %v10883 = vmul.f32 %v6698, %v7538
    %v10884 = vmul.f32 %v6702, %v7539
    %v10885 = vmul.f32 %v6706, %v7540
    %v10886 = vmul.f32 %v6710, %v7541
    %v10887 = vmul.f32 %v6714, %v7542
    %v10888 = vmul.f32 %v6718, %v7543
    %v10889 = vmul.f32 %v6722, %v7544
    %v10890 = vmul.f32 %v6726, %v7545
    %v10891 = vmul.f32 %v6730, %v7546
    %v10892 = vmul.f32 %v6734, %v7547
    %v10893 = vmul.f32 %v6738, %v7548
    %v10894 = vmul.f32 %v6742, %v7549
    %v10895 = vmul.f32 %v6746, %v7550
    %v10896 = vmul.f32 %v6750, %v7551
    %10913 = vrot.lane.b32.xlu0 %v10881, 116
    %v10914 = vpop.permute.xlu0 %10913
    %10915 = vrot.lane.b32.xlu0 %v10882, 116
    %v10916 = vpop.permute.xlu0 %10915
    %10917 = vrot.lane.b32.xlu0 %v10883, 116
    %v10918 = vpop.permute.xlu0 %10917
    %10919 = vrot.lane.b32.xlu0 %v10884, 116
    %v10920 = vpop.permute.xlu0 %10919
    %10921 = vrot.lane.b32.xlu0 %v10885, 116
    %v10922 = vpop.permute.xlu0 %10921
    %10923 = vrot.lane.b32.xlu0 %v10886, 116
    %v10924 = vpop.permute.xlu0 %10923
    %10925 = vrot.lane.b32.xlu0 %v10887, 116
    %v10926 = vpop.permute.xlu0 %10925
    %10927 = vrot.lane.b32.xlu0 %v10888, 116
    %v10928 = vpop.permute.xlu0 %10927
    %10929 = vrot.lane.b32.xlu0 %v10889, 116
    %v10930 = vpop.permute.xlu0 %10929
    %10931 = vrot.lane.b32.xlu0 %v10890, 116
    %v10932 = vpop.permute.xlu0 %10931
    %10933 = vrot.lane.b32.xlu0 %v10891, 116
    %v10934 = vpop.permute.xlu0 %10933
    %10935 = vrot.lane.b32.xlu0 %v10892, 116
    %v10936 = vpop.permute.xlu0 %10935
    %10937 = vrot.lane.b32.xlu0 %v10893, 116
    %v10938 = vpop.permute.xlu0 %10937
    %10939 = vrot.lane.b32.xlu0 %v10894, 116
    %v10940 = vpop.permute.xlu0 %10939
    %10941 = vrot.lane.b32.xlu0 %v10895, 116
    %v10942 = vpop.permute.xlu0 %10941
    %10943 = vrot.lane.b32.xlu0 %v10896, 116
    %v10944 = vpop.permute.xlu0 %10943
    %v10961 = vadd.f32 %v10769, %v10914
    %v10962 = vadd.f32 %v10770, %v10916
    %v10963 = vadd.f32 %v10771, %v10918
    %v10964 = vadd.f32 %v10772, %v10920
    %v10965 = vadd.f32 %v10773, %v10922
    %v10966 = vadd.f32 %v10774, %v10924
    %v10967 = vadd.f32 %v10775, %v10926
    %v10968 = vadd.f32 %v10776, %v10928
    %v10969 = vadd.f32 %v10777, %v10930
    %v10970 = vadd.f32 %v10778, %v10932
    %v10971 = vadd.f32 %v10779, %v10934
    %v10972 = vadd.f32 %v10780, %v10936
    %v10973 = vadd.f32 %v10781, %v10938
    %v10974 = vadd.f32 %v10782, %v10940
    %v10975 = vadd.f32 %v10783, %v10942
    %v10976 = vadd.f32 %v10784, %v10944
    %v10977 = vmul.f32 %v7458, %v6768
    %v10978 = vmul.f32 %v7462, %v6769
    %v10979 = vmul.f32 %v7466, %v6770
    %v10980 = vmul.f32 %v7470, %v6771
    %v10981 = vmul.f32 %v7474, %v6772
    %v10982 = vmul.f32 %v7478, %v6773
    %v10983 = vmul.f32 %v7482, %v6774
    %v10984 = vmul.f32 %v7486, %v6775
    %v10985 = vmul.f32 %v7490, %v6776
    %v10986 = vmul.f32 %v7494, %v6777
    %v10987 = vmul.f32 %v7498, %v6778
    %v10988 = vmul.f32 %v7502, %v6779
    %v10989 = vmul.f32 %v7506, %v6780
    %v10990 = vmul.f32 %v7510, %v6781
    %v10991 = vmul.f32 %v7514, %v6782
    %v10992 = vmul.f32 %v7518, %v6783
    %11009 = vrot.lane.b32.xlu0 %v10977, 116
    %v11010 = vpop.permute.xlu0 %11009
    %11011 = vrot.lane.b32.xlu0 %v10978, 116
    %v11012 = vpop.permute.xlu0 %11011
    %11013 = vrot.lane.b32.xlu0 %v10979, 116
    %v11014 = vpop.permute.xlu0 %11013
    %11015 = vrot.lane.b32.xlu0 %v10980, 116
    %v11016 = vpop.permute.xlu0 %11015
    %11017 = vrot.lane.b32.xlu0 %v10981, 116
    %v11018 = vpop.permute.xlu0 %11017
    %11019 = vrot.lane.b32.xlu0 %v10982, 116
    %v11020 = vpop.permute.xlu0 %11019
    %11021 = vrot.lane.b32.xlu0 %v10983, 116
    %v11022 = vpop.permute.xlu0 %11021
    %11023 = vrot.lane.b32.xlu0 %v10984, 116
    %v11024 = vpop.permute.xlu0 %11023
    %11025 = vrot.lane.b32.xlu0 %v10985, 116
    %v11026 = vpop.permute.xlu0 %11025
    %11027 = vrot.lane.b32.xlu0 %v10986, 116
    %v11028 = vpop.permute.xlu0 %11027
    %11029 = vrot.lane.b32.xlu0 %v10987, 116
    %v11030 = vpop.permute.xlu0 %11029
    %11031 = vrot.lane.b32.xlu0 %v10988, 116
    %v11032 = vpop.permute.xlu0 %11031
    %11033 = vrot.lane.b32.xlu0 %v10989, 116
    %v11034 = vpop.permute.xlu0 %11033
    %11035 = vrot.lane.b32.xlu0 %v10990, 116
    %v11036 = vpop.permute.xlu0 %11035
    %11037 = vrot.lane.b32.xlu0 %v10991, 116
    %v11038 = vpop.permute.xlu0 %11037
    %11039 = vrot.lane.b32.xlu0 %v10992, 116
    %v11040 = vpop.permute.xlu0 %11039
    %v11057 = vadd.f32 %v10865, %v11010
    %v11058 = vadd.f32 %v10866, %v11012
    %v11059 = vadd.f32 %v10867, %v11014
    %v11060 = vadd.f32 %v10868, %v11016
    %v11061 = vadd.f32 %v10869, %v11018
    %v11062 = vadd.f32 %v10870, %v11020
    %v11063 = vadd.f32 %v10871, %v11022
    %v11064 = vadd.f32 %v10872, %v11024
    %v11065 = vadd.f32 %v10873, %v11026
    %v11066 = vadd.f32 %v10874, %v11028
    %v11067 = vadd.f32 %v10875, %v11030
    %v11068 = vadd.f32 %v10876, %v11032
    %v11069 = vadd.f32 %v10877, %v11034
    %v11070 = vadd.f32 %v10878, %v11036
    %v11071 = vadd.f32 %v10879, %v11038
    %v11072 = vadd.f32 %v10880, %v11040
    %v11073 = vmul.f32 %v10961, %v11057
    %v11074 = vmul.f32 %v10962, %v11058
    %v11075 = vmul.f32 %v10963, %v11059
    %v11076 = vmul.f32 %v10964, %v11060
    %v11077 = vmul.f32 %v10965, %v11061
    %v11078 = vmul.f32 %v10966, %v11062
    %v11079 = vmul.f32 %v10967, %v11063
    %v11080 = vmul.f32 %v10968, %v11064
    %v11081 = vmul.f32 %v10969, %v11065
    %v11082 = vmul.f32 %v10970, %v11066
    %v11083 = vmul.f32 %v10971, %v11067
    %v11084 = vmul.f32 %v10972, %v11068
    %v11085 = vmul.f32 %v10973, %v11069
    %v11086 = vmul.f32 %v10974, %v11070
    %v11087 = vmul.f32 %v10975, %v11071
    %v11088 = vmul.f32 %v10976, %v11072
    %v11089 = vsel %vm8208, %v11073, 0.0
    %11090 = vadd.xlane.f32.xlu0 %v11089
    %v11091 = vpop.xlane.xlu0 %11090
    %v11092 = vsel %vm8208, %v11074, 0.0
    %11093 = vadd.xlane.f32.xlu0 %v11092
    %v11094 = vpop.xlane.xlu0 %11093
    %v11095 = vsel %vm8208, %v11075, 0.0
    %11096 = vadd.xlane.f32.xlu0 %v11095
    %v11097 = vpop.xlane.xlu0 %11096
    %v11098 = vsel %vm8208, %v11076, 0.0
    %11099 = vadd.xlane.f32.xlu0 %v11098
    %v11100 = vpop.xlane.xlu0 %11099
    %v11101 = vsel %vm8208, %v11077, 0.0
    %11102 = vadd.xlane.f32.xlu0 %v11101
    %v11103 = vpop.xlane.xlu0 %11102
    %v11104 = vsel %vm8208, %v11078, 0.0
    %11105 = vadd.xlane.f32.xlu0 %v11104
    %v11106 = vpop.xlane.xlu0 %11105
    %v11107 = vsel %vm8208, %v11079, 0.0
    %11108 = vadd.xlane.f32.xlu0 %v11107
    %v11109 = vpop.xlane.xlu0 %11108
    %v11110 = vsel %vm8208, %v11080, 0.0
    %11111 = vadd.xlane.f32.xlu0 %v11110
    %v11112 = vpop.xlane.xlu0 %11111
    %v11113 = vsel %vm8208, %v11081, 0.0
    %11114 = vadd.xlane.f32.xlu0 %v11113
    %v11115 = vpop.xlane.xlu0 %11114
    %v11116 = vsel %vm8208, %v11082, 0.0
    %11117 = vadd.xlane.f32.xlu0 %v11116
    %v11118 = vpop.xlane.xlu0 %11117
    %v11119 = vsel %vm8208, %v11083, 0.0
    %11120 = vadd.xlane.f32.xlu0 %v11119
    %v11121 = vpop.xlane.xlu0 %11120
    %v11122 = vsel %vm8208, %v11084, 0.0
    %11123 = vadd.xlane.f32.xlu0 %v11122
    %v11124 = vpop.xlane.xlu0 %11123
    %v11125 = vsel %vm8208, %v11085, 0.0
    %11126 = vadd.xlane.f32.xlu0 %v11125
    %v11127 = vpop.xlane.xlu0 %11126
    %v11128 = vsel %vm8208, %v11086, 0.0
    %11129 = vadd.xlane.f32.xlu0 %v11128
    %v11130 = vpop.xlane.xlu0 %11129
    %v11131 = vsel %vm8208, %v11087, 0.0
    %11132 = vadd.xlane.f32.xlu0 %v11131
    %v11133 = vpop.xlane.xlu0 %11132
    %v11134 = vsel %vm8208, %v11088, 0.0
    %11135 = vadd.xlane.f32.xlu0 %v11134
    %v11136 = vpop.xlane.xlu0 %11135
    %v11137 = vadd.f32 %v10417, %v11091
    %v11138 = vadd.f32 %v10418, %v11094
    %v11139 = vadd.f32 %v10419, %v11097
    %v11140 = vadd.f32 %v10420, %v11100
    %v11141 = vadd.f32 %v10421, %v11103
    %v11142 = vadd.f32 %v10422, %v11106
    %v11143 = vadd.f32 %v10423, %v11109
    %v11144 = vadd.f32 %v10424, %v11112
    %v11145 = vadd.f32 %v10425, %v11115
    %v11146 = vadd.f32 %v10426, %v11118
    %v11147 = vadd.f32 %v10427, %v11121
    %v11148 = vadd.f32 %v10428, %v11124
    %v11149 = vadd.f32 %v10429, %v11127
    %v11150 = vadd.f32 %v10430, %v11130
    %v11151 = vadd.f32 %v10431, %v11133
    %v11152 = vadd.f32 %v10432, %v11136
    %v11153 = vmul.f32 %v6786, %v7536
    %v11154 = vmul.f32 %v6790, %v7537
    %v11155 = vmul.f32 %v6794, %v7538
    %v11156 = vmul.f32 %v6798, %v7539
    %v11157 = vmul.f32 %v6802, %v7540
    %v11158 = vmul.f32 %v6806, %v7541
    %v11159 = vmul.f32 %v6810, %v7542
    %v11160 = vmul.f32 %v6814, %v7543
    %v11161 = vmul.f32 %v6818, %v7544
    %v11162 = vmul.f32 %v6822, %v7545
    %v11163 = vmul.f32 %v6826, %v7546
    %v11164 = vmul.f32 %v6830, %v7547
    %v11165 = vmul.f32 %v6834, %v7548
    %v11166 = vmul.f32 %v6838, %v7549
    %v11167 = vmul.f32 %v6842, %v7550
    %v11168 = vmul.f32 %v6846, %v7551
    %v11169 = vadd.f32 %v11153, 0.0
    %v11170 = vadd.f32 %v11154, 0.0
    %v11171 = vadd.f32 %v11155, 0.0
    %v11172 = vadd.f32 %v11156, 0.0
    %v11173 = vadd.f32 %v11157, 0.0
    %v11174 = vadd.f32 %v11158, 0.0
    %v11175 = vadd.f32 %v11159, 0.0
    %v11176 = vadd.f32 %v11160, 0.0
    %v11177 = vadd.f32 %v11161, 0.0
    %v11178 = vadd.f32 %v11162, 0.0
    %v11179 = vadd.f32 %v11163, 0.0
    %v11180 = vadd.f32 %v11164, 0.0
    %v11181 = vadd.f32 %v11165, 0.0
    %v11182 = vadd.f32 %v11166, 0.0
    %v11183 = vadd.f32 %v11167, 0.0
    %v11184 = vadd.f32 %v11168, 0.0
    %v11185 = vmul.f32 %v7170, %v7152
    %v11186 = vmul.f32 %v7174, %v7153
    %v11187 = vmul.f32 %v7178, %v7154
    %v11188 = vmul.f32 %v7182, %v7155
    %v11189 = vmul.f32 %v7186, %v7156
    %v11190 = vmul.f32 %v7190, %v7157
    %v11191 = vmul.f32 %v7194, %v7158
    %v11192 = vmul.f32 %v7198, %v7159
    %v11193 = vmul.f32 %v7202, %v7160
    %v11194 = vmul.f32 %v7206, %v7161
    %v11195 = vmul.f32 %v7210, %v7162
    %v11196 = vmul.f32 %v7214, %v7163
    %v11197 = vmul.f32 %v7218, %v7164
    %v11198 = vmul.f32 %v7222, %v7165
    %v11199 = vmul.f32 %v7226, %v7166
    %v11200 = vmul.f32 %v7230, %v7167
    %v11201 = vadd.f32 %v11185, 0.0
    %v11202 = vadd.f32 %v11186, 0.0
    %v11203 = vadd.f32 %v11187, 0.0
    %v11204 = vadd.f32 %v11188, 0.0
    %v11205 = vadd.f32 %v11189, 0.0
    %v11206 = vadd.f32 %v11190, 0.0
    %v11207 = vadd.f32 %v11191, 0.0
    %v11208 = vadd.f32 %v11192, 0.0
    %v11209 = vadd.f32 %v11193, 0.0
    %v11210 = vadd.f32 %v11194, 0.0
    %v11211 = vadd.f32 %v11195, 0.0
    %v11212 = vadd.f32 %v11196, 0.0
    %v11213 = vadd.f32 %v11197, 0.0
    %v11214 = vadd.f32 %v11198, 0.0
    %v11215 = vadd.f32 %v11199, 0.0
    %v11216 = vadd.f32 %v11200, 0.0
    %v11217 = vmul.f32 %v6882, %v7536
    %v11218 = vmul.f32 %v6886, %v7537
    %v11219 = vmul.f32 %v6890, %v7538
    %v11220 = vmul.f32 %v6894, %v7539
    %v11221 = vmul.f32 %v6898, %v7540
    %v11222 = vmul.f32 %v6902, %v7541
    %v11223 = vmul.f32 %v6906, %v7542
    %v11224 = vmul.f32 %v6910, %v7543
    %v11225 = vmul.f32 %v6914, %v7544
    %v11226 = vmul.f32 %v6918, %v7545
    %v11227 = vmul.f32 %v6922, %v7546
    %v11228 = vmul.f32 %v6926, %v7547
    %v11229 = vmul.f32 %v6930, %v7548
    %v11230 = vmul.f32 %v6934, %v7549
    %v11231 = vmul.f32 %v6938, %v7550
    %v11232 = vmul.f32 %v6942, %v7551
    %11249 = vrot.lane.b32.xlu0 %v11217, 124
    %v11250 = vpop.permute.xlu0 %11249
    %11251 = vrot.lane.b32.xlu0 %v11218, 124
    %v11252 = vpop.permute.xlu0 %11251
    %11253 = vrot.lane.b32.xlu0 %v11219, 124
    %v11254 = vpop.permute.xlu0 %11253
    %11255 = vrot.lane.b32.xlu0 %v11220, 124
    %v11256 = vpop.permute.xlu0 %11255
    %11257 = vrot.lane.b32.xlu0 %v11221, 124
    %v11258 = vpop.permute.xlu0 %11257
    %11259 = vrot.lane.b32.xlu0 %v11222, 124
    %v11260 = vpop.permute.xlu0 %11259
    %11261 = vrot.lane.b32.xlu0 %v11223, 124
    %v11262 = vpop.permute.xlu0 %11261
    %11263 = vrot.lane.b32.xlu0 %v11224, 124
    %v11264 = vpop.permute.xlu0 %11263
    %11265 = vrot.lane.b32.xlu0 %v11225, 124
    %v11266 = vpop.permute.xlu0 %11265
    %11267 = vrot.lane.b32.xlu0 %v11226, 124
    %v11268 = vpop.permute.xlu0 %11267
    %11269 = vrot.lane.b32.xlu0 %v11227, 124
    %v11270 = vpop.permute.xlu0 %11269
    %11271 = vrot.lane.b32.xlu0 %v11228, 124
    %v11272 = vpop.permute.xlu0 %11271
    %11273 = vrot.lane.b32.xlu0 %v11229, 124
    %v11274 = vpop.permute.xlu0 %11273
    %11275 = vrot.lane.b32.xlu0 %v11230, 124
    %v11276 = vpop.permute.xlu0 %11275
    %11277 = vrot.lane.b32.xlu0 %v11231, 124
    %v11278 = vpop.permute.xlu0 %11277
    %11279 = vrot.lane.b32.xlu0 %v11232, 124
    %v11280 = vpop.permute.xlu0 %11279
    %v11297 = vadd.f32 %v11169, %v11250
    %v11298 = vadd.f32 %v11170, %v11252
    %v11299 = vadd.f32 %v11171, %v11254
    %v11300 = vadd.f32 %v11172, %v11256
    %v11301 = vadd.f32 %v11173, %v11258
    %v11302 = vadd.f32 %v11174, %v11260
    %v11303 = vadd.f32 %v11175, %v11262
    %v11304 = vadd.f32 %v11176, %v11264
    %v11305 = vadd.f32 %v11177, %v11266
    %v11306 = vadd.f32 %v11178, %v11268
    %v11307 = vadd.f32 %v11179, %v11270
    %v11308 = vadd.f32 %v11180, %v11272
    %v11309 = vadd.f32 %v11181, %v11274
    %v11310 = vadd.f32 %v11182, %v11276
    %v11311 = vadd.f32 %v11183, %v11278
    %v11312 = vadd.f32 %v11184, %v11280
    %v11313 = vmul.f32 %v7266, %v7152
    %v11314 = vmul.f32 %v7270, %v7153
    %v11315 = vmul.f32 %v7274, %v7154
    %v11316 = vmul.f32 %v7278, %v7155
    %v11317 = vmul.f32 %v7282, %v7156
    %v11318 = vmul.f32 %v7286, %v7157
    %v11319 = vmul.f32 %v7290, %v7158
    %v11320 = vmul.f32 %v7294, %v7159
    %v11321 = vmul.f32 %v7298, %v7160
    %v11322 = vmul.f32 %v7302, %v7161
    %v11323 = vmul.f32 %v7306, %v7162
    %v11324 = vmul.f32 %v7310, %v7163
    %v11325 = vmul.f32 %v7314, %v7164
    %v11326 = vmul.f32 %v7318, %v7165
    %v11327 = vmul.f32 %v7322, %v7166
    %v11328 = vmul.f32 %v7326, %v7167
    %11345 = vrot.lane.b32.xlu0 %v11313, 124
    %v11346 = vpop.permute.xlu0 %11345
    %11347 = vrot.lane.b32.xlu0 %v11314, 124
    %v11348 = vpop.permute.xlu0 %11347
    %11349 = vrot.lane.b32.xlu0 %v11315, 124
    %v11350 = vpop.permute.xlu0 %11349
    %11351 = vrot.lane.b32.xlu0 %v11316, 124
    %v11352 = vpop.permute.xlu0 %11351
    %11353 = vrot.lane.b32.xlu0 %v11317, 124
    %v11354 = vpop.permute.xlu0 %11353
    %11355 = vrot.lane.b32.xlu0 %v11318, 124
    %v11356 = vpop.permute.xlu0 %11355
    %11357 = vrot.lane.b32.xlu0 %v11319, 124
    %v11358 = vpop.permute.xlu0 %11357
    %11359 = vrot.lane.b32.xlu0 %v11320, 124
    %v11360 = vpop.permute.xlu0 %11359
    %11361 = vrot.lane.b32.xlu0 %v11321, 124
    %v11362 = vpop.permute.xlu0 %11361
    %11363 = vrot.lane.b32.xlu0 %v11322, 124
    %v11364 = vpop.permute.xlu0 %11363
    %11365 = vrot.lane.b32.xlu0 %v11323, 124
    %v11366 = vpop.permute.xlu0 %11365
    %11367 = vrot.lane.b32.xlu0 %v11324, 124
    %v11368 = vpop.permute.xlu0 %11367
    %11369 = vrot.lane.b32.xlu0 %v11325, 124
    %v11370 = vpop.permute.xlu0 %11369
    %11371 = vrot.lane.b32.xlu0 %v11326, 124
    %v11372 = vpop.permute.xlu0 %11371
    %11373 = vrot.lane.b32.xlu0 %v11327, 124
    %v11374 = vpop.permute.xlu0 %11373
    %11375 = vrot.lane.b32.xlu0 %v11328, 124
    %v11376 = vpop.permute.xlu0 %11375
    %v11393 = vadd.f32 %v11201, %v11346
    %v11394 = vadd.f32 %v11202, %v11348
    %v11395 = vadd.f32 %v11203, %v11350
    %v11396 = vadd.f32 %v11204, %v11352
    %v11397 = vadd.f32 %v11205, %v11354
    %v11398 = vadd.f32 %v11206, %v11356
    %v11399 = vadd.f32 %v11207, %v11358
    %v11400 = vadd.f32 %v11208, %v11360
    %v11401 = vadd.f32 %v11209, %v11362
    %v11402 = vadd.f32 %v11210, %v11364
    %v11403 = vadd.f32 %v11211, %v11366
    %v11404 = vadd.f32 %v11212, %v11368
    %v11405 = vadd.f32 %v11213, %v11370
    %v11406 = vadd.f32 %v11214, %v11372
    %v11407 = vadd.f32 %v11215, %v11374
    %v11408 = vadd.f32 %v11216, %v11376
    %v11409 = vmul.f32 %v6978, %v7536
    %v11410 = vmul.f32 %v6982, %v7537
    %v11411 = vmul.f32 %v6986, %v7538
    %v11412 = vmul.f32 %v6990, %v7539
    %v11413 = vmul.f32 %v6994, %v7540
    %v11414 = vmul.f32 %v6998, %v7541
    %v11415 = vmul.f32 %v7002, %v7542
    %v11416 = vmul.f32 %v7006, %v7543
    %v11417 = vmul.f32 %v7010, %v7544
    %v11418 = vmul.f32 %v7014, %v7545
    %v11419 = vmul.f32 %v7018, %v7546
    %v11420 = vmul.f32 %v7022, %v7547
    %v11421 = vmul.f32 %v7026, %v7548
    %v11422 = vmul.f32 %v7030, %v7549
    %v11423 = vmul.f32 %v7034, %v7550
    %v11424 = vmul.f32 %v7038, %v7551
    %11441 = vrot.lane.b32.xlu0 %v11409, 120
    %v11442 = vpop.permute.xlu0 %11441
    %11443 = vrot.lane.b32.xlu0 %v11410, 120
    %v11444 = vpop.permute.xlu0 %11443
    %11445 = vrot.lane.b32.xlu0 %v11411, 120
    %v11446 = vpop.permute.xlu0 %11445
    %11447 = vrot.lane.b32.xlu0 %v11412, 120
    %v11448 = vpop.permute.xlu0 %11447
    %11449 = vrot.lane.b32.xlu0 %v11413, 120
    %v11450 = vpop.permute.xlu0 %11449
    %11451 = vrot.lane.b32.xlu0 %v11414, 120
    %v11452 = vpop.permute.xlu0 %11451
    %11453 = vrot.lane.b32.xlu0 %v11415, 120
    %v11454 = vpop.permute.xlu0 %11453
    %11455 = vrot.lane.b32.xlu0 %v11416, 120
    %v11456 = vpop.permute.xlu0 %11455
    %11457 = vrot.lane.b32.xlu0 %v11417, 120
    %v11458 = vpop.permute.xlu0 %11457
    %11459 = vrot.lane.b32.xlu0 %v11418, 120
    %v11460 = vpop.permute.xlu0 %11459
    %11461 = vrot.lane.b32.xlu0 %v11419, 120
    %v11462 = vpop.permute.xlu0 %11461
    %11463 = vrot.lane.b32.xlu0 %v11420, 120
    %v11464 = vpop.permute.xlu0 %11463
    %11465 = vrot.lane.b32.xlu0 %v11421, 120
    %v11466 = vpop.permute.xlu0 %11465
    %11467 = vrot.lane.b32.xlu0 %v11422, 120
    %v11468 = vpop.permute.xlu0 %11467
    %11469 = vrot.lane.b32.xlu0 %v11423, 120
    %v11470 = vpop.permute.xlu0 %11469
    %11471 = vrot.lane.b32.xlu0 %v11424, 120
    %v11472 = vpop.permute.xlu0 %11471
    %v11489 = vadd.f32 %v11297, %v11442
    %v11490 = vadd.f32 %v11298, %v11444
    %v11491 = vadd.f32 %v11299, %v11446
    %v11492 = vadd.f32 %v11300, %v11448
    %v11493 = vadd.f32 %v11301, %v11450
    %v11494 = vadd.f32 %v11302, %v11452
    %v11495 = vadd.f32 %v11303, %v11454
    %v11496 = vadd.f32 %v11304, %v11456
    %v11497 = vadd.f32 %v11305, %v11458
    %v11498 = vadd.f32 %v11306, %v11460
    %v11499 = vadd.f32 %v11307, %v11462
    %v11500 = vadd.f32 %v11308, %v11464
    %v11501 = vadd.f32 %v11309, %v11466
    %v11502 = vadd.f32 %v11310, %v11468
    %v11503 = vadd.f32 %v11311, %v11470
    %v11504 = vadd.f32 %v11312, %v11472
    %v11505 = vmul.f32 %v7362, %v7152
    %v11506 = vmul.f32 %v7366, %v7153
    %v11507 = vmul.f32 %v7370, %v7154
    %v11508 = vmul.f32 %v7374, %v7155
    %v11509 = vmul.f32 %v7378, %v7156
    %v11510 = vmul.f32 %v7382, %v7157
    %v11511 = vmul.f32 %v7386, %v7158
    %v11512 = vmul.f32 %v7390, %v7159
    %v11513 = vmul.f32 %v7394, %v7160
    %v11514 = vmul.f32 %v7398, %v7161
    %v11515 = vmul.f32 %v7402, %v7162
    %v11516 = vmul.f32 %v7406, %v7163
    %v11517 = vmul.f32 %v7410, %v7164
    %v11518 = vmul.f32 %v7414, %v7165
    %v11519 = vmul.f32 %v7418, %v7166
    %v11520 = vmul.f32 %v7422, %v7167
    %11537 = vrot.lane.b32.xlu0 %v11505, 120
    %v11538 = vpop.permute.xlu0 %11537
    %11539 = vrot.lane.b32.xlu0 %v11506, 120
    %v11540 = vpop.permute.xlu0 %11539
    %11541 = vrot.lane.b32.xlu0 %v11507, 120
    %v11542 = vpop.permute.xlu0 %11541
    %11543 = vrot.lane.b32.xlu0 %v11508, 120
    %v11544 = vpop.permute.xlu0 %11543
    %11545 = vrot.lane.b32.xlu0 %v11509, 120
    %v11546 = vpop.permute.xlu0 %11545
    %11547 = vrot.lane.b32.xlu0 %v11510, 120
    %v11548 = vpop.permute.xlu0 %11547
    %11549 = vrot.lane.b32.xlu0 %v11511, 120
    %v11550 = vpop.permute.xlu0 %11549
    %11551 = vrot.lane.b32.xlu0 %v11512, 120
    %v11552 = vpop.permute.xlu0 %11551
    %11553 = vrot.lane.b32.xlu0 %v11513, 120
    %v11554 = vpop.permute.xlu0 %11553
    %11555 = vrot.lane.b32.xlu0 %v11514, 120
    %v11556 = vpop.permute.xlu0 %11555
    %11557 = vrot.lane.b32.xlu0 %v11515, 120
    %v11558 = vpop.permute.xlu0 %11557
    %11559 = vrot.lane.b32.xlu0 %v11516, 120
    %v11560 = vpop.permute.xlu0 %11559
    %11561 = vrot.lane.b32.xlu0 %v11517, 120
    %v11562 = vpop.permute.xlu0 %11561
    %11563 = vrot.lane.b32.xlu0 %v11518, 120
    %v11564 = vpop.permute.xlu0 %11563
    %11565 = vrot.lane.b32.xlu0 %v11519, 120
    %v11566 = vpop.permute.xlu0 %11565
    %11567 = vrot.lane.b32.xlu0 %v11520, 120
    %v11568 = vpop.permute.xlu0 %11567
    %v11585 = vadd.f32 %v11393, %v11538
    %v11586 = vadd.f32 %v11394, %v11540
    %v11587 = vadd.f32 %v11395, %v11542
    %v11588 = vadd.f32 %v11396, %v11544
    %v11589 = vadd.f32 %v11397, %v11546
    %v11590 = vadd.f32 %v11398, %v11548
    %v11591 = vadd.f32 %v11399, %v11550
    %v11592 = vadd.f32 %v11400, %v11552
    %v11593 = vadd.f32 %v11401, %v11554
    %v11594 = vadd.f32 %v11402, %v11556
    %v11595 = vadd.f32 %v11403, %v11558
    %v11596 = vadd.f32 %v11404, %v11560
    %v11597 = vadd.f32 %v11405, %v11562
    %v11598 = vadd.f32 %v11406, %v11564
    %v11599 = vadd.f32 %v11407, %v11566
    %v11600 = vadd.f32 %v11408, %v11568
    %v11601 = vmul.f32 %v7074, %v7536
    %v11602 = vmul.f32 %v7078, %v7537
    %v11603 = vmul.f32 %v7082, %v7538
    %v11604 = vmul.f32 %v7086, %v7539
    %v11605 = vmul.f32 %v7090, %v7540
    %v11606 = vmul.f32 %v7094, %v7541
    %v11607 = vmul.f32 %v7098, %v7542
    %v11608 = vmul.f32 %v7102, %v7543
    %v11609 = vmul.f32 %v7106, %v7544
    %v11610 = vmul.f32 %v7110, %v7545
    %v11611 = vmul.f32 %v7114, %v7546
    %v11612 = vmul.f32 %v7118, %v7547
    %v11613 = vmul.f32 %v7122, %v7548
    %v11614 = vmul.f32 %v7126, %v7549
    %v11615 = vmul.f32 %v7130, %v7550
    %v11616 = vmul.f32 %v7134, %v7551
    %11633 = vrot.lane.b32.xlu0 %v11601, 116
    %v11634 = vpop.permute.xlu0 %11633
    %11635 = vrot.lane.b32.xlu0 %v11602, 116
    %v11636 = vpop.permute.xlu0 %11635
    %11637 = vrot.lane.b32.xlu0 %v11603, 116
    %v11638 = vpop.permute.xlu0 %11637
    %11639 = vrot.lane.b32.xlu0 %v11604, 116
    %v11640 = vpop.permute.xlu0 %11639
    %11641 = vrot.lane.b32.xlu0 %v11605, 116
    %v11642 = vpop.permute.xlu0 %11641
    %11643 = vrot.lane.b32.xlu0 %v11606, 116
    %v11644 = vpop.permute.xlu0 %11643
    %11645 = vrot.lane.b32.xlu0 %v11607, 116
    %v11646 = vpop.permute.xlu0 %11645
    %11647 = vrot.lane.b32.xlu0 %v11608, 116
    %v11648 = vpop.permute.xlu0 %11647
    %11649 = vrot.lane.b32.xlu0 %v11609, 116
    %v11650 = vpop.permute.xlu0 %11649
    %11651 = vrot.lane.b32.xlu0 %v11610, 116
    %v11652 = vpop.permute.xlu0 %11651
    %11653 = vrot.lane.b32.xlu0 %v11611, 116
    %v11654 = vpop.permute.xlu0 %11653
    %11655 = vrot.lane.b32.xlu0 %v11612, 116
    %v11656 = vpop.permute.xlu0 %11655
    %11657 = vrot.lane.b32.xlu0 %v11613, 116
    %v11658 = vpop.permute.xlu0 %11657
    %11659 = vrot.lane.b32.xlu0 %v11614, 116
    %v11660 = vpop.permute.xlu0 %11659
    %11661 = vrot.lane.b32.xlu0 %v11615, 116
    %v11662 = vpop.permute.xlu0 %11661
    %11663 = vrot.lane.b32.xlu0 %v11616, 116
    %v11664 = vpop.permute.xlu0 %11663
    %v11681 = vadd.f32 %v11489, %v11634
    %v11682 = vadd.f32 %v11490, %v11636
    %v11683 = vadd.f32 %v11491, %v11638
    %v11684 = vadd.f32 %v11492, %v11640
    %v11685 = vadd.f32 %v11493, %v11642
    %v11686 = vadd.f32 %v11494, %v11644
    %v11687 = vadd.f32 %v11495, %v11646
    %v11688 = vadd.f32 %v11496, %v11648
    %v11689 = vadd.f32 %v11497, %v11650
    %v11690 = vadd.f32 %v11498, %v11652
    %v11691 = vadd.f32 %v11499, %v11654
    %v11692 = vadd.f32 %v11500, %v11656
    %v11693 = vadd.f32 %v11501, %v11658
    %v11694 = vadd.f32 %v11502, %v11660
    %v11695 = vadd.f32 %v11503, %v11662
    %v11696 = vadd.f32 %v11504, %v11664
    %v11697 = vmul.f32 %v7458, %v7152
    %v11698 = vmul.f32 %v7462, %v7153
    %v11699 = vmul.f32 %v7466, %v7154
    %v11700 = vmul.f32 %v7470, %v7155
    %v11701 = vmul.f32 %v7474, %v7156
    %v11702 = vmul.f32 %v7478, %v7157
    %v11703 = vmul.f32 %v7482, %v7158
    %v11704 = vmul.f32 %v7486, %v7159
    %v11705 = vmul.f32 %v7490, %v7160
    %v11706 = vmul.f32 %v7494, %v7161
    %v11707 = vmul.f32 %v7498, %v7162
    %v11708 = vmul.f32 %v7502, %v7163
    %v11709 = vmul.f32 %v7506, %v7164
    %v11710 = vmul.f32 %v7510, %v7165
    %v11711 = vmul.f32 %v7514, %v7166
    %v11712 = vmul.f32 %v7518, %v7167
    %11729 = vrot.lane.b32.xlu0 %v11697, 116
    %v11730 = vpop.permute.xlu0 %11729
    %11731 = vrot.lane.b32.xlu0 %v11698, 116
    %v11732 = vpop.permute.xlu0 %11731
    %11733 = vrot.lane.b32.xlu0 %v11699, 116
    %v11734 = vpop.permute.xlu0 %11733
    %11735 = vrot.lane.b32.xlu0 %v11700, 116
    %v11736 = vpop.permute.xlu0 %11735
    %11737 = vrot.lane.b32.xlu0 %v11701, 116
    %v11738 = vpop.permute.xlu0 %11737
    %11739 = vrot.lane.b32.xlu0 %v11702, 116
    %v11740 = vpop.permute.xlu0 %11739
    %11741 = vrot.lane.b32.xlu0 %v11703, 116
    %v11742 = vpop.permute.xlu0 %11741
    %11743 = vrot.lane.b32.xlu0 %v11704, 116
    %v11744 = vpop.permute.xlu0 %11743
    %11745 = vrot.lane.b32.xlu0 %v11705, 116
    %v11746 = vpop.permute.xlu0 %11745
    %11747 = vrot.lane.b32.xlu0 %v11706, 116
    %v11748 = vpop.permute.xlu0 %11747
    %11749 = vrot.lane.b32.xlu0 %v11707, 116
    %v11750 = vpop.permute.xlu0 %11749
    %11751 = vrot.lane.b32.xlu0 %v11708, 116
    %v11752 = vpop.permute.xlu0 %11751
    %11753 = vrot.lane.b32.xlu0 %v11709, 116
    %v11754 = vpop.permute.xlu0 %11753
    %11755 = vrot.lane.b32.xlu0 %v11710, 116
    %v11756 = vpop.permute.xlu0 %11755
    %11757 = vrot.lane.b32.xlu0 %v11711, 116
    %v11758 = vpop.permute.xlu0 %11757
    %11759 = vrot.lane.b32.xlu0 %v11712, 116
    %v11760 = vpop.permute.xlu0 %11759
    %v11777 = vadd.f32 %v11585, %v11730
    %v11778 = vadd.f32 %v11586, %v11732
    %v11779 = vadd.f32 %v11587, %v11734
    %v11780 = vadd.f32 %v11588, %v11736
    %v11781 = vadd.f32 %v11589, %v11738
    %v11782 = vadd.f32 %v11590, %v11740
    %v11783 = vadd.f32 %v11591, %v11742
    %v11784 = vadd.f32 %v11592, %v11744
    %v11785 = vadd.f32 %v11593, %v11746
    %v11786 = vadd.f32 %v11594, %v11748
    %v11787 = vadd.f32 %v11595, %v11750
    %v11788 = vadd.f32 %v11596, %v11752
    %v11789 = vadd.f32 %v11597, %v11754
    %v11790 = vadd.f32 %v11598, %v11756
    %v11791 = vadd.f32 %v11599, %v11758
    %v11792 = vadd.f32 %v11600, %v11760
    %v11793 = vmul.f32 %v11681, %v11777
    %v11794 = vmul.f32 %v11682, %v11778
    %v11795 = vmul.f32 %v11683, %v11779
    %v11796 = vmul.f32 %v11684, %v11780
    %v11797 = vmul.f32 %v11685, %v11781
    %v11798 = vmul.f32 %v11686, %v11782
    %v11799 = vmul.f32 %v11687, %v11783
    %v11800 = vmul.f32 %v11688, %v11784
    %v11801 = vmul.f32 %v11689, %v11785
    %v11802 = vmul.f32 %v11690, %v11786
    %v11803 = vmul.f32 %v11691, %v11787
    %v11804 = vmul.f32 %v11692, %v11788
    %v11805 = vmul.f32 %v11693, %v11789
    %v11806 = vmul.f32 %v11694, %v11790
    %v11807 = vmul.f32 %v11695, %v11791
    %v11808 = vmul.f32 %v11696, %v11792
    %v11809 = vsel %vm8208, %v11793, 0.0
    %11810 = vadd.xlane.f32.xlu0 %v11809
    %v11811 = vpop.xlane.xlu0 %11810
    %v11812 = vsel %vm8208, %v11794, 0.0
    %11813 = vadd.xlane.f32.xlu0 %v11812
    %v11814 = vpop.xlane.xlu0 %11813
    %v11815 = vsel %vm8208, %v11795, 0.0
    %11816 = vadd.xlane.f32.xlu0 %v11815
    %v11817 = vpop.xlane.xlu0 %11816
    %v11818 = vsel %vm8208, %v11796, 0.0
    %11819 = vadd.xlane.f32.xlu0 %v11818
    %v11820 = vpop.xlane.xlu0 %11819
    %v11821 = vsel %vm8208, %v11797, 0.0
    %11822 = vadd.xlane.f32.xlu0 %v11821
    %v11823 = vpop.xlane.xlu0 %11822
    %v11824 = vsel %vm8208, %v11798, 0.0
    %11825 = vadd.xlane.f32.xlu0 %v11824
    %v11826 = vpop.xlane.xlu0 %11825
    %v11827 = vsel %vm8208, %v11799, 0.0
    %11828 = vadd.xlane.f32.xlu0 %v11827
    %v11829 = vpop.xlane.xlu0 %11828
    %v11830 = vsel %vm8208, %v11800, 0.0
    %11831 = vadd.xlane.f32.xlu0 %v11830
    %v11832 = vpop.xlane.xlu0 %11831
    %v11833 = vsel %vm8208, %v11801, 0.0
    %11834 = vadd.xlane.f32.xlu0 %v11833
    %v11835 = vpop.xlane.xlu0 %11834
    %v11836 = vsel %vm8208, %v11802, 0.0
    %11837 = vadd.xlane.f32.xlu0 %v11836
    %v11838 = vpop.xlane.xlu0 %11837
    %v11839 = vsel %vm8208, %v11803, 0.0
    %11840 = vadd.xlane.f32.xlu0 %v11839
    %v11841 = vpop.xlane.xlu0 %11840
    %v11842 = vsel %vm8208, %v11804, 0.0
    %11843 = vadd.xlane.f32.xlu0 %v11842
    %v11844 = vpop.xlane.xlu0 %11843
    %v11845 = vsel %vm8208, %v11805, 0.0
    %11846 = vadd.xlane.f32.xlu0 %v11845
    %v11847 = vpop.xlane.xlu0 %11846
    %v11848 = vsel %vm8208, %v11806, 0.0
    %11849 = vadd.xlane.f32.xlu0 %v11848
    %v11850 = vpop.xlane.xlu0 %11849
    %v11851 = vsel %vm8208, %v11807, 0.0
    %11852 = vadd.xlane.f32.xlu0 %v11851
    %v11853 = vpop.xlane.xlu0 %11852
    %v11854 = vsel %vm8208, %v11808, 0.0
    %11855 = vadd.xlane.f32.xlu0 %v11854
    %v11856 = vpop.xlane.xlu0 %11855
    %v11857 = vadd.f32 %v11137, %v11811
    %v11858 = vadd.f32 %v11138, %v11814
    %v11859 = vadd.f32 %v11139, %v11817
    %v11860 = vadd.f32 %v11140, %v11820
    %v11861 = vadd.f32 %v11141, %v11823
    %v11862 = vadd.f32 %v11142, %v11826
    %v11863 = vadd.f32 %v11143, %v11829
    %v11864 = vadd.f32 %v11144, %v11832
    %v11865 = vadd.f32 %v11145, %v11835
    %v11866 = vadd.f32 %v11146, %v11838
    %v11867 = vadd.f32 %v11147, %v11841
    %v11868 = vadd.f32 %v11148, %v11844
    %v11869 = vadd.f32 %v11149, %v11847
    %v11870 = vadd.f32 %v11150, %v11850
    %v11871 = vadd.f32 %v11151, %v11853
    %v11872 = vadd.f32 %v11152, %v11856
    %v11873 = vadd.f32 %v11857, %v5744
    %v11874 = vadd.f32 %v11858, %v5745
    %v11875 = vadd.f32 %v11859, %v5746
    %v11876 = vadd.f32 %v11860, %v5747
    %v11877 = vadd.f32 %v11861, %v5748
    %v11878 = vadd.f32 %v11862, %v5749
    %v11879 = vadd.f32 %v11863, %v5750
    %v11880 = vadd.f32 %v11864, %v5751
    %v11881 = vadd.f32 %v11865, %v5752
    %v11882 = vadd.f32 %v11866, %v5753
    %v11883 = vadd.f32 %v11867, %v5754
    %v11884 = vadd.f32 %v11868, %v5755
    %v11885 = vadd.f32 %v11869, %v5756
    %v11886 = vadd.f32 %v11870, %v5757
    %v11887 = vadd.f32 %v11871, %v5758
    %v11888 = vadd.f32 %v11872, %v5759
    %v11889 = vadd.f32 %v11873, 0.0
    %v11890 = vadd.f32 %v11874, 0.0
    %v11891 = vadd.f32 %v11875, 0.0
    %v11892 = vadd.f32 %v11876, 0.0
    %v11893 = vadd.f32 %v11877, 0.0
    %v11894 = vadd.f32 %v11878, 0.0
    %v11895 = vadd.f32 %v11879, 0.0
    %v11896 = vadd.f32 %v11880, 0.0
    %v11897 = vadd.f32 %v11881, 0.0
    %v11898 = vadd.f32 %v11882, 0.0
    %v11899 = vadd.f32 %v11883, 0.0
    %v11900 = vadd.f32 %v11884, 0.0
    %v11901 = vadd.f32 %v11885, 0.0
    %v11902 = vadd.f32 %v11886, 0.0
    %v11903 = vadd.f32 %v11887, 0.0
    %v11904 = vadd.f32 %v11888, 0.0
    %11921 = vset.pattern.permute.xlu0 16
    %11922 = vperm.xlu0 %11921, %v11889
    %v11923 = vpop.permute.xlu0 %11922
    %11924 = vset.pattern.permute.xlu0 16
    %11925 = vperm.xlu0 %11924, %v11890
    %v11926 = vpop.permute.xlu0 %11925
    %11927 = vset.pattern.permute.xlu0 16
    %11928 = vperm.xlu0 %11927, %v11891
    %v11929 = vpop.permute.xlu0 %11928
    %11930 = vset.pattern.permute.xlu0 16
    %11931 = vperm.xlu0 %11930, %v11892
    %v11932 = vpop.permute.xlu0 %11931
    %11933 = vset.pattern.permute.xlu0 16
    %11934 = vperm.xlu0 %11933, %v11893
    %v11935 = vpop.permute.xlu0 %11934
    %11936 = vset.pattern.permute.xlu0 16
    %11937 = vperm.xlu0 %11936, %v11894
    %v11938 = vpop.permute.xlu0 %11937
    %11939 = vset.pattern.permute.xlu0 16
    %11940 = vperm.xlu0 %11939, %v11895
    %v11941 = vpop.permute.xlu0 %11940
    %11942 = vset.pattern.permute.xlu0 16
    %11943 = vperm.xlu0 %11942, %v11896
    %v11944 = vpop.permute.xlu0 %11943
    %11945 = vset.pattern.permute.xlu0 16
    %11946 = vperm.xlu0 %11945, %v11897
    %v11947 = vpop.permute.xlu0 %11946
    %11948 = vset.pattern.permute.xlu0 16
    %11949 = vperm.xlu0 %11948, %v11898
    %v11950 = vpop.permute.xlu0 %11949
    %11951 = vset.pattern.permute.xlu0 16
    %11952 = vperm.xlu0 %11951, %v11899
    %v11953 = vpop.permute.xlu0 %11952
    %11954 = vset.pattern.permute.xlu0 16
    %11955 = vperm.xlu0 %11954, %v11900
    %v11956 = vpop.permute.xlu0 %11955
    %11957 = vset.pattern.permute.xlu0 16
    %11958 = vperm.xlu0 %11957, %v11901
    %v11959 = vpop.permute.xlu0 %11958
    %11960 = vset.pattern.permute.xlu0 16
    %11961 = vperm.xlu0 %11960, %v11902
    %v11962 = vpop.permute.xlu0 %11961
    %11963 = vset.pattern.permute.xlu0 16
    %11964 = vperm.xlu0 %11963, %v11903
    %v11965 = vpop.permute.xlu0 %11964
    %11966 = vset.pattern.permute.xlu0 16
    %11967 = vperm.xlu0 %11966, %v11904
    %v11968 = vpop.permute.xlu0 %11967
    %v11969 = vlaneseq
    %v11970 = vshrl.u32 %v11969, 7
    %v11971 = vsub.s32 %v105, %v11970
    %v11972 = vrot.slane %v11923, %v11971
    %v11973 = vadd.s32 %v105, 4294967288
    %v11974 = vlaneseq
    %v11975 = vshrl.u32 %v11974, 7
    %v11976 = vsub.s32 %v11973, %v11975
    %v11977 = vrot.slane %v11926, %v11976
    %vm11978 = vcmask 130112
    %v11979 = vsel %vm11978, %v11977, %v11972
    %v11980 = vadd.s32 %v105, 4294967280
    %v11981 = vlaneseq
    %v11982 = vshrl.u32 %v11981, 7
    %v11983 = vsub.s32 %v11980, %v11982
    %v11984 = vrot.slane %v11929, %v11983
    %vm11985 = vcmask 195712
    %v11986 = vsel %vm11985, %v11984, %v11979
    %v11987 = vadd.s32 %v105, 4294967272
    %v11988 = vlaneseq
    %v11989 = vshrl.u32 %v11988, 7
    %v11990 = vsub.s32 %v11987, %v11989
    %v11991 = vrot.slane %v11932, %v11990
    %vm11992 = vcmask 261312
    %v11993 = vsel %vm11992, %v11991, %v11986
    %v11994 = vadd.s32 %v105, 4294967264
    %v11995 = vlaneseq
    %v11996 = vshrl.u32 %v11995, 7
    %v11997 = vsub.s32 %v11994, %v11996
    %v11998 = vrot.slane %v11935, %v11997
    %vm11999 = vcmask 326912
    %v12000 = vsel %vm11999, %v11998, %v11993
    %v12001 = vadd.s32 %v105, 4294967256
    %v12002 = vlaneseq
    %v12003 = vshrl.u32 %v12002, 7
    %v12004 = vsub.s32 %v12001, %v12003
    %v12005 = vrot.slane %v11938, %v12004
    %vm12006 = vcmask 392512
    %v12007 = vsel %vm12006, %v12005, %v12000
    %v12008 = vadd.s32 %v105, 4294967248
    %v12009 = vlaneseq
    %v12010 = vshrl.u32 %v12009, 7
    %v12011 = vsub.s32 %v12008, %v12010
    %v12012 = vrot.slane %v11941, %v12011
    %vm12013 = vcmask 458112
    %v12014 = vsel %vm12013, %v12012, %v12007
    %v12015 = vadd.s32 %v105, 4294967240
    %v12016 = vlaneseq
    %v12017 = vshrl.u32 %v12016, 7
    %v12018 = vsub.s32 %v12015, %v12017
    %v12019 = vrot.slane %v11944, %v12018
    %vm12020 = vcmask 523712
    %v12021 = vsel %vm12020, %v12019, %v12014
    %v12022 = vadd.s32 %v105, 4294967232
    %v12023 = vlaneseq
    %v12024 = vshrl.u32 %v12023, 7
    %v12025 = vsub.s32 %v12022, %v12024
    %v12026 = vrot.slane %v11947, %v12025
    %vm12027 = vcmask 589312
    %v12028 = vsel %vm12027, %v12026, %v12021
    %v12029 = vadd.s32 %v105, 4294967224
    %v12030 = vlaneseq
    %v12031 = vshrl.u32 %v12030, 7
    %v12032 = vsub.s32 %v12029, %v12031
    %v12033 = vrot.slane %v11950, %v12032
    %vm12034 = vcmask 654912
    %v12035 = vsel %vm12034, %v12033, %v12028
    %v12036 = vadd.s32 %v105, 4294967216
    %v12037 = vlaneseq
    %v12038 = vshrl.u32 %v12037, 7
    %v12039 = vsub.s32 %v12036, %v12038
    %v12040 = vrot.slane %v11953, %v12039
    %vm12041 = vcmask 720512
    %v12042 = vsel %vm12041, %v12040, %v12035
    %v12043 = vadd.s32 %v105, 4294967208
    %v12044 = vlaneseq
    %v12045 = vshrl.u32 %v12044, 7
    %v12046 = vsub.s32 %v12043, %v12045
    %v12047 = vrot.slane %v11956, %v12046
    %vm12048 = vcmask 786112
    %v12049 = vsel %vm12048, %v12047, %v12042
    %v12050 = vadd.s32 %v105, 4294967200
    %v12051 = vlaneseq
    %v12052 = vshrl.u32 %v12051, 7
    %v12053 = vsub.s32 %v12050, %v12052
    %v12054 = vrot.slane %v11959, %v12053
    %vm12055 = vcmask 851712
    %v12056 = vsel %vm12055, %v12054, %v12049
    %v12057 = vadd.s32 %v105, 4294967192
    %v12058 = vlaneseq
    %v12059 = vshrl.u32 %v12058, 7
    %v12060 = vsub.s32 %v12057, %v12059
    %v12061 = vrot.slane %v11962, %v12060
    %vm12062 = vcmask 917312
    %v12063 = vsel %vm12062, %v12061, %v12056
    %v12064 = vadd.s32 %v105, 4294967184
    %v12065 = vlaneseq
    %v12066 = vshrl.u32 %v12065, 7
    %v12067 = vsub.s32 %v12064, %v12066
    %v12068 = vrot.slane %v11965, %v12067
    %vm12069 = vcmask 982912
    %v12070 = vsel %vm12069, %v12068, %v12063
    %v12071 = vadd.s32 %v105, 4294967176
    %v12072 = vlaneseq
    %v12073 = vshrl.u32 %v12072, 7
    %v12074 = vsub.s32 %v12071, %v12073
    %v12075 = vrot.slane %v11968, %v12074
    %vm12076 = vcmask 1048512
    %v12077 = vsel %vm12076, %v12075, %v12070
    %12079 = vst [vmem:[#allocation2] sm:$0x1] %v12077
    // Predicated region
    $region26: #{tpu_custom_call.1} parent=1 // pred_check
      _
    $region27: #{tpu_custom_call.1} parent=1 // pred_check_branch
      %12081 = sbr.rel (0) target = $region29
    $region28: #{tpu_custom_call.1} parent=1 // pred_region
      %s12083 = ssub.s32 16, 16
      %12084 = vsyncadd [#allocation3], %s12083
      %s12086 = sshll.u32 [#allocation2], 4
      %s12087 = int_to_ptr.vmem [resolvable:$true] %s12086
      %12089 = dma.vmem_to_hbm [thread:$0]  %s12087, 16, %s6, [#allocation3]
    $region29: #{tpu_custom_call.1} parent=1 // pred_fallthru
      _
    // Predicated region
    $region30: #{tpu_custom_call.1} parent=1 // pred_check
      _
    $region31: #{tpu_custom_call.1} parent=1 // pred_check_branch
      %12091 = sbr.rel (0) target = $region33
    $region32: #{tpu_custom_call.1} parent=1 // pred_region
      %12092 = dma.done [#allocation3], 16
    $region33: #{tpu_custom_call.1} parent=1 // pred_fallthru
      _
    %12093 = vsyncpa [#allocation3], 1

</llo_original>
